<compile_context>
chip_gen: v5e
topology: v5e:2x2
jax: 0.10.0
libtpu: 0.0.40
codegen_flags: <defaults>
</compile_context>

<pallas_src>
import jax
import jax.numpy as jnp
from jax import lax
from jax.experimental import pallas as pl
from jax.experimental.pallas import tpu as pltpu


# ----------------------------------------------------------------------------
# small helpers
# ----------------------------------------------------------------------------
def _round_up(x, m):
    return ((x + m - 1) // m) * m


def _point_tile(n):
    """Row tile over the points axis: 512 for big N, else N rounded up to 8."""
    if n >= 512:
        return 512
    return max(8, _round_up(n, 8))


def _row_chunks(tn, cr):
    """Static (offset, size) sub-chunks of a tn-row tile (all multiples of 8)."""
    chunks, off = [], 0
    while off < tn:
        sz = min(cr, tn - off)
        chunks.append((off, sz))
        off += sz
    return chunks


def _small_k_matmul(x, w):
    """(M, K) @ (K, C) with tiny K (<=4) as VPU broadcast FMAs (MXU would be starved)."""
    k = x.shape[1]
    xf = x.astype(jnp.float32)
    wf = w.astype(jnp.float32)
    acc = xf[:, 0:1] * wf[0:1, :]
    for i in range(1, k):
        acc = acc + xf[:, i:i + 1] * wf[i:i + 1, :]
    return acc


# ----------------------------------------------------------------------------
# Generic fused "per-point MLP chain + masked global max-pool" kernel.
# Grid: (B, n_halves, tiles_per_half); the pooled output block is resident across the
# (arbitrary) inner axis and accumulated with a running max; the half axis is parallel
# so both v7x TensorCores get work at small batch.  The per-point chain runs over
# 128-row sub-chunks so the (rows, 1024) pre-pool value never grows past ~512 KiB.
# Optionally the first layer's activation is streamed out (used to fuse base conv1
# into the stn64 extractor).
# ----------------------------------------------------------------------------
def _make_pool_kernel(descs, emit_first, tn, cr, ntph, n_valid, has_pad):
    """descs: tuple of (per_batch, has_bias, relu, small_k) per layer."""
    n_wb = sum(1 + int(hb) for (_, hb, _, _) in descs)

    def kernel(*refs):
        x_ref = refs[0]
        wb_refs = refs[1:1 + n_wb]
        if emit_first:
            h_out_ref = refs[1 + n_wb]
            pool_ref = refs[2 + n_wb]
        else:
            pool_ref = refs[1 + n_wb]

        half = pl.program_id(1)
        inner = pl.program_id(2)
        tile_row0 = (half * ntph + inner) * tn

        # Hoist the (small) weight / bias loads out of the row-chunk loop.
        ws, bs = [], []
        wi = 0
        for (per_batch, has_bias, _, _) in descs:
            w_ref = wb_refs[wi]
            wi += 1
            ws.append(w_ref[0] if per_batch else w_ref[...])
            if has_bias:
                bs.append(wb_refs[wi][...])
                wi += 1
            else:
                bs.append(None)

        def run_chunk(off, sz):
            v = x_ref[0, pl.ds(off, sz), :]
            for li, (_, _, relu, small_k) in enumerate(descs):
                if small_k:
                    y = _small_k_matmul(v, ws[li])
                else:
                    y = jnp.dot(v.astype(jnp.bfloat16), ws[li],
                                preferred_element_type=jnp.float32)
                if bs[li] is not None:
                    y = y + bs[li]
                if relu:
                    y = jnp.maximum(y, 0.0)
                if li == 0 and emit_first:
                    h_out_ref[0, pl.ds(off, sz), :] = y.astype(h_out_ref.dtype)
                v = y
            return v                                       # (sz, C_last) f32

        tile_max = None
        for off, sz in _row_chunks(tn, cr):
            g = run_chunk(off, sz)
            if has_pad:
                # Narrow (sz, 1) row-index column; the -inf select broadcasts across
                # lanes and costs <1% of the chunk's matmul work, so it is not gated
                # on the last tile (a value-producing branch would duplicate code).
                rows = tile_row0 + off + lax.broadcasted_iota(jnp.int32, (sz, 1), 0)
                g = jnp.where(rows < n_valid, g, -jnp.inf)
            m = jnp.max(g, axis=0, keepdims=True)          # (1, C_last)
            tile_max = m if tile_max is None else jnp.maximum(tile_max, m)

        @pl.when(inner == 0)
        def _():
            pool_ref[0, 0] = tile_max

        @pl.when(inner > 0)
        def _():
            pool_ref[0, 0] = jnp.maximum(pool_ref[0, 0], tile_max)

    return kernel


def pool_extract(x, layers, *, emit_first_dtype, tn, cr, n_halves, ntph,
                 n_valid, has_pad):
    """x: (B, Np, K) channels-last; layers: list of dicts {w, b, relu, per_batch,
    small_k}.  Returns pooled (B, C_last) f32, preceded by the emitted first-layer
    activation (B, Np, C0) if emit_first_dtype is not None."""
    B, Np, K = x.shape
    c_last = layers[-1]["w"].shape[-1]

    descs = tuple((bool(l["per_batch"]), l["b"] is not None, bool(l["relu"]),
                   bool(l["small_k"])) for l in layers)

    in_specs = [pl.BlockSpec((1, tn, K), lambda b, hf, n: (b, hf * ntph + n, 0))]
    args = [x]
    flops = 0
    for l in layers:
        w = l["w"]
        if l["per_batch"]:
            _, ki, ko = w.shape
            in_specs.append(pl.BlockSpec((1, ki, ko), lambda b, hf, n: (b, 0, 0)))
        else:
            ki, ko = w.shape
            in_specs.append(pl.BlockSpec((ki, ko), lambda b, hf, n: (0, 0)))
        args.append(w.astype(jnp.bfloat16))
        if l["b"] is not None:
            in_specs.append(pl.BlockSpec((1, ko), lambda b, hf, n: (0, 0)))
            args.append(l["b"].reshape(1, ko).astype(jnp.float32))
        flops += 2 * B * Np * ki * ko

    out_shapes, out_specs = [], []
    if emit_first_dtype is not None:
        c0 = layers[0]["w"].shape[-1]
        out_shapes.append(jax.ShapeDtypeStruct((B, Np, c0), emit_first_dtype))
        out_specs.append(
            pl.BlockSpec((1, tn, c0), lambda b, hf, n: (b, hf * ntph + n, 0)))
    out_shapes.append(jax.ShapeDtypeStruct((B, n_halves, 1, c_last), jnp.float32))
    out_specs.append(pl.BlockSpec((1, 1, 1, c_last), lambda b, hf, n: (b, hf, 0, 0)))

    bytes_acc = (x.size * x.dtype.itemsize + B * n_halves * c_last * 4
                 + sum(int(a.size) * a.dtype.itemsize for a in args[1:]))
    if emit_first_dtype is not None:
        bytes_acc += B * Np * layers[0]["w"].shape[-1] * jnp.dtype(emit_first_dtype).itemsize

    outs = pl.pallas_call(
        _make_pool_kernel(descs, emit_first_dtype is not None, tn, cr, ntph,
                          n_valid, has_pad),
        out_shape=tuple(out_shapes),
        grid=(B, n_halves, ntph),
        in_specs=in_specs,
        out_specs=tuple(out_specs),
        compiler_params=pltpu.CompilerParams(
            dimension_semantics=("parallel", "parallel", "arbitrary")),
        cost_estimate=pl.CostEstimate(flops=flops, transcendentals=0,
                                      bytes_accessed=bytes_acc),
    )(*args)

    pooled = jnp.max(outs[-1], axis=1)[:, 0, :]            # reduce the 2 halves (XLA)
    if emit_first_dtype is not None:
        return outs[0], pooled
    return pooled


# ----------------------------------------------------------------------------
# Fused segmentation head.  No (B, N, 1088) concat and no `local` tensor:
#   h1 = relu(h @ (T64 @ W1_local)  +  (g @ W1_global + b1))
#   out = relu(h1 @ W2 + b2) -> relu(@W3 + b3) -> @Wout_pad + bout_pad   (bf16, 128 lanes)
# ----------------------------------------------------------------------------
def _seghead_kernel(h_ref, wl_ref, g_ref, w2_ref, b2_ref, w3_ref, b3_ref,
                    wo_ref, bo_ref, o_ref):
    h = jnp.dot(h_ref[0], wl_ref[0], preferred_element_type=jnp.float32)
    h = jnp.maximum(h + g_ref[0], 0.0)                                    # (tn, 512)
    h = jnp.dot(h.astype(jnp.bfloat16), w2_ref[...],
                preferred_element_type=jnp.float32) + b2_ref[...]
    h = jnp.maximum(h, 0.0)                                               # (tn, 256)
    h = jnp.dot(h.astype(jnp.bfloat16), w3_ref[...],
                preferred_element_type=jnp.float32) + b3_ref[...]
    h = jnp.maximum(h, 0.0)                                               # (tn, 128)
    o = jnp.dot(h.astype(jnp.bfloat16), wo_ref[...],
                preferred_element_type=jnp.float32) + bo_ref[...]
    o_ref[0] = o.astype(o_ref.dtype)                                      # (tn, 128) bf16


def segmentation_head(h, wl_eff, gproj, w2, b2, w3, b3, wo_pad, bo_pad, *, tn):
    B, Np, C = h.shape                                     # C = 64
    nt = Np // tn
    h1 = wl_eff.shape[2]
    h2, h3, cp = w2.shape[1], w3.shape[1], wo_pad.shape[1]

    flops = 2 * B * Np * (C * h1 + h1 * h2 + h2 * h3 + h3 * cp)
    bytes_acc = (h.size * 2 + B * Np * cp * 2
                 + int(wl_eff.size + w2.size + w3.size + wo_pad.size) * 2)

    return pl.pallas_call(
        _seghead_kernel,
        out_shape=jax.ShapeDtypeStruct((B, Np, cp), jnp.bfloat16),
        grid=(B, nt),
        in_specs=[
            pl.BlockSpec((1, tn, C), lambda b, n: (b, n, 0)),
            pl.BlockSpec((1, C, h1), lambda b, n: (b, 0, 0)),
            pl.BlockSpec((1, 1, h1), lambda b, n: (b, 0, 0)),
            pl.BlockSpec((h1, h2), lambda b, n: (0, 0)),
            pl.BlockSpec((1, h2), lambda b, n: (0, 0)),
            pl.BlockSpec((h2, h3), lambda b, n: (0, 0)),
            pl.BlockSpec((1, h3), lambda b, n: (0, 0)),
            pl.BlockSpec((h3, cp), lambda b, n: (0, 0)),
            pl.BlockSpec((1, cp), lambda b, n: (0, 0)),
        ],
        out_specs=pl.BlockSpec((1, tn, cp), lambda b, n: (b, n, 0)),
        compiler_params=pltpu.CompilerParams(
            dimension_semantics=("parallel", "parallel")),
        cost_estimate=pl.CostEstimate(flops=flops, transcendentals=0,
                                      bytes_accessed=bytes_acc),
    )(h, wl_eff.astype(jnp.bfloat16), gproj.reshape(B, 1, h1).astype(jnp.float32),
      w2.astype(jnp.bfloat16), b2.reshape(1, h2).astype(jnp.float32),
      w3.astype(jnp.bfloat16), b3.reshape(1, h3).astype(jnp.float32),
      wo_pad.astype(jnp.bfloat16), bo_pad.reshape(1, cp).astype(jnp.float32))


# ----------------------------------------------------------------------------
# Deterministic parameter construction (synthetic weights, BN folded for eval)
# ----------------------------------------------------------------------------
def init_layer(key, cin, cout, with_bn=True):
    k1, k2, k3, k4, k5, k6 = jax.random.split(key, 6)
    w = jax.random.normal(k1, (cin, cout), jnp.float32) / jnp.sqrt(jnp.float32(cin))
    b = 0.01 * jax.random.normal(k2, (cout,), jnp.float32)
    if with_bn:
        gamma = 1.0 + 0.1 * jax.random.normal(k3, (cout,), jnp.float32)
        beta = 0.1 * jax.random.normal(k4, (cout,), jnp.float32)
        mean = 0.1 * jax.random.normal(k5, (cout,), jnp.float32)
        var = 1.0 + 0.1 * jnp.abs(jax.random.normal(k6, (cout,), jnp.float32))
        scale = gamma / jnp.sqrt(var + 1e-5)
        w = w * scale[None, :]
        b = (b - mean) * scale + beta
    return w, b


def init_tnet(key, k):
    keys = jax.random.split(key, 6)
    return {
        "c1": init_layer(keys[0], k, 64),
        "c2": init_layer(keys[1], 64, 128),
        "c3": init_layer(keys[2], 128, 1024),
        "f1": init_layer(keys[3], 1024, 512),
        "f2": init_layer(keys[4], 512, 256),
        "f3": init_layer(keys[5], 256, k * k, with_bn=False),
    }


def init_params(key, num_classes):
    keys = jax.random.split(key, 9)
    return {
        "stn3": init_tnet(keys[0], 3),
        "base_c1": init_layer(keys[1], 3, 64),
        "stn64": init_tnet(keys[2], 64),
        "base_c2": init_layer(keys[3], 64, 128),
        "base_c3": init_layer(keys[4], 128, 1024),
        "mlp1": init_layer(keys[5], 1088, 512),
        "mlp2": init_layer(keys[6], 512, 256),
        "mlp3": init_layer(keys[7], 256, 128),
        "out": init_layer(keys[8], 128, num_classes, with_bn=False),
    }


# ----------------------------------------------------------------------------
# Forward pass
# ----------------------------------------------------------------------------
def tnet_fc_head(g, p, k):
    """Tiny FC head (M = B rows): plain XLA — a pallas_call here is pure launch overhead."""
    h = jax.nn.relu(g @ p["f1"][0] + p["f1"][1])
    h = jax.nn.relu(h @ p["f2"][0] + p["f2"][1])
    h = h @ p["f3"][0] + p["f3"][1]
    eye = jnp.eye(k, dtype=jnp.float32).reshape(1, k * k)
    return (h + eye).reshape(-1, k, k)


def pointnet_segmentation_forward(x_bcn, params, num_classes):
    # x_bcn: (B, 3, N)  -- same layout as the PyTorch module input.
    x = jnp.transpose(x_bcn, (0, 2, 1)).astype(jnp.float32)       # (B, N, 3)
    B, N, _ = x.shape
    tn = _point_tile(N)
    Np = _round_up(N, tn)
    has_pad = Np != N
    if has_pad:
        x = jnp.pad(x, ((0, 0), (0, Np - N), (0, 0)))             # padded rows masked in pools
    nt = Np // tn
    n_halves = 2 if (nt >= 2 and nt % 2 == 0) else 1              # v7x: 2nd parallel axis
    ntph = nt // n_halves
    cr = min(tn, 128)                                             # in-kernel row chunk
    cfg = dict(tn=tn, cr=cr, n_halves=n_halves, ntph=ntph, n_valid=N, has_pad=has_pad)

    # --- input T-Net (3x3): fused extractor + pool kernel, FC head in XLA ---
    p3 = params["stn3"]
    g3 = pool_extract(
        x,
        layers=[
            dict(w=p3["c1"][0], b=p3["c1"][1], relu=True, per_batch=False, small_k=True),
            dict(w=p3["c2"][0], b=p3["c2"][1], relu=True, per_batch=False, small_k=False),
            dict(w=p3["c3"][0], b=p3["c3"][1], relu=True, per_batch=False, small_k=False),
        ],
        emit_first_dtype=None, **cfg)                             # (B, 1024)
    input_transform = tnet_fc_head(g3, p3, 3)                     # (B, 3, 3)

    # --- base conv1 (input transform folded: x @ (T3@W1)) FUSED with stn64 extractor ---
    w_eff = jnp.einsum("bij,jk->bik", input_transform, params["base_c1"][0])  # (B, 3, 64)
    p64 = params["stn64"]
    h, g64 = pool_extract(
        x,
        layers=[
            dict(w=w_eff, b=params["base_c1"][1], relu=True, per_batch=True, small_k=True),
            dict(w=p64["c1"][0], b=p64["c1"][1], relu=True, per_batch=False, small_k=False),
            dict(w=p64["c2"][0], b=p64["c2"][1], relu=True, per_batch=False, small_k=False),
            dict(w=p64["c3"][0], b=p64["c3"][1], relu=True, per_batch=False, small_k=False),
        ],
        emit_first_dtype=jnp.bfloat16, **cfg)          # h: (B, Np, 64) bf16, g64: (B, 1024)
    feature_transform = tnet_fc_head(g64, p64, 64)                # (B, 64, 64)

    # --- global feature: (h @ T64) -> relu(c2) -> c3 -> masked max-pool (no local output) ---
    global_features = pool_extract(
        h,
        layers=[
            dict(w=feature_transform, b=None, relu=False, per_batch=True, small_k=False),
            dict(w=params["base_c2"][0], b=params["base_c2"][1], relu=True,
                 per_batch=False, small_k=False),
            dict(w=params["base_c3"][0], b=params["base_c3"][1], relu=False,
                 per_batch=False, small_k=False),
        ],
        emit_first_dtype=None, **cfg)                             # (B, 1024)

    # --- segmentation head (mlp1 split; T64 folded into the local weight; b1 folded) ---
    w1, b1 = params["mlp1"]
    wl_eff = jnp.einsum("bij,jk->bik", feature_transform, w1[:64])        # (B, 64, 512)
    gproj = global_features @ w1[64:] + b1                                # (B, 512)
    cp = _round_up(max(num_classes, 1), 128)                              # lane-dense classifier
    wo, bo = params["out"]
    wo_pad = jnp.zeros((wo.shape[0], cp), jnp.float32).at[:, :num_classes].set(wo)
    bo_pad = jnp.zeros((cp,), jnp.float32).at[:num_classes].set(bo)
    o = segmentation_head(h, wl_eff, gproj, *params["mlp2"], *params["mlp3"],
                          wo_pad, bo_pad, tn=tn)                          # (B, Np, 128) bf16
    out = o[:, :N, :num_classes].astype(jnp.float32)                      # slice bf16, then upcast

    # PyTorch: self.out(out).transpose(1, 2) -> (B, N, num_classes) == our layout
    return input_transform, feature_transform, out


# ----------------------------------------------------------------------------
# Pure-JAX f32 reference (same folded weights) for a correctness cross-check
# ----------------------------------------------------------------------------
def reference_forward(x_bcn, params):
    x = jnp.transpose(x_bcn, (0, 2, 1)).astype(jnp.float32)       # (B, N, 3)

    def tnet(h, p, k):
        a = jax.nn.relu(h @ p["c1"][0] + p["c1"][1])
        a = jax.nn.relu(a @ p["c2"][0] + p["c2"][1])
        a = jax.nn.relu(a @ p["c3"][0] + p["c3"][1])
        g = jnp.max(a, axis=1)
        f = jax.nn.relu(g @ p["f1"][0] + p["f1"][1])
        f = jax.nn.relu(f @ p["f2"][0] + p["f2"][1])
        f = f @ p["f3"][0] + p["f3"][1]
        return f.reshape(-1, k, k) + jnp.eye(k, dtype=jnp.float32)[None]

    it = tnet(x, params["stn3"], 3)
    xt = jnp.einsum("bnd,bde->bne", x, it)
    h = jax.nn.relu(xt @ params["base_c1"][0] + params["base_c1"][1])
    ft = tnet(h, params["stn64"], 64)
    local = jnp.einsum("bnd,bde->bne", h, ft)
    g = jax.nn.relu(local @ params["base_c2"][0] + params["base_c2"][1])
    g = g @ params["base_c3"][0] + params["base_c3"][1]
    gmax = jnp.max(g, axis=1)                                     # (B, 1024)
    gexp = jnp.broadcast_to(gmax[:, None, :], local.shape[:2] + (gmax.shape[-1],))
    feat = jnp.concatenate([local, gexp], axis=-1)                # (B, N, 1088)
    m = jax.nn.relu(feat @ params["mlp1"][0] + params["mlp1"][1])
    m = jax.nn.relu(m @ params["mlp2"][0] + params["mlp2"][1])
    m = jax.nn.relu(m @ params["mlp3"][0] + params["mlp3"][1])
    out = m @ params["out"][0] + params["out"][1]
    return it, ft, out


def _max_rel_err(a, b):
    a = jnp.asarray(a, jnp.float32)
    b = jnp.asarray(b, jnp.float32)
    return float(jnp.max(jnp.abs(a - b)) / (jnp.max(jnp.abs(b)) + 1e-6))


# ----------------------------------------------------------------------------
if __name__ == "__main__":
    NUM_CLASSES = 5
    key = jax.random.PRNGKey(0)
    k_param, k_x1, k_x2 = jax.random.split(key, 3)
    params = init_params(k_param, NUM_CLASSES)

    fwd = jax.jit(pointnet_segmentation_forward, static_argnums=2)
    ref = jax.jit(reference_forward)

    # Config 1: small single-tile case with a padded tail (N=60 -> 64-row tile).
    B1, N1 = 2, 60
    x1 = jax.random.normal(k_x1, (B1, 3, N1), jnp.float32)
    it1, ft1, out1 = fwd(x1, params, NUM_CLASSES)
    jax.block_until_ready((it1, ft1, out1))
    assert it1.shape == (B1, 3, 3) and ft1.shape == (B1, 64, 64)
    assert out1.shape == (B1, N1, NUM_CLASSES)
    assert bool(jnp.isfinite(out1).all())
    assert bool(jnp.isfinite(it1).all()) and bool(jnp.isfinite(ft1).all())
    rit1, rft1, rout1 = ref(x1, params)
    assert _max_rel_err(it1, rit1) < 0.1
    assert _max_rel_err(ft1, rft1) < 0.1
    assert _max_rel_err(out1, rout1) < 0.1

    # Config 2: exercises 512-row tiles, in-kernel row chunking, the 2-way point-axis
    # split (v7x megacore) and last-tile masking (N=1000 -> Np=1024).
    B2, N2 = 1, 1000
    x2 = jax.random.normal(k_x2, (B2, 3, N2), jnp.float32)
    it2, ft2, out2 = fwd(x2, params, NUM_CLASSES)
    jax.block_until_ready((it2, ft2, out2))
    assert it2.shape == (B2, 3, 3) and ft2.shape == (B2, 64, 64)
    assert out2.shape == (B2, N2, NUM_CLASSES)
    assert bool(jnp.isfinite(out2).all())
    rit2, rft2, rout2 = ref(x2, params)
    assert _max_rel_err(out2, rout2) < 0.1

    print("KERNEL_OK")
</pallas_src>

<mosaic_0001>
module attributes {stable_mosaic.version = 11 : i64} {
  func.func @kernel(%arg0: i32, %arg1: i32, %arg2: i32, %arg3: memref<1x64x3xf32, #tpu.memory_space<vmem>>, %arg4: memref<3x64xbf16, #tpu.memory_space<vmem>>, %arg5: memref<1x64xf32, #tpu.memory_space<vmem>>, %arg6: memref<64x128xbf16, #tpu.memory_space<vmem>>, %arg7: memref<1x128xf32, #tpu.memory_space<vmem>>, %arg8: memref<128x1024xbf16, #tpu.memory_space<vmem>>, %arg9: memref<1x1024xf32, #tpu.memory_space<vmem>>, %arg10: memref<1x1x1x1024xf32, #tpu.memory_space<vmem>>) attributes {dimension_semantics = [#tpu.dimension_semantics<parallel>, #tpu.dimension_semantics<parallel>, #tpu.dimension_semantics<arbitrary>], iteration_bounds = array<i64: 2, 1, 1>, scalar_prefetch = 0 : i64, scratch_operands = 0 : i64, tpu.core_type = #tpu.core_type<tc>, window_params = [{transform_indices = @transform_0, window_bounds = array<i64: 1, 64, 3>}, {pipeline_mode = #tpu.pipeline_mode<synchronous>, transform_indices = @transform_1, window_bounds = array<i64: 3, 64>}, {pipeline_mode = #tpu.pipeline_mode<synchronous>, transform_indices = @transform_2, window_bounds = array<i64: 1, 64>}, {pipeline_mode = #tpu.pipeline_mode<synchronous>, transform_indices = @transform_3, window_bounds = array<i64: 64, 128>}, {pipeline_mode = #tpu.pipeline_mode<synchronous>, transform_indices = @transform_4, window_bounds = array<i64: 1, 128>}, {pipeline_mode = #tpu.pipeline_mode<synchronous>, transform_indices = @transform_5, window_bounds = array<i64: 128, 1024>}, {pipeline_mode = #tpu.pipeline_mode<synchronous>, transform_indices = @transform_6, window_bounds = array<i64: 1, 1024>}, {transform_indices = @transform_7, window_bounds = array<i64: 1, 1, 1, 1024>}]} {
    %c1_i32 = arith.constant 1 : i32
    %0 = arith.muli %arg1, %c1_i32 : i32
    %1 = arith.addi %0, %arg2 : i32
    %c64_i32 = arith.constant 64 : i32
    %2 = arith.muli %1, %c64_i32 : i32
    %c0 = arith.constant 0 : index
    %c0_0 = arith.constant 0 : index
    %3 = vector.load %arg4[%c0, %c0_0] : memref<3x64xbf16, #tpu.memory_space<vmem>>, vector<3x64xbf16>
    %c0_1 = arith.constant 0 : index
    %c0_2 = arith.constant 0 : index
    %4 = vector.load %arg5[%c0_1, %c0_2] : memref<1x64xf32, #tpu.memory_space<vmem>>, vector<1x64xf32>
    %c0_3 = arith.constant 0 : index
    %c0_4 = arith.constant 0 : index
    %5 = vector.load %arg6[%c0_3, %c0_4] : memref<64x128xbf16, #tpu.memory_space<vmem>>, vector<64x128xbf16>
    %c0_5 = arith.constant 0 : index
    %c0_6 = arith.constant 0 : index
    %6 = vector.load %arg7[%c0_5, %c0_6] : memref<1x128xf32, #tpu.memory_space<vmem>>, vector<1x128xf32>
    %c0_7 = arith.constant 0 : index
    %c0_8 = arith.constant 0 : index
    %7 = vector.load %arg8[%c0_7, %c0_8] : memref<128x1024xbf16, #tpu.memory_space<vmem>>, vector<128x1024xbf16>
    %c0_9 = arith.constant 0 : index
    %c0_10 = arith.constant 0 : index
    %8 = vector.load %arg9[%c0_9, %c0_10] : memref<1x1024xf32, #tpu.memory_space<vmem>>, vector<1x1024xf32>
    %c0_11 = arith.constant 0 : index
    %c0_12 = arith.constant 0 : index
    %c0_13 = arith.constant 0 : index
    %9 = vector.load %arg3[%c0_11, %c0_12, %c0_13] : memref<1x64x3xf32, #tpu.memory_space<vmem>>, vector<1x64x3xf32>
    %10 = vector.shape_cast %9 : vector<1x64x3xf32> to vector<64x3xf32>
    %11 = arith.extf %3 : vector<3x64xbf16> to vector<3x64xf32>
    %12 = vector.extract_strided_slice %10 {offsets = [0, 0], sizes = [64, 1], strides = [1, 1]} : vector<64x3xf32> to vector<64x1xf32>
    %13 = vector.extract_strided_slice %11 {offsets = [0, 0], sizes = [1, 64], strides = [1, 1]} : vector<3x64xf32> to vector<1x64xf32>
    %14 = vector.broadcast %12 : vector<64x1xf32> to vector<64x64xf32>
    %15 = vector.broadcast %13 : vector<1x64xf32> to vector<64x64xf32>
    %16 = arith.mulf %14, %15 : vector<64x64xf32>
    %17 = vector.extract_strided_slice %10 {offsets = [0, 1], sizes = [64, 1], strides = [1, 1]} : vector<64x3xf32> to vector<64x1xf32>
    %18 = vector.extract_strided_slice %11 {offsets = [1, 0], sizes = [1, 64], strides = [1, 1]} : vector<3x64xf32> to vector<1x64xf32>
    %19 = vector.broadcast %17 : vector<64x1xf32> to vector<64x64xf32>
    %20 = vector.broadcast %18 : vector<1x64xf32> to vector<64x64xf32>
    %21 = arith.mulf %19, %20 : vector<64x64xf32>
    %22 = arith.addf %16, %21 : vector<64x64xf32>
    %23 = vector.extract_strided_slice %10 {offsets = [0, 2], sizes = [64, 1], strides = [1, 1]} : vector<64x3xf32> to vector<64x1xf32>
    %24 = vector.extract_strided_slice %11 {offsets = [2, 0], sizes = [1, 64], strides = [1, 1]} : vector<3x64xf32> to vector<1x64xf32>
    %25 = vector.broadcast %23 : vector<64x1xf32> to vector<64x64xf32>
    %26 = vector.broadcast %24 : vector<1x64xf32> to vector<64x64xf32>
    %27 = arith.mulf %25, %26 : vector<64x64xf32>
    %28 = arith.addf %22, %27 : vector<64x64xf32>
    %29 = vector.broadcast %4 : vector<1x64xf32> to vector<64x64xf32>
    %30 = arith.addf %28, %29 : vector<64x64xf32>
    %cst = arith.constant 0.000000e+00 : f32
    %31 = vector.broadcast %cst : f32 to vector<64x64xf32>
    %32 = arith.maximumf %30, %31 : vector<64x64xf32>
    %33 = arith.truncf %32 : vector<64x64xf32> to vector<64x64xbf16>
    %cst_14 = arith.constant dense<0.000000e+00> : vector<64x128xf32>
    %34 = tpu.matmul %33, %5, %cst_14 {dimension_numbers = #tpu.dot_dimension_numbers<[1], [0], [0], [1], [0, 0, 1, 1], [], []>} : vector<64x64xbf16>, vector<64x128xbf16>, vector<64x128xf32> -> vector<64x128xf32>
    %35 = vector.broadcast %6 : vector<1x128xf32> to vector<64x128xf32>
    %36 = arith.addf %34, %35 : vector<64x128xf32>
    %cst_15 = arith.constant 0.000000e+00 : f32
    %37 = vector.broadcast %cst_15 : f32 to vector<64x128xf32>
    %38 = arith.maximumf %36, %37 : vector<64x128xf32>
    %39 = arith.truncf %38 : vector<64x128xf32> to vector<64x128xbf16>
    %cst_16 = arith.constant dense<0.000000e+00> : vector<64x1024xf32>
    %40 = tpu.matmul %39, %7, %cst_16 {dimension_numbers = #tpu.dot_dimension_numbers<[1], [0], [0], [1], [0, 0, 1, 1], [], []>} : vector<64x128xbf16>, vector<128x1024xbf16>, vector<64x1024xf32> -> vector<64x1024xf32>
    %41 = vector.broadcast %8 : vector<1x1024xf32> to vector<64x1024xf32>
    %42 = arith.addf %40, %41 : vector<64x1024xf32>
    %cst_17 = arith.constant 0.000000e+00 : f32
    %43 = vector.broadcast %cst_17 : f32 to vector<64x1024xf32>
    %44 = arith.maximumf %42, %43 : vector<64x1024xf32>
    %c0_i32 = arith.constant 0 : i32
    %45 = arith.addi %2, %c0_i32 : i32
    %46 = tpu.iota {dimensions = array<i32: 0>} : vector<64x1xi32>
    %47 = vector.broadcast %45 : i32 to vector<64x1xi32>
    %48 = arith.addi %47, %46 : vector<64x1xi32>
    %c60_i32 = arith.constant 60 : i32
    %49 = vector.broadcast %c60_i32 : i32 to vector<64x1xi32>
    %50 = arith.cmpi slt, %48, %49 : vector<64x1xi32>
    %cst_18 = arith.constant 0xFF800000 : f32
    %51 = vector.shape_cast %50 : vector<64x1xi1> to vector<64x1xi1>
    %52 = vector.broadcast %51 : vector<64x1xi1> to vector<64x1024xi1>
    %53 = vector.broadcast %cst_18 : f32 to vector<64x1024xf32>
    %54 = arith.select %52, %44, %53 : vector<64x1024xi1>, vector<64x1024xf32>
    %cst_19 = arith.constant dense<0xFF800000> : vector<1024xf32>
    %55 = vector.multi_reduction <maximumf>, %54, %cst_19 [0] : vector<64x1024xf32> to vector<1024xf32>
    %56 = vector.shape_cast %55 : vector<1024xf32> to vector<1x1024xf32>
    %c0_i32_20 = arith.constant 0 : i32
    %57 = arith.cmpi eq, %arg2, %c0_i32_20 : i32
    %58 = arith.extui %57 : i1 to i32
    %c0_i32_21 = arith.constant 0 : i32
    %59 = arith.cmpi ne, %58, %c0_i32_21 : i32
    scf.if %59 {
      %c0_24 = arith.constant 0 : index
      %c0_25 = arith.constant 0 : index
      %c0_26 = arith.constant 0 : index
      %c0_27 = arith.constant 0 : index
      %63 = vector.load %arg10[%c0_24, %c0_25, %c0_26, %c0_27] : memref<1x1x1x1024xf32, #tpu.memory_space<vmem>>, vector<1x1x1x1024xf32>
      %64 = vector.shape_cast %63 : vector<1x1x1x1024xf32> to vector<1x1024xf32>
      %65 = vector.shape_cast %56 : vector<1x1024xf32> to vector<1x1x1x1024xf32>
      tpu.vector_store %arg10[%c0_24, %c0_25, %c0_26, %c0_27], %65 {strides = array<i32>} : memref<1x1x1x1024xf32, #tpu.memory_space<vmem>>, vector<1x1x1x1024xf32>,
    } else {
    }
    %c0_i32_22 = arith.constant 0 : i32
    %60 = arith.cmpi sgt, %arg2, %c0_i32_22 : i32
    %61 = arith.extui %60 : i1 to i32
    %c0_i32_23 = arith.constant 0 : i32
    %62 = arith.cmpi ne, %61, %c0_i32_23 : i32
    scf.if %62 {
      %c0_24 = arith.constant 0 : index
      %c0_25 = arith.constant 0 : index
      %c0_26 = arith.constant 0 : index
      %c0_27 = arith.constant 0 : index
      %63 = vector.load %arg10[%c0_24, %c0_25, %c0_26, %c0_27] : memref<1x1x1x1024xf32, #tpu.memory_space<vmem>>, vector<1x1x1x1024xf32>
      %64 = vector.shape_cast %63 : vector<1x1x1x1024xf32> to vector<1x1024xf32>
      %65 = arith.maximumf %64, %56 : vector<1x1024xf32>
      %c0_28 = arith.constant 0 : index
      %c0_29 = arith.constant 0 : index
      %c0_30 = arith.constant 0 : index
      %c0_31 = arith.constant 0 : index
      %66 = vector.load %arg10[%c0_28, %c0_29, %c0_30, %c0_31] : memref<1x1x1x1024xf32, #tpu.memory_space<vmem>>, vector<1x1x1x1024xf32>
      %67 = vector.shape_cast %66 : vector<1x1x1x1024xf32> to vector<1x1024xf32>
      %68 = vector.shape_cast %65 : vector<1x1024xf32> to vector<1x1x1x1024xf32>
      tpu.vector_store %arg10[%c0_28, %c0_29, %c0_30, %c0_31], %68 {strides = array<i32>} : memref<1x1x1x1024xf32, #tpu.memory_space<vmem>>, vector<1x1x1x1024xf32>,
    } else {
    }
    return
  }
  func.func @transform_0(%arg0: i32, %arg1: i32, %arg2: i32) -> (i32, i32, i32) {
    %c1_i32 = arith.constant 1 : i32
    %0 = arith.muli %arg1, %c1_i32 : i32
    %1 = arith.addi %0, %arg2 : i32
    %c0_i32 = arith.constant 0 : i32
    %c0_i32_0 = arith.constant 0 : i32
    return %arg0, %1, %c0_i32 : i32, i32, i32
  }
  func.func @transform_1(%arg0: i32, %arg1: i32, %arg2: i32) -> (i32, i32) {
    %c0_i32 = arith.constant 0 : i32
    %c0_i32_0 = arith.constant 0 : i32
    %c0_i32_1 = arith.constant 0 : i32
    return %c0_i32, %c0_i32_0 : i32, i32
  }
  func.func @transform_2(%arg0: i32, %arg1: i32, %arg2: i32) -> (i32, i32) {
    %c0_i32 = arith.constant 0 : i32
    %c0_i32_0 = arith.constant 0 : i32
    %c0_i32_1 = arith.constant 0 : i32
    return %c0_i32, %c0_i32_0 : i32, i32
  }
  func.func @transform_3(%arg0: i32, %arg1: i32, %arg2: i32) -> (i32, i32) {
    %c0_i32 = arith.constant 0 : i32
    %c0_i32_0 = arith.constant 0 : i32
    %c0_i32_1 = arith.constant 0 : i32
    return %c0_i32, %c0_i32_0 : i32, i32
  }
  func.func @transform_4(%arg0: i32, %arg1: i32, %arg2: i32) -> (i32, i32) {
    %c0_i32 = arith.constant 0 : i32
    %c0_i32_0 = arith.constant 0 : i32
    %c0_i32_1 = arith.constant 0 : i32
    return %c0_i32, %c0_i32_0 : i32, i32
  }
  func.func @transform_5(%arg0: i32, %arg1: i32, %arg2: i32) -> (i32, i32) {
    %c0_i32 = arith.constant 0 : i32
    %c0_i32_0 = arith.constant 0 : i32
    %c0_i32_1 = arith.constant 0 : i32
    return %c0_i32, %c0_i32_0 : i32, i32
  }
  func.func @transform_6(%arg0: i32, %arg1: i32, %arg2: i32) -> (i32, i32) {
    %c0_i32 = arith.constant 0 : i32
    %c0_i32_0 = arith.constant 0 : i32
    %c0_i32_1 = arith.constant 0 : i32
    return %c0_i32, %c0_i32_0 : i32, i32
  }
  func.func @transform_7(%arg0: i32, %arg1: i32, %arg2: i32) -> (i32, i32, i32, i32) {
    %c0_i32 = arith.constant 0 : i32
    %c0_i32_0 = arith.constant 0 : i32
    %c0_i32_1 = arith.constant 0 : i32
    return %arg0, %arg1, %c0_i32, %c0_i32_0 : i32, i32, i32, i32
  }
}

module attributes {stable_mosaic.version = 11 : i64} {
  func.func @kernel(%arg0: i32, %arg1: i32, %arg2: i32, %arg3: memref<1x64x3xf32, #tpu.memory_space<vmem>>, %arg4: memref<1x3x64xbf16, #tpu.memory_space<vmem>>, %arg5: memref<1x64xf32, #tpu.memory_space<vmem>>, %arg6: memref<64x64xbf16, #tpu.memory_space<vmem>>, %arg7: memref<1x64xf32, #tpu.memory_space<vmem>>, %arg8: memref<64x128xbf16, #tpu.memory_space<vmem>>, %arg9: memref<1x128xf32, #tpu.memory_space<vmem>>, %arg10: memref<128x1024xbf16, #tpu.memory_space<vmem>>, %arg11: memref<1x1024xf32, #tpu.memory_space<vmem>>, %arg12: memref<1x64x64xbf16, #tpu.memory_space<vmem>>, %arg13: memref<1x1x1x1024xf32, #tpu.memory_space<vmem>>) attributes {dimension_semantics = [#tpu.dimension_semantics<parallel>, #tpu.dimension_semantics<parallel>, #tpu.dimension_semantics<arbitrary>], iteration_bounds = array<i64: 2, 1, 1>, scalar_prefetch = 0 : i64, scratch_operands = 0 : i64, tpu.core_type = #tpu.core_type<tc>, window_params = [{transform_indices = @transform_0, window_bounds = array<i64: 1, 64, 3>}, {transform_indices = @transform_1, window_bounds = array<i64: 1, 3, 64>}, {pipeline_mode = #tpu.pipeline_mode<synchronous>, transform_indices = @transform_2, window_bounds = array<i64: 1, 64>}, {pipeline_mode = #tpu.pipeline_mode<synchronous>, transform_indices = @transform_3, window_bounds = array<i64: 64, 64>}, {pipeline_mode = #tpu.pipeline_mode<synchronous>, transform_indices = @transform_4, window_bounds = array<i64: 1, 64>}, {pipeline_mode = #tpu.pipeline_mode<synchronous>, transform_indices = @transform_5, window_bounds = array<i64: 64, 128>}, {pipeline_mode = #tpu.pipeline_mode<synchronous>, transform_indices = @transform_6, window_bounds = array<i64: 1, 128>}, {pipeline_mode = #tpu.pipeline_mode<synchronous>, transform_indices = @transform_7, window_bounds = array<i64: 128, 1024>}, {pipeline_mode = #tpu.pipeline_mode<synchronous>, transform_indices = @transform_8, window_bounds = array<i64: 1, 1024>}, {transform_indices = @transform_9, window_bounds = array<i64: 1, 64, 64>}, {transform_indices = @transform_10, window_bounds = array<i64: 1, 1, 1, 1024>}]} {
    %c1_i32 = arith.constant 1 : i32
    %0 = arith.muli %arg1, %c1_i32 : i32
    %1 = arith.addi %0, %arg2 : i32
    %c64_i32 = arith.constant 64 : i32
    %2 = arith.muli %1, %c64_i32 : i32
    %c0 = arith.constant 0 : index
    %c0_0 = arith.constant 0 : index
    %c0_1 = arith.constant 0 : index
    %3 = vector.load %arg4[%c0, %c0_0, %c0_1] : memref<1x3x64xbf16, #tpu.memory_space<vmem>>, vector<1x3x64xbf16>
    %4 = vector.shape_cast %3 : vector<1x3x64xbf16> to vector<3x64xbf16>
    %c0_2 = arith.constant 0 : index
    %c0_3 = arith.constant 0 : index
    %5 = vector.load %arg5[%c0_2, %c0_3] : memref<1x64xf32, #tpu.memory_space<vmem>>, vector<1x64xf32>
    %c0_4 = arith.constant 0 : index
    %c0_5 = arith.constant 0 : index
    %6 = vector.load %arg6[%c0_4, %c0_5] : memref<64x64xbf16, #tpu.memory_space<vmem>>, vector<64x64xbf16>
    %c0_6 = arith.constant 0 : index
    %c0_7 = arith.constant 0 : index
    %7 = vector.load %arg7[%c0_6, %c0_7] : memref<1x64xf32, #tpu.memory_space<vmem>>, vector<1x64xf32>
    %c0_8 = arith.constant 0 : index
    %c0_9 = arith.constant 0 : index
    %8 = vector.load %arg8[%c0_8, %c0_9] : memref<64x128xbf16, #tpu.memory_space<vmem>>, vector<64x128xbf16>
    %c0_10 = arith.constant 0 : index
    %c0_11 = arith.constant 0 : index
    %9 = vector.load %arg9[%c0_10, %c0_11] : memref<1x128xf32, #tpu.memory_space<vmem>>, vector<1x128xf32>
    %c0_12 = arith.constant 0 : index
    %c0_13 = arith.constant 0 : index
    %10 = vector.load %arg10[%c0_12, %c0_13] : memref<128x1024xbf16, #tpu.memory_space<vmem>>, vector<128x1024xbf16>
    %c0_14 = arith.constant 0 : index
    %c0_15 = arith.constant 0 : index
    %11 = vector.load %arg11[%c0_14, %c0_15] : memref<1x1024xf32, #tpu.memory_space<vmem>>, vector<1x1024xf32>
    %c0_16 = arith.constant 0 : index
    %c0_17 = arith.constant 0 : index
    %c0_18 = arith.constant 0 : index
    %12 = vector.load %arg3[%c0_16, %c0_17, %c0_18] : memref<1x64x3xf32, #tpu.memory_space<vmem>>, vector<1x64x3xf32>
    %13 = vector.shape_cast %12 : vector<1x64x3xf32> to vector<64x3xf32>
    %14 = arith.extf %4 : vector<3x64xbf16> to vector<3x64xf32>
    %15 = vector.extract_strided_slice %13 {offsets = [0, 0], sizes = [64, 1], strides = [1, 1]} : vector<64x3xf32> to vector<64x1xf32>
    %16 = vector.extract_strided_slice %14 {offsets = [0, 0], sizes = [1, 64], strides = [1, 1]} : vector<3x64xf32> to vector<1x64xf32>
    %17 = vector.broadcast %15 : vector<64x1xf32> to vector<64x64xf32>
    %18 = vector.broadcast %16 : vector<1x64xf32> to vector<64x64xf32>
    %19 = arith.mulf %17, %18 : vector<64x64xf32>
    %20 = vector.extract_strided_slice %13 {offsets = [0, 1], sizes = [64, 1], strides = [1, 1]} : vector<64x3xf32> to vector<64x1xf32>
    %21 = vector.extract_strided_slice %14 {offsets = [1, 0], sizes = [1, 64], strides = [1, 1]} : vector<3x64xf32> to vector<1x64xf32>
    %22 = vector.broadcast %20 : vector<64x1xf32> to vector<64x64xf32>
    %23 = vector.broadcast %21 : vector<1x64xf32> to vector<64x64xf32>
    %24 = arith.mulf %22, %23 : vector<64x64xf32>
    %25 = arith.addf %19, %24 : vector<64x64xf32>
    %26 = vector.extract_strided_slice %13 {offsets = [0, 2], sizes = [64, 1], strides = [1, 1]} : vector<64x3xf32> to vector<64x1xf32>
    %27 = vector.extract_strided_slice %14 {offsets = [2, 0], sizes = [1, 64], strides = [1, 1]} : vector<3x64xf32> to vector<1x64xf32>
    %28 = vector.broadcast %26 : vector<64x1xf32> to vector<64x64xf32>
    %29 = vector.broadcast %27 : vector<1x64xf32> to vector<64x64xf32>
    %30 = arith.mulf %28, %29 : vector<64x64xf32>
    %31 = arith.addf %25, %30 : vector<64x64xf32>
    %32 = vector.broadcast %5 : vector<1x64xf32> to vector<64x64xf32>
    %33 = arith.addf %31, %32 : vector<64x64xf32>
    %cst = arith.constant 0.000000e+00 : f32
    %34 = vector.broadcast %cst : f32 to vector<64x64xf32>
    %35 = arith.maximumf %33, %34 : vector<64x64xf32>
    %36 = arith.truncf %35 : vector<64x64xf32> to vector<64x64xbf16>
    %c0_19 = arith.constant 0 : index
    %c0_20 = arith.constant 0 : index
    %c0_21 = arith.constant 0 : index
    %37 = vector.load %arg12[%c0_19, %c0_20, %c0_21] : memref<1x64x64xbf16, #tpu.memory_space<vmem>>, vector<1x64x64xbf16>
    %38 = vector.shape_cast %37 : vector<1x64x64xbf16> to vector<64x64xbf16>
    %39 = vector.shape_cast %36 : vector<64x64xbf16> to vector<1x64x64xbf16>
    tpu.vector_store %arg12[%c0_19, %c0_20, %c0_21], %39 {strides = array<i32>} : memref<1x64x64xbf16, #tpu.memory_space<vmem>>, vector<1x64x64xbf16>,
    %40 = arith.truncf %35 : vector<64x64xf32> to vector<64x64xbf16>
    %cst_22 = arith.constant dense<0.000000e+00> : vector<64x64xf32>
    %41 = tpu.matmul %40, %6, %cst_22 {dimension_numbers = #tpu.dot_dimension_numbers<[1], [0], [0], [1], [0, 0, 1, 1], [], []>} : vector<64x64xbf16>, vector<64x64xbf16>, vector<64x64xf32> -> vector<64x64xf32>
    %42 = vector.broadcast %7 : vector<1x64xf32> to vector<64x64xf32>
    %43 = arith.addf %41, %42 : vector<64x64xf32>
    %cst_23 = arith.constant 0.000000e+00 : f32
    %44 = vector.broadcast %cst_23 : f32 to vector<64x64xf32>
    %45 = arith.maximumf %43, %44 : vector<64x64xf32>
    %46 = arith.truncf %45 : vector<64x64xf32> to vector<64x64xbf16>
    %cst_24 = arith.constant dense<0.000000e+00> : vector<64x128xf32>
    %47 = tpu.matmul %46, %8, %cst_24 {dimension_numbers = #tpu.dot_dimension_numbers<[1], [0], [0], [1], [0, 0, 1, 1], [], []>} : vector<64x64xbf16>, vector<64x128xbf16>, vector<64x128xf32> -> vector<64x128xf32>
    %48 = vector.broadcast %9 : vector<1x128xf32> to vector<64x128xf32>
    %49 = arith.addf %47, %48 : vector<64x128xf32>
    %cst_25 = arith.constant 0.000000e+00 : f32
    %50 = vector.broadcast %cst_25 : f32 to vector<64x128xf32>
    %51 = arith.maximumf %49, %50 : vector<64x128xf32>
    %52 = arith.truncf %51 : vector<64x128xf32> to vector<64x128xbf16>
    %cst_26 = arith.constant dense<0.000000e+00> : vector<64x1024xf32>
    %53 = tpu.matmul %52, %10, %cst_26 {dimension_numbers = #tpu.dot_dimension_numbers<[1], [0], [0], [1], [0, 0, 1, 1], [], []>} : vector<64x128xbf16>, vector<128x1024xbf16>, vector<64x1024xf32> -> vector<64x1024xf32>
    %54 = vector.broadcast %11 : vector<1x1024xf32> to vector<64x1024xf32>
    %55 = arith.addf %53, %54 : vector<64x1024xf32>
    %cst_27 = arith.constant 0.000000e+00 : f32
    %56 = vector.broadcast %cst_27 : f32 to vector<64x1024xf32>
    %57 = arith.maximumf %55, %56 : vector<64x1024xf32>
    %c0_i32 = arith.constant 0 : i32
    %58 = arith.addi %2, %c0_i32 : i32
    %59 = tpu.iota {dimensions = array<i32: 0>} : vector<64x1xi32>
    %60 = vector.broadcast %58 : i32 to vector<64x1xi32>
    %61 = arith.addi %60, %59 : vector<64x1xi32>
    %c60_i32 = arith.constant 60 : i32
    %62 = vector.broadcast %c60_i32 : i32 to vector<64x1xi32>
    %63 = arith.cmpi slt, %61, %62 : vector<64x1xi32>
    %cst_28 = arith.constant 0xFF800000 : f32
    %64 = vector.shape_cast %63 : vector<64x1xi1> to vector<64x1xi1>
    %65 = vector.broadcast %64 : vector<64x1xi1> to vector<64x1024xi1>
    %66 = vector.broadcast %cst_28 : f32 to vector<64x1024xf32>
    %67 = arith.select %65, %57, %66 : vector<64x1024xi1>, vector<64x1024xf32>
    %cst_29 = arith.constant dense<0xFF800000> : vector<1024xf32>
    %68 = vector.multi_reduction <maximumf>, %67, %cst_29 [0] : vector<64x1024xf32> to vector<1024xf32>
    %69 = vector.shape_cast %68 : vector<1024xf32> to vector<1x1024xf32>
    %c0_i32_30 = arith.constant 0 : i32
    %70 = arith.cmpi eq, %arg2, %c0_i32_30 : i32
    %71 = arith.extui %70 : i1 to i32
    %c0_i32_31 = arith.constant 0 : i32
    %72 = arith.cmpi ne, %71, %c0_i32_31 : i32
    scf.if %72 {
      %c0_34 = arith.constant 0 : index
      %c0_35 = arith.constant 0 : index
      %c0_36 = arith.constant 0 : index
      %c0_37 = arith.constant 0 : index
      %76 = vector.load %arg13[%c0_34, %c0_35, %c0_36, %c0_37] : memref<1x1x1x1024xf32, #tpu.memory_space<vmem>>, vector<1x1x1x1024xf32>
      %77 = vector.shape_cast %76 : vector<1x1x1x1024xf32> to vector<1x1024xf32>
      %78 = vector.shape_cast %69 : vector<1x1024xf32> to vector<1x1x1x1024xf32>
      tpu.vector_store %arg13[%c0_34, %c0_35, %c0_36, %c0_37], %78 {strides = array<i32>} : memref<1x1x1x1024xf32, #tpu.memory_space<vmem>>, vector<1x1x1x1024xf32>,
    } else {
    }
    %c0_i32_32 = arith.constant 0 : i32
    %73 = arith.cmpi sgt, %arg2, %c0_i32_32 : i32
    %74 = arith.extui %73 : i1 to i32
    %c0_i32_33 = arith.constant 0 : i32
    %75 = arith.cmpi ne, %74, %c0_i32_33 : i32
    scf.if %75 {
      %c0_34 = arith.constant 0 : index
      %c0_35 = arith.constant 0 : index
      %c0_36 = arith.constant 0 : index
      %c0_37 = arith.constant 0 : index
      %76 = vector.load %arg13[%c0_34, %c0_35, %c0_36, %c0_37] : memref<1x1x1x1024xf32, #tpu.memory_space<vmem>>, vector<1x1x1x1024xf32>
      %77 = vector.shape_cast %76 : vector<1x1x1x1024xf32> to vector<1x1024xf32>
      %78 = arith.maximumf %77, %69 : vector<1x1024xf32>
      %c0_38 = arith.constant 0 : index
      %c0_39 = arith.constant 0 : index
      %c0_40 = arith.constant 0 : index
      %c0_41 = arith.constant 0 : index
      %79 = vector.load %arg13[%c0_38, %c0_39, %c0_40, %c0_41] : memref<1x1x1x1024xf32, #tpu.memory_space<vmem>>, vector<1x1x1x1024xf32>
      %80 = vector.shape_cast %79 : vector<1x1x1x1024xf32> to vector<1x1024xf32>
      %81 = vector.shape_cast %78 : vector<1x1024xf32> to vector<1x1x1x1024xf32>
      tpu.vector_store %arg13[%c0_38, %c0_39, %c0_40, %c0_41], %81 {strides = array<i32>} : memref<1x1x1x1024xf32, #tpu.memory_space<vmem>>, vector<1x1x1x1024xf32>,
    } else {
    }
    return
  }
  func.func @transform_0(%arg0: i32, %arg1: i32, %arg2: i32) -> (i32, i32, i32) {
    %c1_i32 = arith.constant 1 : i32
    %0 = arith.muli %arg1, %c1_i32 : i32
    %1 = arith.addi %0, %arg2 : i32
    %c0_i32 = arith.constant 0 : i32
    %c0_i32_0 = arith.constant 0 : i32
    return %arg0, %1, %c0_i32 : i32, i32, i32
  }
  func.func @transform_1(%arg0: i32, %arg1: i32, %arg2: i32) -> (i32, i32, i32) {
    %c0_i32 = arith.constant 0 : i32
    %c0_i32_0 = arith.constant 0 : i32
    %c0_i32_1 = arith.constant 0 : i32
    return %arg0, %c0_i32, %c0_i32_0 : i32, i32, i32
  }
  func.func @transform_2(%arg0: i32, %arg1: i32, %arg2: i32) -> (i32, i32) {
    %c0_i32 = arith.constant 0 : i32
    %c0_i32_0 = arith.constant 0 : i32
    %c0_i32_1 = arith.constant 0 : i32
    return %c0_i32, %c0_i32_0 : i32, i32
  }
  func.func @transform_3(%arg0: i32, %arg1: i32, %arg2: i32) -> (i32, i32) {
    %c0_i32 = arith.constant 0 : i32
    %c0_i32_0 = arith.constant 0 : i32
    %c0_i32_1 = arith.constant 0 : i32
    return %c0_i32, %c0_i32_0 : i32, i32
  }
  func.func @transform_4(%arg0: i32, %arg1: i32, %arg2: i32) -> (i32, i32) {
    %c0_i32 = arith.constant 0 : i32
    %c0_i32_0 = arith.constant 0 : i32
    %c0_i32_1 = arith.constant 0 : i32
    return %c0_i32, %c0_i32_0 : i32, i32
  }
  func.func @transform_5(%arg0: i32, %arg1: i32, %arg2: i32) -> (i32, i32) {
    %c0_i32 = arith.constant 0 : i32
    %c0_i32_0 = arith.constant 0 : i32
    %c0_i32_1 = arith.constant 0 : i32
    return %c0_i32, %c0_i32_0 : i32, i32
  }
  func.func @transform_6(%arg0: i32, %arg1: i32, %arg2: i32) -> (i32, i32) {
    %c0_i32 = arith.constant 0 : i32
    %c0_i32_0 = arith.constant 0 : i32
    %c0_i32_1 = arith.constant 0 : i32
    return %c0_i32, %c0_i32_0 : i32, i32
  }
  func.func @transform_7(%arg0: i32, %arg1: i32, %arg2: i32) -> (i32, i32) {
    %c0_i32 = arith.constant 0 : i32
    %c0_i32_0 = arith.constant 0 : i32
    %c0_i32_1 = arith.constant 0 : i32
    return %c0_i32, %c0_i32_0 : i32, i32
  }
  func.func @transform_8(%arg0: i32, %arg1: i32, %arg2: i32) -> (i32, i32) {
    %c0_i32 = arith.constant 0 : i32
    %c0_i32_0 = arith.constant 0 : i32
    %c0_i32_1 = arith.constant 0 : i32
    return %c0_i32, %c0_i32_0 : i32, i32
  }
  func.func @transform_9(%arg0: i32, %arg1: i32, %arg2: i32) -> (i32, i32, i32) {
    %c1_i32 = arith.constant 1 : i32
    %0 = arith.muli %arg1, %c1_i32 : i32
    %1 = arith.addi %0, %arg2 : i32
    %c0_i32 = arith.constant 0 : i32
    %c0_i32_0 = arith.constant 0 : i32
    return %arg0, %1, %c0_i32 : i32, i32, i32
  }
  func.func @transform_10(%arg0: i32, %arg1: i32, %arg2: i32) -> (i32, i32, i32, i32) {
    %c0_i32 = arith.constant 0 : i32
    %c0_i32_0 = arith.constant 0 : i32
    %c0_i32_1 = arith.constant 0 : i32
    return %arg0, %arg1, %c0_i32, %c0_i32_0 : i32, i32, i32, i32
  }
}

module attributes {stable_mosaic.version = 11 : i64} {
  func.func @kernel(%arg0: i32, %arg1: i32, %arg2: i32, %arg3: memref<1x64x64xbf16, #tpu.memory_space<vmem>>, %arg4: memref<1x64x64xbf16, #tpu.memory_space<vmem>>, %arg5: memref<64x128xbf16, #tpu.memory_space<vmem>>, %arg6: memref<1x128xf32, #tpu.memory_space<vmem>>, %arg7: memref<128x1024xbf16, #tpu.memory_space<vmem>>, %arg8: memref<1x1024xf32, #tpu.memory_space<vmem>>, %arg9: memref<1x1x1x1024xf32, #tpu.memory_space<vmem>>) attributes {dimension_semantics = [#tpu.dimension_semantics<parallel>, #tpu.dimension_semantics<parallel>, #tpu.dimension_semantics<arbitrary>], iteration_bounds = array<i64: 2, 1, 1>, scalar_prefetch = 0 : i64, scratch_operands = 0 : i64, tpu.core_type = #tpu.core_type<tc>, window_params = [{transform_indices = @transform_0, window_bounds = array<i64: 1, 64, 64>}, {transform_indices = @transform_1, window_bounds = array<i64: 1, 64, 64>}, {pipeline_mode = #tpu.pipeline_mode<synchronous>, transform_indices = @transform_2, window_bounds = array<i64: 64, 128>}, {pipeline_mode = #tpu.pipeline_mode<synchronous>, transform_indices = @transform_3, window_bounds = array<i64: 1, 128>}, {pipeline_mode = #tpu.pipeline_mode<synchronous>, transform_indices = @transform_4, window_bounds = array<i64: 128, 1024>}, {pipeline_mode = #tpu.pipeline_mode<synchronous>, transform_indices = @transform_5, window_bounds = array<i64: 1, 1024>}, {transform_indices = @transform_6, window_bounds = array<i64: 1, 1, 1, 1024>}]} {
    %c1_i32 = arith.constant 1 : i32
    %0 = arith.muli %arg1, %c1_i32 : i32
    %1 = arith.addi %0, %arg2 : i32
    %c64_i32 = arith.constant 64 : i32
    %2 = arith.muli %1, %c64_i32 : i32
    %c0 = arith.constant 0 : index
    %c0_0 = arith.constant 0 : index
    %c0_1 = arith.constant 0 : index
    %3 = vector.load %arg4[%c0, %c0_0, %c0_1] : memref<1x64x64xbf16, #tpu.memory_space<vmem>>, vector<1x64x64xbf16>
    %4 = vector.shape_cast %3 : vector<1x64x64xbf16> to vector<64x64xbf16>
    %c0_2 = arith.constant 0 : index
    %c0_3 = arith.constant 0 : index
    %5 = vector.load %arg5[%c0_2, %c0_3] : memref<64x128xbf16, #tpu.memory_space<vmem>>, vector<64x128xbf16>
    %c0_4 = arith.constant 0 : index
    %c0_5 = arith.constant 0 : index
    %6 = vector.load %arg6[%c0_4, %c0_5] : memref<1x128xf32, #tpu.memory_space<vmem>>, vector<1x128xf32>
    %c0_6 = arith.constant 0 : index
    %c0_7 = arith.constant 0 : index
    %7 = vector.load %arg7[%c0_6, %c0_7] : memref<128x1024xbf16, #tpu.memory_space<vmem>>, vector<128x1024xbf16>
    %c0_8 = arith.constant 0 : index
    %c0_9 = arith.constant 0 : index
    %8 = vector.load %arg8[%c0_8, %c0_9] : memref<1x1024xf32, #tpu.memory_space<vmem>>, vector<1x1024xf32>
    %c0_10 = arith.constant 0 : index
    %c0_11 = arith.constant 0 : index
    %c0_12 = arith.constant 0 : index
    %9 = vector.load %arg3[%c0_10, %c0_11, %c0_12] : memref<1x64x64xbf16, #tpu.memory_space<vmem>>, vector<1x64x64xbf16>
    %10 = vector.shape_cast %9 : vector<1x64x64xbf16> to vector<64x64xbf16>
    %cst = arith.constant dense<0.000000e+00> : vector<64x64xf32>
    %11 = tpu.matmul %10, %4, %cst {dimension_numbers = #tpu.dot_dimension_numbers<[1], [0], [0], [1], [0, 0, 1, 1], [], []>} : vector<64x64xbf16>, vector<64x64xbf16>, vector<64x64xf32> -> vector<64x64xf32>
    %12 = arith.truncf %11 : vector<64x64xf32> to vector<64x64xbf16>
    %cst_13 = arith.constant dense<0.000000e+00> : vector<64x128xf32>
    %13 = tpu.matmul %12, %5, %cst_13 {dimension_numbers = #tpu.dot_dimension_numbers<[1], [0], [0], [1], [0, 0, 1, 1], [], []>} : vector<64x64xbf16>, vector<64x128xbf16>, vector<64x128xf32> -> vector<64x128xf32>
    %14 = vector.broadcast %6 : vector<1x128xf32> to vector<64x128xf32>
    %15 = arith.addf %13, %14 : vector<64x128xf32>
    %cst_14 = arith.constant 0.000000e+00 : f32
    %16 = vector.broadcast %cst_14 : f32 to vector<64x128xf32>
    %17 = arith.maximumf %15, %16 : vector<64x128xf32>
    %18 = arith.truncf %17 : vector<64x128xf32> to vector<64x128xbf16>
    %cst_15 = arith.constant dense<0.000000e+00> : vector<64x1024xf32>
    %19 = tpu.matmul %18, %7, %cst_15 {dimension_numbers = #tpu.dot_dimension_numbers<[1], [0], [0], [1], [0, 0, 1, 1], [], []>} : vector<64x128xbf16>, vector<128x1024xbf16>, vector<64x1024xf32> -> vector<64x1024xf32>
    %20 = vector.broadcast %8 : vector<1x1024xf32> to vector<64x1024xf32>
    %21 = arith.addf %19, %20 : vector<64x1024xf32>
    %c0_i32 = arith.constant 0 : i32
    %22 = arith.addi %2, %c0_i32 : i32
    %23 = tpu.iota {dimensions = array<i32: 0>} : vector<64x1xi32>
    %24 = vector.broadcast %22 : i32 to vector<64x1xi32>
    %25 = arith.addi %24, %23 : vector<64x1xi32>
    %c60_i32 = arith.constant 60 : i32
    %26 = vector.broadcast %c60_i32 : i32 to vector<64x1xi32>
    %27 = arith.cmpi slt, %25, %26 : vector<64x1xi32>
    %cst_16 = arith.constant 0xFF800000 : f32
    %28 = vector.shape_cast %27 : vector<64x1xi1> to vector<64x1xi1>
    %29 = vector.broadcast %28 : vector<64x1xi1> to vector<64x1024xi1>
    %30 = vector.broadcast %cst_16 : f32 to vector<64x1024xf32>
    %31 = arith.select %29, %21, %30 : vector<64x1024xi1>, vector<64x1024xf32>
    %cst_17 = arith.constant dense<0xFF800000> : vector<1024xf32>
    %32 = vector.multi_reduction <maximumf>, %31, %cst_17 [0] : vector<64x1024xf32> to vector<1024xf32>
    %33 = vector.shape_cast %32 : vector<1024xf32> to vector<1x1024xf32>
    %c0_i32_18 = arith.constant 0 : i32
    %34 = arith.cmpi eq, %arg2, %c0_i32_18 : i32
    %35 = arith.extui %34 : i1 to i32
    %c0_i32_19 = arith.constant 0 : i32
    %36 = arith.cmpi ne, %35, %c0_i32_19 : i32
    scf.if %36 {
      %c0_22 = arith.constant 0 : index
      %c0_23 = arith.constant 0 : index
      %c0_24 = arith.constant 0 : index
      %c0_25 = arith.constant 0 : index
      %40 = vector.load %arg9[%c0_22, %c0_23, %c0_24, %c0_25] : memref<1x1x1x1024xf32, #tpu.memory_space<vmem>>, vector<1x1x1x1024xf32>
      %41 = vector.shape_cast %40 : vector<1x1x1x1024xf32> to vector<1x1024xf32>
      %42 = vector.shape_cast %33 : vector<1x1024xf32> to vector<1x1x1x1024xf32>
      tpu.vector_store %arg9[%c0_22, %c0_23, %c0_24, %c0_25], %42 {strides = array<i32>} : memref<1x1x1x1024xf32, #tpu.memory_space<vmem>>, vector<1x1x1x1024xf32>,
    } else {
    }
    %c0_i32_20 = arith.constant 0 : i32
    %37 = arith.cmpi sgt, %arg2, %c0_i32_20 : i32
    %38 = arith.extui %37 : i1 to i32
    %c0_i32_21 = arith.constant 0 : i32
    %39 = arith.cmpi ne, %38, %c0_i32_21 : i32
    scf.if %39 {
      %c0_22 = arith.constant 0 : index
      %c0_23 = arith.constant 0 : index
      %c0_24 = arith.constant 0 : index
      %c0_25 = arith.constant 0 : index
      %40 = vector.load %arg9[%c0_22, %c0_23, %c0_24, %c0_25] : memref<1x1x1x1024xf32, #tpu.memory_space<vmem>>, vector<1x1x1x1024xf32>
      %41 = vector.shape_cast %40 : vector<1x1x1x1024xf32> to vector<1x1024xf32>
      %42 = arith.maximumf %41, %33 : vector<1x1024xf32>
      %c0_26 = arith.constant 0 : index
      %c0_27 = arith.constant 0 : index
      %c0_28 = arith.constant 0 : index
      %c0_29 = arith.constant 0 : index
      %43 = vector.load %arg9[%c0_26, %c0_27, %c0_28, %c0_29] : memref<1x1x1x1024xf32, #tpu.memory_space<vmem>>, vector<1x1x1x1024xf32>
      %44 = vector.shape_cast %43 : vector<1x1x1x1024xf32> to vector<1x1024xf32>
      %45 = vector.shape_cast %42 : vector<1x1024xf32> to vector<1x1x1x1024xf32>
      tpu.vector_store %arg9[%c0_26, %c0_27, %c0_28, %c0_29], %45 {strides = array<i32>} : memref<1x1x1x1024xf32, #tpu.memory_space<vmem>>, vector<1x1x1x1024xf32>,
    } else {
    }
    return
  }
  func.func @transform_0(%arg0: i32, %arg1: i32, %arg2: i32) -> (i32, i32, i32) {
    %c1_i32 = arith.constant 1 : i32
    %0 = arith.muli %arg1, %c1_i32 : i32
    %1 = arith.addi %0, %arg2 : i32
    %c0_i32 = arith.constant 0 : i32
    %c0_i32_0 = arith.constant 0 : i32
    return %arg0, %1, %c0_i32 : i32, i32, i32
  }
  func.func @transform_1(%arg0: i32, %arg1: i32, %arg2: i32) -> (i32, i32, i32) {
    %c0_i32 = arith.constant 0 : i32
    %c0_i32_0 = arith.constant 0 : i32
    %c0_i32_1 = arith.constant 0 : i32
    return %arg0, %c0_i32, %c0_i32_0 : i32, i32, i32
  }
  func.func @transform_2(%arg0: i32, %arg1: i32, %arg2: i32) -> (i32, i32) {
    %c0_i32 = arith.constant 0 : i32
    %c0_i32_0 = arith.constant 0 : i32
    %c0_i32_1 = arith.constant 0 : i32
    return %c0_i32, %c0_i32_0 : i32, i32
  }
  func.func @transform_3(%arg0: i32, %arg1: i32, %arg2: i32) -> (i32, i32) {
    %c0_i32 = arith.constant 0 : i32
    %c0_i32_0 = arith.constant 0 : i32
    %c0_i32_1 = arith.constant 0 : i32
    return %c0_i32, %c0_i32_0 : i32, i32
  }
  func.func @transform_4(%arg0: i32, %arg1: i32, %arg2: i32) -> (i32, i32) {
    %c0_i32 = arith.constant 0 : i32
    %c0_i32_0 = arith.constant 0 : i32
    %c0_i32_1 = arith.constant 0 : i32
    return %c0_i32, %c0_i32_0 : i32, i32
  }
  func.func @transform_5(%arg0: i32, %arg1: i32, %arg2: i32) -> (i32, i32) {
    %c0_i32 = arith.constant 0 : i32
    %c0_i32_0 = arith.constant 0 : i32
    %c0_i32_1 = arith.constant 0 : i32
    return %c0_i32, %c0_i32_0 : i32, i32
  }
  func.func @transform_6(%arg0: i32, %arg1: i32, %arg2: i32) -> (i32, i32, i32, i32) {
    %c0_i32 = arith.constant 0 : i32
    %c0_i32_0 = arith.constant 0 : i32
    %c0_i32_1 = arith.constant 0 : i32
    return %arg0, %arg1, %c0_i32, %c0_i32_0 : i32, i32, i32, i32
  }
}

module attributes {stable_mosaic.version = 11 : i64} {
  func.func @_seghead_kernel(%arg0: i32, %arg1: i32, %arg2: memref<1x64x64xbf16, #tpu.memory_space<vmem>>, %arg3: memref<1x64x512xbf16, #tpu.memory_space<vmem>>, %arg4: memref<1x1x512xf32, #tpu.memory_space<vmem>>, %arg5: memref<512x256xbf16, #tpu.memory_space<vmem>>, %arg6: memref<1x256xf32, #tpu.memory_space<vmem>>, %arg7: memref<256x128xbf16, #tpu.memory_space<vmem>>, %arg8: memref<1x128xf32, #tpu.memory_space<vmem>>, %arg9: memref<128x128xbf16, #tpu.memory_space<vmem>>, %arg10: memref<1x128xf32, #tpu.memory_space<vmem>>, %arg11: memref<1x64x128xbf16, #tpu.memory_space<vmem>>) attributes {dimension_semantics = [#tpu.dimension_semantics<parallel>, #tpu.dimension_semantics<parallel>], iteration_bounds = array<i64: 2, 1>, scalar_prefetch = 0 : i64, scratch_operands = 0 : i64, tpu.core_type = #tpu.core_type<tc>, window_params = [{transform_indices = @transform_0, window_bounds = array<i64: 1, 64, 64>}, {transform_indices = @transform_1, window_bounds = array<i64: 1, 64, 512>}, {transform_indices = @transform_2, window_bounds = array<i64: 1, 1, 512>}, {pipeline_mode = #tpu.pipeline_mode<synchronous>, transform_indices = @transform_3, window_bounds = array<i64: 512, 256>}, {pipeline_mode = #tpu.pipeline_mode<synchronous>, transform_indices = @transform_4, window_bounds = array<i64: 1, 256>}, {pipeline_mode = #tpu.pipeline_mode<synchronous>, transform_indices = @transform_5, window_bounds = array<i64: 256, 128>}, {pipeline_mode = #tpu.pipeline_mode<synchronous>, transform_indices = @transform_6, window_bounds = array<i64: 1, 128>}, {pipeline_mode = #tpu.pipeline_mode<synchronous>, transform_indices = @transform_7, window_bounds = array<i64: 128, 128>}, {pipeline_mode = #tpu.pipeline_mode<synchronous>, transform_indices = @transform_8, window_bounds = array<i64: 1, 128>}, {transform_indices = @transform_9, window_bounds = array<i64: 1, 64, 128>}]} {
    %c0 = arith.constant 0 : index
    %c0_0 = arith.constant 0 : index
    %c0_1 = arith.constant 0 : index
    %0 = vector.load %arg2[%c0, %c0_0, %c0_1] : memref<1x64x64xbf16, #tpu.memory_space<vmem>>, vector<1x64x64xbf16>
    %1 = vector.shape_cast %0 : vector<1x64x64xbf16> to vector<64x64xbf16>
    %c0_2 = arith.constant 0 : index
    %c0_3 = arith.constant 0 : index
    %c0_4 = arith.constant 0 : index
    %2 = vector.load %arg3[%c0_2, %c0_3, %c0_4] : memref<1x64x512xbf16, #tpu.memory_space<vmem>>, vector<1x64x512xbf16>
    %3 = vector.shape_cast %2 : vector<1x64x512xbf16> to vector<64x512xbf16>
    %cst = arith.constant dense<0.000000e+00> : vector<64x512xf32>
    %4 = tpu.matmul %1, %3, %cst {dimension_numbers = #tpu.dot_dimension_numbers<[1], [0], [0], [1], [0, 0, 1, 1], [], []>} : vector<64x64xbf16>, vector<64x512xbf16>, vector<64x512xf32> -> vector<64x512xf32>
    %c0_5 = arith.constant 0 : index
    %c0_6 = arith.constant 0 : index
    %c0_7 = arith.constant 0 : index
    %5 = vector.load %arg4[%c0_5, %c0_6, %c0_7] : memref<1x1x512xf32, #tpu.memory_space<vmem>>, vector<1x1x512xf32>
    %6 = vector.shape_cast %5 : vector<1x1x512xf32> to vector<1x512xf32>
    %7 = vector.broadcast %6 : vector<1x512xf32> to vector<64x512xf32>
    %8 = arith.addf %4, %7 : vector<64x512xf32>
    %cst_8 = arith.constant 0.000000e+00 : f32
    %9 = vector.broadcast %cst_8 : f32 to vector<64x512xf32>
    %10 = arith.maximumf %8, %9 : vector<64x512xf32>
    %11 = arith.truncf %10 : vector<64x512xf32> to vector<64x512xbf16>
    %c0_9 = arith.constant 0 : index
    %c0_10 = arith.constant 0 : index
    %12 = vector.load %arg5[%c0_9, %c0_10] : memref<512x256xbf16, #tpu.memory_space<vmem>>, vector<512x256xbf16>
    %cst_11 = arith.constant dense<0.000000e+00> : vector<64x256xf32>
    %13 = tpu.matmul %11, %12, %cst_11 {dimension_numbers = #tpu.dot_dimension_numbers<[1], [0], [0], [1], [0, 0, 1, 1], [], []>} : vector<64x512xbf16>, vector<512x256xbf16>, vector<64x256xf32> -> vector<64x256xf32>
    %c0_12 = arith.constant 0 : index
    %c0_13 = arith.constant 0 : index
    %14 = vector.load %arg6[%c0_12, %c0_13] : memref<1x256xf32, #tpu.memory_space<vmem>>, vector<1x256xf32>
    %15 = vector.broadcast %14 : vector<1x256xf32> to vector<64x256xf32>
    %16 = arith.addf %13, %15 : vector<64x256xf32>
    %cst_14 = arith.constant 0.000000e+00 : f32
    %17 = vector.broadcast %cst_14 : f32 to vector<64x256xf32>
    %18 = arith.maximumf %16, %17 : vector<64x256xf32>
    %19 = arith.truncf %18 : vector<64x256xf32> to vector<64x256xbf16>
    %c0_15 = arith.constant 0 : index
    %c0_16 = arith.constant 0 : index
    %20 = vector.load %arg7[%c0_15, %c0_16] : memref<256x128xbf16, #tpu.memory_space<vmem>>, vector<256x128xbf16>
    %cst_17 = arith.constant dense<0.000000e+00> : vector<64x128xf32>
    %21 = tpu.matmul %19, %20, %cst_17 {dimension_numbers = #tpu.dot_dimension_numbers<[1], [0], [0], [1], [0, 0, 1, 1], [], []>} : vector<64x256xbf16>, vector<256x128xbf16>, vector<64x128xf32> -> vector<64x128xf32>
    %c0_18 = arith.constant 0 : index
    %c0_19 = arith.constant 0 : index
    %22 = vector.load %arg8[%c0_18, %c0_19] : memref<1x128xf32, #tpu.memory_space<vmem>>, vector<1x128xf32>
    %23 = vector.broadcast %22 : vector<1x128xf32> to vector<64x128xf32>
    %24 = arith.addf %21, %23 : vector<64x128xf32>
    %cst_20 = arith.constant 0.000000e+00 : f32
    %25 = vector.broadcast %cst_20 : f32 to vector<64x128xf32>
    %26 = arith.maximumf %24, %25 : vector<64x128xf32>
    %27 = arith.truncf %26 : vector<64x128xf32> to vector<64x128xbf16>
    %c0_21 = arith.constant 0 : index
    %c0_22 = arith.constant 0 : index
    %28 = vector.load %arg9[%c0_21, %c0_22] : memref<128x128xbf16, #tpu.memory_space<vmem>>, vector<128x128xbf16>
    %cst_23 = arith.constant dense<0.000000e+00> : vector<64x128xf32>
    %29 = tpu.matmul %27, %28, %cst_23 {dimension_numbers = #tpu.dot_dimension_numbers<[1], [0], [0], [1], [0, 0, 1, 1], [], []>} : vector<64x128xbf16>, vector<128x128xbf16>, vector<64x128xf32> -> vector<64x128xf32>
    %c0_24 = arith.constant 0 : index
    %c0_25 = arith.constant 0 : index
    %30 = vector.load %arg10[%c0_24, %c0_25] : memref<1x128xf32, #tpu.memory_space<vmem>>, vector<1x128xf32>
    %31 = vector.broadcast %30 : vector<1x128xf32> to vector<64x128xf32>
    %32 = arith.addf %29, %31 : vector<64x128xf32>
    %33 = arith.truncf %32 : vector<64x128xf32> to vector<64x128xbf16>
    %c0_26 = arith.constant 0 : index
    %c0_27 = arith.constant 0 : index
    %c0_28 = arith.constant 0 : index
    %34 = vector.load %arg11[%c0_26, %c0_27, %c0_28] : memref<1x64x128xbf16, #tpu.memory_space<vmem>>, vector<1x64x128xbf16>
    %35 = vector.shape_cast %34 : vector<1x64x128xbf16> to vector<64x128xbf16>
    %36 = vector.shape_cast %33 : vector<64x128xbf16> to vector<1x64x128xbf16>
    tpu.vector_store %arg11[%c0_26, %c0_27, %c0_28], %36 {strides = array<i32>} : memref<1x64x128xbf16, #tpu.memory_space<vmem>>, vector<1x64x128xbf16>,
    return
  }
  func.func @transform_0(%arg0: i32, %arg1: i32) -> (i32, i32, i32) {
    %c0_i32 = arith.constant 0 : i32
    %c0_i32_0 = arith.constant 0 : i32
    return %arg0, %arg1, %c0_i32 : i32, i32, i32
  }
  func.func @transform_1(%arg0: i32, %arg1: i32) -> (i32, i32, i32) {
    %c0_i32 = arith.constant 0 : i32
    %c0_i32_0 = arith.constant 0 : i32
    %c0_i32_1 = arith.constant 0 : i32
    return %arg0, %c0_i32, %c0_i32_0 : i32, i32, i32
  }
  func.func @transform_2(%arg0: i32, %arg1: i32) -> (i32, i32, i32) {
    %c0_i32 = arith.constant 0 : i32
    %c0_i32_0 = arith.constant 0 : i32
    %c0_i32_1 = arith.constant 0 : i32
    return %arg0, %c0_i32, %c0_i32_0 : i32, i32, i32
  }
  func.func @transform_3(%arg0: i32, %arg1: i32) -> (i32, i32) {
    %c0_i32 = arith.constant 0 : i32
    %c0_i32_0 = arith.constant 0 : i32
    %c0_i32_1 = arith.constant 0 : i32
    return %c0_i32, %c0_i32_0 : i32, i32
  }
  func.func @transform_4(%arg0: i32, %arg1: i32) -> (i32, i32) {
    %c0_i32 = arith.constant 0 : i32
    %c0_i32_0 = arith.constant 0 : i32
    %c0_i32_1 = arith.constant 0 : i32
    return %c0_i32, %c0_i32_0 : i32, i32
  }
  func.func @transform_5(%arg0: i32, %arg1: i32) -> (i32, i32) {
    %c0_i32 = arith.constant 0 : i32
    %c0_i32_0 = arith.constant 0 : i32
    %c0_i32_1 = arith.constant 0 : i32
    return %c0_i32, %c0_i32_0 : i32, i32
  }
  func.func @transform_6(%arg0: i32, %arg1: i32) -> (i32, i32) {
    %c0_i32 = arith.constant 0 : i32
    %c0_i32_0 = arith.constant 0 : i32
    %c0_i32_1 = arith.constant 0 : i32
    return %c0_i32, %c0_i32_0 : i32, i32
  }
  func.func @transform_7(%arg0: i32, %arg1: i32) -> (i32, i32) {
    %c0_i32 = arith.constant 0 : i32
    %c0_i32_0 = arith.constant 0 : i32
    %c0_i32_1 = arith.constant 0 : i32
    return %c0_i32, %c0_i32_0 : i32, i32
  }
  func.func @transform_8(%arg0: i32, %arg1: i32) -> (i32, i32) {
    %c0_i32 = arith.constant 0 : i32
    %c0_i32_0 = arith.constant 0 : i32
    %c0_i32_1 = arith.constant 0 : i32
    return %c0_i32, %c0_i32_0 : i32, i32
  }
  func.func @transform_9(%arg0: i32, %arg1: i32) -> (i32, i32, i32) {
    %c0_i32 = arith.constant 0 : i32
    %c0_i32_0 = arith.constant 0 : i32
    return %arg0, %arg1, %c0_i32 : i32, i32, i32
  }
}

</mosaic_0001>

<llo_original>
// kernel: pointnet_segmentation_forward.4
$region0: #{pointnet_segmentation_forward.4}
  #allocation0 [shape = 'u32[]', space=smem, size = 0x4, offset = 0x4, fixed_abs, tag = 'smem constant byte address 0x4 - core index']
  #allocation1 [shape = 'u32[72,128]{1,0:T(1,128)}', space=vmem, size = 0x9000, scoped, tag = 'internal scratch']
  %s0 = inlined_call_operand.vmem [shape: f32[2,64,3], index: 0, kind: input, shape index: {}]
  %s1 = inlined_call_operand.vmem [shape: bf16[3,64], index: 1, kind: input, shape index: {}]
  %s2 = inlined_call_operand.hbm [shape: f32[1,64], index: 2, kind: input, shape index: {}]
  %s3 = inlined_call_operand.vmem [shape: bf16[64,128], index: 3, kind: input, shape index: {}]
  %s4 = inlined_call_operand.hbm [shape: f32[1,128], index: 4, kind: input, shape index: {}]
  %s5 = inlined_call_operand.vmem [shape: bf16[128,1024], index: 5, kind: input, shape index: {}]
  %s6 = inlined_call_operand.hbm [shape: f32[1,1024], index: 6, kind: input, shape index: {}]
  %s7 = inlined_call_operand.vmem [shape: f32[2,1,1,1024], index: 7, kind: output, shape index: {}]
  %s8 = sld [smem:[#allocation0]]
  $region81: #{pointnet_segmentation_forward.4} parent=0
    _
  %s10 = ssub.s32 1, %s8
  %s11 = scalar_select 0, %s10, %s8
  $region1: #{pointnet_segmentation_forward.4} parent=0
    #allocation2 [shape = 'u8[512]{0}', space=vmem, size = 0x400, scoped, tag = 'input window, operand 2, single buffered']
    #allocation3 [shape = 's32[2]{0}', space=sflag, size = 0x8, scoped, tag = 'scoped memory for pointnet_segmentation_forward.4']
    #allocation4 [shape = 'u8[512]{0}', space=vmem, size = 0x400, scoped, tag = 'input window, operand 4, single buffered']
    #allocation5 [shape = 's32[1]{0}', space=sflag, size = 0x4, scoped, tag = 'scoped memory for pointnet_segmentation_forward.4']
    #allocation6 [shape = 'u8[4096]{0}', space=vmem, size = 0x1000, scoped, tag = 'input window, operand 6, single buffered']
    %12 = vsyncpa [#allocation3], 0
    %13 = vsyncpa [#allocation5], 0
    loop: start=0, step=1, limit=4
    $region2: #{pointnet_segmentation_forward.4} parent=1 // loop_pre_header
      _
    $region3: #{pointnet_segmentation_forward.4} parent=1 // loop_header
      %s15 = sphi 0, %s19
      %p16 = scmp.ge.s32.totalorder %s15, 4
      %s22 = sphi 0, %s41
      %s23 = sphi 0, %s37
      %s24 = sphi 0, %s33
      %s25 = sphi 0, %s22
      %s26 = sphi 0, %s23
      %s27 = sphi 0, %s24
      %s28 = sphi 0, %s25
      %s29 = sphi 0, %s26
      %s30 = sphi 0, %s27
      %s48 = sphi 0, %s50
      %s51 = sphi 0, %s48
      %s52 = sphi 0, %s51
      %s68 = sphi 0, %s52
      %s72 = sphi 0, %s72
      %s74 = sphi 0, %s72
      %s75 = sphi 0, %s74
      %s89 = sphi 0, %s75
      %s93 = sphi 0, %s93
      %s95 = sphi 0, %s93
      %s96 = sphi 0, %s95
      %s110 = sphi 0, %s96
      %s114 = sphi 0, %s114
      %s116 = sphi 0, %s114
      %s117 = sphi 0, %s116
      %s131 = sphi 0, %s117
      %s135 = sphi 0, %s135
      %s137 = sphi 0, %s135
      %s138 = sphi 0, %s137
      %s152 = sphi 0, %s138
      %s156 = sphi 0, %s156
      %s158 = sphi 0, %s156
      %s159 = sphi 0, %s158
      %s173 = sphi 0, %s159
      %s177 = sphi 0, %s177
      %s179 = sphi 0, %s177
      %s180 = sphi 0, %s179
      %s194 = sphi 0, %s180
      %s202 = sphi 0, %s204
      %s205 = sphi 0, %s202
      %s206 = sphi 0, %s205
      %s222 = sphi 0, %s206
    $region4: #{pointnet_segmentation_forward.4} parent=1 // loop_header_branch
      %18 = sbr.rel (%p16) target = $region8
    $region5: #{pointnet_segmentation_forward.4} parent=1 // loop_body
      %s20 = ssub.s32 %s15, 1
      %s21 = ssub.s32 %s15, 2
      %s31 = sadd.s32 1, %s24
      %p32 = scmp.ge.s32.totalorder %s31, 1
      %s33 = scalar_select %p32, 0, %s31
      %s34 = sadd.s32 1, %s23
      %s35 = scalar_select %p32, %s34, %s23
      %p36 = scmp.ge.s32.totalorder %s35, 1
      %s37 = scalar_select %p36, 0, %s35
      %s38 = sadd.s32 1, %s22
      %s39 = scalar_select %p36, %s38, %s22
      %p40 = scmp.ge.s32.totalorder %s39, 2
      %s41 = scalar_select %p40, 0, %s39
      %s42 = sadd.s32 %s23, %s24
      %s43 = sadd.s32 %s37, %s33
      %s44 = ssub.s32 %s22, %s41
      %s45 = ssub.s32 %s42, %s43
      %s46 = sor.u32 %s44, %s45
      %p47 = scmp.eq.s32.totalorder %s46, 0
      %s49 = sadd.s32 %s48, 1
      %s50 = scalar_select %p47, %s48, %s49
      %p53 = pneg %p47
      %p54 = scmp.eq.s32.totalorder %s15, 1
      %p55 = por %p53, %p54
      %p56 = scmp.ne.s32.totalorder %s48, %s51
      %p57 = scmp.eq.s32.totalorder %s15, 0
      %p58 = por %p56, %p57
      %p59 = scmp.ne.s32.totalorder %s48, %s51
      %p60 = scmp.eq.s32.totalorder %s20, 1
      %p61 = por %p59, %p60
      %p62 = scmp.ne.s32.totalorder %s51, %s52
      %p63 = scmp.eq.s32.totalorder %s20, 0
      %p64 = por %p62, %p63
      %p65 = scmp.ne.s32.totalorder %s51, %s52
      %p66 = scmp.eq.s32.totalorder %s21, 1
      %p67 = por %p65, %p66
      %p69 = scmp.ne.s32.totalorder %s52, %s68
      %p70 = scmp.eq.s32.totalorder %s21, 0
      %p71 = por %p69, %p70
      %s73 = sadd.s32 %s72, 1
      %p76 = scmp.eq.s32.totalorder %s15, 1
      %p77 = scmp.ne.s32.totalorder %s72, %s74
      %p78 = scmp.eq.s32.totalorder %s15, 0
      %p79 = por %p77, %p78
      %p80 = scmp.ne.s32.totalorder %s72, %s74
      %p81 = scmp.eq.s32.totalorder %s20, 1
      %p82 = por %p80, %p81
      %p83 = scmp.ne.s32.totalorder %s74, %s75
      %p84 = scmp.eq.s32.totalorder %s20, 0
      %p85 = por %p83, %p84
      %p86 = scmp.ne.s32.totalorder %s74, %s75
      %p87 = scmp.eq.s32.totalorder %s21, 1
      %p88 = por %p86, %p87
      %p90 = scmp.ne.s32.totalorder %s75, %s89
      %p91 = scmp.eq.s32.totalorder %s21, 0
      %p92 = por %p90, %p91
      %s94 = sadd.s32 %s93, 1
      %p97 = scmp.eq.s32.totalorder %s15, 1
      %p98 = scmp.ne.s32.totalorder %s93, %s95
      %p99 = scmp.eq.s32.totalorder %s15, 0
      %p100 = por %p98, %p99
      %p101 = scmp.ne.s32.totalorder %s93, %s95
      %p102 = scmp.eq.s32.totalorder %s20, 1
      %p103 = por %p101, %p102
      %p104 = scmp.ne.s32.totalorder %s95, %s96
      %p105 = scmp.eq.s32.totalorder %s20, 0
      %p106 = por %p104, %p105
      %p107 = scmp.ne.s32.totalorder %s95, %s96
      %p108 = scmp.eq.s32.totalorder %s21, 1
      %p109 = por %p107, %p108
      %p111 = scmp.ne.s32.totalorder %s96, %s110
      %p112 = scmp.eq.s32.totalorder %s21, 0
      %p113 = por %p111, %p112
      %s115 = sadd.s32 %s114, 1
      %p118 = scmp.eq.s32.totalorder %s15, 1
      %p119 = scmp.ne.s32.totalorder %s114, %s116
      %p120 = scmp.eq.s32.totalorder %s15, 0
      %p121 = por %p119, %p120
      %p122 = scmp.ne.s32.totalorder %s114, %s116
      %p123 = scmp.eq.s32.totalorder %s20, 1
      %p124 = por %p122, %p123
      %p125 = scmp.ne.s32.totalorder %s116, %s117
      %p126 = scmp.eq.s32.totalorder %s20, 0
      %p127 = por %p125, %p126
      %p128 = scmp.ne.s32.totalorder %s116, %s117
      %p129 = scmp.eq.s32.totalorder %s21, 1
      %p130 = por %p128, %p129
      %p132 = scmp.ne.s32.totalorder %s117, %s131
      %p133 = scmp.eq.s32.totalorder %s21, 0
      %p134 = por %p132, %p133
      %s136 = sadd.s32 %s135, 1
      %p139 = scmp.eq.s32.totalorder %s15, 1
      %p140 = scmp.ne.s32.totalorder %s135, %s137
      %p141 = scmp.eq.s32.totalorder %s15, 0
      %p142 = por %p140, %p141
      %p143 = scmp.ne.s32.totalorder %s135, %s137
      %p144 = scmp.eq.s32.totalorder %s20, 1
      %p145 = por %p143, %p144
      %p146 = scmp.ne.s32.totalorder %s137, %s138
      %p147 = scmp.eq.s32.totalorder %s20, 0
      %p148 = por %p146, %p147
      %p149 = scmp.ne.s32.totalorder %s137, %s138
      %p150 = scmp.eq.s32.totalorder %s21, 1
      %p151 = por %p149, %p150
      %p153 = scmp.ne.s32.totalorder %s138, %s152
      %p154 = scmp.eq.s32.totalorder %s21, 0
      %p155 = por %p153, %p154
      %s157 = sadd.s32 %s156, 1
      %p160 = scmp.eq.s32.totalorder %s15, 1
      %p161 = scmp.ne.s32.totalorder %s156, %s158
      %p162 = scmp.eq.s32.totalorder %s15, 0
      %p163 = por %p161, %p162
      %p164 = scmp.ne.s32.totalorder %s156, %s158
      %p165 = scmp.eq.s32.totalorder %s20, 1
      %p166 = por %p164, %p165
      %p167 = scmp.ne.s32.totalorder %s158, %s159
      %p168 = scmp.eq.s32.totalorder %s20, 0
      %p169 = por %p167, %p168
      %p170 = scmp.ne.s32.totalorder %s158, %s159
      %p171 = scmp.eq.s32.totalorder %s21, 1
      %p172 = por %p170, %p171
      %p174 = scmp.ne.s32.totalorder %s159, %s173
      %p175 = scmp.eq.s32.totalorder %s21, 0
      %p176 = por %p174, %p175
      %s178 = sadd.s32 %s177, 1
      %p181 = scmp.eq.s32.totalorder %s15, 1
      %p182 = scmp.ne.s32.totalorder %s177, %s179
      %p183 = scmp.eq.s32.totalorder %s15, 0
      %p184 = por %p182, %p183
      %p185 = scmp.ne.s32.totalorder %s177, %s179
      %p186 = scmp.eq.s32.totalorder %s20, 1
      %p187 = por %p185, %p186
      %p188 = scmp.ne.s32.totalorder %s179, %s180
      %p189 = scmp.eq.s32.totalorder %s20, 0
      %p190 = por %p188, %p189
      %p191 = scmp.ne.s32.totalorder %s179, %s180
      %p192 = scmp.eq.s32.totalorder %s21, 1
      %p193 = por %p191, %p192
      %p195 = scmp.ne.s32.totalorder %s180, %s194
      %p196 = scmp.eq.s32.totalorder %s21, 0
      %p197 = por %p195, %p196
      %s198 = ssub.s32 %s22, %s41
      %s199 = ssub.s32 %s23, %s37
      %s200 = sor.u32 %s198, %s199
      %p201 = scmp.eq.s32.totalorder %s200, 0
      %s203 = sadd.s32 %s202, 1
      %s204 = scalar_select %p201, %s202, %s203
      %p207 = pneg %p201
      %p208 = scmp.eq.s32.totalorder %s15, 1
      %p209 = por %p207, %p208
      %p210 = scmp.ne.s32.totalorder %s202, %s205
      %p211 = scmp.eq.s32.totalorder %s15, 0
      %p212 = por %p210, %p211
      %p213 = scmp.ne.s32.totalorder %s202, %s205
      %p214 = scmp.eq.s32.totalorder %s20, 1
      %p215 = por %p213, %p214
      %p216 = scmp.ne.s32.totalorder %s205, %s206
      %p217 = scmp.eq.s32.totalorder %s20, 0
      %p218 = por %p216, %p217
      %p219 = scmp.ne.s32.totalorder %s205, %s206
      %p220 = scmp.eq.s32.totalorder %s21, 1
      %p221 = por %p219, %p220
      %p223 = scmp.ne.s32.totalorder %s206, %s222
      %p224 = scmp.eq.s32.totalorder %s21, 0
      %p225 = por %p223, %p224
      %p226 = scmp.le.s32.totalorder 1, %s15
      %p227 = scmp.lt.s32.totalorder %s15, 3
      %p228 = pnand %p226, %p227
      %p229 = pneg %p228
      // Predicated region
      $region9: #{pointnet_segmentation_forward.4} parent=5 // pred_check
        _
      $region10: #{pointnet_segmentation_forward.4} parent=5 // pred_check_branch
        %231 = sbr.rel (%p228) target = $region12
      $region11: #{pointnet_segmentation_forward.4} parent=5 // pred_region
        %s232 = ssub.s32 %s15, 1
        // Predicated region
        $region13: #{pointnet_segmentation_forward.4} parent=11 // pred_check
          %p233 = pneg %p85
        $region14: #{pointnet_segmentation_forward.4} parent=11 // pred_check_branch
          %235 = sbr.rel (%p233) target = $region16
        $region15: #{pointnet_segmentation_forward.4} parent=11 // pred_region
          _
        $region16: #{pointnet_segmentation_forward.4} parent=11 // pred_fallthru
          _
        // Predicated region
        $region17: #{pointnet_segmentation_forward.4} parent=11 // pred_check
          %p236 = pneg %p106
        $region18: #{pointnet_segmentation_forward.4} parent=11 // pred_check_branch
          %238 = sbr.rel (%p236) target = $region20
        $region19: #{pointnet_segmentation_forward.4} parent=11 // pred_region
          %240 = vsyncadd [#allocation3], 0
          %s242 = sshll.u32 %s2, 4
          %s243 = int_to_ptr.hbm [resolvable:$true] %s242
          %s244 = sshll.u32 [#allocation2], 4
          %s245 = int_to_ptr.vmem [resolvable:$true] %s244
          %247 = dma.hbm_to_vmem [thread:$0]  %s243, 16, %s245, [#allocation3]
        $region20: #{pointnet_segmentation_forward.4} parent=11 // pred_fallthru
          _
        // Predicated region
        $region21: #{pointnet_segmentation_forward.4} parent=11 // pred_check
          %p248 = pneg %p127
        $region22: #{pointnet_segmentation_forward.4} parent=11 // pred_check_branch
          %250 = sbr.rel (%p248) target = $region24
        $region23: #{pointnet_segmentation_forward.4} parent=11 // pred_region
          _
        $region24: #{pointnet_segmentation_forward.4} parent=11 // pred_fallthru
          _
        // Predicated region
        $region25: #{pointnet_segmentation_forward.4} parent=11 // pred_check
          %p251 = pneg %p148
        $region26: #{pointnet_segmentation_forward.4} parent=11 // pred_check_branch
          %253 = sbr.rel (%p251) target = $region28
        $region27: #{pointnet_segmentation_forward.4} parent=11 // pred_region
          %255 = vsyncadd [#allocation5], 0
          %s257 = sshll.u32 %s4, 4
          %s258 = int_to_ptr.hbm [resolvable:$true] %s257
          %s259 = sshll.u32 [#allocation4], 4
          %s260 = int_to_ptr.vmem [resolvable:$true] %s259
          %262 = dma.hbm_to_vmem [thread:$0]  %s258, 16, %s260, [#allocation5]
        $region28: #{pointnet_segmentation_forward.4} parent=11 // pred_fallthru
          _
        // Predicated region
        $region29: #{pointnet_segmentation_forward.4} parent=11 // pred_check
          %p263 = pneg %p169
        $region30: #{pointnet_segmentation_forward.4} parent=11 // pred_check_branch
          %265 = sbr.rel (%p263) target = $region32
        $region31: #{pointnet_segmentation_forward.4} parent=11 // pred_region
          _
        $region32: #{pointnet_segmentation_forward.4} parent=11 // pred_fallthru
          _
        // Predicated region
        $region33: #{pointnet_segmentation_forward.4} parent=11 // pred_check
          %p266 = pneg %p190
        $region34: #{pointnet_segmentation_forward.4} parent=11 // pred_check_branch
          %268 = sbr.rel (%p266) target = $region36
        $region35: #{pointnet_segmentation_forward.4} parent=11 // pred_region
          %270 = vsyncadd [#allocation5], 0
          %s272 = sshll.u32 %s6, 4
          %s273 = int_to_ptr.hbm [resolvable:$true] %s272
          %s274 = sshll.u32 [#allocation6], 4
          %s275 = int_to_ptr.vmem [resolvable:$true] %s274
          %277 = dma.hbm_to_vmem [thread:$0]  %s273, 128, %s275, [#allocation5]
        $region36: #{pointnet_segmentation_forward.4} parent=11 // pred_fallthru
          _
      $region12: #{pointnet_segmentation_forward.4} parent=5 // pred_fallthru
        _
      %p278 = scmp.lt.s32.totalorder %s15, 2
      // Predicated region
      $region37: #{pointnet_segmentation_forward.4} parent=5 // pred_check
        %p279 = pneg %p278
      $region38: #{pointnet_segmentation_forward.4} parent=5 // pred_check_branch
        %281 = sbr.rel (%p279) target = $region40
      $region39: #{pointnet_segmentation_forward.4} parent=5 // pred_region
        // Predicated region
        $region41: #{pointnet_segmentation_forward.4} parent=39 // pred_check
          %p282 = pneg %p58
        $region42: #{pointnet_segmentation_forward.4} parent=39 // pred_check_branch
          %284 = sbr.rel (%p282) target = $region44
        $region43: #{pointnet_segmentation_forward.4} parent=39 // pred_region
          %s285 = sadd.s32 %s23, %s24
          %s286 = smul.u32 8, %s285
          %p287 = scmp.lt.s32.totalorder %s22, 1
          %s288 = scalar_select %p287, %s22, 1
          %p289 = scmp.lt.s32.totalorder %s286, 7
          %s290 = scalar_select %p289, %s286, 7
          %s291 = smul.addr %s288, 8
          %s292 = sadd.s32 %s290, %s291
          %s293 = smul.addr %s292, 8
          %s294 = scalar_lea.vmem %s0, %s293
          %s295 = sadd.s32 %s23, %s24
          %s296 = smul.u32 8, %s295
        $region44: #{pointnet_segmentation_forward.4} parent=39 // pred_fallthru
          _
      $region40: #{pointnet_segmentation_forward.4} parent=5 // pred_fallthru
        _
      %p297 = scmp.le.s32.totalorder 1, %s15
      %p298 = scmp.lt.s32.totalorder %s15, 3
      %p299 = pnand %p297, %p298
      %p300 = pneg %p299
      // Predicated region
      $region45: #{pointnet_segmentation_forward.4} parent=5 // pred_check
        _
      $region46: #{pointnet_segmentation_forward.4} parent=5 // pred_check_branch
        %302 = sbr.rel (%p299) target = $region48
      $region47: #{pointnet_segmentation_forward.4} parent=5 // pred_region
        %s303 = ssub.s32 %s15, 1
        // Predicated region
        $region49: #{pointnet_segmentation_forward.4} parent=47 // pred_check
          %p304 = pneg %p106
        $region50: #{pointnet_segmentation_forward.4} parent=47 // pred_check_branch
          %306 = sbr.rel (%p304) target = $region52
        $region51: #{pointnet_segmentation_forward.4} parent=47 // pred_region
          %308 = dma.done [#allocation3], 16
        $region52: #{pointnet_segmentation_forward.4} parent=47 // pred_fallthru
          _
        // Predicated region
        $region53: #{pointnet_segmentation_forward.4} parent=47 // pred_check
          %p309 = pneg %p148
        $region54: #{pointnet_segmentation_forward.4} parent=47 // pred_check_branch
          %311 = sbr.rel (%p309) target = $region56
        $region55: #{pointnet_segmentation_forward.4} parent=47 // pred_region
          %313 = dma.done [#allocation5], 16
        $region56: #{pointnet_segmentation_forward.4} parent=47 // pred_fallthru
          _
        // Predicated region
        $region57: #{pointnet_segmentation_forward.4} parent=47 // pred_check
          %p314 = pneg %p190
        $region58: #{pointnet_segmentation_forward.4} parent=47 // pred_check_branch
          %316 = sbr.rel (%p314) target = $region60
        $region59: #{pointnet_segmentation_forward.4} parent=47 // pred_region
          %318 = dma.done [#allocation5], 128
        $region60: #{pointnet_segmentation_forward.4} parent=47 // pred_fallthru
          _
        %s319 = sadd.s32 %s26, %s27
        %s320 = smul.u32 8, %s319
        %p321 = scmp.lt.s32.totalorder %s25, 1
        %s322 = scalar_select %p321, %s25, 1
        %p323 = scmp.lt.s32.totalorder %s320, 7
        %s324 = scalar_select %p323, %s320, 7
        %s325 = smul.addr %s322, 8
        %s326 = sadd.s32 %s324, %s325
        %s327 = smul.addr %s326, 8
        %s328 = scalar_lea.vmem %s0, %s327
        %p329 = pneg %p64
        %p330 = pneg %p61
        %p331 = pneg %p85
        %p332 = pneg %p82
        %p333 = pneg %p106
        %p334 = pneg %p103
        %p335 = pneg %p127
        %p336 = pneg %p124
        %p337 = pneg %p148
        %p338 = pneg %p145
        %p339 = pneg %p169
        %p340 = pneg %p166
        %p341 = pneg %p190
        %p342 = pneg %p187
        %p343 = pneg %p218
        %p344 = pneg %p215
        %p345 = scmp.lt.s32.totalorder %s25, 1
        %s346 = scalar_select %p345, %s25, 1
        %p347 = scmp.lt.s32.totalorder %s26, 0
        %s348 = scalar_select %p347, %s26, 0
        %s349 = smul.addr %s348, 8
        %s350 = smul.addr %s346, 8
        %s351 = sadd.s32 %s349, %s350
        %s352 = scalar_lea.vmem %s7, %s351
        %s353 = sadd.s32 %s26, %s27
        %s354 = smul.u32 8, %s353
        %p355 = scmp.lt.s32.totalorder %s25, 1
        %s356 = scalar_select %p355, %s25, 1
        %p357 = scmp.lt.s32.totalorder %s354, 7
        %s358 = scalar_select %p357, %s354, 7
        %s359 = smul.addr %s356, 8
        %s360 = sadd.s32 %s358, %s359
        %s361 = smul.addr %s360, 8
        %s362 = scalar_lea.vmem %s0, %s361
        %s363 = sadd.s32 %s26, %s27
        %s364 = smul.u32 8, %s363
        %p365 = scmp.lt.s32.totalorder %s25, 1
        %s366 = scalar_select %p365, %s25, 1
        %p367 = scmp.lt.s32.totalorder %s26, 0
        %s368 = scalar_select %p367, %s26, 0
        %s369 = smul.addr %s368, 8
        %s370 = smul.addr %s366, 8
        %s371 = sadd.s32 %s369, %s370
        %s372 = scalar_lea.vmem %s7, %s371
        %s374 = sadd.s32 %s26, %s27
        %s375 = smul.u32 %s374, 64
        %v376 = vld [vmem:[%s1] sm:$0x3]
        %v377 = vld [vmem:[#allocation2] sm:$0x1]
        %v378 = vld [vmem:[%s3] sm:$0xf]
        %v379 = vld [vmem:[%s3 + $0x4] sm:$0xf]
        %v380 = vld [vmem:[%s3 + $0x8] sm:$0xf]
        %v381 = vld [vmem:[%s3 + $0xc] sm:$0xf]
        %v382 = vld [vmem:[%s3 + $0x10] sm:$0xf]
        %v383 = vld [vmem:[%s3 + $0x14] sm:$0xf]
        %v384 = vld [vmem:[%s3 + $0x18] sm:$0xf]
        %v385 = vld [vmem:[%s3 + $0x1c] sm:$0xf]
        %v386 = vld [vmem:[#allocation4] sm:$0x1]
        %v387 = vld [vmem:[%s5] sm:$0xff]
        %v388 = vld [vmem:[%s5 + $0x8] sm:$0xff]
        %v389 = vld [vmem:[%s5 + $0x10] sm:$0xff]
        %v390 = vld [vmem:[%s5 + $0x18] sm:$0xff]
        %v391 = vld [vmem:[%s5 + $0x20] sm:$0xff]
        %v392 = vld [vmem:[%s5 + $0x28] sm:$0xff]
        %v393 = vld [vmem:[%s5 + $0x30] sm:$0xff]
        %v394 = vld [vmem:[%s5 + $0x38] sm:$0xff]
        %v395 = vld [vmem:[%s5 + $0x40] sm:$0xff]
        %v396 = vld [vmem:[%s5 + $0x48] sm:$0xff]
        %v397 = vld [vmem:[%s5 + $0x50] sm:$0xff]
        %v398 = vld [vmem:[%s5 + $0x58] sm:$0xff]
        %v399 = vld [vmem:[%s5 + $0x60] sm:$0xff]
        %v400 = vld [vmem:[%s5 + $0x68] sm:$0xff]
        %v401 = vld [vmem:[%s5 + $0x70] sm:$0xff]
        %v402 = vld [vmem:[%s5 + $0x78] sm:$0xff]
        %v403 = vld [vmem:[%s5 + $0x80] sm:$0xff]
        %v404 = vld [vmem:[%s5 + $0x88] sm:$0xff]
        %v405 = vld [vmem:[%s5 + $0x90] sm:$0xff]
        %v406 = vld [vmem:[%s5 + $0x98] sm:$0xff]
        %v407 = vld [vmem:[%s5 + $0xa0] sm:$0xff]
        %v408 = vld [vmem:[%s5 + $0xa8] sm:$0xff]
        %v409 = vld [vmem:[%s5 + $0xb0] sm:$0xff]
        %v410 = vld [vmem:[%s5 + $0xb8] sm:$0xff]
        %v411 = vld [vmem:[%s5 + $0xc0] sm:$0xff]
        %v412 = vld [vmem:[%s5 + $0xc8] sm:$0xff]
        %v413 = vld [vmem:[%s5 + $0xd0] sm:$0xff]
        %v414 = vld [vmem:[%s5 + $0xd8] sm:$0xff]
        %v415 = vld [vmem:[%s5 + $0xe0] sm:$0xff]
        %v416 = vld [vmem:[%s5 + $0xe8] sm:$0xff]
        %v417 = vld [vmem:[%s5 + $0xf0] sm:$0xff]
        %v418 = vld [vmem:[%s5 + $0xf8] sm:$0xff]
        %v419 = vld [vmem:[%s5 + $0x100] sm:$0xff]
        %v420 = vld [vmem:[%s5 + $0x108] sm:$0xff]
        %v421 = vld [vmem:[%s5 + $0x110] sm:$0xff]
        %v422 = vld [vmem:[%s5 + $0x118] sm:$0xff]
        %v423 = vld [vmem:[%s5 + $0x120] sm:$0xff]
        %v424 = vld [vmem:[%s5 + $0x128] sm:$0xff]
        %v425 = vld [vmem:[%s5 + $0x130] sm:$0xff]
        %v426 = vld [vmem:[%s5 + $0x138] sm:$0xff]
        %v427 = vld [vmem:[%s5 + $0x140] sm:$0xff]
        %v428 = vld [vmem:[%s5 + $0x148] sm:$0xff]
        %v429 = vld [vmem:[%s5 + $0x150] sm:$0xff]
        %v430 = vld [vmem:[%s5 + $0x158] sm:$0xff]
        %v431 = vld [vmem:[%s5 + $0x160] sm:$0xff]
        %v432 = vld [vmem:[%s5 + $0x168] sm:$0xff]
        %v433 = vld [vmem:[%s5 + $0x170] sm:$0xff]
        %v434 = vld [vmem:[%s5 + $0x178] sm:$0xff]
        %v435 = vld [vmem:[%s5 + $0x180] sm:$0xff]
        %v436 = vld [vmem:[%s5 + $0x188] sm:$0xff]
        %v437 = vld [vmem:[%s5 + $0x190] sm:$0xff]
        %v438 = vld [vmem:[%s5 + $0x198] sm:$0xff]
        %v439 = vld [vmem:[%s5 + $0x1a0] sm:$0xff]
        %v440 = vld [vmem:[%s5 + $0x1a8] sm:$0xff]
        %v441 = vld [vmem:[%s5 + $0x1b0] sm:$0xff]
        %v442 = vld [vmem:[%s5 + $0x1b8] sm:$0xff]
        %v443 = vld [vmem:[%s5 + $0x1c0] sm:$0xff]
        %v444 = vld [vmem:[%s5 + $0x1c8] sm:$0xff]
        %v445 = vld [vmem:[%s5 + $0x1d0] sm:$0xff]
        %v446 = vld [vmem:[%s5 + $0x1d8] sm:$0xff]
        %v447 = vld [vmem:[%s5 + $0x1e0] sm:$0xff]
        %v448 = vld [vmem:[%s5 + $0x1e8] sm:$0xff]
        %v449 = vld [vmem:[%s5 + $0x1f0] sm:$0xff]
        %v450 = vld [vmem:[%s5 + $0x1f8] sm:$0xff]
        %v451 = vld [vmem:[#allocation6] sm:$0xff]
        %v452 = vld [vmem:[%s362] sm:$0xff]
        %v453 = vld [vmem:[%s362 + $0x8] sm:$0xff]
        %v454 = vld [vmem:[%s362 + $0x10] sm:$0xff]
        %v455 = vld [vmem:[%s362 + $0x18] sm:$0xff]
        %v456 = vld [vmem:[%s362 + $0x20] sm:$0xff]
        %v457 = vld [vmem:[%s362 + $0x28] sm:$0xff]
        %v458 = vld [vmem:[%s362 + $0x30] sm:$0xff]
        %v459 = vld [vmem:[%s362 + $0x38] sm:$0xff]
        %v460 = vunpack.c.l.bf16 %v376
        %462 = vset.pattern.permute.xlu0 0
        %463 = vperm.xlu0 %462, %v452
        %v464 = vpop.permute.xlu0 %463
        %467 = vset.pattern.permute.xlu0 0
        %468 = vperm.xlu0 %467, %v453
        %v469 = vpop.permute.xlu0 %468
        %472 = vset.pattern.permute.xlu0 0
        %473 = vperm.xlu0 %472, %v454
        %v474 = vpop.permute.xlu0 %473
        %477 = vset.pattern.permute.xlu0 0
        %478 = vperm.xlu0 %477, %v455
        %v479 = vpop.permute.xlu0 %478
        %482 = vset.pattern.permute.xlu0 0
        %483 = vperm.xlu0 %482, %v456
        %v484 = vpop.permute.xlu0 %483
        %487 = vset.pattern.permute.xlu0 0
        %488 = vperm.xlu0 %487, %v457
        %v489 = vpop.permute.xlu0 %488
        %492 = vset.pattern.permute.xlu0 0
        %493 = vperm.xlu0 %492, %v458
        %v494 = vpop.permute.xlu0 %493
        %497 = vset.pattern.permute.xlu0 0
        %498 = vperm.xlu0 %497, %v459
        %v499 = vpop.permute.xlu0 %498
        %v501 = vperm.slane %v460, 0
        %v502 = vmul.f32 %v464, %v501
        %v503 = vmul.f32 %v469, %v501
        %v504 = vmul.f32 %v474, %v501
        %v505 = vmul.f32 %v479, %v501
        %v506 = vmul.f32 %v484, %v501
        %v507 = vmul.f32 %v489, %v501
        %v508 = vmul.f32 %v494, %v501
        %v509 = vmul.f32 %v499, %v501
        %510 = vset.pattern.permute.xlu0 1
        %511 = vperm.xlu0 %510, %v452
        %v512 = vpop.permute.xlu0 %511
        %514 = vset.pattern.permute.xlu0 1
        %515 = vperm.xlu0 %514, %v453
        %v516 = vpop.permute.xlu0 %515
        %518 = vset.pattern.permute.xlu0 1
        %519 = vperm.xlu0 %518, %v454
        %v520 = vpop.permute.xlu0 %519
        %522 = vset.pattern.permute.xlu0 1
        %523 = vperm.xlu0 %522, %v455
        %v524 = vpop.permute.xlu0 %523
        %526 = vset.pattern.permute.xlu0 1
        %527 = vperm.xlu0 %526, %v456
        %v528 = vpop.permute.xlu0 %527
        %530 = vset.pattern.permute.xlu0 1
        %531 = vperm.xlu0 %530, %v457
        %v532 = vpop.permute.xlu0 %531
        %534 = vset.pattern.permute.xlu0 1
        %535 = vperm.xlu0 %534, %v458
        %v536 = vpop.permute.xlu0 %535
        %538 = vset.pattern.permute.xlu0 1
        %539 = vperm.xlu0 %538, %v459
        %v540 = vpop.permute.xlu0 %539
        %v542 = vperm.slane %v460, 1
        %v543 = vmul.f32 %v512, %v542
        %v544 = vmul.f32 %v516, %v542
        %v545 = vmul.f32 %v520, %v542
        %v546 = vmul.f32 %v524, %v542
        %v547 = vmul.f32 %v528, %v542
        %v548 = vmul.f32 %v532, %v542
        %v549 = vmul.f32 %v536, %v542
        %v550 = vmul.f32 %v540, %v542
        %v551 = vadd.f32 %v502, %v543
        %v552 = vadd.f32 %v503, %v544
        %v553 = vadd.f32 %v504, %v545
        %v554 = vadd.f32 %v505, %v546
        %v555 = vadd.f32 %v506, %v547
        %v556 = vadd.f32 %v507, %v548
        %v557 = vadd.f32 %v508, %v549
        %v558 = vadd.f32 %v509, %v550
        %559 = vset.pattern.permute.xlu0 2
        %560 = vperm.xlu0 %559, %v452
        %v561 = vpop.permute.xlu0 %560
        %563 = vset.pattern.permute.xlu0 2
        %564 = vperm.xlu0 %563, %v453
        %v565 = vpop.permute.xlu0 %564
        %567 = vset.pattern.permute.xlu0 2
        %568 = vperm.xlu0 %567, %v454
        %v569 = vpop.permute.xlu0 %568
        %571 = vset.pattern.permute.xlu0 2
        %572 = vperm.xlu0 %571, %v455
        %v573 = vpop.permute.xlu0 %572
        %575 = vset.pattern.permute.xlu0 2
        %576 = vperm.xlu0 %575, %v456
        %v577 = vpop.permute.xlu0 %576
        %579 = vset.pattern.permute.xlu0 2
        %580 = vperm.xlu0 %579, %v457
        %v581 = vpop.permute.xlu0 %580
        %583 = vset.pattern.permute.xlu0 2
        %584 = vperm.xlu0 %583, %v458
        %v585 = vpop.permute.xlu0 %584
        %587 = vset.pattern.permute.xlu0 2
        %588 = vperm.xlu0 %587, %v459
        %v589 = vpop.permute.xlu0 %588
        %v591 = vperm.slane %v460, 2
        %v592 = vmul.f32 %v561, %v591
        %v593 = vmul.f32 %v565, %v591
        %v594 = vmul.f32 %v569, %v591
        %v595 = vmul.f32 %v573, %v591
        %v596 = vmul.f32 %v577, %v591
        %v597 = vmul.f32 %v581, %v591
        %v598 = vmul.f32 %v585, %v591
        %v599 = vmul.f32 %v589, %v591
        %v600 = vadd.f32 %v551, %v592
        %v601 = vadd.f32 %v552, %v593
        %v602 = vadd.f32 %v553, %v594
        %v603 = vadd.f32 %v554, %v595
        %v604 = vadd.f32 %v555, %v596
        %v605 = vadd.f32 %v556, %v597
        %v606 = vadd.f32 %v557, %v598
        %v607 = vadd.f32 %v558, %v599
        %v609 = vperm.slane %v377, 0
        %v611 = vadd.f32 %v600, %v609
        %v612 = vadd.f32 %v601, %v609
        %v613 = vadd.f32 %v602, %v609
        %v614 = vadd.f32 %v603, %v609
        %v615 = vadd.f32 %v604, %v609
        %v616 = vadd.f32 %v605, %v609
        %v617 = vadd.f32 %v606, %v609
        %v618 = vadd.f32 %v607, %v609
        %v619 = vmax.f32 %v611, 0.0
        %v620 = vmax.f32 %v612, 0.0
        %v621 = vmax.f32 %v613, 0.0
        %v622 = vmax.f32 %v614, 0.0
        %v623 = vmax.f32 %v615, 0.0
        %v624 = vmax.f32 %v616, 0.0
        %v625 = vmax.f32 %v617, 0.0
        %v626 = vmax.f32 %v618, 0.0
        %v627 = vpack.c.bf16 %v620, %v619
        %v628 = vpack.c.bf16 %v622, %v621
        %v629 = vpack.c.bf16 %v624, %v623
        %v630 = vpack.c.bf16 %v626, %v625
        %v632 = vperm.slane %v386, 0
        %v642 = vunpack.c.l.b16 %v378
        %v643 = vunpack.c.l.b16 %v379
        %v644 = vunpack.c.l.b16 %v380
        %v645 = vunpack.c.l.b16 %v381
        %v646 = vunpack.c.l.b16 %v382
        %v647 = vunpack.c.l.b16 %v383
        %v648 = vunpack.c.l.b16 %v384
        %v649 = vunpack.c.l.b16 %v385
        %v650 = vpack.c.b16 %v643, %v642
        %v651 = vpack.c.b16 %v645, %v644
        %v652 = vpack.c.b16 %v647, %v646
        %v653 = vpack.c.b16 %v649, %v648
        %vm658 = vcmask 523264
        %v660 = vsel %vm658, %v627, 0
        %v663 = vsel %vm658, %v628, 0
        %v666 = vsel %vm658, %v629, 0
        %v669 = vsel %vm658, %v630, 0
        %671 = vmatpush.bf16.msra.mxu0 0
        %672 = vmatpush.bf16.msra.mxu0 0
        %673 = vmatpush.bf16.msra.mxu0 0
        %674 = vmatpush.bf16.msra.mxu0 0
        %675 = vmatpush.bf16.msra.mxu0 %v653
        %676 = vmatpush.bf16.msra.mxu0 %v652
        %677 = vmatpush.bf16.msra.mxu0 %v651
        %678 = vmatpush.bf16.msra.mxu0 %v650
        %679 = vmatmul.bf16.gmra.mxu0 %v660
        %v680 = vpop.f32.mrf.mxu0
        %v681 = vadd.f32 %v632, %v680
        %v682 = vpop.f32.mrf.mxu0
        %v683 = vadd.f32 %v632, %v682
        %684 = vmatmul.bf16.gmra.mxu0 %v663
        %v685 = vpop.f32.mrf.mxu0
        %v686 = vadd.f32 %v632, %v685
        %v687 = vpop.f32.mrf.mxu0
        %v688 = vadd.f32 %v632, %v687
        %689 = vmatmul.bf16.gmra.mxu0 %v666
        %v690 = vpop.f32.mrf.mxu0
        %v691 = vadd.f32 %v632, %v690
        %v692 = vpop.f32.mrf.mxu0
        %v693 = vadd.f32 %v632, %v692
        %694 = vmatmul.bf16.gmra.mxu0 %v669
        %v695 = vpop.f32.mrf.mxu0
        %v696 = vadd.f32 %v632, %v695
        %v697 = vpop.f32.mrf.mxu0
        %v698 = vadd.f32 %v632, %v697
        %699 = vdwg.mxu0
        %v700 = vmax.f32 %v681, 0.0
        %v701 = vmax.f32 %v683, 0.0
        %v702 = vmax.f32 %v686, 0.0
        %v703 = vmax.f32 %v688, 0.0
        %v704 = vmax.f32 %v691, 0.0
        %v705 = vmax.f32 %v693, 0.0
        %v706 = vmax.f32 %v696, 0.0
        %v707 = vmax.f32 %v698, 0.0
        %v708 = vpack.c.bf16 %v701, %v700
        %v709 = vpack.c.bf16 %v703, %v702
        %v710 = vpack.c.bf16 %v705, %v704
        %v711 = vpack.c.bf16 %v707, %v706
        %v713 = vperm.slane %v451, 0
        %v714 = vperm.slane %v451, 1
        %v715 = vperm.slane %v451, 2
        %v716 = vperm.slane %v451, 3
        %v717 = vperm.slane %v451, 4
        %v718 = vperm.slane %v451, 5
        %v719 = vperm.slane %v451, 6
        %v720 = vperm.slane %v451, 7
        %v793 = vunpack.c.l.b16 %v387
        %v794 = vunpack.c.h.b16 %v387
        %v795 = vunpack.c.l.b16 %v388
        %v796 = vunpack.c.h.b16 %v388
        %v797 = vunpack.c.l.b16 %v389
        %v798 = vunpack.c.h.b16 %v389
        %v799 = vunpack.c.l.b16 %v390
        %v800 = vunpack.c.h.b16 %v390
        %v801 = vunpack.c.l.b16 %v391
        %v802 = vunpack.c.h.b16 %v391
        %v803 = vunpack.c.l.b16 %v392
        %v804 = vunpack.c.h.b16 %v392
        %v805 = vunpack.c.l.b16 %v393
        %v806 = vunpack.c.h.b16 %v393
        %v807 = vunpack.c.l.b16 %v394
        %v808 = vunpack.c.h.b16 %v394
        %v809 = vunpack.c.l.b16 %v395
        %v810 = vunpack.c.h.b16 %v395
        %v811 = vunpack.c.l.b16 %v396
        %v812 = vunpack.c.h.b16 %v396
        %v813 = vunpack.c.l.b16 %v397
        %v814 = vunpack.c.h.b16 %v397
        %v815 = vunpack.c.l.b16 %v398
        %v816 = vunpack.c.h.b16 %v398
        %v817 = vunpack.c.l.b16 %v399
        %v818 = vunpack.c.h.b16 %v399
        %v819 = vunpack.c.l.b16 %v400
        %v820 = vunpack.c.h.b16 %v400
        %v821 = vunpack.c.l.b16 %v401
        %v822 = vunpack.c.h.b16 %v401
        %v823 = vunpack.c.l.b16 %v402
        %v824 = vunpack.c.h.b16 %v402
        %v825 = vunpack.c.l.b16 %v403
        %v826 = vunpack.c.h.b16 %v403
        %v827 = vunpack.c.l.b16 %v404
        %v828 = vunpack.c.h.b16 %v404
        %v829 = vunpack.c.l.b16 %v405
        %v830 = vunpack.c.h.b16 %v405
        %v831 = vunpack.c.l.b16 %v406
        %v832 = vunpack.c.h.b16 %v406
        %v833 = vunpack.c.l.b16 %v407
        %v834 = vunpack.c.h.b16 %v407
        %v835 = vunpack.c.l.b16 %v408
        %v836 = vunpack.c.h.b16 %v408
        %v837 = vunpack.c.l.b16 %v409
        %v838 = vunpack.c.h.b16 %v409
        %v839 = vunpack.c.l.b16 %v410
        %v840 = vunpack.c.h.b16 %v410
        %v841 = vunpack.c.l.b16 %v411
        %v842 = vunpack.c.h.b16 %v411
        %v843 = vunpack.c.l.b16 %v412
        %v844 = vunpack.c.h.b16 %v412
        %v845 = vunpack.c.l.b16 %v413
        %v846 = vunpack.c.h.b16 %v413
        %v847 = vunpack.c.l.b16 %v414
        %v848 = vunpack.c.h.b16 %v414
        %v849 = vunpack.c.l.b16 %v415
        %v850 = vunpack.c.h.b16 %v415
        %v851 = vunpack.c.l.b16 %v416
        %v852 = vunpack.c.h.b16 %v416
        %v853 = vunpack.c.l.b16 %v417
        %v854 = vunpack.c.h.b16 %v417
        %v855 = vunpack.c.l.b16 %v418
        %v856 = vunpack.c.h.b16 %v418
        %v857 = vunpack.c.l.b16 %v419
        %v858 = vunpack.c.h.b16 %v419
        %v859 = vunpack.c.l.b16 %v420
        %v860 = vunpack.c.h.b16 %v420
        %v861 = vunpack.c.l.b16 %v421
        %v862 = vunpack.c.h.b16 %v421
        %v863 = vunpack.c.l.b16 %v422
        %v864 = vunpack.c.h.b16 %v422
        %v865 = vunpack.c.l.b16 %v423
        %v866 = vunpack.c.h.b16 %v423
        %v867 = vunpack.c.l.b16 %v424
        %v868 = vunpack.c.h.b16 %v424
        %v869 = vunpack.c.l.b16 %v425
        %v870 = vunpack.c.h.b16 %v425
        %v871 = vunpack.c.l.b16 %v426
        %v872 = vunpack.c.h.b16 %v426
        %v873 = vunpack.c.l.b16 %v427
        %v874 = vunpack.c.h.b16 %v427
        %v875 = vunpack.c.l.b16 %v428
        %v876 = vunpack.c.h.b16 %v428
        %v877 = vunpack.c.l.b16 %v429
        %v878 = vunpack.c.h.b16 %v429
        %v879 = vunpack.c.l.b16 %v430
        %v880 = vunpack.c.h.b16 %v430
        %v881 = vunpack.c.l.b16 %v431
        %v882 = vunpack.c.h.b16 %v431
        %v883 = vunpack.c.l.b16 %v432
        %v884 = vunpack.c.h.b16 %v432
        %v885 = vunpack.c.l.b16 %v433
        %v886 = vunpack.c.h.b16 %v433
        %v887 = vunpack.c.l.b16 %v434
        %v888 = vunpack.c.h.b16 %v434
        %v889 = vunpack.c.l.b16 %v435
        %v890 = vunpack.c.h.b16 %v435
        %v891 = vunpack.c.l.b16 %v436
        %v892 = vunpack.c.h.b16 %v436
        %v893 = vunpack.c.l.b16 %v437
        %v894 = vunpack.c.h.b16 %v437
        %v895 = vunpack.c.l.b16 %v438
        %v896 = vunpack.c.h.b16 %v438
        %v897 = vunpack.c.l.b16 %v439
        %v898 = vunpack.c.h.b16 %v439
        %v899 = vunpack.c.l.b16 %v440
        %v900 = vunpack.c.h.b16 %v440
        %v901 = vunpack.c.l.b16 %v441
        %v902 = vunpack.c.h.b16 %v441
        %v903 = vunpack.c.l.b16 %v442
        %v904 = vunpack.c.h.b16 %v442
        %v905 = vunpack.c.l.b16 %v443
        %v906 = vunpack.c.h.b16 %v443
        %v907 = vunpack.c.l.b16 %v444
        %v908 = vunpack.c.h.b16 %v444
        %v909 = vunpack.c.l.b16 %v445
        %v910 = vunpack.c.h.b16 %v445
        %v911 = vunpack.c.l.b16 %v446
        %v912 = vunpack.c.h.b16 %v446
        %v913 = vunpack.c.l.b16 %v447
        %v914 = vunpack.c.h.b16 %v447
        %v915 = vunpack.c.l.b16 %v448
        %v916 = vunpack.c.h.b16 %v448
        %v917 = vunpack.c.l.b16 %v449
        %v918 = vunpack.c.h.b16 %v449
        %v919 = vunpack.c.l.b16 %v450
        %v920 = vunpack.c.h.b16 %v450
        %v921 = vpack.c.b16 %v801, %v793
        %v922 = vpack.c.b16 %v802, %v794
        %v923 = vpack.c.b16 %v803, %v795
        %v924 = vpack.c.b16 %v804, %v796
        %v925 = vpack.c.b16 %v805, %v797
        %v926 = vpack.c.b16 %v806, %v798
        %v927 = vpack.c.b16 %v807, %v799
        %v928 = vpack.c.b16 %v808, %v800
        %v929 = vpack.c.b16 %v817, %v809
        %v930 = vpack.c.b16 %v818, %v810
        %v931 = vpack.c.b16 %v819, %v811
        %v932 = vpack.c.b16 %v820, %v812
        %v933 = vpack.c.b16 %v821, %v813
        %v934 = vpack.c.b16 %v822, %v814
        %v935 = vpack.c.b16 %v823, %v815
        %v936 = vpack.c.b16 %v824, %v816
        %v937 = vpack.c.b16 %v833, %v825
        %v938 = vpack.c.b16 %v834, %v826
        %v939 = vpack.c.b16 %v835, %v827
        %v940 = vpack.c.b16 %v836, %v828
        %v941 = vpack.c.b16 %v837, %v829
        %v942 = vpack.c.b16 %v838, %v830
        %v943 = vpack.c.b16 %v839, %v831
        %v944 = vpack.c.b16 %v840, %v832
        %v945 = vpack.c.b16 %v849, %v841
        %v946 = vpack.c.b16 %v850, %v842
        %v947 = vpack.c.b16 %v851, %v843
        %v948 = vpack.c.b16 %v852, %v844
        %v949 = vpack.c.b16 %v853, %v845
        %v950 = vpack.c.b16 %v854, %v846
        %v951 = vpack.c.b16 %v855, %v847
        %v952 = vpack.c.b16 %v856, %v848
        %v953 = vpack.c.b16 %v865, %v857
        %v954 = vpack.c.b16 %v866, %v858
        %v955 = vpack.c.b16 %v867, %v859
        %v956 = vpack.c.b16 %v868, %v860
        %v957 = vpack.c.b16 %v869, %v861
        %v958 = vpack.c.b16 %v870, %v862
        %v959 = vpack.c.b16 %v871, %v863
        %v960 = vpack.c.b16 %v872, %v864
        %v961 = vpack.c.b16 %v881, %v873
        %v962 = vpack.c.b16 %v882, %v874
        %v963 = vpack.c.b16 %v883, %v875
        %v964 = vpack.c.b16 %v884, %v876
        %v965 = vpack.c.b16 %v885, %v877
        %v966 = vpack.c.b16 %v886, %v878
        %v967 = vpack.c.b16 %v887, %v879
        %v968 = vpack.c.b16 %v888, %v880
        %v969 = vpack.c.b16 %v897, %v889
        %v970 = vpack.c.b16 %v898, %v890
        %v971 = vpack.c.b16 %v899, %v891
        %v972 = vpack.c.b16 %v900, %v892
        %v973 = vpack.c.b16 %v901, %v893
        %v974 = vpack.c.b16 %v902, %v894
        %v975 = vpack.c.b16 %v903, %v895
        %v976 = vpack.c.b16 %v904, %v896
        %v977 = vpack.c.b16 %v913, %v905
        %v978 = vpack.c.b16 %v914, %v906
        %v979 = vpack.c.b16 %v915, %v907
        %v980 = vpack.c.b16 %v916, %v908
        %v981 = vpack.c.b16 %v917, %v909
        %v982 = vpack.c.b16 %v918, %v910
        %v983 = vpack.c.b16 %v919, %v911
        %v984 = vpack.c.b16 %v920, %v912
        %1049 = vmatpush.bf16.msra.mxu0 %v977
        %1050 = vmatpush.bf16.msra.mxu0 %v969
        %1051 = vmatpush.bf16.msra.mxu0 %v961
        %1052 = vmatpush.bf16.msra.mxu0 %v953
        %1053 = vmatpush.bf16.msra.mxu0 %v945
        %1054 = vmatpush.bf16.msra.mxu0 %v937
        %1055 = vmatpush.bf16.msra.mxu0 %v929
        %1056 = vmatpush.bf16.msra.mxu0 %v921
        %1057 = vmatmul.bf16.gmra.mxu0 %v708
        %v1058 = vpop.f32.mrf.mxu0
        %v1059 = vadd.f32 %v713, %v1058
        %v1060 = vpop.f32.mrf.mxu0
        %v1061 = vadd.f32 %v713, %v1060
        %1062 = vmatmul.bf16.gmra.mxu0 %v709
        %v1063 = vpop.f32.mrf.mxu0
        %v1064 = vadd.f32 %v713, %v1063
        %v1065 = vpop.f32.mrf.mxu0
        %v1066 = vadd.f32 %v713, %v1065
        %1067 = vmatmul.bf16.gmra.mxu0 %v710
        %v1068 = vpop.f32.mrf.mxu0
        %v1069 = vadd.f32 %v713, %v1068
        %v1070 = vpop.f32.mrf.mxu0
        %v1071 = vadd.f32 %v713, %v1070
        %1072 = vmatmul.bf16.gmra.mxu0 %v711
        %v1073 = vpop.f32.mrf.mxu0
        %v1074 = vadd.f32 %v713, %v1073
        %v1075 = vpop.f32.mrf.mxu0
        %v1076 = vadd.f32 %v713, %v1075
        %1077 = vdwg.mxu0
        %1078 = vmatpush.bf16.msra.mxu0 %v978
        %1079 = vmatpush.bf16.msra.mxu0 %v970
        %1080 = vmatpush.bf16.msra.mxu0 %v962
        %1081 = vmatpush.bf16.msra.mxu0 %v954
        %1082 = vmatpush.bf16.msra.mxu0 %v946
        %1083 = vmatpush.bf16.msra.mxu0 %v938
        %1084 = vmatpush.bf16.msra.mxu0 %v930
        %1085 = vmatpush.bf16.msra.mxu0 %v922
        %1086 = vmatmul.bf16.gmra.mxu0 %v708
        %v1087 = vpop.f32.mrf.mxu0
        %v1088 = vadd.f32 %v714, %v1087
        %v1089 = vpop.f32.mrf.mxu0
        %v1090 = vadd.f32 %v714, %v1089
        %1091 = vmatmul.bf16.gmra.mxu0 %v709
        %v1092 = vpop.f32.mrf.mxu0
        %v1093 = vadd.f32 %v714, %v1092
        %v1094 = vpop.f32.mrf.mxu0
        %v1095 = vadd.f32 %v714, %v1094
        %1096 = vmatmul.bf16.gmra.mxu0 %v710
        %v1097 = vpop.f32.mrf.mxu0
        %v1098 = vadd.f32 %v714, %v1097
        %v1099 = vpop.f32.mrf.mxu0
        %v1100 = vadd.f32 %v714, %v1099
        %1101 = vmatmul.bf16.gmra.mxu0 %v711
        %v1102 = vpop.f32.mrf.mxu0
        %v1103 = vadd.f32 %v714, %v1102
        %v1104 = vpop.f32.mrf.mxu0
        %v1105 = vadd.f32 %v714, %v1104
        %1106 = vdwg.mxu0
        %1107 = vmatpush.bf16.msra.mxu0 %v979
        %1108 = vmatpush.bf16.msra.mxu0 %v971
        %1109 = vmatpush.bf16.msra.mxu0 %v963
        %1110 = vmatpush.bf16.msra.mxu0 %v955
        %1111 = vmatpush.bf16.msra.mxu0 %v947
        %1112 = vmatpush.bf16.msra.mxu0 %v939
        %1113 = vmatpush.bf16.msra.mxu0 %v931
        %1114 = vmatpush.bf16.msra.mxu0 %v923
        %1115 = vmatmul.bf16.gmra.mxu0 %v708
        %v1116 = vpop.f32.mrf.mxu0
        %v1117 = vadd.f32 %v715, %v1116
        %v1118 = vpop.f32.mrf.mxu0
        %v1119 = vadd.f32 %v715, %v1118
        %1120 = vmatmul.bf16.gmra.mxu0 %v709
        %v1121 = vpop.f32.mrf.mxu0
        %v1122 = vadd.f32 %v715, %v1121
        %v1123 = vpop.f32.mrf.mxu0
        %v1124 = vadd.f32 %v715, %v1123
        %1125 = vmatmul.bf16.gmra.mxu0 %v710
        %v1126 = vpop.f32.mrf.mxu0
        %v1127 = vadd.f32 %v715, %v1126
        %v1128 = vpop.f32.mrf.mxu0
        %v1129 = vadd.f32 %v715, %v1128
        %1130 = vmatmul.bf16.gmra.mxu0 %v711
        %v1131 = vpop.f32.mrf.mxu0
        %v1132 = vadd.f32 %v715, %v1131
        %v1133 = vpop.f32.mrf.mxu0
        %v1134 = vadd.f32 %v715, %v1133
        %1135 = vdwg.mxu0
        %1136 = vmatpush.bf16.msra.mxu0 %v980
        %1137 = vmatpush.bf16.msra.mxu0 %v972
        %1138 = vmatpush.bf16.msra.mxu0 %v964
        %1139 = vmatpush.bf16.msra.mxu0 %v956
        %1140 = vmatpush.bf16.msra.mxu0 %v948
        %1141 = vmatpush.bf16.msra.mxu0 %v940
        %1142 = vmatpush.bf16.msra.mxu0 %v932
        %1143 = vmatpush.bf16.msra.mxu0 %v924
        %1144 = vmatmul.bf16.gmra.mxu0 %v708
        %v1145 = vpop.f32.mrf.mxu0
        %v1146 = vadd.f32 %v716, %v1145
        %v1147 = vpop.f32.mrf.mxu0
        %v1148 = vadd.f32 %v716, %v1147
        %1149 = vmatmul.bf16.gmra.mxu0 %v709
        %v1150 = vpop.f32.mrf.mxu0
        %v1151 = vadd.f32 %v716, %v1150
        %v1152 = vpop.f32.mrf.mxu0
        %v1153 = vadd.f32 %v716, %v1152
        %1154 = vmatmul.bf16.gmra.mxu0 %v710
        %v1155 = vpop.f32.mrf.mxu0
        %v1156 = vadd.f32 %v716, %v1155
        %v1157 = vpop.f32.mrf.mxu0
        %v1158 = vadd.f32 %v716, %v1157
        %1159 = vmatmul.bf16.gmra.mxu0 %v711
        %v1160 = vpop.f32.mrf.mxu0
        %v1161 = vadd.f32 %v716, %v1160
        %v1162 = vpop.f32.mrf.mxu0
        %v1163 = vadd.f32 %v716, %v1162
        %1164 = vdwg.mxu0
        %1165 = vmatpush.bf16.msra.mxu0 %v981
        %1166 = vmatpush.bf16.msra.mxu0 %v973
        %1167 = vmatpush.bf16.msra.mxu0 %v965
        %1168 = vmatpush.bf16.msra.mxu0 %v957
        %1169 = vmatpush.bf16.msra.mxu0 %v949
        %1170 = vmatpush.bf16.msra.mxu0 %v941
        %1171 = vmatpush.bf16.msra.mxu0 %v933
        %1172 = vmatpush.bf16.msra.mxu0 %v925
        %1173 = vmatmul.bf16.gmra.mxu0 %v708
        %v1174 = vpop.f32.mrf.mxu0
        %v1175 = vadd.f32 %v717, %v1174
        %v1176 = vpop.f32.mrf.mxu0
        %v1177 = vadd.f32 %v717, %v1176
        %1178 = vmatmul.bf16.gmra.mxu0 %v709
        %v1179 = vpop.f32.mrf.mxu0
        %v1180 = vadd.f32 %v717, %v1179
        %v1181 = vpop.f32.mrf.mxu0
        %v1182 = vadd.f32 %v717, %v1181
        %1183 = vmatmul.bf16.gmra.mxu0 %v710
        %v1184 = vpop.f32.mrf.mxu0
        %v1185 = vadd.f32 %v717, %v1184
        %v1186 = vpop.f32.mrf.mxu0
        %v1187 = vadd.f32 %v717, %v1186
        %1188 = vmatmul.bf16.gmra.mxu0 %v711
        %v1189 = vpop.f32.mrf.mxu0
        %v1190 = vadd.f32 %v717, %v1189
        %v1191 = vpop.f32.mrf.mxu0
        %v1192 = vadd.f32 %v717, %v1191
        %1193 = vdwg.mxu0
        %1194 = vmatpush.bf16.msra.mxu0 %v982
        %1195 = vmatpush.bf16.msra.mxu0 %v974
        %1196 = vmatpush.bf16.msra.mxu0 %v966
        %1197 = vmatpush.bf16.msra.mxu0 %v958
        %1198 = vmatpush.bf16.msra.mxu0 %v950
        %1199 = vmatpush.bf16.msra.mxu0 %v942
        %1200 = vmatpush.bf16.msra.mxu0 %v934
        %1201 = vmatpush.bf16.msra.mxu0 %v926
        %1202 = vmatmul.bf16.gmra.mxu0 %v708
        %v1203 = vpop.f32.mrf.mxu0
        %v1204 = vadd.f32 %v718, %v1203
        %v1205 = vpop.f32.mrf.mxu0
        %v1206 = vadd.f32 %v718, %v1205
        %1207 = vmatmul.bf16.gmra.mxu0 %v709
        %v1208 = vpop.f32.mrf.mxu0
        %v1209 = vadd.f32 %v718, %v1208
        %v1210 = vpop.f32.mrf.mxu0
        %v1211 = vadd.f32 %v718, %v1210
        %1212 = vmatmul.bf16.gmra.mxu0 %v710
        %v1213 = vpop.f32.mrf.mxu0
        %v1214 = vadd.f32 %v718, %v1213
        %v1215 = vpop.f32.mrf.mxu0
        %v1216 = vadd.f32 %v718, %v1215
        %1217 = vmatmul.bf16.gmra.mxu0 %v711
        %v1218 = vpop.f32.mrf.mxu0
        %v1219 = vadd.f32 %v718, %v1218
        %v1220 = vpop.f32.mrf.mxu0
        %v1221 = vadd.f32 %v718, %v1220
        %1222 = vdwg.mxu0
        %1223 = vmatpush.bf16.msra.mxu0 %v983
        %1224 = vmatpush.bf16.msra.mxu0 %v975
        %1225 = vmatpush.bf16.msra.mxu0 %v967
        %1226 = vmatpush.bf16.msra.mxu0 %v959
        %1227 = vmatpush.bf16.msra.mxu0 %v951
        %1228 = vmatpush.bf16.msra.mxu0 %v943
        %1229 = vmatpush.bf16.msra.mxu0 %v935
        %1230 = vmatpush.bf16.msra.mxu0 %v927
        %1231 = vmatmul.bf16.gmra.mxu0 %v708
        %v1232 = vpop.f32.mrf.mxu0
        %v1233 = vadd.f32 %v719, %v1232
        %v1234 = vpop.f32.mrf.mxu0
        %v1235 = vadd.f32 %v719, %v1234
        %1236 = vmatmul.bf16.gmra.mxu0 %v709
        %v1237 = vpop.f32.mrf.mxu0
        %v1238 = vadd.f32 %v719, %v1237
        %v1239 = vpop.f32.mrf.mxu0
        %v1240 = vadd.f32 %v719, %v1239
        %1241 = vmatmul.bf16.gmra.mxu0 %v710
        %v1242 = vpop.f32.mrf.mxu0
        %v1243 = vadd.f32 %v719, %v1242
        %v1244 = vpop.f32.mrf.mxu0
        %v1245 = vadd.f32 %v719, %v1244
        %1246 = vmatmul.bf16.gmra.mxu0 %v711
        %v1247 = vpop.f32.mrf.mxu0
        %v1248 = vadd.f32 %v719, %v1247
        %v1249 = vpop.f32.mrf.mxu0
        %v1250 = vadd.f32 %v719, %v1249
        %1251 = vdwg.mxu0
        %1252 = vmatpush.bf16.msra.mxu0 %v984
        %1253 = vmatpush.bf16.msra.mxu0 %v976
        %1254 = vmatpush.bf16.msra.mxu0 %v968
        %1255 = vmatpush.bf16.msra.mxu0 %v960
        %1256 = vmatpush.bf16.msra.mxu0 %v952
        %1257 = vmatpush.bf16.msra.mxu0 %v944
        %1258 = vmatpush.bf16.msra.mxu0 %v936
        %1259 = vmatpush.bf16.msra.mxu0 %v928
        %1260 = vmatmul.bf16.gmra.mxu0 %v708
        %v1261 = vpop.f32.mrf.mxu0
        %v1262 = vadd.f32 %v720, %v1261
        %v1263 = vpop.f32.mrf.mxu0
        %v1264 = vadd.f32 %v720, %v1263
        %1265 = vmatmul.bf16.gmra.mxu0 %v709
        %v1266 = vpop.f32.mrf.mxu0
        %v1267 = vadd.f32 %v720, %v1266
        %v1268 = vpop.f32.mrf.mxu0
        %v1269 = vadd.f32 %v720, %v1268
        %1270 = vmatmul.bf16.gmra.mxu0 %v710
        %v1271 = vpop.f32.mrf.mxu0
        %v1272 = vadd.f32 %v720, %v1271
        %v1273 = vpop.f32.mrf.mxu0
        %v1274 = vadd.f32 %v720, %v1273
        %1275 = vmatmul.bf16.gmra.mxu0 %v711
        %v1276 = vpop.f32.mrf.mxu0
        %v1277 = vadd.f32 %v720, %v1276
        %v1278 = vpop.f32.mrf.mxu0
        %v1279 = vadd.f32 %v720, %v1278
        %1280 = vdwg.mxu0
        %v1281 = vmax.f32 %v1059, 0.0
        %v1282 = vmax.f32 %v1088, 0.0
        %v1283 = vmax.f32 %v1117, 0.0
        %v1284 = vmax.f32 %v1146, 0.0
        %v1285 = vmax.f32 %v1175, 0.0
        %v1286 = vmax.f32 %v1204, 0.0
        %v1287 = vmax.f32 %v1233, 0.0
        %v1288 = vmax.f32 %v1262, 0.0
        %v1289 = vmax.f32 %v1061, 0.0
        %v1290 = vmax.f32 %v1090, 0.0
        %v1291 = vmax.f32 %v1119, 0.0
        %v1292 = vmax.f32 %v1148, 0.0
        %v1293 = vmax.f32 %v1177, 0.0
        %v1294 = vmax.f32 %v1206, 0.0
        %v1295 = vmax.f32 %v1235, 0.0
        %v1296 = vmax.f32 %v1264, 0.0
        %v1297 = vmax.f32 %v1064, 0.0
        %v1298 = vmax.f32 %v1093, 0.0
        %v1299 = vmax.f32 %v1122, 0.0
        %v1300 = vmax.f32 %v1151, 0.0
        %v1301 = vmax.f32 %v1180, 0.0
        %v1302 = vmax.f32 %v1209, 0.0
        %v1303 = vmax.f32 %v1238, 0.0
        %v1304 = vmax.f32 %v1267, 0.0
        %v1305 = vmax.f32 %v1066, 0.0
        %v1306 = vmax.f32 %v1095, 0.0
        %v1307 = vmax.f32 %v1124, 0.0
        %v1308 = vmax.f32 %v1153, 0.0
        %v1309 = vmax.f32 %v1182, 0.0
        %v1310 = vmax.f32 %v1211, 0.0
        %v1311 = vmax.f32 %v1240, 0.0
        %v1312 = vmax.f32 %v1269, 0.0
        %v1313 = vmax.f32 %v1069, 0.0
        %v1314 = vmax.f32 %v1098, 0.0
        %v1315 = vmax.f32 %v1127, 0.0
        %v1316 = vmax.f32 %v1156, 0.0
        %v1317 = vmax.f32 %v1185, 0.0
        %v1318 = vmax.f32 %v1214, 0.0
        %v1319 = vmax.f32 %v1243, 0.0
        %v1320 = vmax.f32 %v1272, 0.0
        %v1321 = vmax.f32 %v1071, 0.0
        %v1322 = vmax.f32 %v1100, 0.0
        %v1323 = vmax.f32 %v1129, 0.0
        %v1324 = vmax.f32 %v1158, 0.0
        %v1325 = vmax.f32 %v1187, 0.0
        %v1326 = vmax.f32 %v1216, 0.0
        %v1327 = vmax.f32 %v1245, 0.0
        %v1328 = vmax.f32 %v1274, 0.0
        %v1329 = vmax.f32 %v1074, 0.0
        %v1330 = vmax.f32 %v1103, 0.0
        %v1331 = vmax.f32 %v1132, 0.0
        %v1332 = vmax.f32 %v1161, 0.0
        %v1333 = vmax.f32 %v1190, 0.0
        %v1334 = vmax.f32 %v1219, 0.0
        %v1335 = vmax.f32 %v1248, 0.0
        %v1336 = vmax.f32 %v1277, 0.0
        %v1337 = vmax.f32 %v1076, 0.0
        %v1338 = vmax.f32 %v1105, 0.0
        %v1339 = vmax.f32 %v1134, 0.0
        %v1340 = vmax.f32 %v1163, 0.0
        %v1341 = vmax.f32 %v1192, 0.0
        %v1342 = vmax.f32 %v1221, 0.0
        %v1343 = vmax.f32 %v1250, 0.0
        %v1344 = vmax.f32 %v1279, 0.0
        %v1345 = vlaneseq
        %v1346 = vshrl.u32 %v1345, 7
        %v1347 = vadd.s32 %v1346, 8
        %v1348 = vadd.s32 %v1346, 16
        %v1349 = vadd.s32 %v1346, 24
        %v1350 = vadd.s32 %v1346, 32
        %v1351 = vadd.s32 %v1346, 40
        %v1352 = vadd.s32 %v1346, 48
        %v1353 = vadd.s32 %v1346, 56
        %v1354 = vstv %s375
        %v1355 = vadd.s32 %v1354, %v1346
        %v1356 = vadd.s32 %v1354, %v1347
        %v1357 = vadd.s32 %v1354, %v1348
        %v1358 = vadd.s32 %v1354, %v1349
        %v1359 = vadd.s32 %v1354, %v1350
        %v1360 = vadd.s32 %v1354, %v1351
        %v1361 = vadd.s32 %v1354, %v1352
        %v1362 = vadd.s32 %v1354, %v1353
        %vm1363 = vcmp.lt.s32.totalorder %v1355, 60
        %vm1364 = vcmp.lt.s32.totalorder %v1356, 60
        %vm1365 = vcmp.lt.s32.totalorder %v1357, 60
        %vm1366 = vcmp.lt.s32.totalorder %v1358, 60
        %vm1367 = vcmp.lt.s32.totalorder %v1359, 60
        %vm1368 = vcmp.lt.s32.totalorder %v1360, 60
        %vm1369 = vcmp.lt.s32.totalorder %v1361, 60
        %vm1370 = vcmp.lt.s32.totalorder %v1362, 60
        %v1371 = vsel %vm1363, 1, 0
        %v1372 = vsel %vm1364, 1, 0
        %v1373 = vsel %vm1365, 1, 0
        %v1374 = vsel %vm1366, 1, 0
        %v1375 = vsel %vm1367, 1, 0
        %v1376 = vsel %vm1368, 1, 0
        %v1377 = vsel %vm1369, 1, 0
        %v1378 = vsel %vm1370, 1, 0
        %vm1379 = vcmp.eq.s32.totalorder %v1371, 1
        %vm1380 = vcmp.eq.s32.totalorder %v1372, 1
        %vm1381 = vcmp.eq.s32.totalorder %v1373, 1
        %vm1382 = vcmp.eq.s32.totalorder %v1374, 1
        %vm1383 = vcmp.eq.s32.totalorder %v1375, 1
        %vm1384 = vcmp.eq.s32.totalorder %v1376, 1
        %vm1385 = vcmp.eq.s32.totalorder %v1377, 1
        %vm1386 = vcmp.eq.s32.totalorder %v1378, 1
        %v1387 = vsel %vm1379, %v1281, -inf
        %v1388 = vsel %vm1379, %v1282, -inf
        %v1389 = vsel %vm1379, %v1283, -inf
        %v1390 = vsel %vm1379, %v1284, -inf
        %v1391 = vsel %vm1379, %v1285, -inf
        %v1392 = vsel %vm1379, %v1286, -inf
        %v1393 = vsel %vm1379, %v1287, -inf
        %v1394 = vsel %vm1379, %v1288, -inf
        %v1395 = vsel %vm1380, %v1289, -inf
        %v1396 = vsel %vm1380, %v1290, -inf
        %v1397 = vsel %vm1380, %v1291, -inf
        %v1398 = vsel %vm1380, %v1292, -inf
        %v1399 = vsel %vm1380, %v1293, -inf
        %v1400 = vsel %vm1380, %v1294, -inf
        %v1401 = vsel %vm1380, %v1295, -inf
        %v1402 = vsel %vm1380, %v1296, -inf
        %v1403 = vsel %vm1381, %v1297, -inf
        %v1404 = vsel %vm1381, %v1298, -inf
        %v1405 = vsel %vm1381, %v1299, -inf
        %v1406 = vsel %vm1381, %v1300, -inf
        %v1407 = vsel %vm1381, %v1301, -inf
        %v1408 = vsel %vm1381, %v1302, -inf
        %v1409 = vsel %vm1381, %v1303, -inf
        %v1410 = vsel %vm1381, %v1304, -inf
        %v1411 = vsel %vm1382, %v1305, -inf
        %v1412 = vsel %vm1382, %v1306, -inf
        %v1413 = vsel %vm1382, %v1307, -inf
        %v1414 = vsel %vm1382, %v1308, -inf
        %v1415 = vsel %vm1382, %v1309, -inf
        %v1416 = vsel %vm1382, %v1310, -inf
        %v1417 = vsel %vm1382, %v1311, -inf
        %v1418 = vsel %vm1382, %v1312, -inf
        %v1419 = vsel %vm1383, %v1313, -inf
        %v1420 = vsel %vm1383, %v1314, -inf
        %v1421 = vsel %vm1383, %v1315, -inf
        %v1422 = vsel %vm1383, %v1316, -inf
        %v1423 = vsel %vm1383, %v1317, -inf
        %v1424 = vsel %vm1383, %v1318, -inf
        %v1425 = vsel %vm1383, %v1319, -inf
        %v1426 = vsel %vm1383, %v1320, -inf
        %v1427 = vsel %vm1384, %v1321, -inf
        %v1428 = vsel %vm1384, %v1322, -inf
        %v1429 = vsel %vm1384, %v1323, -inf
        %v1430 = vsel %vm1384, %v1324, -inf
        %v1431 = vsel %vm1384, %v1325, -inf
        %v1432 = vsel %vm1384, %v1326, -inf
        %v1433 = vsel %vm1384, %v1327, -inf
        %v1434 = vsel %vm1384, %v1328, -inf
        %v1435 = vsel %vm1385, %v1329, -inf
        %v1436 = vsel %vm1385, %v1330, -inf
        %v1437 = vsel %vm1385, %v1331, -inf
        %v1438 = vsel %vm1385, %v1332, -inf
        %v1439 = vsel %vm1385, %v1333, -inf
        %v1440 = vsel %vm1385, %v1334, -inf
        %v1441 = vsel %vm1385, %v1335, -inf
        %v1442 = vsel %vm1385, %v1336, -inf
        %v1443 = vsel %vm1386, %v1337, -inf
        %v1444 = vsel %vm1386, %v1338, -inf
        %v1445 = vsel %vm1386, %v1339, -inf
        %v1446 = vsel %vm1386, %v1340, -inf
        %v1447 = vsel %vm1386, %v1341, -inf
        %v1448 = vsel %vm1386, %v1342, -inf
        %v1449 = vsel %vm1386, %v1343, -inf
        %v1450 = vsel %vm1386, %v1344, -inf
        %v1451 = vmax.f32 %v1387, %v1395
        %v1452 = vmax.f32 %v1451, %v1403
        %v1453 = vmax.f32 %v1452, %v1411
        %v1454 = vmax.f32 %v1453, %v1419
        %v1455 = vmax.f32 %v1454, %v1427
        %v1456 = vmax.f32 %v1455, %v1435
        %v1457 = vmax.f32 %v1456, %v1443
        %v1458 = vrot.slane %v1457, 4
        %v1459 = vmax.f32 %v1457, %v1458
        %v1460 = vrot.slane %v1459, 2
        %v1461 = vmax.f32 %v1459, %v1460
        %v1462 = vrot.slane %v1461, 1
        %v1463 = vmax.f32 %v1461, %v1462
        %v1464 = vmax.f32 %v1388, %v1396
        %v1465 = vmax.f32 %v1464, %v1404
        %v1466 = vmax.f32 %v1465, %v1412
        %v1467 = vmax.f32 %v1466, %v1420
        %v1468 = vmax.f32 %v1467, %v1428
        %v1469 = vmax.f32 %v1468, %v1436
        %v1470 = vmax.f32 %v1469, %v1444
        %v1471 = vrot.slane %v1470, 4
        %v1472 = vmax.f32 %v1470, %v1471
        %v1473 = vrot.slane %v1472, 2
        %v1474 = vmax.f32 %v1472, %v1473
        %v1475 = vrot.slane %v1474, 1
        %v1476 = vmax.f32 %v1474, %v1475
        %v1477 = vmax.f32 %v1389, %v1397
        %v1478 = vmax.f32 %v1477, %v1405
        %v1479 = vmax.f32 %v1478, %v1413
        %v1480 = vmax.f32 %v1479, %v1421
        %v1481 = vmax.f32 %v1480, %v1429
        %v1482 = vmax.f32 %v1481, %v1437
        %v1483 = vmax.f32 %v1482, %v1445
        %v1484 = vrot.slane %v1483, 4
        %v1485 = vmax.f32 %v1483, %v1484
        %v1486 = vrot.slane %v1485, 2
        %v1487 = vmax.f32 %v1485, %v1486
        %v1488 = vrot.slane %v1487, 1
        %v1489 = vmax.f32 %v1487, %v1488
        %v1490 = vmax.f32 %v1390, %v1398
        %v1491 = vmax.f32 %v1490, %v1406
        %v1492 = vmax.f32 %v1491, %v1414
        %v1493 = vmax.f32 %v1492, %v1422
        %v1494 = vmax.f32 %v1493, %v1430
        %v1495 = vmax.f32 %v1494, %v1438
        %v1496 = vmax.f32 %v1495, %v1446
        %v1497 = vrot.slane %v1496, 4
        %v1498 = vmax.f32 %v1496, %v1497
        %v1499 = vrot.slane %v1498, 2
        %v1500 = vmax.f32 %v1498, %v1499
        %v1501 = vrot.slane %v1500, 1
        %v1502 = vmax.f32 %v1500, %v1501
        %v1503 = vmax.f32 %v1391, %v1399
        %v1504 = vmax.f32 %v1503, %v1407
        %v1505 = vmax.f32 %v1504, %v1415
        %v1506 = vmax.f32 %v1505, %v1423
        %v1507 = vmax.f32 %v1506, %v1431
        %v1508 = vmax.f32 %v1507, %v1439
        %v1509 = vmax.f32 %v1508, %v1447
        %v1510 = vrot.slane %v1509, 4
        %v1511 = vmax.f32 %v1509, %v1510
        %v1512 = vrot.slane %v1511, 2
        %v1513 = vmax.f32 %v1511, %v1512
        %v1514 = vrot.slane %v1513, 1
        %v1515 = vmax.f32 %v1513, %v1514
        %v1516 = vmax.f32 %v1392, %v1400
        %v1517 = vmax.f32 %v1516, %v1408
        %v1518 = vmax.f32 %v1517, %v1416
        %v1519 = vmax.f32 %v1518, %v1424
        %v1520 = vmax.f32 %v1519, %v1432
        %v1521 = vmax.f32 %v1520, %v1440
        %v1522 = vmax.f32 %v1521, %v1448
        %v1523 = vrot.slane %v1522, 4
        %v1524 = vmax.f32 %v1522, %v1523
        %v1525 = vrot.slane %v1524, 2
        %v1526 = vmax.f32 %v1524, %v1525
        %v1527 = vrot.slane %v1526, 1
        %v1528 = vmax.f32 %v1526, %v1527
        %v1529 = vmax.f32 %v1393, %v1401
        %v1530 = vmax.f32 %v1529, %v1409
        %v1531 = vmax.f32 %v1530, %v1417
        %v1532 = vmax.f32 %v1531, %v1425
        %v1533 = vmax.f32 %v1532, %v1433
        %v1534 = vmax.f32 %v1533, %v1441
        %v1535 = vmax.f32 %v1534, %v1449
        %v1536 = vrot.slane %v1535, 4
        %v1537 = vmax.f32 %v1535, %v1536
        %v1538 = vrot.slane %v1537, 2
        %v1539 = vmax.f32 %v1537, %v1538
        %v1540 = vrot.slane %v1539, 1
        %v1541 = vmax.f32 %v1539, %v1540
        %v1542 = vmax.f32 %v1394, %v1402
        %v1543 = vmax.f32 %v1542, %v1410
        %v1544 = vmax.f32 %v1543, %v1418
        %v1545 = vmax.f32 %v1544, %v1426
        %v1546 = vmax.f32 %v1545, %v1434
        %v1547 = vmax.f32 %v1546, %v1442
        %v1548 = vmax.f32 %v1547, %v1450
        %v1549 = vrot.slane %v1548, 4
        %v1550 = vmax.f32 %v1548, %v1549
        %v1551 = vrot.slane %v1550, 2
        %v1552 = vmax.f32 %v1550, %v1551
        %v1553 = vrot.slane %v1552, 1
        %v1554 = vmax.f32 %v1552, %v1553
        %p1555 = scmp.eq.s32.totalorder %s27, 0
        // Predicated region
        $region61: #{pointnet_segmentation_forward.4} parent=47 // pred_check
          %p1556 = pneg %p1555
        $region62: #{pointnet_segmentation_forward.4} parent=47 // pred_check_branch
          %1558 = sbr.rel (%p1556) target = $region64
        $region63: #{pointnet_segmentation_forward.4} parent=47 // pred_region
          %v1567 = vrot.slane %v1476, 7
          %v1568 = vrot.slane %v1489, 6
          %v1569 = vrot.slane %v1502, 5
          %v1570 = vrot.slane %v1515, 4
          %v1571 = vrot.slane %v1528, 3
          %v1572 = vrot.slane %v1541, 2
          %v1573 = vrot.slane %v1554, 1
          %vm1574 = vcmask 1040384
          %v1575 = vsel %vm1574, %v1463, %v1567
          %vm1576 = vcmask 1042434
          %v1577 = vsel %vm1576, %v1568, %v1569
          %vm1578 = vcmask 1041408
          %v1579 = vsel %vm1578, %v1575, %v1577
          %vm1580 = vcmask 1044484
          %v1581 = vsel %vm1580, %v1570, %v1571
          %vm1582 = vcmask 1046534
          %v1583 = vsel %vm1582, %v1572, %v1573
          %vm1584 = vcmask 1045508
          %v1585 = vsel %vm1584, %v1581, %v1583
          %vm1586 = vcmask 1043456
          %v1587 = vsel %vm1586, %v1579, %v1585
          %1589 = vst [vmem:[%s372] sm:$0xff] %v1587
        $region64: #{pointnet_segmentation_forward.4} parent=47 // pred_fallthru
          _
        %p1590 = scmp.gt.s32.totalorder %s27, 0
        // Predicated region
        $region65: #{pointnet_segmentation_forward.4} parent=47 // pred_check
          %p1591 = pneg %p1590
        $region66: #{pointnet_segmentation_forward.4} parent=47 // pred_check_branch
          %1593 = sbr.rel (%p1591) target = $region68
        $region67: #{pointnet_segmentation_forward.4} parent=47 // pred_region
          %v1594 = vld [vmem:[%s372] sm:$0xff]
          %v1603 = vrot.slane %v1476, 7
          %v1604 = vrot.slane %v1489, 6
          %v1605 = vrot.slane %v1502, 5
          %v1606 = vrot.slane %v1515, 4
          %v1607 = vrot.slane %v1528, 3
          %v1608 = vrot.slane %v1541, 2
          %v1609 = vrot.slane %v1554, 1
          %vm1610 = vcmask 1040384
          %v1611 = vsel %vm1610, %v1463, %v1603
          %vm1612 = vcmask 1042434
          %v1613 = vsel %vm1612, %v1604, %v1605
          %vm1614 = vcmask 1041408
          %v1615 = vsel %vm1614, %v1611, %v1613
          %vm1616 = vcmask 1044484
          %v1617 = vsel %vm1616, %v1606, %v1607
          %vm1618 = vcmask 1046534
          %v1619 = vsel %vm1618, %v1608, %v1609
          %vm1620 = vcmask 1045508
          %v1621 = vsel %vm1620, %v1617, %v1619
          %vm1622 = vcmask 1043456
          %v1623 = vsel %vm1622, %v1615, %v1621
          %v1625 = vmax.f32 %v1594, %v1623
          %1626 = vst [vmem:[%s372] sm:$0xff] %v1625
        $region68: #{pointnet_segmentation_forward.4} parent=47 // pred_fallthru
          _
        %p1627 = scmp.lt.s32.totalorder %s25, 1
        %s1628 = scalar_select %p1627, %s25, 1
        %p1629 = scmp.lt.s32.totalorder %s26, 0
        %s1630 = scalar_select %p1629, %s26, 0
        %s1631 = smul.addr %s1630, 8
        %s1632 = smul.addr %s1628, 8
        %s1633 = sadd.s32 %s1631, %s1632
        %s1634 = scalar_lea.vmem %s7, %s1633
        // Predicated region
        $region69: #{pointnet_segmentation_forward.4} parent=47 // pred_check
          %p1635 = pneg %p215
        $region70: #{pointnet_segmentation_forward.4} parent=47 // pred_check_branch
          %1637 = sbr.rel (%p1635) target = $region72
        $region71: #{pointnet_segmentation_forward.4} parent=47 // pred_region
          _
        $region72: #{pointnet_segmentation_forward.4} parent=47 // pred_fallthru
          _
      $region48: #{pointnet_segmentation_forward.4} parent=5 // pred_fallthru
        _
      %p1638 = scmp.le.s32.totalorder 2, %s15
      // Predicated region
      $region73: #{pointnet_segmentation_forward.4} parent=5 // pred_check
        %p1639 = pneg %p1638
      $region74: #{pointnet_segmentation_forward.4} parent=5 // pred_check_branch
        %1641 = sbr.rel (%p1639) target = $region76
      $region75: #{pointnet_segmentation_forward.4} parent=5 // pred_region
        %s1642 = ssub.s32 %s15, 2
        // Predicated region
        $region77: #{pointnet_segmentation_forward.4} parent=75 // pred_check
          %p1643 = pneg %p221
        $region78: #{pointnet_segmentation_forward.4} parent=75 // pred_check_branch
          %1645 = sbr.rel (%p1643) target = $region80
        $region79: #{pointnet_segmentation_forward.4} parent=75 // pred_region
          %p1646 = scmp.lt.s32.totalorder %s28, 1
          %s1647 = scalar_select %p1646, %s28, 1
          %p1648 = scmp.lt.s32.totalorder %s29, 0
          %s1649 = scalar_select %p1648, %s29, 0
          %s1650 = smul.addr %s1649, 8
          %s1651 = smul.addr %s1647, 8
          %s1652 = sadd.s32 %s1650, %s1651
          %s1653 = scalar_lea.vmem %s7, %s1652
        $region80: #{pointnet_segmentation_forward.4} parent=75 // pred_fallthru
          _
      $region76: #{pointnet_segmentation_forward.4} parent=5 // pred_fallthru
        _
    $region6: #{pointnet_segmentation_forward.4} parent=1 // loop_footer
      %s19 = sadd.s32 1, %s15
    $region7: #{pointnet_segmentation_forward.4} parent=1 // loop_footer_branch
      %14 = sbr.rel target = $region3
    $region8: #{pointnet_segmentation_forward.4} parent=1 // loop_exit
      _
    %1654 = vsyncpa [#allocation3], 1
    %s1655 = scalar_lea.sflag [#allocation3], 1
    %1656 = vsyncpa %s1655, 1
    %1657 = vsyncpa [#allocation5], 1

// kernel: pointnet_segmentation_forward.5
$region0: #{pointnet_segmentation_forward.5}
  #allocation0 [shape = 'u32[]', space=smem, size = 0x4, offset = 0x4, fixed_abs, tag = 'smem constant byte address 0x4 - core index']
  #allocation1 [shape = 'u32[72,128]{1,0:T(1,128)}', space=vmem, size = 0x9000, scoped, tag = 'internal scratch']
  %s0 = inlined_call_operand.vmem [shape: f32[2,64,3], index: 0, kind: input, shape index: {}]
  %s1 = inlined_call_operand.vmem [shape: bf16[2,3,64], index: 1, kind: input, shape index: {}]
  %s2 = inlined_call_operand.vmem [shape: f32[1,64], index: 2, kind: input, shape index: {}]
  %s3 = inlined_call_operand.vmem [shape: bf16[64,64], index: 3, kind: input, shape index: {}]
  %s4 = inlined_call_operand.vmem [shape: f32[1,64], index: 4, kind: input, shape index: {}]
  %s5 = inlined_call_operand.vmem [shape: bf16[64,128], index: 5, kind: input, shape index: {}]
  %s6 = inlined_call_operand.vmem [shape: f32[1,128], index: 6, kind: input, shape index: {}]
  %s7 = inlined_call_operand.vmem [shape: bf16[128,1024], index: 7, kind: input, shape index: {}]
  %s8 = inlined_call_operand.vmem [shape: f32[1,1024], index: 8, kind: input, shape index: {}]
  %s9 = inlined_call_operand.vmem [shape: bf16[2,64,64], index: 9, kind: output, shape index: {0}]
  %s10 = inlined_call_operand.vmem [shape: f32[2,1,1,1024], index: 10, kind: output, shape index: {1}]
  %11 = xla_tuple %s9, %s10
  %s12 = sld [smem:[#allocation0]]
  $region85: #{pointnet_segmentation_forward.5} parent=0
    _
  %s14 = ssub.s32 1, %s12
  %s15 = scalar_select 0, %s14, %s12
  loop: start=0, step=1, limit=4
  $region2: #{pointnet_segmentation_forward.5} parent=0 // loop_pre_header
    _
  $region3: #{pointnet_segmentation_forward.5} parent=0 // loop_header
    %s17 = sphi 0, %s21
    %p18 = scmp.ge.s32.totalorder %s17, 4
    %s24 = sphi 0, %s43
    %s25 = sphi 0, %s39
    %s26 = sphi 0, %s35
    %s27 = sphi 0, %s24
    %s28 = sphi 0, %s25
    %s29 = sphi 0, %s26
    %s30 = sphi 0, %s27
    %s31 = sphi 0, %s28
    %s32 = sphi 0, %s29
    %s50 = sphi 0, %s52
    %s53 = sphi 0, %s50
    %s54 = sphi 0, %s53
    %s70 = sphi 0, %s54
    %s76 = sphi 0, %s78
    %s79 = sphi 0, %s76
    %s80 = sphi 0, %s79
    %s96 = sphi 0, %s80
    %s100 = sphi 0, %s100
    %s102 = sphi 0, %s100
    %s103 = sphi 0, %s102
    %s117 = sphi 0, %s103
    %s121 = sphi 0, %s121
    %s123 = sphi 0, %s121
    %s124 = sphi 0, %s123
    %s138 = sphi 0, %s124
    %s142 = sphi 0, %s142
    %s144 = sphi 0, %s142
    %s145 = sphi 0, %s144
    %s159 = sphi 0, %s145
    %s163 = sphi 0, %s163
    %s165 = sphi 0, %s163
    %s166 = sphi 0, %s165
    %s180 = sphi 0, %s166
    %s184 = sphi 0, %s184
    %s186 = sphi 0, %s184
    %s187 = sphi 0, %s186
    %s201 = sphi 0, %s187
    %s205 = sphi 0, %s205
    %s207 = sphi 0, %s205
    %s208 = sphi 0, %s207
    %s222 = sphi 0, %s208
    %s226 = sphi 0, %s226
    %s228 = sphi 0, %s226
    %s229 = sphi 0, %s228
    %s243 = sphi 0, %s229
    %s253 = sphi 0, %s255
    %s256 = sphi 0, %s253
    %s257 = sphi 0, %s256
    %s273 = sphi 0, %s257
    %s281 = sphi 0, %s283
    %s284 = sphi 0, %s281
    %s285 = sphi 0, %s284
    %s301 = sphi 0, %s285
  $region4: #{pointnet_segmentation_forward.5} parent=0 // loop_header_branch
    %20 = sbr.rel (%p18) target = $region8
  $region5: #{pointnet_segmentation_forward.5} parent=0 // loop_body
    %s22 = ssub.s32 %s17, 1
    %s23 = ssub.s32 %s17, 2
    %s33 = sadd.s32 1, %s26
    %p34 = scmp.ge.s32.totalorder %s33, 1
    %s35 = scalar_select %p34, 0, %s33
    %s36 = sadd.s32 1, %s25
    %s37 = scalar_select %p34, %s36, %s25
    %p38 = scmp.ge.s32.totalorder %s37, 1
    %s39 = scalar_select %p38, 0, %s37
    %s40 = sadd.s32 1, %s24
    %s41 = scalar_select %p38, %s40, %s24
    %p42 = scmp.ge.s32.totalorder %s41, 2
    %s43 = scalar_select %p42, 0, %s41
    %s44 = sadd.s32 %s25, %s26
    %s45 = sadd.s32 %s39, %s35
    %s46 = ssub.s32 %s24, %s43
    %s47 = ssub.s32 %s44, %s45
    %s48 = sor.u32 %s46, %s47
    %p49 = scmp.eq.s32.totalorder %s48, 0
    %s51 = sadd.s32 %s50, 1
    %s52 = scalar_select %p49, %s50, %s51
    %p55 = pneg %p49
    %p56 = scmp.eq.s32.totalorder %s17, 1
    %p57 = por %p55, %p56
    %p58 = scmp.ne.s32.totalorder %s50, %s53
    %p59 = scmp.eq.s32.totalorder %s17, 0
    %p60 = por %p58, %p59
    %p61 = scmp.ne.s32.totalorder %s50, %s53
    %p62 = scmp.eq.s32.totalorder %s22, 1
    %p63 = por %p61, %p62
    %p64 = scmp.ne.s32.totalorder %s53, %s54
    %p65 = scmp.eq.s32.totalorder %s22, 0
    %p66 = por %p64, %p65
    %p67 = scmp.ne.s32.totalorder %s53, %s54
    %p68 = scmp.eq.s32.totalorder %s23, 1
    %p69 = por %p67, %p68
    %p71 = scmp.ne.s32.totalorder %s54, %s70
    %p72 = scmp.eq.s32.totalorder %s23, 0
    %p73 = por %p71, %p72
    %s74 = ssub.s32 %s24, %s43
    %p75 = scmp.eq.s32.totalorder %s74, 0
    %s77 = sadd.s32 %s76, 1
    %s78 = scalar_select %p75, %s76, %s77
    %p81 = pneg %p75
    %p82 = scmp.eq.s32.totalorder %s17, 1
    %p83 = por %p81, %p82
    %p84 = scmp.ne.s32.totalorder %s76, %s79
    %p85 = scmp.eq.s32.totalorder %s17, 0
    %p86 = por %p84, %p85
    %p87 = scmp.ne.s32.totalorder %s76, %s79
    %p88 = scmp.eq.s32.totalorder %s22, 1
    %p89 = por %p87, %p88
    %p90 = scmp.ne.s32.totalorder %s79, %s80
    %p91 = scmp.eq.s32.totalorder %s22, 0
    %p92 = por %p90, %p91
    %p93 = scmp.ne.s32.totalorder %s79, %s80
    %p94 = scmp.eq.s32.totalorder %s23, 1
    %p95 = por %p93, %p94
    %p97 = scmp.ne.s32.totalorder %s80, %s96
    %p98 = scmp.eq.s32.totalorder %s23, 0
    %p99 = por %p97, %p98
    %s101 = sadd.s32 %s100, 1
    %p104 = scmp.eq.s32.totalorder %s17, 1
    %p105 = scmp.ne.s32.totalorder %s100, %s102
    %p106 = scmp.eq.s32.totalorder %s17, 0
    %p107 = por %p105, %p106
    %p108 = scmp.ne.s32.totalorder %s100, %s102
    %p109 = scmp.eq.s32.totalorder %s22, 1
    %p110 = por %p108, %p109
    %p111 = scmp.ne.s32.totalorder %s102, %s103
    %p112 = scmp.eq.s32.totalorder %s22, 0
    %p113 = por %p111, %p112
    %p114 = scmp.ne.s32.totalorder %s102, %s103
    %p115 = scmp.eq.s32.totalorder %s23, 1
    %p116 = por %p114, %p115
    %p118 = scmp.ne.s32.totalorder %s103, %s117
    %p119 = scmp.eq.s32.totalorder %s23, 0
    %p120 = por %p118, %p119
    %s122 = sadd.s32 %s121, 1
    %p125 = scmp.eq.s32.totalorder %s17, 1
    %p126 = scmp.ne.s32.totalorder %s121, %s123
    %p127 = scmp.eq.s32.totalorder %s17, 0
    %p128 = por %p126, %p127
    %p129 = scmp.ne.s32.totalorder %s121, %s123
    %p130 = scmp.eq.s32.totalorder %s22, 1
    %p131 = por %p129, %p130
    %p132 = scmp.ne.s32.totalorder %s123, %s124
    %p133 = scmp.eq.s32.totalorder %s22, 0
    %p134 = por %p132, %p133
    %p135 = scmp.ne.s32.totalorder %s123, %s124
    %p136 = scmp.eq.s32.totalorder %s23, 1
    %p137 = por %p135, %p136
    %p139 = scmp.ne.s32.totalorder %s124, %s138
    %p140 = scmp.eq.s32.totalorder %s23, 0
    %p141 = por %p139, %p140
    %s143 = sadd.s32 %s142, 1
    %p146 = scmp.eq.s32.totalorder %s17, 1
    %p147 = scmp.ne.s32.totalorder %s142, %s144
    %p148 = scmp.eq.s32.totalorder %s17, 0
    %p149 = por %p147, %p148
    %p150 = scmp.ne.s32.totalorder %s142, %s144
    %p151 = scmp.eq.s32.totalorder %s22, 1
    %p152 = por %p150, %p151
    %p153 = scmp.ne.s32.totalorder %s144, %s145
    %p154 = scmp.eq.s32.totalorder %s22, 0
    %p155 = por %p153, %p154
    %p156 = scmp.ne.s32.totalorder %s144, %s145
    %p157 = scmp.eq.s32.totalorder %s23, 1
    %p158 = por %p156, %p157
    %p160 = scmp.ne.s32.totalorder %s145, %s159
    %p161 = scmp.eq.s32.totalorder %s23, 0
    %p162 = por %p160, %p161
    %s164 = sadd.s32 %s163, 1
    %p167 = scmp.eq.s32.totalorder %s17, 1
    %p168 = scmp.ne.s32.totalorder %s163, %s165
    %p169 = scmp.eq.s32.totalorder %s17, 0
    %p170 = por %p168, %p169
    %p171 = scmp.ne.s32.totalorder %s163, %s165
    %p172 = scmp.eq.s32.totalorder %s22, 1
    %p173 = por %p171, %p172
    %p174 = scmp.ne.s32.totalorder %s165, %s166
    %p175 = scmp.eq.s32.totalorder %s22, 0
    %p176 = por %p174, %p175
    %p177 = scmp.ne.s32.totalorder %s165, %s166
    %p178 = scmp.eq.s32.totalorder %s23, 1
    %p179 = por %p177, %p178
    %p181 = scmp.ne.s32.totalorder %s166, %s180
    %p182 = scmp.eq.s32.totalorder %s23, 0
    %p183 = por %p181, %p182
    %s185 = sadd.s32 %s184, 1
    %p188 = scmp.eq.s32.totalorder %s17, 1
    %p189 = scmp.ne.s32.totalorder %s184, %s186
    %p190 = scmp.eq.s32.totalorder %s17, 0
    %p191 = por %p189, %p190
    %p192 = scmp.ne.s32.totalorder %s184, %s186
    %p193 = scmp.eq.s32.totalorder %s22, 1
    %p194 = por %p192, %p193
    %p195 = scmp.ne.s32.totalorder %s186, %s187
    %p196 = scmp.eq.s32.totalorder %s22, 0
    %p197 = por %p195, %p196
    %p198 = scmp.ne.s32.totalorder %s186, %s187
    %p199 = scmp.eq.s32.totalorder %s23, 1
    %p200 = por %p198, %p199
    %p202 = scmp.ne.s32.totalorder %s187, %s201
    %p203 = scmp.eq.s32.totalorder %s23, 0
    %p204 = por %p202, %p203
    %s206 = sadd.s32 %s205, 1
    %p209 = scmp.eq.s32.totalorder %s17, 1
    %p210 = scmp.ne.s32.totalorder %s205, %s207
    %p211 = scmp.eq.s32.totalorder %s17, 0
    %p212 = por %p210, %p211
    %p213 = scmp.ne.s32.totalorder %s205, %s207
    %p214 = scmp.eq.s32.totalorder %s22, 1
    %p215 = por %p213, %p214
    %p216 = scmp.ne.s32.totalorder %s207, %s208
    %p217 = scmp.eq.s32.totalorder %s22, 0
    %p218 = por %p216, %p217
    %p219 = scmp.ne.s32.totalorder %s207, %s208
    %p220 = scmp.eq.s32.totalorder %s23, 1
    %p221 = por %p219, %p220
    %p223 = scmp.ne.s32.totalorder %s208, %s222
    %p224 = scmp.eq.s32.totalorder %s23, 0
    %p225 = por %p223, %p224
    %s227 = sadd.s32 %s226, 1
    %p230 = scmp.eq.s32.totalorder %s17, 1
    %p231 = scmp.ne.s32.totalorder %s226, %s228
    %p232 = scmp.eq.s32.totalorder %s17, 0
    %p233 = por %p231, %p232
    %p234 = scmp.ne.s32.totalorder %s226, %s228
    %p235 = scmp.eq.s32.totalorder %s22, 1
    %p236 = por %p234, %p235
    %p237 = scmp.ne.s32.totalorder %s228, %s229
    %p238 = scmp.eq.s32.totalorder %s22, 0
    %p239 = por %p237, %p238
    %p240 = scmp.ne.s32.totalorder %s228, %s229
    %p241 = scmp.eq.s32.totalorder %s23, 1
    %p242 = por %p240, %p241
    %p244 = scmp.ne.s32.totalorder %s229, %s243
    %p245 = scmp.eq.s32.totalorder %s23, 0
    %p246 = por %p244, %p245
    %s247 = sadd.s32 %s25, %s26
    %s248 = sadd.s32 %s39, %s35
    %s249 = ssub.s32 %s24, %s43
    %s250 = ssub.s32 %s247, %s248
    %s251 = sor.u32 %s249, %s250
    %p252 = scmp.eq.s32.totalorder %s251, 0
    %s254 = sadd.s32 %s253, 1
    %s255 = scalar_select %p252, %s253, %s254
    %p258 = pneg %p252
    %p259 = scmp.eq.s32.totalorder %s17, 1
    %p260 = por %p258, %p259
    %p261 = scmp.ne.s32.totalorder %s253, %s256
    %p262 = scmp.eq.s32.totalorder %s17, 0
    %p263 = por %p261, %p262
    %p264 = scmp.ne.s32.totalorder %s253, %s256
    %p265 = scmp.eq.s32.totalorder %s22, 1
    %p266 = por %p264, %p265
    %p267 = scmp.ne.s32.totalorder %s256, %s257
    %p268 = scmp.eq.s32.totalorder %s22, 0
    %p269 = por %p267, %p268
    %p270 = scmp.ne.s32.totalorder %s256, %s257
    %p271 = scmp.eq.s32.totalorder %s23, 1
    %p272 = por %p270, %p271
    %p274 = scmp.ne.s32.totalorder %s257, %s273
    %p275 = scmp.eq.s32.totalorder %s23, 0
    %p276 = por %p274, %p275
    %s277 = ssub.s32 %s24, %s43
    %s278 = ssub.s32 %s25, %s39
    %s279 = sor.u32 %s277, %s278
    %p280 = scmp.eq.s32.totalorder %s279, 0
    %s282 = sadd.s32 %s281, 1
    %s283 = scalar_select %p280, %s281, %s282
    %p286 = pneg %p280
    %p287 = scmp.eq.s32.totalorder %s17, 1
    %p288 = por %p286, %p287
    %p289 = scmp.ne.s32.totalorder %s281, %s284
    %p290 = scmp.eq.s32.totalorder %s17, 0
    %p291 = por %p289, %p290
    %p292 = scmp.ne.s32.totalorder %s281, %s284
    %p293 = scmp.eq.s32.totalorder %s22, 1
    %p294 = por %p292, %p293
    %p295 = scmp.ne.s32.totalorder %s284, %s285
    %p296 = scmp.eq.s32.totalorder %s22, 0
    %p297 = por %p295, %p296
    %p298 = scmp.ne.s32.totalorder %s284, %s285
    %p299 = scmp.eq.s32.totalorder %s23, 1
    %p300 = por %p298, %p299
    %p302 = scmp.ne.s32.totalorder %s285, %s301
    %p303 = scmp.eq.s32.totalorder %s23, 0
    %p304 = por %p302, %p303
    %p305 = scmp.le.s32.totalorder 1, %s17
    %p306 = scmp.lt.s32.totalorder %s17, 3
    %p307 = pnand %p305, %p306
    %p308 = pneg %p307
    // Predicated region
    $region9: #{pointnet_segmentation_forward.5} parent=5 // pred_check
      _
    $region10: #{pointnet_segmentation_forward.5} parent=5 // pred_check_branch
      %310 = sbr.rel (%p307) target = $region12
    $region11: #{pointnet_segmentation_forward.5} parent=5 // pred_region
      %s311 = ssub.s32 %s17, 1
      // Predicated region
      $region13: #{pointnet_segmentation_forward.5} parent=11 // pred_check
        %p312 = pneg %p113
      $region14: #{pointnet_segmentation_forward.5} parent=11 // pred_check_branch
        %314 = sbr.rel (%p312) target = $region16
      $region15: #{pointnet_segmentation_forward.5} parent=11 // pred_region
        _
      $region16: #{pointnet_segmentation_forward.5} parent=11 // pred_fallthru
        _
      // Predicated region
      $region17: #{pointnet_segmentation_forward.5} parent=11 // pred_check
        %p315 = pneg %p134
      $region18: #{pointnet_segmentation_forward.5} parent=11 // pred_check_branch
        %317 = sbr.rel (%p315) target = $region20
      $region19: #{pointnet_segmentation_forward.5} parent=11 // pred_region
        _
      $region20: #{pointnet_segmentation_forward.5} parent=11 // pred_fallthru
        _
      // Predicated region
      $region21: #{pointnet_segmentation_forward.5} parent=11 // pred_check
        %p318 = pneg %p155
      $region22: #{pointnet_segmentation_forward.5} parent=11 // pred_check_branch
        %320 = sbr.rel (%p318) target = $region24
      $region23: #{pointnet_segmentation_forward.5} parent=11 // pred_region
        _
      $region24: #{pointnet_segmentation_forward.5} parent=11 // pred_fallthru
        _
      // Predicated region
      $region25: #{pointnet_segmentation_forward.5} parent=11 // pred_check
        %p321 = pneg %p176
      $region26: #{pointnet_segmentation_forward.5} parent=11 // pred_check_branch
        %323 = sbr.rel (%p321) target = $region28
      $region27: #{pointnet_segmentation_forward.5} parent=11 // pred_region
        _
      $region28: #{pointnet_segmentation_forward.5} parent=11 // pred_fallthru
        _
      // Predicated region
      $region29: #{pointnet_segmentation_forward.5} parent=11 // pred_check
        %p324 = pneg %p197
      $region30: #{pointnet_segmentation_forward.5} parent=11 // pred_check_branch
        %326 = sbr.rel (%p324) target = $region32
      $region31: #{pointnet_segmentation_forward.5} parent=11 // pred_region
        _
      $region32: #{pointnet_segmentation_forward.5} parent=11 // pred_fallthru
        _
      // Predicated region
      $region33: #{pointnet_segmentation_forward.5} parent=11 // pred_check
        %p327 = pneg %p218
      $region34: #{pointnet_segmentation_forward.5} parent=11 // pred_check_branch
        %329 = sbr.rel (%p327) target = $region36
      $region35: #{pointnet_segmentation_forward.5} parent=11 // pred_region
        _
      $region36: #{pointnet_segmentation_forward.5} parent=11 // pred_fallthru
        _
      // Predicated region
      $region37: #{pointnet_segmentation_forward.5} parent=11 // pred_check
        %p330 = pneg %p239
      $region38: #{pointnet_segmentation_forward.5} parent=11 // pred_check_branch
        %332 = sbr.rel (%p330) target = $region40
      $region39: #{pointnet_segmentation_forward.5} parent=11 // pred_region
        _
      $region40: #{pointnet_segmentation_forward.5} parent=11 // pred_fallthru
        _
    $region12: #{pointnet_segmentation_forward.5} parent=5 // pred_fallthru
      _
    %p333 = scmp.lt.s32.totalorder %s17, 2
    // Predicated region
    $region41: #{pointnet_segmentation_forward.5} parent=5 // pred_check
      %p334 = pneg %p333
    $region42: #{pointnet_segmentation_forward.5} parent=5 // pred_check_branch
      %336 = sbr.rel (%p334) target = $region44
    $region43: #{pointnet_segmentation_forward.5} parent=5 // pred_region
      // Predicated region
      $region45: #{pointnet_segmentation_forward.5} parent=43 // pred_check
        %p337 = pneg %p60
      $region46: #{pointnet_segmentation_forward.5} parent=43 // pred_check_branch
        %339 = sbr.rel (%p337) target = $region48
      $region47: #{pointnet_segmentation_forward.5} parent=43 // pred_region
        %s340 = sadd.s32 %s25, %s26
        %s341 = smul.u32 8, %s340
        %p342 = scmp.lt.s32.totalorder %s24, 1
        %s343 = scalar_select %p342, %s24, 1
        %p344 = scmp.lt.s32.totalorder %s341, 7
        %s345 = scalar_select %p344, %s341, 7
        %s346 = smul.addr %s343, 8
        %s347 = sadd.s32 %s345, %s346
        %s348 = smul.addr %s347, 8
        %s349 = scalar_lea.vmem %s0, %s348
        %s350 = sadd.s32 %s25, %s26
        %s351 = smul.u32 8, %s350
      $region48: #{pointnet_segmentation_forward.5} parent=43 // pred_fallthru
        _
      // Predicated region
      $region49: #{pointnet_segmentation_forward.5} parent=43 // pred_check
        %p352 = pneg %p86
      $region50: #{pointnet_segmentation_forward.5} parent=43 // pred_check_branch
        %354 = sbr.rel (%p352) target = $region52
      $region51: #{pointnet_segmentation_forward.5} parent=43 // pred_region
        %p355 = scmp.lt.s32.totalorder %s24, 1
        %s356 = scalar_select %p355, %s24, 1
        %s357 = smul.addr %s356, 2
        %s358 = scalar_lea.vmem %s1, %s357
      $region52: #{pointnet_segmentation_forward.5} parent=43 // pred_fallthru
        _
    $region44: #{pointnet_segmentation_forward.5} parent=5 // pred_fallthru
      _
    %p359 = scmp.le.s32.totalorder 1, %s17
    %p360 = scmp.lt.s32.totalorder %s17, 3
    %p361 = pnand %p359, %p360
    %p362 = pneg %p361
    // Predicated region
    $region53: #{pointnet_segmentation_forward.5} parent=5 // pred_check
      _
    $region54: #{pointnet_segmentation_forward.5} parent=5 // pred_check_branch
      %364 = sbr.rel (%p361) target = $region56
    $region55: #{pointnet_segmentation_forward.5} parent=5 // pred_region
      %s365 = ssub.s32 %s17, 1
      %s366 = sadd.s32 %s28, %s29
      %s367 = smul.u32 8, %s366
      %p368 = scmp.lt.s32.totalorder %s27, 1
      %s369 = scalar_select %p368, %s27, 1
      %p370 = scmp.lt.s32.totalorder %s367, 7
      %s371 = scalar_select %p370, %s367, 7
      %s372 = smul.addr %s369, 8
      %s373 = sadd.s32 %s371, %s372
      %s374 = smul.addr %s373, 8
      %s375 = scalar_lea.vmem %s0, %s374
      %p376 = pneg %p66
      %p377 = pneg %p63
      %p378 = scmp.lt.s32.totalorder %s27, 1
      %s379 = scalar_select %p378, %s27, 1
      %s380 = smul.addr %s379, 2
      %s381 = scalar_lea.vmem %s1, %s380
      %p382 = pneg %p92
      %p383 = pneg %p89
      %p384 = pneg %p113
      %p385 = pneg %p110
      %p386 = pneg %p134
      %p387 = pneg %p131
      %p388 = pneg %p155
      %p389 = pneg %p152
      %p390 = pneg %p176
      %p391 = pneg %p173
      %p392 = pneg %p197
      %p393 = pneg %p194
      %p394 = pneg %p218
      %p395 = pneg %p215
      %p396 = pneg %p239
      %p397 = pneg %p236
      %p398 = pneg %p269
      %p399 = pneg %p266
      %s400 = sadd.s32 %s28, %s29
      %s401 = smul.u32 8, %s400
      %p402 = scmp.lt.s32.totalorder %s27, 1
      %s403 = scalar_select %p402, %s27, 1
      %p404 = scmp.lt.s32.totalorder %s401, 7
      %s405 = scalar_select %p404, %s401, 7
      %s406 = smul.addr %s403, 8
      %s407 = sadd.s32 %s405, %s406
      %s408 = smul.addr %s407, 4
      %s409 = scalar_lea.vmem %s9, %s408
      %p410 = pneg %p297
      %p411 = pneg %p294
      %p412 = scmp.lt.s32.totalorder %s27, 1
      %s413 = scalar_select %p412, %s27, 1
      %p414 = scmp.lt.s32.totalorder %s28, 0
      %s415 = scalar_select %p414, %s28, 0
      %s416 = smul.addr %s415, 8
      %s417 = smul.addr %s413, 8
      %s418 = sadd.s32 %s416, %s417
      %s419 = scalar_lea.vmem %s10, %s418
      %s420 = sadd.s32 %s28, %s29
      %s421 = smul.u32 8, %s420
      %p422 = scmp.lt.s32.totalorder %s27, 1
      %s423 = scalar_select %p422, %s27, 1
      %p424 = scmp.lt.s32.totalorder %s421, 7
      %s425 = scalar_select %p424, %s421, 7
      %s426 = smul.addr %s423, 8
      %s427 = sadd.s32 %s425, %s426
      %s428 = smul.addr %s427, 8
      %s429 = scalar_lea.vmem %s0, %s428
      %s430 = sadd.s32 %s28, %s29
      %s431 = smul.u32 8, %s430
      %p432 = scmp.lt.s32.totalorder %s27, 1
      %s433 = scalar_select %p432, %s27, 1
      %s434 = smul.addr %s433, 2
      %s435 = scalar_lea.vmem %s1, %s434
      %s436 = sadd.s32 %s28, %s29
      %s437 = smul.u32 8, %s436
      %p438 = scmp.lt.s32.totalorder %s27, 1
      %s439 = scalar_select %p438, %s27, 1
      %p440 = scmp.lt.s32.totalorder %s437, 7
      %s441 = scalar_select %p440, %s437, 7
      %s442 = smul.addr %s439, 8
      %s443 = sadd.s32 %s441, %s442
      %s444 = smul.addr %s443, 4
      %s445 = scalar_lea.vmem %s9, %s444
      %s446 = sadd.s32 %s28, %s29
      %s447 = smul.u32 8, %s446
      %p448 = scmp.lt.s32.totalorder %s27, 1
      %s449 = scalar_select %p448, %s27, 1
      %p450 = scmp.lt.s32.totalorder %s28, 0
      %s451 = scalar_select %p450, %s28, 0
      %s452 = smul.addr %s451, 8
      %s453 = smul.addr %s449, 8
      %s454 = sadd.s32 %s452, %s453
      %s455 = scalar_lea.vmem %s10, %s454
      %s457 = sadd.s32 %s28, %s29
      %s458 = smul.u32 %s457, 64
      %v459 = vld [vmem:[%s435] sm:$0x3]
      %v460 = vld [vmem:[%s2] sm:$0x1]
      %v461 = vld [vmem:[%s3] sm:$0xf]
      %v462 = vld [vmem:[%s3 + $0x4] sm:$0xf]
      %v463 = vld [vmem:[%s3 + $0x8] sm:$0xf]
      %v464 = vld [vmem:[%s3 + $0xc] sm:$0xf]
      %v465 = vld [vmem:[%s3 + $0x10] sm:$0xf]
      %v466 = vld [vmem:[%s3 + $0x14] sm:$0xf]
      %v467 = vld [vmem:[%s3 + $0x18] sm:$0xf]
      %v468 = vld [vmem:[%s3 + $0x1c] sm:$0xf]
      %v469 = vld [vmem:[%s4] sm:$0x1]
      %v470 = vld [vmem:[%s5] sm:$0xf]
      %v471 = vld [vmem:[%s5 + $0x4] sm:$0xf]
      %v472 = vld [vmem:[%s5 + $0x8] sm:$0xf]
      %v473 = vld [vmem:[%s5 + $0xc] sm:$0xf]
      %v474 = vld [vmem:[%s5 + $0x10] sm:$0xf]
      %v475 = vld [vmem:[%s5 + $0x14] sm:$0xf]
      %v476 = vld [vmem:[%s5 + $0x18] sm:$0xf]
      %v477 = vld [vmem:[%s5 + $0x1c] sm:$0xf]
      %v478 = vld [vmem:[%s6] sm:$0x1]
      %v479 = vld [vmem:[%s7] sm:$0xff]
      %v480 = vld [vmem:[%s7 + $0x8] sm:$0xff]
      %v481 = vld [vmem:[%s7 + $0x10] sm:$0xff]
      %v482 = vld [vmem:[%s7 + $0x18] sm:$0xff]
      %v483 = vld [vmem:[%s7 + $0x20] sm:$0xff]
      %v484 = vld [vmem:[%s7 + $0x28] sm:$0xff]
      %v485 = vld [vmem:[%s7 + $0x30] sm:$0xff]
      %v486 = vld [vmem:[%s7 + $0x38] sm:$0xff]
      %v487 = vld [vmem:[%s7 + $0x40] sm:$0xff]
      %v488 = vld [vmem:[%s7 + $0x48] sm:$0xff]
      %v489 = vld [vmem:[%s7 + $0x50] sm:$0xff]
      %v490 = vld [vmem:[%s7 + $0x58] sm:$0xff]
      %v491 = vld [vmem:[%s7 + $0x60] sm:$0xff]
      %v492 = vld [vmem:[%s7 + $0x68] sm:$0xff]
      %v493 = vld [vmem:[%s7 + $0x70] sm:$0xff]
      %v494 = vld [vmem:[%s7 + $0x78] sm:$0xff]
      %v495 = vld [vmem:[%s7 + $0x80] sm:$0xff]
      %v496 = vld [vmem:[%s7 + $0x88] sm:$0xff]
      %v497 = vld [vmem:[%s7 + $0x90] sm:$0xff]
      %v498 = vld [vmem:[%s7 + $0x98] sm:$0xff]
      %v499 = vld [vmem:[%s7 + $0xa0] sm:$0xff]
      %v500 = vld [vmem:[%s7 + $0xa8] sm:$0xff]
      %v501 = vld [vmem:[%s7 + $0xb0] sm:$0xff]
      %v502 = vld [vmem:[%s7 + $0xb8] sm:$0xff]
      %v503 = vld [vmem:[%s7 + $0xc0] sm:$0xff]
      %v504 = vld [vmem:[%s7 + $0xc8] sm:$0xff]
      %v505 = vld [vmem:[%s7 + $0xd0] sm:$0xff]
      %v506 = vld [vmem:[%s7 + $0xd8] sm:$0xff]
      %v507 = vld [vmem:[%s7 + $0xe0] sm:$0xff]
      %v508 = vld [vmem:[%s7 + $0xe8] sm:$0xff]
      %v509 = vld [vmem:[%s7 + $0xf0] sm:$0xff]
      %v510 = vld [vmem:[%s7 + $0xf8] sm:$0xff]
      %v511 = vld [vmem:[%s7 + $0x100] sm:$0xff]
      %v512 = vld [vmem:[%s7 + $0x108] sm:$0xff]
      %v513 = vld [vmem:[%s7 + $0x110] sm:$0xff]
      %v514 = vld [vmem:[%s7 + $0x118] sm:$0xff]
      %v515 = vld [vmem:[%s7 + $0x120] sm:$0xff]
      %v516 = vld [vmem:[%s7 + $0x128] sm:$0xff]
      %v517 = vld [vmem:[%s7 + $0x130] sm:$0xff]
      %v518 = vld [vmem:[%s7 + $0x138] sm:$0xff]
      %v519 = vld [vmem:[%s7 + $0x140] sm:$0xff]
      %v520 = vld [vmem:[%s7 + $0x148] sm:$0xff]
      %v521 = vld [vmem:[%s7 + $0x150] sm:$0xff]
      %v522 = vld [vmem:[%s7 + $0x158] sm:$0xff]
      %v523 = vld [vmem:[%s7 + $0x160] sm:$0xff]
      %v524 = vld [vmem:[%s7 + $0x168] sm:$0xff]
      %v525 = vld [vmem:[%s7 + $0x170] sm:$0xff]
      %v526 = vld [vmem:[%s7 + $0x178] sm:$0xff]
      %v527 = vld [vmem:[%s7 + $0x180] sm:$0xff]
      %v528 = vld [vmem:[%s7 + $0x188] sm:$0xff]
      %v529 = vld [vmem:[%s7 + $0x190] sm:$0xff]
      %v530 = vld [vmem:[%s7 + $0x198] sm:$0xff]
      %v531 = vld [vmem:[%s7 + $0x1a0] sm:$0xff]
      %v532 = vld [vmem:[%s7 + $0x1a8] sm:$0xff]
      %v533 = vld [vmem:[%s7 + $0x1b0] sm:$0xff]
      %v534 = vld [vmem:[%s7 + $0x1b8] sm:$0xff]
      %v535 = vld [vmem:[%s7 + $0x1c0] sm:$0xff]
      %v536 = vld [vmem:[%s7 + $0x1c8] sm:$0xff]
      %v537 = vld [vmem:[%s7 + $0x1d0] sm:$0xff]
      %v538 = vld [vmem:[%s7 + $0x1d8] sm:$0xff]
      %v539 = vld [vmem:[%s7 + $0x1e0] sm:$0xff]
      %v540 = vld [vmem:[%s7 + $0x1e8] sm:$0xff]
      %v541 = vld [vmem:[%s7 + $0x1f0] sm:$0xff]
      %v542 = vld [vmem:[%s7 + $0x1f8] sm:$0xff]
      %v543 = vld [vmem:[%s8] sm:$0xff]
      %v544 = vld [vmem:[%s429] sm:$0xff]
      %v545 = vld [vmem:[%s429 + $0x8] sm:$0xff]
      %v546 = vld [vmem:[%s429 + $0x10] sm:$0xff]
      %v547 = vld [vmem:[%s429 + $0x18] sm:$0xff]
      %v548 = vld [vmem:[%s429 + $0x20] sm:$0xff]
      %v549 = vld [vmem:[%s429 + $0x28] sm:$0xff]
      %v550 = vld [vmem:[%s429 + $0x30] sm:$0xff]
      %v551 = vld [vmem:[%s429 + $0x38] sm:$0xff]
      %v552 = vunpack.c.l.bf16 %v459
      %554 = vset.pattern.permute.xlu0 0
      %555 = vperm.xlu0 %554, %v544
      %v556 = vpop.permute.xlu0 %555
      %559 = vset.pattern.permute.xlu0 0
      %560 = vperm.xlu0 %559, %v545
      %v561 = vpop.permute.xlu0 %560
      %564 = vset.pattern.permute.xlu0 0
      %565 = vperm.xlu0 %564, %v546
      %v566 = vpop.permute.xlu0 %565
      %569 = vset.pattern.permute.xlu0 0
      %570 = vperm.xlu0 %569, %v547
      %v571 = vpop.permute.xlu0 %570
      %574 = vset.pattern.permute.xlu0 0
      %575 = vperm.xlu0 %574, %v548
      %v576 = vpop.permute.xlu0 %575
      %579 = vset.pattern.permute.xlu0 0
      %580 = vperm.xlu0 %579, %v549
      %v581 = vpop.permute.xlu0 %580
      %584 = vset.pattern.permute.xlu0 0
      %585 = vperm.xlu0 %584, %v550
      %v586 = vpop.permute.xlu0 %585
      %589 = vset.pattern.permute.xlu0 0
      %590 = vperm.xlu0 %589, %v551
      %v591 = vpop.permute.xlu0 %590
      %v593 = vperm.slane %v552, 0
      %v594 = vmul.f32 %v556, %v593
      %v595 = vmul.f32 %v561, %v593
      %v596 = vmul.f32 %v566, %v593
      %v597 = vmul.f32 %v571, %v593
      %v598 = vmul.f32 %v576, %v593
      %v599 = vmul.f32 %v581, %v593
      %v600 = vmul.f32 %v586, %v593
      %v601 = vmul.f32 %v591, %v593
      %602 = vset.pattern.permute.xlu0 1
      %603 = vperm.xlu0 %602, %v544
      %v604 = vpop.permute.xlu0 %603
      %606 = vset.pattern.permute.xlu0 1
      %607 = vperm.xlu0 %606, %v545
      %v608 = vpop.permute.xlu0 %607
      %610 = vset.pattern.permute.xlu0 1
      %611 = vperm.xlu0 %610, %v546
      %v612 = vpop.permute.xlu0 %611
      %614 = vset.pattern.permute.xlu0 1
      %615 = vperm.xlu0 %614, %v547
      %v616 = vpop.permute.xlu0 %615
      %618 = vset.pattern.permute.xlu0 1
      %619 = vperm.xlu0 %618, %v548
      %v620 = vpop.permute.xlu0 %619
      %622 = vset.pattern.permute.xlu0 1
      %623 = vperm.xlu0 %622, %v549
      %v624 = vpop.permute.xlu0 %623
      %626 = vset.pattern.permute.xlu0 1
      %627 = vperm.xlu0 %626, %v550
      %v628 = vpop.permute.xlu0 %627
      %630 = vset.pattern.permute.xlu0 1
      %631 = vperm.xlu0 %630, %v551
      %v632 = vpop.permute.xlu0 %631
      %v634 = vperm.slane %v552, 1
      %v635 = vmul.f32 %v604, %v634
      %v636 = vmul.f32 %v608, %v634
      %v637 = vmul.f32 %v612, %v634
      %v638 = vmul.f32 %v616, %v634
      %v639 = vmul.f32 %v620, %v634
      %v640 = vmul.f32 %v624, %v634
      %v641 = vmul.f32 %v628, %v634
      %v642 = vmul.f32 %v632, %v634
      %v643 = vadd.f32 %v594, %v635
      %v644 = vadd.f32 %v595, %v636
      %v645 = vadd.f32 %v596, %v637
      %v646 = vadd.f32 %v597, %v638
      %v647 = vadd.f32 %v598, %v639
      %v648 = vadd.f32 %v599, %v640
      %v649 = vadd.f32 %v600, %v641
      %v650 = vadd.f32 %v601, %v642
      %651 = vset.pattern.permute.xlu0 2
      %652 = vperm.xlu0 %651, %v544
      %v653 = vpop.permute.xlu0 %652
      %655 = vset.pattern.permute.xlu0 2
      %656 = vperm.xlu0 %655, %v545
      %v657 = vpop.permute.xlu0 %656
      %659 = vset.pattern.permute.xlu0 2
      %660 = vperm.xlu0 %659, %v546
      %v661 = vpop.permute.xlu0 %660
      %663 = vset.pattern.permute.xlu0 2
      %664 = vperm.xlu0 %663, %v547
      %v665 = vpop.permute.xlu0 %664
      %667 = vset.pattern.permute.xlu0 2
      %668 = vperm.xlu0 %667, %v548
      %v669 = vpop.permute.xlu0 %668
      %671 = vset.pattern.permute.xlu0 2
      %672 = vperm.xlu0 %671, %v549
      %v673 = vpop.permute.xlu0 %672
      %675 = vset.pattern.permute.xlu0 2
      %676 = vperm.xlu0 %675, %v550
      %v677 = vpop.permute.xlu0 %676
      %679 = vset.pattern.permute.xlu0 2
      %680 = vperm.xlu0 %679, %v551
      %v681 = vpop.permute.xlu0 %680
      %v683 = vperm.slane %v552, 2
      %v684 = vmul.f32 %v653, %v683
      %v685 = vmul.f32 %v657, %v683
      %v686 = vmul.f32 %v661, %v683
      %v687 = vmul.f32 %v665, %v683
      %v688 = vmul.f32 %v669, %v683
      %v689 = vmul.f32 %v673, %v683
      %v690 = vmul.f32 %v677, %v683
      %v691 = vmul.f32 %v681, %v683
      %v692 = vadd.f32 %v643, %v684
      %v693 = vadd.f32 %v644, %v685
      %v694 = vadd.f32 %v645, %v686
      %v695 = vadd.f32 %v646, %v687
      %v696 = vadd.f32 %v647, %v688
      %v697 = vadd.f32 %v648, %v689
      %v698 = vadd.f32 %v649, %v690
      %v699 = vadd.f32 %v650, %v691
      %v701 = vperm.slane %v460, 0
      %v703 = vadd.f32 %v692, %v701
      %v704 = vadd.f32 %v693, %v701
      %v705 = vadd.f32 %v694, %v701
      %v706 = vadd.f32 %v695, %v701
      %v707 = vadd.f32 %v696, %v701
      %v708 = vadd.f32 %v697, %v701
      %v709 = vadd.f32 %v698, %v701
      %v710 = vadd.f32 %v699, %v701
      %v711 = vmax.f32 %v703, 0.0
      %v712 = vmax.f32 %v704, 0.0
      %v713 = vmax.f32 %v705, 0.0
      %v714 = vmax.f32 %v706, 0.0
      %v715 = vmax.f32 %v707, 0.0
      %v716 = vmax.f32 %v708, 0.0
      %v717 = vmax.f32 %v709, 0.0
      %v718 = vmax.f32 %v710, 0.0
      %v719 = vpack.c.bf16 %v711, %v711
      %v720 = vpack.c.bf16 %v712, %v712
      %v721 = vpack.c.bf16 %v713, %v713
      %v722 = vpack.c.bf16 %v714, %v714
      %v723 = vpack.c.bf16 %v715, %v715
      %v724 = vpack.c.bf16 %v716, %v716
      %v725 = vpack.c.bf16 %v717, %v717
      %v726 = vpack.c.bf16 %v718, %v718
      %vm727 = vcmask 519168
      %728 = vst.msk [vmem:[%s445] sm:$0xf] %vm727, %v719
      %729 = vst.msk [vmem:[%s445 + $0x4] sm:$0xf] %vm727, %v720
      %730 = vst.msk [vmem:[%s445 + $0x8] sm:$0xf] %vm727, %v721
      %731 = vst.msk [vmem:[%s445 + $0xc] sm:$0xf] %vm727, %v722
      %732 = vst.msk [vmem:[%s445 + $0x10] sm:$0xf] %vm727, %v723
      %733 = vst.msk [vmem:[%s445 + $0x14] sm:$0xf] %vm727, %v724
      %734 = vst.msk [vmem:[%s445 + $0x18] sm:$0xf] %vm727, %v725
      %735 = vst.msk [vmem:[%s445 + $0x1c] sm:$0xf] %vm727, %v726
      %v737 = vperm.slane %v469, 0
      %v747 = vunpack.c.l.b16 %v719
      %v748 = vunpack.c.l.b16 %v720
      %v749 = vunpack.c.l.b16 %v721
      %v750 = vunpack.c.l.b16 %v722
      %v751 = vunpack.c.l.b16 %v723
      %v752 = vunpack.c.l.b16 %v724
      %v753 = vunpack.c.l.b16 %v725
      %v754 = vunpack.c.l.b16 %v726
      %v755 = vpack.c.b16 %v748, %v747
      %v756 = vpack.c.b16 %v750, %v749
      %v757 = vpack.c.b16 %v752, %v751
      %v758 = vpack.c.b16 %v754, %v753
      %v767 = vunpack.c.l.b16 %v461
      %v768 = vunpack.c.l.b16 %v462
      %v769 = vunpack.c.l.b16 %v463
      %v770 = vunpack.c.l.b16 %v464
      %v771 = vunpack.c.l.b16 %v465
      %v772 = vunpack.c.l.b16 %v466
      %v773 = vunpack.c.l.b16 %v467
      %v774 = vunpack.c.l.b16 %v468
      %v775 = vpack.c.b16 %v768, %v767
      %v776 = vpack.c.b16 %v770, %v769
      %v777 = vpack.c.b16 %v772, %v771
      %v778 = vpack.c.b16 %v774, %v773
      %vm783 = vcmask 523264
      %v785 = vsel %vm783, %v755, 0
      %v788 = vsel %vm783, %v756, 0
      %v791 = vsel %vm783, %v757, 0
      %v794 = vsel %vm783, %v758, 0
      %796 = vmatpush.bf16.msra.mxu0 0
      %797 = vmatpush.bf16.msra.mxu0 0
      %798 = vmatpush.bf16.msra.mxu0 0
      %799 = vmatpush.bf16.msra.mxu0 0
      %800 = vmatpush.bf16.msra.mxu0 %v778
      %801 = vmatpush.bf16.msra.mxu0 %v777
      %802 = vmatpush.bf16.msra.mxu0 %v776
      %803 = vmatpush.bf16.msra.mxu0 %v775
      %804 = vmatmul.bf16.gmra.mxu0 %v785
      %v805 = vpop.f32.mrf.mxu0
      %v806 = vadd.f32 %v737, %v805
      %v807 = vpop.f32.mrf.mxu0
      %v808 = vadd.f32 %v737, %v807
      %809 = vmatmul.bf16.gmra.mxu0 %v788
      %v810 = vpop.f32.mrf.mxu0
      %v811 = vadd.f32 %v737, %v810
      %v812 = vpop.f32.mrf.mxu0
      %v813 = vadd.f32 %v737, %v812
      %814 = vmatmul.bf16.gmra.mxu0 %v791
      %v815 = vpop.f32.mrf.mxu0
      %v816 = vadd.f32 %v737, %v815
      %v817 = vpop.f32.mrf.mxu0
      %v818 = vadd.f32 %v737, %v817
      %819 = vmatmul.bf16.gmra.mxu0 %v794
      %v820 = vpop.f32.mrf.mxu0
      %v821 = vadd.f32 %v737, %v820
      %v822 = vpop.f32.mrf.mxu0
      %v823 = vadd.f32 %v737, %v822
      %824 = vdwg.mxu0
      %v825 = vmax.f32 %v806, 0.0
      %v826 = vmax.f32 %v808, 0.0
      %v827 = vmax.f32 %v811, 0.0
      %v828 = vmax.f32 %v813, 0.0
      %v829 = vmax.f32 %v816, 0.0
      %v830 = vmax.f32 %v818, 0.0
      %v831 = vmax.f32 %v821, 0.0
      %v832 = vmax.f32 %v823, 0.0
      %v833 = vpack.c.bf16 %v826, %v825
      %v834 = vpack.c.bf16 %v828, %v827
      %v835 = vpack.c.bf16 %v830, %v829
      %v836 = vpack.c.bf16 %v832, %v831
      %v838 = vperm.slane %v478, 0
      %v848 = vunpack.c.l.b16 %v470
      %v849 = vunpack.c.l.b16 %v471
      %v850 = vunpack.c.l.b16 %v472
      %v851 = vunpack.c.l.b16 %v473
      %v852 = vunpack.c.l.b16 %v474
      %v853 = vunpack.c.l.b16 %v475
      %v854 = vunpack.c.l.b16 %v476
      %v855 = vunpack.c.l.b16 %v477
      %v856 = vpack.c.b16 %v849, %v848
      %v857 = vpack.c.b16 %v851, %v850
      %v858 = vpack.c.b16 %v853, %v852
      %v859 = vpack.c.b16 %v855, %v854
      %v865 = vsel %vm783, %v833, 0
      %v868 = vsel %vm783, %v834, 0
      %v871 = vsel %vm783, %v835, 0
      %v874 = vsel %vm783, %v836, 0
      %876 = vmatpush.bf16.msra.mxu0 0
      %877 = vmatpush.bf16.msra.mxu0 0
      %878 = vmatpush.bf16.msra.mxu0 0
      %879 = vmatpush.bf16.msra.mxu0 0
      %880 = vmatpush.bf16.msra.mxu0 %v859
      %881 = vmatpush.bf16.msra.mxu0 %v858
      %882 = vmatpush.bf16.msra.mxu0 %v857
      %883 = vmatpush.bf16.msra.mxu0 %v856
      %884 = vmatmul.bf16.gmra.mxu0 %v865
      %v885 = vpop.f32.mrf.mxu0
      %v886 = vadd.f32 %v838, %v885
      %v887 = vpop.f32.mrf.mxu0
      %v888 = vadd.f32 %v838, %v887
      %889 = vmatmul.bf16.gmra.mxu0 %v868
      %v890 = vpop.f32.mrf.mxu0
      %v891 = vadd.f32 %v838, %v890
      %v892 = vpop.f32.mrf.mxu0
      %v893 = vadd.f32 %v838, %v892
      %894 = vmatmul.bf16.gmra.mxu0 %v871
      %v895 = vpop.f32.mrf.mxu0
      %v896 = vadd.f32 %v838, %v895
      %v897 = vpop.f32.mrf.mxu0
      %v898 = vadd.f32 %v838, %v897
      %899 = vmatmul.bf16.gmra.mxu0 %v874
      %v900 = vpop.f32.mrf.mxu0
      %v901 = vadd.f32 %v838, %v900
      %v902 = vpop.f32.mrf.mxu0
      %v903 = vadd.f32 %v838, %v902
      %904 = vdwg.mxu0
      %v905 = vmax.f32 %v886, 0.0
      %v906 = vmax.f32 %v888, 0.0
      %v907 = vmax.f32 %v891, 0.0
      %v908 = vmax.f32 %v893, 0.0
      %v909 = vmax.f32 %v896, 0.0
      %v910 = vmax.f32 %v898, 0.0
      %v911 = vmax.f32 %v901, 0.0
      %v912 = vmax.f32 %v903, 0.0
      %v913 = vpack.c.bf16 %v906, %v905
      %v914 = vpack.c.bf16 %v908, %v907
      %v915 = vpack.c.bf16 %v910, %v909
      %v916 = vpack.c.bf16 %v912, %v911
      %v918 = vperm.slane %v543, 0
      %v919 = vperm.slane %v543, 1
      %v920 = vperm.slane %v543, 2
      %v921 = vperm.slane %v543, 3
      %v922 = vperm.slane %v543, 4
      %v923 = vperm.slane %v543, 5
      %v924 = vperm.slane %v543, 6
      %v925 = vperm.slane %v543, 7
      %v998 = vunpack.c.l.b16 %v479
      %v999 = vunpack.c.h.b16 %v479
      %v1000 = vunpack.c.l.b16 %v480
      %v1001 = vunpack.c.h.b16 %v480
      %v1002 = vunpack.c.l.b16 %v481
      %v1003 = vunpack.c.h.b16 %v481
      %v1004 = vunpack.c.l.b16 %v482
      %v1005 = vunpack.c.h.b16 %v482
      %v1006 = vunpack.c.l.b16 %v483
      %v1007 = vunpack.c.h.b16 %v483
      %v1008 = vunpack.c.l.b16 %v484
      %v1009 = vunpack.c.h.b16 %v484
      %v1010 = vunpack.c.l.b16 %v485
      %v1011 = vunpack.c.h.b16 %v485
      %v1012 = vunpack.c.l.b16 %v486
      %v1013 = vunpack.c.h.b16 %v486
      %v1014 = vunpack.c.l.b16 %v487
      %v1015 = vunpack.c.h.b16 %v487
      %v1016 = vunpack.c.l.b16 %v488
      %v1017 = vunpack.c.h.b16 %v488
      %v1018 = vunpack.c.l.b16 %v489
      %v1019 = vunpack.c.h.b16 %v489
      %v1020 = vunpack.c.l.b16 %v490
      %v1021 = vunpack.c.h.b16 %v490
      %v1022 = vunpack.c.l.b16 %v491
      %v1023 = vunpack.c.h.b16 %v491
      %v1024 = vunpack.c.l.b16 %v492
      %v1025 = vunpack.c.h.b16 %v492
      %v1026 = vunpack.c.l.b16 %v493
      %v1027 = vunpack.c.h.b16 %v493
      %v1028 = vunpack.c.l.b16 %v494
      %v1029 = vunpack.c.h.b16 %v494
      %v1030 = vunpack.c.l.b16 %v495
      %v1031 = vunpack.c.h.b16 %v495
      %v1032 = vunpack.c.l.b16 %v496
      %v1033 = vunpack.c.h.b16 %v496
      %v1034 = vunpack.c.l.b16 %v497
      %v1035 = vunpack.c.h.b16 %v497
      %v1036 = vunpack.c.l.b16 %v498
      %v1037 = vunpack.c.h.b16 %v498
      %v1038 = vunpack.c.l.b16 %v499
      %v1039 = vunpack.c.h.b16 %v499
      %v1040 = vunpack.c.l.b16 %v500
      %v1041 = vunpack.c.h.b16 %v500
      %v1042 = vunpack.c.l.b16 %v501
      %v1043 = vunpack.c.h.b16 %v501
      %v1044 = vunpack.c.l.b16 %v502
      %v1045 = vunpack.c.h.b16 %v502
      %v1046 = vunpack.c.l.b16 %v503
      %v1047 = vunpack.c.h.b16 %v503
      %v1048 = vunpack.c.l.b16 %v504
      %v1049 = vunpack.c.h.b16 %v504
      %v1050 = vunpack.c.l.b16 %v505
      %v1051 = vunpack.c.h.b16 %v505
      %v1052 = vunpack.c.l.b16 %v506
      %v1053 = vunpack.c.h.b16 %v506
      %v1054 = vunpack.c.l.b16 %v507
      %v1055 = vunpack.c.h.b16 %v507
      %v1056 = vunpack.c.l.b16 %v508
      %v1057 = vunpack.c.h.b16 %v508
      %v1058 = vunpack.c.l.b16 %v509
      %v1059 = vunpack.c.h.b16 %v509
      %v1060 = vunpack.c.l.b16 %v510
      %v1061 = vunpack.c.h.b16 %v510
      %v1062 = vunpack.c.l.b16 %v511
      %v1063 = vunpack.c.h.b16 %v511
      %v1064 = vunpack.c.l.b16 %v512
      %v1065 = vunpack.c.h.b16 %v512
      %v1066 = vunpack.c.l.b16 %v513
      %v1067 = vunpack.c.h.b16 %v513
      %v1068 = vunpack.c.l.b16 %v514
      %v1069 = vunpack.c.h.b16 %v514
      %v1070 = vunpack.c.l.b16 %v515
      %v1071 = vunpack.c.h.b16 %v515
      %v1072 = vunpack.c.l.b16 %v516
      %v1073 = vunpack.c.h.b16 %v516
      %v1074 = vunpack.c.l.b16 %v517
      %v1075 = vunpack.c.h.b16 %v517
      %v1076 = vunpack.c.l.b16 %v518
      %v1077 = vunpack.c.h.b16 %v518
      %v1078 = vunpack.c.l.b16 %v519
      %v1079 = vunpack.c.h.b16 %v519
      %v1080 = vunpack.c.l.b16 %v520
      %v1081 = vunpack.c.h.b16 %v520
      %v1082 = vunpack.c.l.b16 %v521
      %v1083 = vunpack.c.h.b16 %v521
      %v1084 = vunpack.c.l.b16 %v522
      %v1085 = vunpack.c.h.b16 %v522
      %v1086 = vunpack.c.l.b16 %v523
      %v1087 = vunpack.c.h.b16 %v523
      %v1088 = vunpack.c.l.b16 %v524
      %v1089 = vunpack.c.h.b16 %v524
      %v1090 = vunpack.c.l.b16 %v525
      %v1091 = vunpack.c.h.b16 %v525
      %v1092 = vunpack.c.l.b16 %v526
      %v1093 = vunpack.c.h.b16 %v526
      %v1094 = vunpack.c.l.b16 %v527
      %v1095 = vunpack.c.h.b16 %v527
      %v1096 = vunpack.c.l.b16 %v528
      %v1097 = vunpack.c.h.b16 %v528
      %v1098 = vunpack.c.l.b16 %v529
      %v1099 = vunpack.c.h.b16 %v529
      %v1100 = vunpack.c.l.b16 %v530
      %v1101 = vunpack.c.h.b16 %v530
      %v1102 = vunpack.c.l.b16 %v531
      %v1103 = vunpack.c.h.b16 %v531
      %v1104 = vunpack.c.l.b16 %v532
      %v1105 = vunpack.c.h.b16 %v532
      %v1106 = vunpack.c.l.b16 %v533
      %v1107 = vunpack.c.h.b16 %v533
      %v1108 = vunpack.c.l.b16 %v534
      %v1109 = vunpack.c.h.b16 %v534
      %v1110 = vunpack.c.l.b16 %v535
      %v1111 = vunpack.c.h.b16 %v535
      %v1112 = vunpack.c.l.b16 %v536
      %v1113 = vunpack.c.h.b16 %v536
      %v1114 = vunpack.c.l.b16 %v537
      %v1115 = vunpack.c.h.b16 %v537
      %v1116 = vunpack.c.l.b16 %v538
      %v1117 = vunpack.c.h.b16 %v538
      %v1118 = vunpack.c.l.b16 %v539
      %v1119 = vunpack.c.h.b16 %v539
      %v1120 = vunpack.c.l.b16 %v540
      %v1121 = vunpack.c.h.b16 %v540
      %v1122 = vunpack.c.l.b16 %v541
      %v1123 = vunpack.c.h.b16 %v541
      %v1124 = vunpack.c.l.b16 %v542
      %v1125 = vunpack.c.h.b16 %v542
      %v1126 = vpack.c.b16 %v1006, %v998
      %v1127 = vpack.c.b16 %v1007, %v999
      %v1128 = vpack.c.b16 %v1008, %v1000
      %v1129 = vpack.c.b16 %v1009, %v1001
      %v1130 = vpack.c.b16 %v1010, %v1002
      %v1131 = vpack.c.b16 %v1011, %v1003
      %v1132 = vpack.c.b16 %v1012, %v1004
      %v1133 = vpack.c.b16 %v1013, %v1005
      %v1134 = vpack.c.b16 %v1022, %v1014
      %v1135 = vpack.c.b16 %v1023, %v1015
      %v1136 = vpack.c.b16 %v1024, %v1016
      %v1137 = vpack.c.b16 %v1025, %v1017
      %v1138 = vpack.c.b16 %v1026, %v1018
      %v1139 = vpack.c.b16 %v1027, %v1019
      %v1140 = vpack.c.b16 %v1028, %v1020
      %v1141 = vpack.c.b16 %v1029, %v1021
      %v1142 = vpack.c.b16 %v1038, %v1030
      %v1143 = vpack.c.b16 %v1039, %v1031
      %v1144 = vpack.c.b16 %v1040, %v1032
      %v1145 = vpack.c.b16 %v1041, %v1033
      %v1146 = vpack.c.b16 %v1042, %v1034
      %v1147 = vpack.c.b16 %v1043, %v1035
      %v1148 = vpack.c.b16 %v1044, %v1036
      %v1149 = vpack.c.b16 %v1045, %v1037
      %v1150 = vpack.c.b16 %v1054, %v1046
      %v1151 = vpack.c.b16 %v1055, %v1047
      %v1152 = vpack.c.b16 %v1056, %v1048
      %v1153 = vpack.c.b16 %v1057, %v1049
      %v1154 = vpack.c.b16 %v1058, %v1050
      %v1155 = vpack.c.b16 %v1059, %v1051
      %v1156 = vpack.c.b16 %v1060, %v1052
      %v1157 = vpack.c.b16 %v1061, %v1053
      %v1158 = vpack.c.b16 %v1070, %v1062
      %v1159 = vpack.c.b16 %v1071, %v1063
      %v1160 = vpack.c.b16 %v1072, %v1064
      %v1161 = vpack.c.b16 %v1073, %v1065
      %v1162 = vpack.c.b16 %v1074, %v1066
      %v1163 = vpack.c.b16 %v1075, %v1067
      %v1164 = vpack.c.b16 %v1076, %v1068
      %v1165 = vpack.c.b16 %v1077, %v1069
      %v1166 = vpack.c.b16 %v1086, %v1078
      %v1167 = vpack.c.b16 %v1087, %v1079
      %v1168 = vpack.c.b16 %v1088, %v1080
      %v1169 = vpack.c.b16 %v1089, %v1081
      %v1170 = vpack.c.b16 %v1090, %v1082
      %v1171 = vpack.c.b16 %v1091, %v1083
      %v1172 = vpack.c.b16 %v1092, %v1084
      %v1173 = vpack.c.b16 %v1093, %v1085
      %v1174 = vpack.c.b16 %v1102, %v1094
      %v1175 = vpack.c.b16 %v1103, %v1095
      %v1176 = vpack.c.b16 %v1104, %v1096
      %v1177 = vpack.c.b16 %v1105, %v1097
      %v1178 = vpack.c.b16 %v1106, %v1098
      %v1179 = vpack.c.b16 %v1107, %v1099
      %v1180 = vpack.c.b16 %v1108, %v1100
      %v1181 = vpack.c.b16 %v1109, %v1101
      %v1182 = vpack.c.b16 %v1118, %v1110
      %v1183 = vpack.c.b16 %v1119, %v1111
      %v1184 = vpack.c.b16 %v1120, %v1112
      %v1185 = vpack.c.b16 %v1121, %v1113
      %v1186 = vpack.c.b16 %v1122, %v1114
      %v1187 = vpack.c.b16 %v1123, %v1115
      %v1188 = vpack.c.b16 %v1124, %v1116
      %v1189 = vpack.c.b16 %v1125, %v1117
      %1254 = vmatpush.bf16.msra.mxu0 %v1182
      %1255 = vmatpush.bf16.msra.mxu0 %v1174
      %1256 = vmatpush.bf16.msra.mxu0 %v1166
      %1257 = vmatpush.bf16.msra.mxu0 %v1158
      %1258 = vmatpush.bf16.msra.mxu0 %v1150
      %1259 = vmatpush.bf16.msra.mxu0 %v1142
      %1260 = vmatpush.bf16.msra.mxu0 %v1134
      %1261 = vmatpush.bf16.msra.mxu0 %v1126
      %1262 = vmatmul.bf16.gmra.mxu0 %v913
      %v1263 = vpop.f32.mrf.mxu0
      %v1264 = vadd.f32 %v918, %v1263
      %v1265 = vpop.f32.mrf.mxu0
      %v1266 = vadd.f32 %v918, %v1265
      %1267 = vmatmul.bf16.gmra.mxu0 %v914
      %v1268 = vpop.f32.mrf.mxu0
      %v1269 = vadd.f32 %v918, %v1268
      %v1270 = vpop.f32.mrf.mxu0
      %v1271 = vadd.f32 %v918, %v1270
      %1272 = vmatmul.bf16.gmra.mxu0 %v915
      %v1273 = vpop.f32.mrf.mxu0
      %v1274 = vadd.f32 %v918, %v1273
      %v1275 = vpop.f32.mrf.mxu0
      %v1276 = vadd.f32 %v918, %v1275
      %1277 = vmatmul.bf16.gmra.mxu0 %v916
      %v1278 = vpop.f32.mrf.mxu0
      %v1279 = vadd.f32 %v918, %v1278
      %v1280 = vpop.f32.mrf.mxu0
      %v1281 = vadd.f32 %v918, %v1280
      %1282 = vdwg.mxu0
      %1283 = vmatpush.bf16.msra.mxu0 %v1183
      %1284 = vmatpush.bf16.msra.mxu0 %v1175
      %1285 = vmatpush.bf16.msra.mxu0 %v1167
      %1286 = vmatpush.bf16.msra.mxu0 %v1159
      %1287 = vmatpush.bf16.msra.mxu0 %v1151
      %1288 = vmatpush.bf16.msra.mxu0 %v1143
      %1289 = vmatpush.bf16.msra.mxu0 %v1135
      %1290 = vmatpush.bf16.msra.mxu0 %v1127
      %1291 = vmatmul.bf16.gmra.mxu0 %v913
      %v1292 = vpop.f32.mrf.mxu0
      %v1293 = vadd.f32 %v919, %v1292
      %v1294 = vpop.f32.mrf.mxu0
      %v1295 = vadd.f32 %v919, %v1294
      %1296 = vmatmul.bf16.gmra.mxu0 %v914
      %v1297 = vpop.f32.mrf.mxu0
      %v1298 = vadd.f32 %v919, %v1297
      %v1299 = vpop.f32.mrf.mxu0
      %v1300 = vadd.f32 %v919, %v1299
      %1301 = vmatmul.bf16.gmra.mxu0 %v915
      %v1302 = vpop.f32.mrf.mxu0
      %v1303 = vadd.f32 %v919, %v1302
      %v1304 = vpop.f32.mrf.mxu0
      %v1305 = vadd.f32 %v919, %v1304
      %1306 = vmatmul.bf16.gmra.mxu0 %v916
      %v1307 = vpop.f32.mrf.mxu0
      %v1308 = vadd.f32 %v919, %v1307
      %v1309 = vpop.f32.mrf.mxu0
      %v1310 = vadd.f32 %v919, %v1309
      %1311 = vdwg.mxu0
      %1312 = vmatpush.bf16.msra.mxu0 %v1184
      %1313 = vmatpush.bf16.msra.mxu0 %v1176
      %1314 = vmatpush.bf16.msra.mxu0 %v1168
      %1315 = vmatpush.bf16.msra.mxu0 %v1160
      %1316 = vmatpush.bf16.msra.mxu0 %v1152
      %1317 = vmatpush.bf16.msra.mxu0 %v1144
      %1318 = vmatpush.bf16.msra.mxu0 %v1136
      %1319 = vmatpush.bf16.msra.mxu0 %v1128
      %1320 = vmatmul.bf16.gmra.mxu0 %v913
      %v1321 = vpop.f32.mrf.mxu0
      %v1322 = vadd.f32 %v920, %v1321
      %v1323 = vpop.f32.mrf.mxu0
      %v1324 = vadd.f32 %v920, %v1323
      %1325 = vmatmul.bf16.gmra.mxu0 %v914
      %v1326 = vpop.f32.mrf.mxu0
      %v1327 = vadd.f32 %v920, %v1326
      %v1328 = vpop.f32.mrf.mxu0
      %v1329 = vadd.f32 %v920, %v1328
      %1330 = vmatmul.bf16.gmra.mxu0 %v915
      %v1331 = vpop.f32.mrf.mxu0
      %v1332 = vadd.f32 %v920, %v1331
      %v1333 = vpop.f32.mrf.mxu0
      %v1334 = vadd.f32 %v920, %v1333
      %1335 = vmatmul.bf16.gmra.mxu0 %v916
      %v1336 = vpop.f32.mrf.mxu0
      %v1337 = vadd.f32 %v920, %v1336
      %v1338 = vpop.f32.mrf.mxu0
      %v1339 = vadd.f32 %v920, %v1338
      %1340 = vdwg.mxu0
      %1341 = vmatpush.bf16.msra.mxu0 %v1185
      %1342 = vmatpush.bf16.msra.mxu0 %v1177
      %1343 = vmatpush.bf16.msra.mxu0 %v1169
      %1344 = vmatpush.bf16.msra.mxu0 %v1161
      %1345 = vmatpush.bf16.msra.mxu0 %v1153
      %1346 = vmatpush.bf16.msra.mxu0 %v1145
      %1347 = vmatpush.bf16.msra.mxu0 %v1137
      %1348 = vmatpush.bf16.msra.mxu0 %v1129
      %1349 = vmatmul.bf16.gmra.mxu0 %v913
      %v1350 = vpop.f32.mrf.mxu0
      %v1351 = vadd.f32 %v921, %v1350
      %v1352 = vpop.f32.mrf.mxu0
      %v1353 = vadd.f32 %v921, %v1352
      %1354 = vmatmul.bf16.gmra.mxu0 %v914
      %v1355 = vpop.f32.mrf.mxu0
      %v1356 = vadd.f32 %v921, %v1355
      %v1357 = vpop.f32.mrf.mxu0
      %v1358 = vadd.f32 %v921, %v1357
      %1359 = vmatmul.bf16.gmra.mxu0 %v915
      %v1360 = vpop.f32.mrf.mxu0
      %v1361 = vadd.f32 %v921, %v1360
      %v1362 = vpop.f32.mrf.mxu0
      %v1363 = vadd.f32 %v921, %v1362
      %1364 = vmatmul.bf16.gmra.mxu0 %v916
      %v1365 = vpop.f32.mrf.mxu0
      %v1366 = vadd.f32 %v921, %v1365
      %v1367 = vpop.f32.mrf.mxu0
      %v1368 = vadd.f32 %v921, %v1367
      %1369 = vdwg.mxu0
      %1370 = vmatpush.bf16.msra.mxu0 %v1186
      %1371 = vmatpush.bf16.msra.mxu0 %v1178
      %1372 = vmatpush.bf16.msra.mxu0 %v1170
      %1373 = vmatpush.bf16.msra.mxu0 %v1162
      %1374 = vmatpush.bf16.msra.mxu0 %v1154
      %1375 = vmatpush.bf16.msra.mxu0 %v1146
      %1376 = vmatpush.bf16.msra.mxu0 %v1138
      %1377 = vmatpush.bf16.msra.mxu0 %v1130
      %1378 = vmatmul.bf16.gmra.mxu0 %v913
      %v1379 = vpop.f32.mrf.mxu0
      %v1380 = vadd.f32 %v922, %v1379
      %v1381 = vpop.f32.mrf.mxu0
      %v1382 = vadd.f32 %v922, %v1381
      %1383 = vmatmul.bf16.gmra.mxu0 %v914
      %v1384 = vpop.f32.mrf.mxu0
      %v1385 = vadd.f32 %v922, %v1384
      %v1386 = vpop.f32.mrf.mxu0
      %v1387 = vadd.f32 %v922, %v1386
      %1388 = vmatmul.bf16.gmra.mxu0 %v915
      %v1389 = vpop.f32.mrf.mxu0
      %v1390 = vadd.f32 %v922, %v1389
      %v1391 = vpop.f32.mrf.mxu0
      %v1392 = vadd.f32 %v922, %v1391
      %1393 = vmatmul.bf16.gmra.mxu0 %v916
      %v1394 = vpop.f32.mrf.mxu0
      %v1395 = vadd.f32 %v922, %v1394
      %v1396 = vpop.f32.mrf.mxu0
      %v1397 = vadd.f32 %v922, %v1396
      %1398 = vdwg.mxu0
      %1399 = vmatpush.bf16.msra.mxu0 %v1187
      %1400 = vmatpush.bf16.msra.mxu0 %v1179
      %1401 = vmatpush.bf16.msra.mxu0 %v1171
      %1402 = vmatpush.bf16.msra.mxu0 %v1163
      %1403 = vmatpush.bf16.msra.mxu0 %v1155
      %1404 = vmatpush.bf16.msra.mxu0 %v1147
      %1405 = vmatpush.bf16.msra.mxu0 %v1139
      %1406 = vmatpush.bf16.msra.mxu0 %v1131
      %1407 = vmatmul.bf16.gmra.mxu0 %v913
      %v1408 = vpop.f32.mrf.mxu0
      %v1409 = vadd.f32 %v923, %v1408
      %v1410 = vpop.f32.mrf.mxu0
      %v1411 = vadd.f32 %v923, %v1410
      %1412 = vmatmul.bf16.gmra.mxu0 %v914
      %v1413 = vpop.f32.mrf.mxu0
      %v1414 = vadd.f32 %v923, %v1413
      %v1415 = vpop.f32.mrf.mxu0
      %v1416 = vadd.f32 %v923, %v1415
      %1417 = vmatmul.bf16.gmra.mxu0 %v915
      %v1418 = vpop.f32.mrf.mxu0
      %v1419 = vadd.f32 %v923, %v1418
      %v1420 = vpop.f32.mrf.mxu0
      %v1421 = vadd.f32 %v923, %v1420
      %1422 = vmatmul.bf16.gmra.mxu0 %v916
      %v1423 = vpop.f32.mrf.mxu0
      %v1424 = vadd.f32 %v923, %v1423
      %v1425 = vpop.f32.mrf.mxu0
      %v1426 = vadd.f32 %v923, %v1425
      %1427 = vdwg.mxu0
      %1428 = vmatpush.bf16.msra.mxu0 %v1188
      %1429 = vmatpush.bf16.msra.mxu0 %v1180
      %1430 = vmatpush.bf16.msra.mxu0 %v1172
      %1431 = vmatpush.bf16.msra.mxu0 %v1164
      %1432 = vmatpush.bf16.msra.mxu0 %v1156
      %1433 = vmatpush.bf16.msra.mxu0 %v1148
      %1434 = vmatpush.bf16.msra.mxu0 %v1140
      %1435 = vmatpush.bf16.msra.mxu0 %v1132
      %1436 = vmatmul.bf16.gmra.mxu0 %v913
      %v1437 = vpop.f32.mrf.mxu0
      %v1438 = vadd.f32 %v924, %v1437
      %v1439 = vpop.f32.mrf.mxu0
      %v1440 = vadd.f32 %v924, %v1439
      %1441 = vmatmul.bf16.gmra.mxu0 %v914
      %v1442 = vpop.f32.mrf.mxu0
      %v1443 = vadd.f32 %v924, %v1442
      %v1444 = vpop.f32.mrf.mxu0
      %v1445 = vadd.f32 %v924, %v1444
      %1446 = vmatmul.bf16.gmra.mxu0 %v915
      %v1447 = vpop.f32.mrf.mxu0
      %v1448 = vadd.f32 %v924, %v1447
      %v1449 = vpop.f32.mrf.mxu0
      %v1450 = vadd.f32 %v924, %v1449
      %1451 = vmatmul.bf16.gmra.mxu0 %v916
      %v1452 = vpop.f32.mrf.mxu0
      %v1453 = vadd.f32 %v924, %v1452
      %v1454 = vpop.f32.mrf.mxu0
      %v1455 = vadd.f32 %v924, %v1454
      %1456 = vdwg.mxu0
      %1457 = vmatpush.bf16.msra.mxu0 %v1189
      %1458 = vmatpush.bf16.msra.mxu0 %v1181
      %1459 = vmatpush.bf16.msra.mxu0 %v1173
      %1460 = vmatpush.bf16.msra.mxu0 %v1165
      %1461 = vmatpush.bf16.msra.mxu0 %v1157
      %1462 = vmatpush.bf16.msra.mxu0 %v1149
      %1463 = vmatpush.bf16.msra.mxu0 %v1141
      %1464 = vmatpush.bf16.msra.mxu0 %v1133
      %1465 = vmatmul.bf16.gmra.mxu0 %v913
      %v1466 = vpop.f32.mrf.mxu0
      %v1467 = vadd.f32 %v925, %v1466
      %v1468 = vpop.f32.mrf.mxu0
      %v1469 = vadd.f32 %v925, %v1468
      %1470 = vmatmul.bf16.gmra.mxu0 %v914
      %v1471 = vpop.f32.mrf.mxu0
      %v1472 = vadd.f32 %v925, %v1471
      %v1473 = vpop.f32.mrf.mxu0
      %v1474 = vadd.f32 %v925, %v1473
      %1475 = vmatmul.bf16.gmra.mxu0 %v915
      %v1476 = vpop.f32.mrf.mxu0
      %v1477 = vadd.f32 %v925, %v1476
      %v1478 = vpop.f32.mrf.mxu0
      %v1479 = vadd.f32 %v925, %v1478
      %1480 = vmatmul.bf16.gmra.mxu0 %v916
      %v1481 = vpop.f32.mrf.mxu0
      %v1482 = vadd.f32 %v925, %v1481
      %v1483 = vpop.f32.mrf.mxu0
      %v1484 = vadd.f32 %v925, %v1483
      %1485 = vdwg.mxu0
      %v1486 = vmax.f32 %v1264, 0.0
      %v1487 = vmax.f32 %v1293, 0.0
      %v1488 = vmax.f32 %v1322, 0.0
      %v1489 = vmax.f32 %v1351, 0.0
      %v1490 = vmax.f32 %v1380, 0.0
      %v1491 = vmax.f32 %v1409, 0.0
      %v1492 = vmax.f32 %v1438, 0.0
      %v1493 = vmax.f32 %v1467, 0.0
      %v1494 = vmax.f32 %v1266, 0.0
      %v1495 = vmax.f32 %v1295, 0.0
      %v1496 = vmax.f32 %v1324, 0.0
      %v1497 = vmax.f32 %v1353, 0.0
      %v1498 = vmax.f32 %v1382, 0.0
      %v1499 = vmax.f32 %v1411, 0.0
      %v1500 = vmax.f32 %v1440, 0.0
      %v1501 = vmax.f32 %v1469, 0.0
      %v1502 = vmax.f32 %v1269, 0.0
      %v1503 = vmax.f32 %v1298, 0.0
      %v1504 = vmax.f32 %v1327, 0.0
      %v1505 = vmax.f32 %v1356, 0.0
      %v1506 = vmax.f32 %v1385, 0.0
      %v1507 = vmax.f32 %v1414, 0.0
      %v1508 = vmax.f32 %v1443, 0.0
      %v1509 = vmax.f32 %v1472, 0.0
      %v1510 = vmax.f32 %v1271, 0.0
      %v1511 = vmax.f32 %v1300, 0.0
      %v1512 = vmax.f32 %v1329, 0.0
      %v1513 = vmax.f32 %v1358, 0.0
      %v1514 = vmax.f32 %v1387, 0.0
      %v1515 = vmax.f32 %v1416, 0.0
      %v1516 = vmax.f32 %v1445, 0.0
      %v1517 = vmax.f32 %v1474, 0.0
      %v1518 = vmax.f32 %v1274, 0.0
      %v1519 = vmax.f32 %v1303, 0.0
      %v1520 = vmax.f32 %v1332, 0.0
      %v1521 = vmax.f32 %v1361, 0.0
      %v1522 = vmax.f32 %v1390, 0.0
      %v1523 = vmax.f32 %v1419, 0.0
      %v1524 = vmax.f32 %v1448, 0.0
      %v1525 = vmax.f32 %v1477, 0.0
      %v1526 = vmax.f32 %v1276, 0.0
      %v1527 = vmax.f32 %v1305, 0.0
      %v1528 = vmax.f32 %v1334, 0.0
      %v1529 = vmax.f32 %v1363, 0.0
      %v1530 = vmax.f32 %v1392, 0.0
      %v1531 = vmax.f32 %v1421, 0.0
      %v1532 = vmax.f32 %v1450, 0.0
      %v1533 = vmax.f32 %v1479, 0.0
      %v1534 = vmax.f32 %v1279, 0.0
      %v1535 = vmax.f32 %v1308, 0.0
      %v1536 = vmax.f32 %v1337, 0.0
      %v1537 = vmax.f32 %v1366, 0.0
      %v1538 = vmax.f32 %v1395, 0.0
      %v1539 = vmax.f32 %v1424, 0.0
      %v1540 = vmax.f32 %v1453, 0.0
      %v1541 = vmax.f32 %v1482, 0.0
      %v1542 = vmax.f32 %v1281, 0.0
      %v1543 = vmax.f32 %v1310, 0.0
      %v1544 = vmax.f32 %v1339, 0.0
      %v1545 = vmax.f32 %v1368, 0.0
      %v1546 = vmax.f32 %v1397, 0.0
      %v1547 = vmax.f32 %v1426, 0.0
      %v1548 = vmax.f32 %v1455, 0.0
      %v1549 = vmax.f32 %v1484, 0.0
      %v1550 = vlaneseq
      %v1551 = vshrl.u32 %v1550, 7
      %v1552 = vadd.s32 %v1551, 8
      %v1553 = vadd.s32 %v1551, 16
      %v1554 = vadd.s32 %v1551, 24
      %v1555 = vadd.s32 %v1551, 32
      %v1556 = vadd.s32 %v1551, 40
      %v1557 = vadd.s32 %v1551, 48
      %v1558 = vadd.s32 %v1551, 56
      %v1559 = vstv %s458
      %v1560 = vadd.s32 %v1559, %v1551
      %v1561 = vadd.s32 %v1559, %v1552
      %v1562 = vadd.s32 %v1559, %v1553
      %v1563 = vadd.s32 %v1559, %v1554
      %v1564 = vadd.s32 %v1559, %v1555
      %v1565 = vadd.s32 %v1559, %v1556
      %v1566 = vadd.s32 %v1559, %v1557
      %v1567 = vadd.s32 %v1559, %v1558
      %vm1568 = vcmp.lt.s32.totalorder %v1560, 60
      %vm1569 = vcmp.lt.s32.totalorder %v1561, 60
      %vm1570 = vcmp.lt.s32.totalorder %v1562, 60
      %vm1571 = vcmp.lt.s32.totalorder %v1563, 60
      %vm1572 = vcmp.lt.s32.totalorder %v1564, 60
      %vm1573 = vcmp.lt.s32.totalorder %v1565, 60
      %vm1574 = vcmp.lt.s32.totalorder %v1566, 60
      %vm1575 = vcmp.lt.s32.totalorder %v1567, 60
      %v1576 = vsel %vm1568, 1, 0
      %v1577 = vsel %vm1569, 1, 0
      %v1578 = vsel %vm1570, 1, 0
      %v1579 = vsel %vm1571, 1, 0
      %v1580 = vsel %vm1572, 1, 0
      %v1581 = vsel %vm1573, 1, 0
      %v1582 = vsel %vm1574, 1, 0
      %v1583 = vsel %vm1575, 1, 0
      %vm1584 = vcmp.eq.s32.totalorder %v1576, 1
      %vm1585 = vcmp.eq.s32.totalorder %v1577, 1
      %vm1586 = vcmp.eq.s32.totalorder %v1578, 1
      %vm1587 = vcmp.eq.s32.totalorder %v1579, 1
      %vm1588 = vcmp.eq.s32.totalorder %v1580, 1
      %vm1589 = vcmp.eq.s32.totalorder %v1581, 1
      %vm1590 = vcmp.eq.s32.totalorder %v1582, 1
      %vm1591 = vcmp.eq.s32.totalorder %v1583, 1
      %v1592 = vsel %vm1584, %v1486, -inf
      %v1593 = vsel %vm1584, %v1487, -inf
      %v1594 = vsel %vm1584, %v1488, -inf
      %v1595 = vsel %vm1584, %v1489, -inf
      %v1596 = vsel %vm1584, %v1490, -inf
      %v1597 = vsel %vm1584, %v1491, -inf
      %v1598 = vsel %vm1584, %v1492, -inf
      %v1599 = vsel %vm1584, %v1493, -inf
      %v1600 = vsel %vm1585, %v1494, -inf
      %v1601 = vsel %vm1585, %v1495, -inf
      %v1602 = vsel %vm1585, %v1496, -inf
      %v1603 = vsel %vm1585, %v1497, -inf
      %v1604 = vsel %vm1585, %v1498, -inf
      %v1605 = vsel %vm1585, %v1499, -inf
      %v1606 = vsel %vm1585, %v1500, -inf
      %v1607 = vsel %vm1585, %v1501, -inf
      %v1608 = vsel %vm1586, %v1502, -inf
      %v1609 = vsel %vm1586, %v1503, -inf
      %v1610 = vsel %vm1586, %v1504, -inf
      %v1611 = vsel %vm1586, %v1505, -inf
      %v1612 = vsel %vm1586, %v1506, -inf
      %v1613 = vsel %vm1586, %v1507, -inf
      %v1614 = vsel %vm1586, %v1508, -inf
      %v1615 = vsel %vm1586, %v1509, -inf
      %v1616 = vsel %vm1587, %v1510, -inf
      %v1617 = vsel %vm1587, %v1511, -inf
      %v1618 = vsel %vm1587, %v1512, -inf
      %v1619 = vsel %vm1587, %v1513, -inf
      %v1620 = vsel %vm1587, %v1514, -inf
      %v1621 = vsel %vm1587, %v1515, -inf
      %v1622 = vsel %vm1587, %v1516, -inf
      %v1623 = vsel %vm1587, %v1517, -inf
      %v1624 = vsel %vm1588, %v1518, -inf
      %v1625 = vsel %vm1588, %v1519, -inf
      %v1626 = vsel %vm1588, %v1520, -inf
      %v1627 = vsel %vm1588, %v1521, -inf
      %v1628 = vsel %vm1588, %v1522, -inf
      %v1629 = vsel %vm1588, %v1523, -inf
      %v1630 = vsel %vm1588, %v1524, -inf
      %v1631 = vsel %vm1588, %v1525, -inf
      %v1632 = vsel %vm1589, %v1526, -inf
      %v1633 = vsel %vm1589, %v1527, -inf
      %v1634 = vsel %vm1589, %v1528, -inf
      %v1635 = vsel %vm1589, %v1529, -inf
      %v1636 = vsel %vm1589, %v1530, -inf
      %v1637 = vsel %vm1589, %v1531, -inf
      %v1638 = vsel %vm1589, %v1532, -inf
      %v1639 = vsel %vm1589, %v1533, -inf
      %v1640 = vsel %vm1590, %v1534, -inf
      %v1641 = vsel %vm1590, %v1535, -inf
      %v1642 = vsel %vm1590, %v1536, -inf
      %v1643 = vsel %vm1590, %v1537, -inf
      %v1644 = vsel %vm1590, %v1538, -inf
      %v1645 = vsel %vm1590, %v1539, -inf
      %v1646 = vsel %vm1590, %v1540, -inf
      %v1647 = vsel %vm1590, %v1541, -inf
      %v1648 = vsel %vm1591, %v1542, -inf
      %v1649 = vsel %vm1591, %v1543, -inf
      %v1650 = vsel %vm1591, %v1544, -inf
      %v1651 = vsel %vm1591, %v1545, -inf
      %v1652 = vsel %vm1591, %v1546, -inf
      %v1653 = vsel %vm1591, %v1547, -inf
      %v1654 = vsel %vm1591, %v1548, -inf
      %v1655 = vsel %vm1591, %v1549, -inf
      %v1656 = vmax.f32 %v1592, %v1600
      %v1657 = vmax.f32 %v1656, %v1608
      %v1658 = vmax.f32 %v1657, %v1616
      %v1659 = vmax.f32 %v1658, %v1624
      %v1660 = vmax.f32 %v1659, %v1632
      %v1661 = vmax.f32 %v1660, %v1640
      %v1662 = vmax.f32 %v1661, %v1648
      %v1663 = vrot.slane %v1662, 4
      %v1664 = vmax.f32 %v1662, %v1663
      %v1665 = vrot.slane %v1664, 2
      %v1666 = vmax.f32 %v1664, %v1665
      %v1667 = vrot.slane %v1666, 1
      %v1668 = vmax.f32 %v1666, %v1667
      %v1669 = vmax.f32 %v1593, %v1601
      %v1670 = vmax.f32 %v1669, %v1609
      %v1671 = vmax.f32 %v1670, %v1617
      %v1672 = vmax.f32 %v1671, %v1625
      %v1673 = vmax.f32 %v1672, %v1633
      %v1674 = vmax.f32 %v1673, %v1641
      %v1675 = vmax.f32 %v1674, %v1649
      %v1676 = vrot.slane %v1675, 4
      %v1677 = vmax.f32 %v1675, %v1676
      %v1678 = vrot.slane %v1677, 2
      %v1679 = vmax.f32 %v1677, %v1678
      %v1680 = vrot.slane %v1679, 1
      %v1681 = vmax.f32 %v1679, %v1680
      %v1682 = vmax.f32 %v1594, %v1602
      %v1683 = vmax.f32 %v1682, %v1610
      %v1684 = vmax.f32 %v1683, %v1618
      %v1685 = vmax.f32 %v1684, %v1626
      %v1686 = vmax.f32 %v1685, %v1634
      %v1687 = vmax.f32 %v1686, %v1642
      %v1688 = vmax.f32 %v1687, %v1650
      %v1689 = vrot.slane %v1688, 4
      %v1690 = vmax.f32 %v1688, %v1689
      %v1691 = vrot.slane %v1690, 2
      %v1692 = vmax.f32 %v1690, %v1691
      %v1693 = vrot.slane %v1692, 1
      %v1694 = vmax.f32 %v1692, %v1693
      %v1695 = vmax.f32 %v1595, %v1603
      %v1696 = vmax.f32 %v1695, %v1611
      %v1697 = vmax.f32 %v1696, %v1619
      %v1698 = vmax.f32 %v1697, %v1627
      %v1699 = vmax.f32 %v1698, %v1635
      %v1700 = vmax.f32 %v1699, %v1643
      %v1701 = vmax.f32 %v1700, %v1651
      %v1702 = vrot.slane %v1701, 4
      %v1703 = vmax.f32 %v1701, %v1702
      %v1704 = vrot.slane %v1703, 2
      %v1705 = vmax.f32 %v1703, %v1704
      %v1706 = vrot.slane %v1705, 1
      %v1707 = vmax.f32 %v1705, %v1706
      %v1708 = vmax.f32 %v1596, %v1604
      %v1709 = vmax.f32 %v1708, %v1612
      %v1710 = vmax.f32 %v1709, %v1620
      %v1711 = vmax.f32 %v1710, %v1628
      %v1712 = vmax.f32 %v1711, %v1636
      %v1713 = vmax.f32 %v1712, %v1644
      %v1714 = vmax.f32 %v1713, %v1652
      %v1715 = vrot.slane %v1714, 4
      %v1716 = vmax.f32 %v1714, %v1715
      %v1717 = vrot.slane %v1716, 2
      %v1718 = vmax.f32 %v1716, %v1717
      %v1719 = vrot.slane %v1718, 1
      %v1720 = vmax.f32 %v1718, %v1719
      %v1721 = vmax.f32 %v1597, %v1605
      %v1722 = vmax.f32 %v1721, %v1613
      %v1723 = vmax.f32 %v1722, %v1621
      %v1724 = vmax.f32 %v1723, %v1629
      %v1725 = vmax.f32 %v1724, %v1637
      %v1726 = vmax.f32 %v1725, %v1645
      %v1727 = vmax.f32 %v1726, %v1653
      %v1728 = vrot.slane %v1727, 4
      %v1729 = vmax.f32 %v1727, %v1728
      %v1730 = vrot.slane %v1729, 2
      %v1731 = vmax.f32 %v1729, %v1730
      %v1732 = vrot.slane %v1731, 1
      %v1733 = vmax.f32 %v1731, %v1732
      %v1734 = vmax.f32 %v1598, %v1606
      %v1735 = vmax.f32 %v1734, %v1614
      %v1736 = vmax.f32 %v1735, %v1622
      %v1737 = vmax.f32 %v1736, %v1630
      %v1738 = vmax.f32 %v1737, %v1638
      %v1739 = vmax.f32 %v1738, %v1646
      %v1740 = vmax.f32 %v1739, %v1654
      %v1741 = vrot.slane %v1740, 4
      %v1742 = vmax.f32 %v1740, %v1741
      %v1743 = vrot.slane %v1742, 2
      %v1744 = vmax.f32 %v1742, %v1743
      %v1745 = vrot.slane %v1744, 1
      %v1746 = vmax.f32 %v1744, %v1745
      %v1747 = vmax.f32 %v1599, %v1607
      %v1748 = vmax.f32 %v1747, %v1615
      %v1749 = vmax.f32 %v1748, %v1623
      %v1750 = vmax.f32 %v1749, %v1631
      %v1751 = vmax.f32 %v1750, %v1639
      %v1752 = vmax.f32 %v1751, %v1647
      %v1753 = vmax.f32 %v1752, %v1655
      %v1754 = vrot.slane %v1753, 4
      %v1755 = vmax.f32 %v1753, %v1754
      %v1756 = vrot.slane %v1755, 2
      %v1757 = vmax.f32 %v1755, %v1756
      %v1758 = vrot.slane %v1757, 1
      %v1759 = vmax.f32 %v1757, %v1758
      %p1760 = scmp.eq.s32.totalorder %s29, 0
      // Predicated region
      $region57: #{pointnet_segmentation_forward.5} parent=55 // pred_check
        %p1761 = pneg %p1760
      $region58: #{pointnet_segmentation_forward.5} parent=55 // pred_check_branch
        %1763 = sbr.rel (%p1761) target = $region60
      $region59: #{pointnet_segmentation_forward.5} parent=55 // pred_region
        %v1772 = vrot.slane %v1681, 7
        %v1773 = vrot.slane %v1694, 6
        %v1774 = vrot.slane %v1707, 5
        %v1775 = vrot.slane %v1720, 4
        %v1776 = vrot.slane %v1733, 3
        %v1777 = vrot.slane %v1746, 2
        %v1778 = vrot.slane %v1759, 1
        %vm1779 = vcmask 1040384
        %v1780 = vsel %vm1779, %v1668, %v1772
        %vm1781 = vcmask 1042434
        %v1782 = vsel %vm1781, %v1773, %v1774
        %vm1783 = vcmask 1041408
        %v1784 = vsel %vm1783, %v1780, %v1782
        %vm1785 = vcmask 1044484
        %v1786 = vsel %vm1785, %v1775, %v1776
        %vm1787 = vcmask 1046534
        %v1788 = vsel %vm1787, %v1777, %v1778
        %vm1789 = vcmask 1045508
        %v1790 = vsel %vm1789, %v1786, %v1788
        %vm1791 = vcmask 1043456
        %v1792 = vsel %vm1791, %v1784, %v1790
        %1794 = vst [vmem:[%s455] sm:$0xff] %v1792
      $region60: #{pointnet_segmentation_forward.5} parent=55 // pred_fallthru
        _
      %p1795 = scmp.gt.s32.totalorder %s29, 0
      // Predicated region
      $region61: #{pointnet_segmentation_forward.5} parent=55 // pred_check
        %p1796 = pneg %p1795
      $region62: #{pointnet_segmentation_forward.5} parent=55 // pred_check_branch
        %1798 = sbr.rel (%p1796) target = $region64
      $region63: #{pointnet_segmentation_forward.5} parent=55 // pred_region
        %v1799 = vld [vmem:[%s455] sm:$0xff]
        %v1808 = vrot.slane %v1681, 7
        %v1809 = vrot.slane %v1694, 6
        %v1810 = vrot.slane %v1707, 5
        %v1811 = vrot.slane %v1720, 4
        %v1812 = vrot.slane %v1733, 3
        %v1813 = vrot.slane %v1746, 2
        %v1814 = vrot.slane %v1759, 1
        %vm1815 = vcmask 1040384
        %v1816 = vsel %vm1815, %v1668, %v1808
        %vm1817 = vcmask 1042434
        %v1818 = vsel %vm1817, %v1809, %v1810
        %vm1819 = vcmask 1041408
        %v1820 = vsel %vm1819, %v1816, %v1818
        %vm1821 = vcmask 1044484
        %v1822 = vsel %vm1821, %v1811, %v1812
        %vm1823 = vcmask 1046534
        %v1824 = vsel %vm1823, %v1813, %v1814
        %vm1825 = vcmask 1045508
        %v1826 = vsel %vm1825, %v1822, %v1824
        %vm1827 = vcmask 1043456
        %v1828 = vsel %vm1827, %v1820, %v1826
        %v1830 = vmax.f32 %v1799, %v1828
        %1831 = vst [vmem:[%s455] sm:$0xff] %v1830
      $region64: #{pointnet_segmentation_forward.5} parent=55 // pred_fallthru
        _
      %s1832 = sadd.s32 %s28, %s29
      %s1833 = smul.u32 8, %s1832
      %p1834 = scmp.lt.s32.totalorder %s27, 1
      %s1835 = scalar_select %p1834, %s27, 1
      %p1836 = scmp.lt.s32.totalorder %s1833, 7
      %s1837 = scalar_select %p1836, %s1833, 7
      %s1838 = smul.addr %s1835, 8
      %s1839 = sadd.s32 %s1837, %s1838
      %s1840 = smul.addr %s1839, 4
      %s1841 = scalar_lea.vmem %s9, %s1840
      %p1842 = scmp.lt.s32.totalorder %s27, 1
      %s1843 = scalar_select %p1842, %s27, 1
      %p1844 = scmp.lt.s32.totalorder %s28, 0
      %s1845 = scalar_select %p1844, %s28, 0
      %s1846 = smul.addr %s1845, 8
      %s1847 = smul.addr %s1843, 8
      %s1848 = sadd.s32 %s1846, %s1847
      %s1849 = scalar_lea.vmem %s10, %s1848
      // Predicated region
      $region65: #{pointnet_segmentation_forward.5} parent=55 // pred_check
        %p1850 = pneg %p266
      $region66: #{pointnet_segmentation_forward.5} parent=55 // pred_check_branch
        %1852 = sbr.rel (%p1850) target = $region68
      $region67: #{pointnet_segmentation_forward.5} parent=55 // pred_region
        %s1853 = sadd.s32 %s28, %s29
        %s1854 = smul.u32 8, %s1853
      $region68: #{pointnet_segmentation_forward.5} parent=55 // pred_fallthru
        _
      // Predicated region
      $region69: #{pointnet_segmentation_forward.5} parent=55 // pred_check
        %p1855 = pneg %p294
      $region70: #{pointnet_segmentation_forward.5} parent=55 // pred_check_branch
        %1857 = sbr.rel (%p1855) target = $region72
      $region71: #{pointnet_segmentation_forward.5} parent=55 // pred_region
        _
      $region72: #{pointnet_segmentation_forward.5} parent=55 // pred_fallthru
        _
    $region56: #{pointnet_segmentation_forward.5} parent=5 // pred_fallthru
      _
    %p1858 = scmp.le.s32.totalorder 2, %s17
    // Predicated region
    $region73: #{pointnet_segmentation_forward.5} parent=5 // pred_check
      %p1859 = pneg %p1858
    $region74: #{pointnet_segmentation_forward.5} parent=5 // pred_check_branch
      %1861 = sbr.rel (%p1859) target = $region76
    $region75: #{pointnet_segmentation_forward.5} parent=5 // pred_region
      %s1862 = ssub.s32 %s17, 2
      // Predicated region
      $region77: #{pointnet_segmentation_forward.5} parent=75 // pred_check
        %p1863 = pneg %p272
      $region78: #{pointnet_segmentation_forward.5} parent=75 // pred_check_branch
        %1865 = sbr.rel (%p1863) target = $region80
      $region79: #{pointnet_segmentation_forward.5} parent=75 // pred_region
        %s1866 = sadd.s32 %s31, %s32
        %s1867 = smul.u32 8, %s1866
        %p1868 = scmp.lt.s32.totalorder %s30, 1
        %s1869 = scalar_select %p1868, %s30, 1
        %p1870 = scmp.lt.s32.totalorder %s1867, 7
        %s1871 = scalar_select %p1870, %s1867, 7
        %s1872 = smul.addr %s1869, 8
        %s1873 = sadd.s32 %s1871, %s1872
        %s1874 = smul.addr %s1873, 4
        %s1875 = scalar_lea.vmem %s9, %s1874
      $region80: #{pointnet_segmentation_forward.5} parent=75 // pred_fallthru
        _
      // Predicated region
      $region81: #{pointnet_segmentation_forward.5} parent=75 // pred_check
        %p1876 = pneg %p300
      $region82: #{pointnet_segmentation_forward.5} parent=75 // pred_check_branch
        %1878 = sbr.rel (%p1876) target = $region84
      $region83: #{pointnet_segmentation_forward.5} parent=75 // pred_region
        %p1879 = scmp.lt.s32.totalorder %s30, 1
        %s1880 = scalar_select %p1879, %s30, 1
        %p1881 = scmp.lt.s32.totalorder %s31, 0
        %s1882 = scalar_select %p1881, %s31, 0
        %s1883 = smul.addr %s1882, 8
        %s1884 = smul.addr %s1880, 8
        %s1885 = sadd.s32 %s1883, %s1884
        %s1886 = scalar_lea.vmem %s10, %s1885
      $region84: #{pointnet_segmentation_forward.5} parent=75 // pred_fallthru
        _
    $region76: #{pointnet_segmentation_forward.5} parent=5 // pred_fallthru
      _
  $region6: #{pointnet_segmentation_forward.5} parent=0 // loop_footer
    %s21 = sadd.s32 1, %s17
  $region7: #{pointnet_segmentation_forward.5} parent=0 // loop_footer_branch
    %16 = sbr.rel target = $region3
  $region8: #{pointnet_segmentation_forward.5} parent=0 // loop_exit
    _

// kernel: pointnet_segmentation_forward.6
$region0: #{pointnet_segmentation_forward.6}
  #allocation0 [shape = 'u32[]', space=smem, size = 0x4, offset = 0x4, fixed_abs, tag = 'smem constant byte address 0x4 - core index']
  #allocation1 [shape = 'u32[72,128]{1,0:T(1,128)}', space=vmem, size = 0x9000, scoped, tag = 'internal scratch']
  %s0 = inlined_call_operand.vmem [shape: bf16[2,64,64], index: 0, kind: input, shape index: {}]
  %s1 = inlined_call_operand.vmem [shape: bf16[2,64,64], index: 1, kind: input, shape index: {}]
  %s2 = inlined_call_operand.vmem [shape: bf16[64,128], index: 2, kind: input, shape index: {}]
  %s3 = inlined_call_operand.vmem [shape: f32[1,128], index: 3, kind: input, shape index: {}]
  %s4 = inlined_call_operand.vmem [shape: bf16[128,1024], index: 4, kind: input, shape index: {}]
  %s5 = inlined_call_operand.vmem [shape: f32[1,1024], index: 5, kind: input, shape index: {}]
  %s6 = inlined_call_operand.vmem [shape: f32[2,1,1,1024], index: 6, kind: output, shape index: {}]
  %s7 = sld [smem:[#allocation0]]
  $region65: #{pointnet_segmentation_forward.6} parent=0
    _
  %s9 = ssub.s32 1, %s7
  %s10 = scalar_select 0, %s9, %s7
  loop: start=0, step=1, limit=4
  $region2: #{pointnet_segmentation_forward.6} parent=0 // loop_pre_header
    _
  $region3: #{pointnet_segmentation_forward.6} parent=0 // loop_header
    %s12 = sphi 0, %s16
    %p13 = scmp.ge.s32.totalorder %s12, 4
    %s19 = sphi 0, %s38
    %s20 = sphi 0, %s34
    %s21 = sphi 0, %s30
    %s22 = sphi 0, %s19
    %s23 = sphi 0, %s20
    %s24 = sphi 0, %s21
    %s25 = sphi 0, %s22
    %s26 = sphi 0, %s23
    %s27 = sphi 0, %s24
    %s45 = sphi 0, %s47
    %s48 = sphi 0, %s45
    %s49 = sphi 0, %s48
    %s65 = sphi 0, %s49
    %s71 = sphi 0, %s73
    %s74 = sphi 0, %s71
    %s75 = sphi 0, %s74
    %s91 = sphi 0, %s75
    %s95 = sphi 0, %s95
    %s97 = sphi 0, %s95
    %s98 = sphi 0, %s97
    %s112 = sphi 0, %s98
    %s116 = sphi 0, %s116
    %s118 = sphi 0, %s116
    %s119 = sphi 0, %s118
    %s133 = sphi 0, %s119
    %s137 = sphi 0, %s137
    %s139 = sphi 0, %s137
    %s140 = sphi 0, %s139
    %s154 = sphi 0, %s140
    %s158 = sphi 0, %s158
    %s160 = sphi 0, %s158
    %s161 = sphi 0, %s160
    %s175 = sphi 0, %s161
    %s183 = sphi 0, %s185
    %s186 = sphi 0, %s183
    %s187 = sphi 0, %s186
    %s203 = sphi 0, %s187
  $region4: #{pointnet_segmentation_forward.6} parent=0 // loop_header_branch
    %15 = sbr.rel (%p13) target = $region8
  $region5: #{pointnet_segmentation_forward.6} parent=0 // loop_body
    %s17 = ssub.s32 %s12, 1
    %s18 = ssub.s32 %s12, 2
    %s28 = sadd.s32 1, %s21
    %p29 = scmp.ge.s32.totalorder %s28, 1
    %s30 = scalar_select %p29, 0, %s28
    %s31 = sadd.s32 1, %s20
    %s32 = scalar_select %p29, %s31, %s20
    %p33 = scmp.ge.s32.totalorder %s32, 1
    %s34 = scalar_select %p33, 0, %s32
    %s35 = sadd.s32 1, %s19
    %s36 = scalar_select %p33, %s35, %s19
    %p37 = scmp.ge.s32.totalorder %s36, 2
    %s38 = scalar_select %p37, 0, %s36
    %s39 = sadd.s32 %s20, %s21
    %s40 = sadd.s32 %s34, %s30
    %s41 = ssub.s32 %s19, %s38
    %s42 = ssub.s32 %s39, %s40
    %s43 = sor.u32 %s41, %s42
    %p44 = scmp.eq.s32.totalorder %s43, 0
    %s46 = sadd.s32 %s45, 1
    %s47 = scalar_select %p44, %s45, %s46
    %p50 = pneg %p44
    %p51 = scmp.eq.s32.totalorder %s12, 1
    %p52 = por %p50, %p51
    %p53 = scmp.ne.s32.totalorder %s45, %s48
    %p54 = scmp.eq.s32.totalorder %s12, 0
    %p55 = por %p53, %p54
    %p56 = scmp.ne.s32.totalorder %s45, %s48
    %p57 = scmp.eq.s32.totalorder %s17, 1
    %p58 = por %p56, %p57
    %p59 = scmp.ne.s32.totalorder %s48, %s49
    %p60 = scmp.eq.s32.totalorder %s17, 0
    %p61 = por %p59, %p60
    %p62 = scmp.ne.s32.totalorder %s48, %s49
    %p63 = scmp.eq.s32.totalorder %s18, 1
    %p64 = por %p62, %p63
    %p66 = scmp.ne.s32.totalorder %s49, %s65
    %p67 = scmp.eq.s32.totalorder %s18, 0
    %p68 = por %p66, %p67
    %s69 = ssub.s32 %s19, %s38
    %p70 = scmp.eq.s32.totalorder %s69, 0
    %s72 = sadd.s32 %s71, 1
    %s73 = scalar_select %p70, %s71, %s72
    %p76 = pneg %p70
    %p77 = scmp.eq.s32.totalorder %s12, 1
    %p78 = por %p76, %p77
    %p79 = scmp.ne.s32.totalorder %s71, %s74
    %p80 = scmp.eq.s32.totalorder %s12, 0
    %p81 = por %p79, %p80
    %p82 = scmp.ne.s32.totalorder %s71, %s74
    %p83 = scmp.eq.s32.totalorder %s17, 1
    %p84 = por %p82, %p83
    %p85 = scmp.ne.s32.totalorder %s74, %s75
    %p86 = scmp.eq.s32.totalorder %s17, 0
    %p87 = por %p85, %p86
    %p88 = scmp.ne.s32.totalorder %s74, %s75
    %p89 = scmp.eq.s32.totalorder %s18, 1
    %p90 = por %p88, %p89
    %p92 = scmp.ne.s32.totalorder %s75, %s91
    %p93 = scmp.eq.s32.totalorder %s18, 0
    %p94 = por %p92, %p93
    %s96 = sadd.s32 %s95, 1
    %p99 = scmp.eq.s32.totalorder %s12, 1
    %p100 = scmp.ne.s32.totalorder %s95, %s97
    %p101 = scmp.eq.s32.totalorder %s12, 0
    %p102 = por %p100, %p101
    %p103 = scmp.ne.s32.totalorder %s95, %s97
    %p104 = scmp.eq.s32.totalorder %s17, 1
    %p105 = por %p103, %p104
    %p106 = scmp.ne.s32.totalorder %s97, %s98
    %p107 = scmp.eq.s32.totalorder %s17, 0
    %p108 = por %p106, %p107
    %p109 = scmp.ne.s32.totalorder %s97, %s98
    %p110 = scmp.eq.s32.totalorder %s18, 1
    %p111 = por %p109, %p110
    %p113 = scmp.ne.s32.totalorder %s98, %s112
    %p114 = scmp.eq.s32.totalorder %s18, 0
    %p115 = por %p113, %p114
    %s117 = sadd.s32 %s116, 1
    %p120 = scmp.eq.s32.totalorder %s12, 1
    %p121 = scmp.ne.s32.totalorder %s116, %s118
    %p122 = scmp.eq.s32.totalorder %s12, 0
    %p123 = por %p121, %p122
    %p124 = scmp.ne.s32.totalorder %s116, %s118
    %p125 = scmp.eq.s32.totalorder %s17, 1
    %p126 = por %p124, %p125
    %p127 = scmp.ne.s32.totalorder %s118, %s119
    %p128 = scmp.eq.s32.totalorder %s17, 0
    %p129 = por %p127, %p128
    %p130 = scmp.ne.s32.totalorder %s118, %s119
    %p131 = scmp.eq.s32.totalorder %s18, 1
    %p132 = por %p130, %p131
    %p134 = scmp.ne.s32.totalorder %s119, %s133
    %p135 = scmp.eq.s32.totalorder %s18, 0
    %p136 = por %p134, %p135
    %s138 = sadd.s32 %s137, 1
    %p141 = scmp.eq.s32.totalorder %s12, 1
    %p142 = scmp.ne.s32.totalorder %s137, %s139
    %p143 = scmp.eq.s32.totalorder %s12, 0
    %p144 = por %p142, %p143
    %p145 = scmp.ne.s32.totalorder %s137, %s139
    %p146 = scmp.eq.s32.totalorder %s17, 1
    %p147 = por %p145, %p146
    %p148 = scmp.ne.s32.totalorder %s139, %s140
    %p149 = scmp.eq.s32.totalorder %s17, 0
    %p150 = por %p148, %p149
    %p151 = scmp.ne.s32.totalorder %s139, %s140
    %p152 = scmp.eq.s32.totalorder %s18, 1
    %p153 = por %p151, %p152
    %p155 = scmp.ne.s32.totalorder %s140, %s154
    %p156 = scmp.eq.s32.totalorder %s18, 0
    %p157 = por %p155, %p156
    %s159 = sadd.s32 %s158, 1
    %p162 = scmp.eq.s32.totalorder %s12, 1
    %p163 = scmp.ne.s32.totalorder %s158, %s160
    %p164 = scmp.eq.s32.totalorder %s12, 0
    %p165 = por %p163, %p164
    %p166 = scmp.ne.s32.totalorder %s158, %s160
    %p167 = scmp.eq.s32.totalorder %s17, 1
    %p168 = por %p166, %p167
    %p169 = scmp.ne.s32.totalorder %s160, %s161
    %p170 = scmp.eq.s32.totalorder %s17, 0
    %p171 = por %p169, %p170
    %p172 = scmp.ne.s32.totalorder %s160, %s161
    %p173 = scmp.eq.s32.totalorder %s18, 1
    %p174 = por %p172, %p173
    %p176 = scmp.ne.s32.totalorder %s161, %s175
    %p177 = scmp.eq.s32.totalorder %s18, 0
    %p178 = por %p176, %p177
    %s179 = ssub.s32 %s19, %s38
    %s180 = ssub.s32 %s20, %s34
    %s181 = sor.u32 %s179, %s180
    %p182 = scmp.eq.s32.totalorder %s181, 0
    %s184 = sadd.s32 %s183, 1
    %s185 = scalar_select %p182, %s183, %s184
    %p188 = pneg %p182
    %p189 = scmp.eq.s32.totalorder %s12, 1
    %p190 = por %p188, %p189
    %p191 = scmp.ne.s32.totalorder %s183, %s186
    %p192 = scmp.eq.s32.totalorder %s12, 0
    %p193 = por %p191, %p192
    %p194 = scmp.ne.s32.totalorder %s183, %s186
    %p195 = scmp.eq.s32.totalorder %s17, 1
    %p196 = por %p194, %p195
    %p197 = scmp.ne.s32.totalorder %s186, %s187
    %p198 = scmp.eq.s32.totalorder %s17, 0
    %p199 = por %p197, %p198
    %p200 = scmp.ne.s32.totalorder %s186, %s187
    %p201 = scmp.eq.s32.totalorder %s18, 1
    %p202 = por %p200, %p201
    %p204 = scmp.ne.s32.totalorder %s187, %s203
    %p205 = scmp.eq.s32.totalorder %s18, 0
    %p206 = por %p204, %p205
    %p207 = scmp.le.s32.totalorder 1, %s12
    %p208 = scmp.lt.s32.totalorder %s12, 3
    %p209 = pnand %p207, %p208
    %p210 = pneg %p209
    // Predicated region
    $region9: #{pointnet_segmentation_forward.6} parent=5 // pred_check
      _
    $region10: #{pointnet_segmentation_forward.6} parent=5 // pred_check_branch
      %212 = sbr.rel (%p209) target = $region12
    $region11: #{pointnet_segmentation_forward.6} parent=5 // pred_region
      %s213 = ssub.s32 %s12, 1
      // Predicated region
      $region13: #{pointnet_segmentation_forward.6} parent=11 // pred_check
        %p214 = pneg %p108
      $region14: #{pointnet_segmentation_forward.6} parent=11 // pred_check_branch
        %216 = sbr.rel (%p214) target = $region16
      $region15: #{pointnet_segmentation_forward.6} parent=11 // pred_region
        _
      $region16: #{pointnet_segmentation_forward.6} parent=11 // pred_fallthru
        _
      // Predicated region
      $region17: #{pointnet_segmentation_forward.6} parent=11 // pred_check
        %p217 = pneg %p129
      $region18: #{pointnet_segmentation_forward.6} parent=11 // pred_check_branch
        %219 = sbr.rel (%p217) target = $region20
      $region19: #{pointnet_segmentation_forward.6} parent=11 // pred_region
        _
      $region20: #{pointnet_segmentation_forward.6} parent=11 // pred_fallthru
        _
      // Predicated region
      $region21: #{pointnet_segmentation_forward.6} parent=11 // pred_check
        %p220 = pneg %p150
      $region22: #{pointnet_segmentation_forward.6} parent=11 // pred_check_branch
        %222 = sbr.rel (%p220) target = $region24
      $region23: #{pointnet_segmentation_forward.6} parent=11 // pred_region
        _
      $region24: #{pointnet_segmentation_forward.6} parent=11 // pred_fallthru
        _
      // Predicated region
      $region25: #{pointnet_segmentation_forward.6} parent=11 // pred_check
        %p223 = pneg %p171
      $region26: #{pointnet_segmentation_forward.6} parent=11 // pred_check_branch
        %225 = sbr.rel (%p223) target = $region28
      $region27: #{pointnet_segmentation_forward.6} parent=11 // pred_region
        _
      $region28: #{pointnet_segmentation_forward.6} parent=11 // pred_fallthru
        _
    $region12: #{pointnet_segmentation_forward.6} parent=5 // pred_fallthru
      _
    %p226 = scmp.lt.s32.totalorder %s12, 2
    // Predicated region
    $region29: #{pointnet_segmentation_forward.6} parent=5 // pred_check
      %p227 = pneg %p226
    $region30: #{pointnet_segmentation_forward.6} parent=5 // pred_check_branch
      %229 = sbr.rel (%p227) target = $region32
    $region31: #{pointnet_segmentation_forward.6} parent=5 // pred_region
      // Predicated region
      $region33: #{pointnet_segmentation_forward.6} parent=31 // pred_check
        %p230 = pneg %p55
      $region34: #{pointnet_segmentation_forward.6} parent=31 // pred_check_branch
        %232 = sbr.rel (%p230) target = $region36
      $region35: #{pointnet_segmentation_forward.6} parent=31 // pred_region
        %s233 = sadd.s32 %s20, %s21
        %s234 = smul.u32 8, %s233
        %p235 = scmp.lt.s32.totalorder %s19, 1
        %s236 = scalar_select %p235, %s19, 1
        %p237 = scmp.lt.s32.totalorder %s234, 7
        %s238 = scalar_select %p237, %s234, 7
        %s239 = smul.addr %s236, 8
        %s240 = sadd.s32 %s238, %s239
        %s241 = smul.addr %s240, 4
        %s242 = scalar_lea.vmem %s0, %s241
        %s243 = sadd.s32 %s20, %s21
        %s244 = smul.u32 8, %s243
      $region36: #{pointnet_segmentation_forward.6} parent=31 // pred_fallthru
        _
      // Predicated region
      $region37: #{pointnet_segmentation_forward.6} parent=31 // pred_check
        %p245 = pneg %p81
      $region38: #{pointnet_segmentation_forward.6} parent=31 // pred_check_branch
        %247 = sbr.rel (%p245) target = $region40
      $region39: #{pointnet_segmentation_forward.6} parent=31 // pred_region
        %p248 = scmp.lt.s32.totalorder %s19, 1
        %s249 = scalar_select %p248, %s19, 1
        %s250 = smul.addr %s249, 8
        %s251 = smul.addr %s250, 4
        %s252 = scalar_lea.vmem %s1, %s251
      $region40: #{pointnet_segmentation_forward.6} parent=31 // pred_fallthru
        _
    $region32: #{pointnet_segmentation_forward.6} parent=5 // pred_fallthru
      _
    %p253 = scmp.le.s32.totalorder 1, %s12
    %p254 = scmp.lt.s32.totalorder %s12, 3
    %p255 = pnand %p253, %p254
    %p256 = pneg %p255
    // Predicated region
    $region41: #{pointnet_segmentation_forward.6} parent=5 // pred_check
      _
    $region42: #{pointnet_segmentation_forward.6} parent=5 // pred_check_branch
      %258 = sbr.rel (%p255) target = $region44
    $region43: #{pointnet_segmentation_forward.6} parent=5 // pred_region
      %s259 = ssub.s32 %s12, 1
      %s260 = sadd.s32 %s23, %s24
      %s261 = smul.u32 8, %s260
      %p262 = scmp.lt.s32.totalorder %s22, 1
      %s263 = scalar_select %p262, %s22, 1
      %p264 = scmp.lt.s32.totalorder %s261, 7
      %s265 = scalar_select %p264, %s261, 7
      %s266 = smul.addr %s263, 8
      %s267 = sadd.s32 %s265, %s266
      %s268 = smul.addr %s267, 4
      %s269 = scalar_lea.vmem %s0, %s268
      %p270 = pneg %p61
      %p271 = pneg %p58
      %p272 = scmp.lt.s32.totalorder %s22, 1
      %s273 = scalar_select %p272, %s22, 1
      %s274 = smul.addr %s273, 8
      %s275 = smul.addr %s274, 4
      %s276 = scalar_lea.vmem %s1, %s275
      %p277 = pneg %p87
      %p278 = pneg %p84
      %p279 = pneg %p108
      %p280 = pneg %p105
      %p281 = pneg %p129
      %p282 = pneg %p126
      %p283 = pneg %p150
      %p284 = pneg %p147
      %p285 = pneg %p171
      %p286 = pneg %p168
      %p287 = pneg %p199
      %p288 = pneg %p196
      %p289 = scmp.lt.s32.totalorder %s22, 1
      %s290 = scalar_select %p289, %s22, 1
      %p291 = scmp.lt.s32.totalorder %s23, 0
      %s292 = scalar_select %p291, %s23, 0
      %s293 = smul.addr %s292, 8
      %s294 = smul.addr %s290, 8
      %s295 = sadd.s32 %s293, %s294
      %s296 = scalar_lea.vmem %s6, %s295
      %s297 = sadd.s32 %s23, %s24
      %s298 = smul.u32 8, %s297
      %p299 = scmp.lt.s32.totalorder %s22, 1
      %s300 = scalar_select %p299, %s22, 1
      %p301 = scmp.lt.s32.totalorder %s298, 7
      %s302 = scalar_select %p301, %s298, 7
      %s303 = smul.addr %s300, 8
      %s304 = sadd.s32 %s302, %s303
      %s305 = smul.addr %s304, 4
      %s306 = scalar_lea.vmem %s0, %s305
      %s307 = sadd.s32 %s23, %s24
      %s308 = smul.u32 8, %s307
      %p309 = scmp.lt.s32.totalorder %s22, 1
      %s310 = scalar_select %p309, %s22, 1
      %s311 = smul.addr %s310, 8
      %s312 = smul.addr %s311, 4
      %s313 = scalar_lea.vmem %s1, %s312
      %p314 = scmp.lt.s32.totalorder %s22, 1
      %s315 = scalar_select %p314, %s22, 1
      %p316 = scmp.lt.s32.totalorder %s23, 0
      %s317 = scalar_select %p316, %s23, 0
      %s318 = smul.addr %s317, 8
      %s319 = smul.addr %s315, 8
      %s320 = sadd.s32 %s318, %s319
      %s321 = scalar_lea.vmem %s6, %s320
      %s323 = sadd.s32 %s23, %s24
      %s324 = smul.u32 %s323, 64
      %v325 = vld [vmem:[%s313] sm:$0xf]
      %v326 = vld [vmem:[%s313 + $0x4] sm:$0xf]
      %v327 = vld [vmem:[%s313 + $0x8] sm:$0xf]
      %v328 = vld [vmem:[%s313 + $0xc] sm:$0xf]
      %v329 = vld [vmem:[%s313 + $0x10] sm:$0xf]
      %v330 = vld [vmem:[%s313 + $0x14] sm:$0xf]
      %v331 = vld [vmem:[%s313 + $0x18] sm:$0xf]
      %v332 = vld [vmem:[%s313 + $0x1c] sm:$0xf]
      %v333 = vld [vmem:[%s2] sm:$0xf]
      %v334 = vld [vmem:[%s2 + $0x4] sm:$0xf]
      %v335 = vld [vmem:[%s2 + $0x8] sm:$0xf]
      %v336 = vld [vmem:[%s2 + $0xc] sm:$0xf]
      %v337 = vld [vmem:[%s2 + $0x10] sm:$0xf]
      %v338 = vld [vmem:[%s2 + $0x14] sm:$0xf]
      %v339 = vld [vmem:[%s2 + $0x18] sm:$0xf]
      %v340 = vld [vmem:[%s2 + $0x1c] sm:$0xf]
      %v341 = vld [vmem:[%s3] sm:$0x1]
      %v342 = vld [vmem:[%s4] sm:$0xff]
      %v343 = vld [vmem:[%s4 + $0x8] sm:$0xff]
      %v344 = vld [vmem:[%s4 + $0x10] sm:$0xff]
      %v345 = vld [vmem:[%s4 + $0x18] sm:$0xff]
      %v346 = vld [vmem:[%s4 + $0x20] sm:$0xff]
      %v347 = vld [vmem:[%s4 + $0x28] sm:$0xff]
      %v348 = vld [vmem:[%s4 + $0x30] sm:$0xff]
      %v349 = vld [vmem:[%s4 + $0x38] sm:$0xff]
      %v350 = vld [vmem:[%s4 + $0x40] sm:$0xff]
      %v351 = vld [vmem:[%s4 + $0x48] sm:$0xff]
      %v352 = vld [vmem:[%s4 + $0x50] sm:$0xff]
      %v353 = vld [vmem:[%s4 + $0x58] sm:$0xff]
      %v354 = vld [vmem:[%s4 + $0x60] sm:$0xff]
      %v355 = vld [vmem:[%s4 + $0x68] sm:$0xff]
      %v356 = vld [vmem:[%s4 + $0x70] sm:$0xff]
      %v357 = vld [vmem:[%s4 + $0x78] sm:$0xff]
      %v358 = vld [vmem:[%s4 + $0x80] sm:$0xff]
      %v359 = vld [vmem:[%s4 + $0x88] sm:$0xff]
      %v360 = vld [vmem:[%s4 + $0x90] sm:$0xff]
      %v361 = vld [vmem:[%s4 + $0x98] sm:$0xff]
      %v362 = vld [vmem:[%s4 + $0xa0] sm:$0xff]
      %v363 = vld [vmem:[%s4 + $0xa8] sm:$0xff]
      %v364 = vld [vmem:[%s4 + $0xb0] sm:$0xff]
      %v365 = vld [vmem:[%s4 + $0xb8] sm:$0xff]
      %v366 = vld [vmem:[%s4 + $0xc0] sm:$0xff]
      %v367 = vld [vmem:[%s4 + $0xc8] sm:$0xff]
      %v368 = vld [vmem:[%s4 + $0xd0] sm:$0xff]
      %v369 = vld [vmem:[%s4 + $0xd8] sm:$0xff]
      %v370 = vld [vmem:[%s4 + $0xe0] sm:$0xff]
      %v371 = vld [vmem:[%s4 + $0xe8] sm:$0xff]
      %v372 = vld [vmem:[%s4 + $0xf0] sm:$0xff]
      %v373 = vld [vmem:[%s4 + $0xf8] sm:$0xff]
      %v374 = vld [vmem:[%s4 + $0x100] sm:$0xff]
      %v375 = vld [vmem:[%s4 + $0x108] sm:$0xff]
      %v376 = vld [vmem:[%s4 + $0x110] sm:$0xff]
      %v377 = vld [vmem:[%s4 + $0x118] sm:$0xff]
      %v378 = vld [vmem:[%s4 + $0x120] sm:$0xff]
      %v379 = vld [vmem:[%s4 + $0x128] sm:$0xff]
      %v380 = vld [vmem:[%s4 + $0x130] sm:$0xff]
      %v381 = vld [vmem:[%s4 + $0x138] sm:$0xff]
      %v382 = vld [vmem:[%s4 + $0x140] sm:$0xff]
      %v383 = vld [vmem:[%s4 + $0x148] sm:$0xff]
      %v384 = vld [vmem:[%s4 + $0x150] sm:$0xff]
      %v385 = vld [vmem:[%s4 + $0x158] sm:$0xff]
      %v386 = vld [vmem:[%s4 + $0x160] sm:$0xff]
      %v387 = vld [vmem:[%s4 + $0x168] sm:$0xff]
      %v388 = vld [vmem:[%s4 + $0x170] sm:$0xff]
      %v389 = vld [vmem:[%s4 + $0x178] sm:$0xff]
      %v390 = vld [vmem:[%s4 + $0x180] sm:$0xff]
      %v391 = vld [vmem:[%s4 + $0x188] sm:$0xff]
      %v392 = vld [vmem:[%s4 + $0x190] sm:$0xff]
      %v393 = vld [vmem:[%s4 + $0x198] sm:$0xff]
      %v394 = vld [vmem:[%s4 + $0x1a0] sm:$0xff]
      %v395 = vld [vmem:[%s4 + $0x1a8] sm:$0xff]
      %v396 = vld [vmem:[%s4 + $0x1b0] sm:$0xff]
      %v397 = vld [vmem:[%s4 + $0x1b8] sm:$0xff]
      %v398 = vld [vmem:[%s4 + $0x1c0] sm:$0xff]
      %v399 = vld [vmem:[%s4 + $0x1c8] sm:$0xff]
      %v400 = vld [vmem:[%s4 + $0x1d0] sm:$0xff]
      %v401 = vld [vmem:[%s4 + $0x1d8] sm:$0xff]
      %v402 = vld [vmem:[%s4 + $0x1e0] sm:$0xff]
      %v403 = vld [vmem:[%s4 + $0x1e8] sm:$0xff]
      %v404 = vld [vmem:[%s4 + $0x1f0] sm:$0xff]
      %v405 = vld [vmem:[%s4 + $0x1f8] sm:$0xff]
      %v406 = vld [vmem:[%s5] sm:$0xff]
      %v407 = vld [vmem:[%s306] sm:$0xf]
      %v408 = vld [vmem:[%s306 + $0x4] sm:$0xf]
      %v409 = vld [vmem:[%s306 + $0x8] sm:$0xf]
      %v410 = vld [vmem:[%s306 + $0xc] sm:$0xf]
      %v411 = vld [vmem:[%s306 + $0x10] sm:$0xf]
      %v412 = vld [vmem:[%s306 + $0x14] sm:$0xf]
      %v413 = vld [vmem:[%s306 + $0x18] sm:$0xf]
      %v414 = vld [vmem:[%s306 + $0x1c] sm:$0xf]
      %v423 = vunpack.c.l.b16 %v407
      %v424 = vunpack.c.l.b16 %v408
      %v425 = vunpack.c.l.b16 %v409
      %v426 = vunpack.c.l.b16 %v410
      %v427 = vunpack.c.l.b16 %v411
      %v428 = vunpack.c.l.b16 %v412
      %v429 = vunpack.c.l.b16 %v413
      %v430 = vunpack.c.l.b16 %v414
      %v431 = vpack.c.b16 %v424, %v423
      %v432 = vpack.c.b16 %v426, %v425
      %v433 = vpack.c.b16 %v428, %v427
      %v434 = vpack.c.b16 %v430, %v429
      %v443 = vunpack.c.l.b16 %v325
      %v444 = vunpack.c.l.b16 %v326
      %v445 = vunpack.c.l.b16 %v327
      %v446 = vunpack.c.l.b16 %v328
      %v447 = vunpack.c.l.b16 %v329
      %v448 = vunpack.c.l.b16 %v330
      %v449 = vunpack.c.l.b16 %v331
      %v450 = vunpack.c.l.b16 %v332
      %v451 = vpack.c.b16 %v444, %v443
      %v452 = vpack.c.b16 %v446, %v445
      %v453 = vpack.c.b16 %v448, %v447
      %v454 = vpack.c.b16 %v450, %v449
      %vm459 = vcmask 523264
      %v461 = vsel %vm459, %v431, 0
      %v464 = vsel %vm459, %v432, 0
      %v467 = vsel %vm459, %v433, 0
      %v470 = vsel %vm459, %v434, 0
      %472 = vmatpush.bf16.msra.mxu0 0
      %473 = vmatpush.bf16.msra.mxu0 0
      %474 = vmatpush.bf16.msra.mxu0 0
      %475 = vmatpush.bf16.msra.mxu0 0
      %476 = vmatpush.bf16.msra.mxu0 %v454
      %477 = vmatpush.bf16.msra.mxu0 %v453
      %478 = vmatpush.bf16.msra.mxu0 %v452
      %479 = vmatpush.bf16.msra.mxu0 %v451
      %480 = vmatmul.bf16.gmra.mxu0 %v461
      %v481 = vpop.f32.mrf.mxu0
      %v482 = vadd.f32 0.0, %v481
      %v483 = vpop.f32.mrf.mxu0
      %v484 = vadd.f32 0.0, %v483
      %485 = vmatmul.bf16.gmra.mxu0 %v464
      %v486 = vpop.f32.mrf.mxu0
      %v487 = vadd.f32 0.0, %v486
      %v488 = vpop.f32.mrf.mxu0
      %v489 = vadd.f32 0.0, %v488
      %490 = vmatmul.bf16.gmra.mxu0 %v467
      %v491 = vpop.f32.mrf.mxu0
      %v492 = vadd.f32 0.0, %v491
      %v493 = vpop.f32.mrf.mxu0
      %v494 = vadd.f32 0.0, %v493
      %495 = vmatmul.bf16.gmra.mxu0 %v470
      %v496 = vpop.f32.mrf.mxu0
      %v497 = vadd.f32 0.0, %v496
      %v498 = vpop.f32.mrf.mxu0
      %v499 = vadd.f32 0.0, %v498
      %500 = vdwg.mxu0
      %v501 = vpack.c.bf16 %v484, %v482
      %v502 = vpack.c.bf16 %v489, %v487
      %v503 = vpack.c.bf16 %v494, %v492
      %v504 = vpack.c.bf16 %v499, %v497
      %v506 = vperm.slane %v341, 0
      %v516 = vunpack.c.l.b16 %v333
      %v517 = vunpack.c.l.b16 %v334
      %v518 = vunpack.c.l.b16 %v335
      %v519 = vunpack.c.l.b16 %v336
      %v520 = vunpack.c.l.b16 %v337
      %v521 = vunpack.c.l.b16 %v338
      %v522 = vunpack.c.l.b16 %v339
      %v523 = vunpack.c.l.b16 %v340
      %v524 = vpack.c.b16 %v517, %v516
      %v525 = vpack.c.b16 %v519, %v518
      %v526 = vpack.c.b16 %v521, %v520
      %v527 = vpack.c.b16 %v523, %v522
      %v533 = vsel %vm459, %v501, 0
      %v536 = vsel %vm459, %v502, 0
      %v539 = vsel %vm459, %v503, 0
      %v542 = vsel %vm459, %v504, 0
      %544 = vmatpush.bf16.msra.mxu0 0
      %545 = vmatpush.bf16.msra.mxu0 0
      %546 = vmatpush.bf16.msra.mxu0 0
      %547 = vmatpush.bf16.msra.mxu0 0
      %548 = vmatpush.bf16.msra.mxu0 %v527
      %549 = vmatpush.bf16.msra.mxu0 %v526
      %550 = vmatpush.bf16.msra.mxu0 %v525
      %551 = vmatpush.bf16.msra.mxu0 %v524
      %552 = vmatmul.bf16.gmra.mxu0 %v533
      %v553 = vpop.f32.mrf.mxu0
      %v554 = vadd.f32 %v506, %v553
      %v555 = vpop.f32.mrf.mxu0
      %v556 = vadd.f32 %v506, %v555
      %557 = vmatmul.bf16.gmra.mxu0 %v536
      %v558 = vpop.f32.mrf.mxu0
      %v559 = vadd.f32 %v506, %v558
      %v560 = vpop.f32.mrf.mxu0
      %v561 = vadd.f32 %v506, %v560
      %562 = vmatmul.bf16.gmra.mxu0 %v539
      %v563 = vpop.f32.mrf.mxu0
      %v564 = vadd.f32 %v506, %v563
      %v565 = vpop.f32.mrf.mxu0
      %v566 = vadd.f32 %v506, %v565
      %567 = vmatmul.bf16.gmra.mxu0 %v542
      %v568 = vpop.f32.mrf.mxu0
      %v569 = vadd.f32 %v506, %v568
      %v570 = vpop.f32.mrf.mxu0
      %v571 = vadd.f32 %v506, %v570
      %572 = vdwg.mxu0
      %v573 = vmax.f32 %v554, 0.0
      %v574 = vmax.f32 %v556, 0.0
      %v575 = vmax.f32 %v559, 0.0
      %v576 = vmax.f32 %v561, 0.0
      %v577 = vmax.f32 %v564, 0.0
      %v578 = vmax.f32 %v566, 0.0
      %v579 = vmax.f32 %v569, 0.0
      %v580 = vmax.f32 %v571, 0.0
      %v581 = vpack.c.bf16 %v574, %v573
      %v582 = vpack.c.bf16 %v576, %v575
      %v583 = vpack.c.bf16 %v578, %v577
      %v584 = vpack.c.bf16 %v580, %v579
      %v586 = vperm.slane %v406, 0
      %v587 = vperm.slane %v406, 1
      %v588 = vperm.slane %v406, 2
      %v589 = vperm.slane %v406, 3
      %v590 = vperm.slane %v406, 4
      %v591 = vperm.slane %v406, 5
      %v592 = vperm.slane %v406, 6
      %v593 = vperm.slane %v406, 7
      %v666 = vunpack.c.l.b16 %v342
      %v667 = vunpack.c.h.b16 %v342
      %v668 = vunpack.c.l.b16 %v343
      %v669 = vunpack.c.h.b16 %v343
      %v670 = vunpack.c.l.b16 %v344
      %v671 = vunpack.c.h.b16 %v344
      %v672 = vunpack.c.l.b16 %v345
      %v673 = vunpack.c.h.b16 %v345
      %v674 = vunpack.c.l.b16 %v346
      %v675 = vunpack.c.h.b16 %v346
      %v676 = vunpack.c.l.b16 %v347
      %v677 = vunpack.c.h.b16 %v347
      %v678 = vunpack.c.l.b16 %v348
      %v679 = vunpack.c.h.b16 %v348
      %v680 = vunpack.c.l.b16 %v349
      %v681 = vunpack.c.h.b16 %v349
      %v682 = vunpack.c.l.b16 %v350
      %v683 = vunpack.c.h.b16 %v350
      %v684 = vunpack.c.l.b16 %v351
      %v685 = vunpack.c.h.b16 %v351
      %v686 = vunpack.c.l.b16 %v352
      %v687 = vunpack.c.h.b16 %v352
      %v688 = vunpack.c.l.b16 %v353
      %v689 = vunpack.c.h.b16 %v353
      %v690 = vunpack.c.l.b16 %v354
      %v691 = vunpack.c.h.b16 %v354
      %v692 = vunpack.c.l.b16 %v355
      %v693 = vunpack.c.h.b16 %v355
      %v694 = vunpack.c.l.b16 %v356
      %v695 = vunpack.c.h.b16 %v356
      %v696 = vunpack.c.l.b16 %v357
      %v697 = vunpack.c.h.b16 %v357
      %v698 = vunpack.c.l.b16 %v358
      %v699 = vunpack.c.h.b16 %v358
      %v700 = vunpack.c.l.b16 %v359
      %v701 = vunpack.c.h.b16 %v359
      %v702 = vunpack.c.l.b16 %v360
      %v703 = vunpack.c.h.b16 %v360
      %v704 = vunpack.c.l.b16 %v361
      %v705 = vunpack.c.h.b16 %v361
      %v706 = vunpack.c.l.b16 %v362
      %v707 = vunpack.c.h.b16 %v362
      %v708 = vunpack.c.l.b16 %v363
      %v709 = vunpack.c.h.b16 %v363
      %v710 = vunpack.c.l.b16 %v364
      %v711 = vunpack.c.h.b16 %v364
      %v712 = vunpack.c.l.b16 %v365
      %v713 = vunpack.c.h.b16 %v365
      %v714 = vunpack.c.l.b16 %v366
      %v715 = vunpack.c.h.b16 %v366
      %v716 = vunpack.c.l.b16 %v367
      %v717 = vunpack.c.h.b16 %v367
      %v718 = vunpack.c.l.b16 %v368
      %v719 = vunpack.c.h.b16 %v368
      %v720 = vunpack.c.l.b16 %v369
      %v721 = vunpack.c.h.b16 %v369
      %v722 = vunpack.c.l.b16 %v370
      %v723 = vunpack.c.h.b16 %v370
      %v724 = vunpack.c.l.b16 %v371
      %v725 = vunpack.c.h.b16 %v371
      %v726 = vunpack.c.l.b16 %v372
      %v727 = vunpack.c.h.b16 %v372
      %v728 = vunpack.c.l.b16 %v373
      %v729 = vunpack.c.h.b16 %v373
      %v730 = vunpack.c.l.b16 %v374
      %v731 = vunpack.c.h.b16 %v374
      %v732 = vunpack.c.l.b16 %v375
      %v733 = vunpack.c.h.b16 %v375
      %v734 = vunpack.c.l.b16 %v376
      %v735 = vunpack.c.h.b16 %v376
      %v736 = vunpack.c.l.b16 %v377
      %v737 = vunpack.c.h.b16 %v377
      %v738 = vunpack.c.l.b16 %v378
      %v739 = vunpack.c.h.b16 %v378
      %v740 = vunpack.c.l.b16 %v379
      %v741 = vunpack.c.h.b16 %v379
      %v742 = vunpack.c.l.b16 %v380
      %v743 = vunpack.c.h.b16 %v380
      %v744 = vunpack.c.l.b16 %v381
      %v745 = vunpack.c.h.b16 %v381
      %v746 = vunpack.c.l.b16 %v382
      %v747 = vunpack.c.h.b16 %v382
      %v748 = vunpack.c.l.b16 %v383
      %v749 = vunpack.c.h.b16 %v383
      %v750 = vunpack.c.l.b16 %v384
      %v751 = vunpack.c.h.b16 %v384
      %v752 = vunpack.c.l.b16 %v385
      %v753 = vunpack.c.h.b16 %v385
      %v754 = vunpack.c.l.b16 %v386
      %v755 = vunpack.c.h.b16 %v386
      %v756 = vunpack.c.l.b16 %v387
      %v757 = vunpack.c.h.b16 %v387
      %v758 = vunpack.c.l.b16 %v388
      %v759 = vunpack.c.h.b16 %v388
      %v760 = vunpack.c.l.b16 %v389
      %v761 = vunpack.c.h.b16 %v389
      %v762 = vunpack.c.l.b16 %v390
      %v763 = vunpack.c.h.b16 %v390
      %v764 = vunpack.c.l.b16 %v391
      %v765 = vunpack.c.h.b16 %v391
      %v766 = vunpack.c.l.b16 %v392
      %v767 = vunpack.c.h.b16 %v392
      %v768 = vunpack.c.l.b16 %v393
      %v769 = vunpack.c.h.b16 %v393
      %v770 = vunpack.c.l.b16 %v394
      %v771 = vunpack.c.h.b16 %v394
      %v772 = vunpack.c.l.b16 %v395
      %v773 = vunpack.c.h.b16 %v395
      %v774 = vunpack.c.l.b16 %v396
      %v775 = vunpack.c.h.b16 %v396
      %v776 = vunpack.c.l.b16 %v397
      %v777 = vunpack.c.h.b16 %v397
      %v778 = vunpack.c.l.b16 %v398
      %v779 = vunpack.c.h.b16 %v398
      %v780 = vunpack.c.l.b16 %v399
      %v781 = vunpack.c.h.b16 %v399
      %v782 = vunpack.c.l.b16 %v400
      %v783 = vunpack.c.h.b16 %v400
      %v784 = vunpack.c.l.b16 %v401
      %v785 = vunpack.c.h.b16 %v401
      %v786 = vunpack.c.l.b16 %v402
      %v787 = vunpack.c.h.b16 %v402
      %v788 = vunpack.c.l.b16 %v403
      %v789 = vunpack.c.h.b16 %v403
      %v790 = vunpack.c.l.b16 %v404
      %v791 = vunpack.c.h.b16 %v404
      %v792 = vunpack.c.l.b16 %v405
      %v793 = vunpack.c.h.b16 %v405
      %v794 = vpack.c.b16 %v674, %v666
      %v795 = vpack.c.b16 %v675, %v667
      %v796 = vpack.c.b16 %v676, %v668
      %v797 = vpack.c.b16 %v677, %v669
      %v798 = vpack.c.b16 %v678, %v670
      %v799 = vpack.c.b16 %v679, %v671
      %v800 = vpack.c.b16 %v680, %v672
      %v801 = vpack.c.b16 %v681, %v673
      %v802 = vpack.c.b16 %v690, %v682
      %v803 = vpack.c.b16 %v691, %v683
      %v804 = vpack.c.b16 %v692, %v684
      %v805 = vpack.c.b16 %v693, %v685
      %v806 = vpack.c.b16 %v694, %v686
      %v807 = vpack.c.b16 %v695, %v687
      %v808 = vpack.c.b16 %v696, %v688
      %v809 = vpack.c.b16 %v697, %v689
      %v810 = vpack.c.b16 %v706, %v698
      %v811 = vpack.c.b16 %v707, %v699
      %v812 = vpack.c.b16 %v708, %v700
      %v813 = vpack.c.b16 %v709, %v701
      %v814 = vpack.c.b16 %v710, %v702
      %v815 = vpack.c.b16 %v711, %v703
      %v816 = vpack.c.b16 %v712, %v704
      %v817 = vpack.c.b16 %v713, %v705
      %v818 = vpack.c.b16 %v722, %v714
      %v819 = vpack.c.b16 %v723, %v715
      %v820 = vpack.c.b16 %v724, %v716
      %v821 = vpack.c.b16 %v725, %v717
      %v822 = vpack.c.b16 %v726, %v718
      %v823 = vpack.c.b16 %v727, %v719
      %v824 = vpack.c.b16 %v728, %v720
      %v825 = vpack.c.b16 %v729, %v721
      %v826 = vpack.c.b16 %v738, %v730
      %v827 = vpack.c.b16 %v739, %v731
      %v828 = vpack.c.b16 %v740, %v732
      %v829 = vpack.c.b16 %v741, %v733
      %v830 = vpack.c.b16 %v742, %v734
      %v831 = vpack.c.b16 %v743, %v735
      %v832 = vpack.c.b16 %v744, %v736
      %v833 = vpack.c.b16 %v745, %v737
      %v834 = vpack.c.b16 %v754, %v746
      %v835 = vpack.c.b16 %v755, %v747
      %v836 = vpack.c.b16 %v756, %v748
      %v837 = vpack.c.b16 %v757, %v749
      %v838 = vpack.c.b16 %v758, %v750
      %v839 = vpack.c.b16 %v759, %v751
      %v840 = vpack.c.b16 %v760, %v752
      %v841 = vpack.c.b16 %v761, %v753
      %v842 = vpack.c.b16 %v770, %v762
      %v843 = vpack.c.b16 %v771, %v763
      %v844 = vpack.c.b16 %v772, %v764
      %v845 = vpack.c.b16 %v773, %v765
      %v846 = vpack.c.b16 %v774, %v766
      %v847 = vpack.c.b16 %v775, %v767
      %v848 = vpack.c.b16 %v776, %v768
      %v849 = vpack.c.b16 %v777, %v769
      %v850 = vpack.c.b16 %v786, %v778
      %v851 = vpack.c.b16 %v787, %v779
      %v852 = vpack.c.b16 %v788, %v780
      %v853 = vpack.c.b16 %v789, %v781
      %v854 = vpack.c.b16 %v790, %v782
      %v855 = vpack.c.b16 %v791, %v783
      %v856 = vpack.c.b16 %v792, %v784
      %v857 = vpack.c.b16 %v793, %v785
      %922 = vmatpush.bf16.msra.mxu0 %v850
      %923 = vmatpush.bf16.msra.mxu0 %v842
      %924 = vmatpush.bf16.msra.mxu0 %v834
      %925 = vmatpush.bf16.msra.mxu0 %v826
      %926 = vmatpush.bf16.msra.mxu0 %v818
      %927 = vmatpush.bf16.msra.mxu0 %v810
      %928 = vmatpush.bf16.msra.mxu0 %v802
      %929 = vmatpush.bf16.msra.mxu0 %v794
      %930 = vmatmul.bf16.gmra.mxu0 %v581
      %v931 = vpop.f32.mrf.mxu0
      %v932 = vadd.f32 %v586, %v931
      %v933 = vpop.f32.mrf.mxu0
      %v934 = vadd.f32 %v586, %v933
      %935 = vmatmul.bf16.gmra.mxu0 %v582
      %v936 = vpop.f32.mrf.mxu0
      %v937 = vadd.f32 %v586, %v936
      %v938 = vpop.f32.mrf.mxu0
      %v939 = vadd.f32 %v586, %v938
      %940 = vmatmul.bf16.gmra.mxu0 %v583
      %v941 = vpop.f32.mrf.mxu0
      %v942 = vadd.f32 %v586, %v941
      %v943 = vpop.f32.mrf.mxu0
      %v944 = vadd.f32 %v586, %v943
      %945 = vmatmul.bf16.gmra.mxu0 %v584
      %v946 = vpop.f32.mrf.mxu0
      %v947 = vadd.f32 %v586, %v946
      %v948 = vpop.f32.mrf.mxu0
      %v949 = vadd.f32 %v586, %v948
      %950 = vdwg.mxu0
      %951 = vmatpush.bf16.msra.mxu0 %v851
      %952 = vmatpush.bf16.msra.mxu0 %v843
      %953 = vmatpush.bf16.msra.mxu0 %v835
      %954 = vmatpush.bf16.msra.mxu0 %v827
      %955 = vmatpush.bf16.msra.mxu0 %v819
      %956 = vmatpush.bf16.msra.mxu0 %v811
      %957 = vmatpush.bf16.msra.mxu0 %v803
      %958 = vmatpush.bf16.msra.mxu0 %v795
      %959 = vmatmul.bf16.gmra.mxu0 %v581
      %v960 = vpop.f32.mrf.mxu0
      %v961 = vadd.f32 %v587, %v960
      %v962 = vpop.f32.mrf.mxu0
      %v963 = vadd.f32 %v587, %v962
      %964 = vmatmul.bf16.gmra.mxu0 %v582
      %v965 = vpop.f32.mrf.mxu0
      %v966 = vadd.f32 %v587, %v965
      %v967 = vpop.f32.mrf.mxu0
      %v968 = vadd.f32 %v587, %v967
      %969 = vmatmul.bf16.gmra.mxu0 %v583
      %v970 = vpop.f32.mrf.mxu0
      %v971 = vadd.f32 %v587, %v970
      %v972 = vpop.f32.mrf.mxu0
      %v973 = vadd.f32 %v587, %v972
      %974 = vmatmul.bf16.gmra.mxu0 %v584
      %v975 = vpop.f32.mrf.mxu0
      %v976 = vadd.f32 %v587, %v975
      %v977 = vpop.f32.mrf.mxu0
      %v978 = vadd.f32 %v587, %v977
      %979 = vdwg.mxu0
      %980 = vmatpush.bf16.msra.mxu0 %v852
      %981 = vmatpush.bf16.msra.mxu0 %v844
      %982 = vmatpush.bf16.msra.mxu0 %v836
      %983 = vmatpush.bf16.msra.mxu0 %v828
      %984 = vmatpush.bf16.msra.mxu0 %v820
      %985 = vmatpush.bf16.msra.mxu0 %v812
      %986 = vmatpush.bf16.msra.mxu0 %v804
      %987 = vmatpush.bf16.msra.mxu0 %v796
      %988 = vmatmul.bf16.gmra.mxu0 %v581
      %v989 = vpop.f32.mrf.mxu0
      %v990 = vadd.f32 %v588, %v989
      %v991 = vpop.f32.mrf.mxu0
      %v992 = vadd.f32 %v588, %v991
      %993 = vmatmul.bf16.gmra.mxu0 %v582
      %v994 = vpop.f32.mrf.mxu0
      %v995 = vadd.f32 %v588, %v994
      %v996 = vpop.f32.mrf.mxu0
      %v997 = vadd.f32 %v588, %v996
      %998 = vmatmul.bf16.gmra.mxu0 %v583
      %v999 = vpop.f32.mrf.mxu0
      %v1000 = vadd.f32 %v588, %v999
      %v1001 = vpop.f32.mrf.mxu0
      %v1002 = vadd.f32 %v588, %v1001
      %1003 = vmatmul.bf16.gmra.mxu0 %v584
      %v1004 = vpop.f32.mrf.mxu0
      %v1005 = vadd.f32 %v588, %v1004
      %v1006 = vpop.f32.mrf.mxu0
      %v1007 = vadd.f32 %v588, %v1006
      %1008 = vdwg.mxu0
      %1009 = vmatpush.bf16.msra.mxu0 %v853
      %1010 = vmatpush.bf16.msra.mxu0 %v845
      %1011 = vmatpush.bf16.msra.mxu0 %v837
      %1012 = vmatpush.bf16.msra.mxu0 %v829
      %1013 = vmatpush.bf16.msra.mxu0 %v821
      %1014 = vmatpush.bf16.msra.mxu0 %v813
      %1015 = vmatpush.bf16.msra.mxu0 %v805
      %1016 = vmatpush.bf16.msra.mxu0 %v797
      %1017 = vmatmul.bf16.gmra.mxu0 %v581
      %v1018 = vpop.f32.mrf.mxu0
      %v1019 = vadd.f32 %v589, %v1018
      %v1020 = vpop.f32.mrf.mxu0
      %v1021 = vadd.f32 %v589, %v1020
      %1022 = vmatmul.bf16.gmra.mxu0 %v582
      %v1023 = vpop.f32.mrf.mxu0
      %v1024 = vadd.f32 %v589, %v1023
      %v1025 = vpop.f32.mrf.mxu0
      %v1026 = vadd.f32 %v589, %v1025
      %1027 = vmatmul.bf16.gmra.mxu0 %v583
      %v1028 = vpop.f32.mrf.mxu0
      %v1029 = vadd.f32 %v589, %v1028
      %v1030 = vpop.f32.mrf.mxu0
      %v1031 = vadd.f32 %v589, %v1030
      %1032 = vmatmul.bf16.gmra.mxu0 %v584
      %v1033 = vpop.f32.mrf.mxu0
      %v1034 = vadd.f32 %v589, %v1033
      %v1035 = vpop.f32.mrf.mxu0
      %v1036 = vadd.f32 %v589, %v1035
      %1037 = vdwg.mxu0
      %1038 = vmatpush.bf16.msra.mxu0 %v854
      %1039 = vmatpush.bf16.msra.mxu0 %v846
      %1040 = vmatpush.bf16.msra.mxu0 %v838
      %1041 = vmatpush.bf16.msra.mxu0 %v830
      %1042 = vmatpush.bf16.msra.mxu0 %v822
      %1043 = vmatpush.bf16.msra.mxu0 %v814
      %1044 = vmatpush.bf16.msra.mxu0 %v806
      %1045 = vmatpush.bf16.msra.mxu0 %v798
      %1046 = vmatmul.bf16.gmra.mxu0 %v581
      %v1047 = vpop.f32.mrf.mxu0
      %v1048 = vadd.f32 %v590, %v1047
      %v1049 = vpop.f32.mrf.mxu0
      %v1050 = vadd.f32 %v590, %v1049
      %1051 = vmatmul.bf16.gmra.mxu0 %v582
      %v1052 = vpop.f32.mrf.mxu0
      %v1053 = vadd.f32 %v590, %v1052
      %v1054 = vpop.f32.mrf.mxu0
      %v1055 = vadd.f32 %v590, %v1054
      %1056 = vmatmul.bf16.gmra.mxu0 %v583
      %v1057 = vpop.f32.mrf.mxu0
      %v1058 = vadd.f32 %v590, %v1057
      %v1059 = vpop.f32.mrf.mxu0
      %v1060 = vadd.f32 %v590, %v1059
      %1061 = vmatmul.bf16.gmra.mxu0 %v584
      %v1062 = vpop.f32.mrf.mxu0
      %v1063 = vadd.f32 %v590, %v1062
      %v1064 = vpop.f32.mrf.mxu0
      %v1065 = vadd.f32 %v590, %v1064
      %1066 = vdwg.mxu0
      %1067 = vmatpush.bf16.msra.mxu0 %v855
      %1068 = vmatpush.bf16.msra.mxu0 %v847
      %1069 = vmatpush.bf16.msra.mxu0 %v839
      %1070 = vmatpush.bf16.msra.mxu0 %v831
      %1071 = vmatpush.bf16.msra.mxu0 %v823
      %1072 = vmatpush.bf16.msra.mxu0 %v815
      %1073 = vmatpush.bf16.msra.mxu0 %v807
      %1074 = vmatpush.bf16.msra.mxu0 %v799
      %1075 = vmatmul.bf16.gmra.mxu0 %v581
      %v1076 = vpop.f32.mrf.mxu0
      %v1077 = vadd.f32 %v591, %v1076
      %v1078 = vpop.f32.mrf.mxu0
      %v1079 = vadd.f32 %v591, %v1078
      %1080 = vmatmul.bf16.gmra.mxu0 %v582
      %v1081 = vpop.f32.mrf.mxu0
      %v1082 = vadd.f32 %v591, %v1081
      %v1083 = vpop.f32.mrf.mxu0
      %v1084 = vadd.f32 %v591, %v1083
      %1085 = vmatmul.bf16.gmra.mxu0 %v583
      %v1086 = vpop.f32.mrf.mxu0
      %v1087 = vadd.f32 %v591, %v1086
      %v1088 = vpop.f32.mrf.mxu0
      %v1089 = vadd.f32 %v591, %v1088
      %1090 = vmatmul.bf16.gmra.mxu0 %v584
      %v1091 = vpop.f32.mrf.mxu0
      %v1092 = vadd.f32 %v591, %v1091
      %v1093 = vpop.f32.mrf.mxu0
      %v1094 = vadd.f32 %v591, %v1093
      %1095 = vdwg.mxu0
      %1096 = vmatpush.bf16.msra.mxu0 %v856
      %1097 = vmatpush.bf16.msra.mxu0 %v848
      %1098 = vmatpush.bf16.msra.mxu0 %v840
      %1099 = vmatpush.bf16.msra.mxu0 %v832
      %1100 = vmatpush.bf16.msra.mxu0 %v824
      %1101 = vmatpush.bf16.msra.mxu0 %v816
      %1102 = vmatpush.bf16.msra.mxu0 %v808
      %1103 = vmatpush.bf16.msra.mxu0 %v800
      %1104 = vmatmul.bf16.gmra.mxu0 %v581
      %v1105 = vpop.f32.mrf.mxu0
      %v1106 = vadd.f32 %v592, %v1105
      %v1107 = vpop.f32.mrf.mxu0
      %v1108 = vadd.f32 %v592, %v1107
      %1109 = vmatmul.bf16.gmra.mxu0 %v582
      %v1110 = vpop.f32.mrf.mxu0
      %v1111 = vadd.f32 %v592, %v1110
      %v1112 = vpop.f32.mrf.mxu0
      %v1113 = vadd.f32 %v592, %v1112
      %1114 = vmatmul.bf16.gmra.mxu0 %v583
      %v1115 = vpop.f32.mrf.mxu0
      %v1116 = vadd.f32 %v592, %v1115
      %v1117 = vpop.f32.mrf.mxu0
      %v1118 = vadd.f32 %v592, %v1117
      %1119 = vmatmul.bf16.gmra.mxu0 %v584
      %v1120 = vpop.f32.mrf.mxu0
      %v1121 = vadd.f32 %v592, %v1120
      %v1122 = vpop.f32.mrf.mxu0
      %v1123 = vadd.f32 %v592, %v1122
      %1124 = vdwg.mxu0
      %1125 = vmatpush.bf16.msra.mxu0 %v857
      %1126 = vmatpush.bf16.msra.mxu0 %v849
      %1127 = vmatpush.bf16.msra.mxu0 %v841
      %1128 = vmatpush.bf16.msra.mxu0 %v833
      %1129 = vmatpush.bf16.msra.mxu0 %v825
      %1130 = vmatpush.bf16.msra.mxu0 %v817
      %1131 = vmatpush.bf16.msra.mxu0 %v809
      %1132 = vmatpush.bf16.msra.mxu0 %v801
      %1133 = vmatmul.bf16.gmra.mxu0 %v581
      %v1134 = vpop.f32.mrf.mxu0
      %v1135 = vadd.f32 %v593, %v1134
      %v1136 = vpop.f32.mrf.mxu0
      %v1137 = vadd.f32 %v593, %v1136
      %1138 = vmatmul.bf16.gmra.mxu0 %v582
      %v1139 = vpop.f32.mrf.mxu0
      %v1140 = vadd.f32 %v593, %v1139
      %v1141 = vpop.f32.mrf.mxu0
      %v1142 = vadd.f32 %v593, %v1141
      %1143 = vmatmul.bf16.gmra.mxu0 %v583
      %v1144 = vpop.f32.mrf.mxu0
      %v1145 = vadd.f32 %v593, %v1144
      %v1146 = vpop.f32.mrf.mxu0
      %v1147 = vadd.f32 %v593, %v1146
      %1148 = vmatmul.bf16.gmra.mxu0 %v584
      %v1149 = vpop.f32.mrf.mxu0
      %v1150 = vadd.f32 %v593, %v1149
      %v1151 = vpop.f32.mrf.mxu0
      %v1152 = vadd.f32 %v593, %v1151
      %1153 = vdwg.mxu0
      %v1154 = vlaneseq
      %v1155 = vshrl.u32 %v1154, 7
      %v1156 = vadd.s32 %v1155, 8
      %v1157 = vadd.s32 %v1155, 16
      %v1158 = vadd.s32 %v1155, 24
      %v1159 = vadd.s32 %v1155, 32
      %v1160 = vadd.s32 %v1155, 40
      %v1161 = vadd.s32 %v1155, 48
      %v1162 = vadd.s32 %v1155, 56
      %v1163 = vstv %s324
      %v1164 = vadd.s32 %v1163, %v1155
      %v1165 = vadd.s32 %v1163, %v1156
      %v1166 = vadd.s32 %v1163, %v1157
      %v1167 = vadd.s32 %v1163, %v1158
      %v1168 = vadd.s32 %v1163, %v1159
      %v1169 = vadd.s32 %v1163, %v1160
      %v1170 = vadd.s32 %v1163, %v1161
      %v1171 = vadd.s32 %v1163, %v1162
      %vm1172 = vcmp.lt.s32.totalorder %v1164, 60
      %vm1173 = vcmp.lt.s32.totalorder %v1165, 60
      %vm1174 = vcmp.lt.s32.totalorder %v1166, 60
      %vm1175 = vcmp.lt.s32.totalorder %v1167, 60
      %vm1176 = vcmp.lt.s32.totalorder %v1168, 60
      %vm1177 = vcmp.lt.s32.totalorder %v1169, 60
      %vm1178 = vcmp.lt.s32.totalorder %v1170, 60
      %vm1179 = vcmp.lt.s32.totalorder %v1171, 60
      %v1180 = vsel %vm1172, 1, 0
      %v1181 = vsel %vm1173, 1, 0
      %v1182 = vsel %vm1174, 1, 0
      %v1183 = vsel %vm1175, 1, 0
      %v1184 = vsel %vm1176, 1, 0
      %v1185 = vsel %vm1177, 1, 0
      %v1186 = vsel %vm1178, 1, 0
      %v1187 = vsel %vm1179, 1, 0
      %vm1188 = vcmp.eq.s32.totalorder %v1180, 1
      %vm1189 = vcmp.eq.s32.totalorder %v1181, 1
      %vm1190 = vcmp.eq.s32.totalorder %v1182, 1
      %vm1191 = vcmp.eq.s32.totalorder %v1183, 1
      %vm1192 = vcmp.eq.s32.totalorder %v1184, 1
      %vm1193 = vcmp.eq.s32.totalorder %v1185, 1
      %vm1194 = vcmp.eq.s32.totalorder %v1186, 1
      %vm1195 = vcmp.eq.s32.totalorder %v1187, 1
      %v1196 = vsel %vm1188, %v932, -inf
      %v1197 = vsel %vm1188, %v961, -inf
      %v1198 = vsel %vm1188, %v990, -inf
      %v1199 = vsel %vm1188, %v1019, -inf
      %v1200 = vsel %vm1188, %v1048, -inf
      %v1201 = vsel %vm1188, %v1077, -inf
      %v1202 = vsel %vm1188, %v1106, -inf
      %v1203 = vsel %vm1188, %v1135, -inf
      %v1204 = vsel %vm1189, %v934, -inf
      %v1205 = vsel %vm1189, %v963, -inf
      %v1206 = vsel %vm1189, %v992, -inf
      %v1207 = vsel %vm1189, %v1021, -inf
      %v1208 = vsel %vm1189, %v1050, -inf
      %v1209 = vsel %vm1189, %v1079, -inf
      %v1210 = vsel %vm1189, %v1108, -inf
      %v1211 = vsel %vm1189, %v1137, -inf
      %v1212 = vsel %vm1190, %v937, -inf
      %v1213 = vsel %vm1190, %v966, -inf
      %v1214 = vsel %vm1190, %v995, -inf
      %v1215 = vsel %vm1190, %v1024, -inf
      %v1216 = vsel %vm1190, %v1053, -inf
      %v1217 = vsel %vm1190, %v1082, -inf
      %v1218 = vsel %vm1190, %v1111, -inf
      %v1219 = vsel %vm1190, %v1140, -inf
      %v1220 = vsel %vm1191, %v939, -inf
      %v1221 = vsel %vm1191, %v968, -inf
      %v1222 = vsel %vm1191, %v997, -inf
      %v1223 = vsel %vm1191, %v1026, -inf
      %v1224 = vsel %vm1191, %v1055, -inf
      %v1225 = vsel %vm1191, %v1084, -inf
      %v1226 = vsel %vm1191, %v1113, -inf
      %v1227 = vsel %vm1191, %v1142, -inf
      %v1228 = vsel %vm1192, %v942, -inf
      %v1229 = vsel %vm1192, %v971, -inf
      %v1230 = vsel %vm1192, %v1000, -inf
      %v1231 = vsel %vm1192, %v1029, -inf
      %v1232 = vsel %vm1192, %v1058, -inf
      %v1233 = vsel %vm1192, %v1087, -inf
      %v1234 = vsel %vm1192, %v1116, -inf
      %v1235 = vsel %vm1192, %v1145, -inf
      %v1236 = vsel %vm1193, %v944, -inf
      %v1237 = vsel %vm1193, %v973, -inf
      %v1238 = vsel %vm1193, %v1002, -inf
      %v1239 = vsel %vm1193, %v1031, -inf
      %v1240 = vsel %vm1193, %v1060, -inf
      %v1241 = vsel %vm1193, %v1089, -inf
      %v1242 = vsel %vm1193, %v1118, -inf
      %v1243 = vsel %vm1193, %v1147, -inf
      %v1244 = vsel %vm1194, %v947, -inf
      %v1245 = vsel %vm1194, %v976, -inf
      %v1246 = vsel %vm1194, %v1005, -inf
      %v1247 = vsel %vm1194, %v1034, -inf
      %v1248 = vsel %vm1194, %v1063, -inf
      %v1249 = vsel %vm1194, %v1092, -inf
      %v1250 = vsel %vm1194, %v1121, -inf
      %v1251 = vsel %vm1194, %v1150, -inf
      %v1252 = vsel %vm1195, %v949, -inf
      %v1253 = vsel %vm1195, %v978, -inf
      %v1254 = vsel %vm1195, %v1007, -inf
      %v1255 = vsel %vm1195, %v1036, -inf
      %v1256 = vsel %vm1195, %v1065, -inf
      %v1257 = vsel %vm1195, %v1094, -inf
      %v1258 = vsel %vm1195, %v1123, -inf
      %v1259 = vsel %vm1195, %v1152, -inf
      %v1260 = vmax.f32 %v1196, %v1204
      %v1261 = vmax.f32 %v1260, %v1212
      %v1262 = vmax.f32 %v1261, %v1220
      %v1263 = vmax.f32 %v1262, %v1228
      %v1264 = vmax.f32 %v1263, %v1236
      %v1265 = vmax.f32 %v1264, %v1244
      %v1266 = vmax.f32 %v1265, %v1252
      %v1267 = vrot.slane %v1266, 4
      %v1268 = vmax.f32 %v1266, %v1267
      %v1269 = vrot.slane %v1268, 2
      %v1270 = vmax.f32 %v1268, %v1269
      %v1271 = vrot.slane %v1270, 1
      %v1272 = vmax.f32 %v1270, %v1271
      %v1273 = vmax.f32 %v1197, %v1205
      %v1274 = vmax.f32 %v1273, %v1213
      %v1275 = vmax.f32 %v1274, %v1221
      %v1276 = vmax.f32 %v1275, %v1229
      %v1277 = vmax.f32 %v1276, %v1237
      %v1278 = vmax.f32 %v1277, %v1245
      %v1279 = vmax.f32 %v1278, %v1253
      %v1280 = vrot.slane %v1279, 4
      %v1281 = vmax.f32 %v1279, %v1280
      %v1282 = vrot.slane %v1281, 2
      %v1283 = vmax.f32 %v1281, %v1282
      %v1284 = vrot.slane %v1283, 1
      %v1285 = vmax.f32 %v1283, %v1284
      %v1286 = vmax.f32 %v1198, %v1206
      %v1287 = vmax.f32 %v1286, %v1214
      %v1288 = vmax.f32 %v1287, %v1222
      %v1289 = vmax.f32 %v1288, %v1230
      %v1290 = vmax.f32 %v1289, %v1238
      %v1291 = vmax.f32 %v1290, %v1246
      %v1292 = vmax.f32 %v1291, %v1254
      %v1293 = vrot.slane %v1292, 4
      %v1294 = vmax.f32 %v1292, %v1293
      %v1295 = vrot.slane %v1294, 2
      %v1296 = vmax.f32 %v1294, %v1295
      %v1297 = vrot.slane %v1296, 1
      %v1298 = vmax.f32 %v1296, %v1297
      %v1299 = vmax.f32 %v1199, %v1207
      %v1300 = vmax.f32 %v1299, %v1215
      %v1301 = vmax.f32 %v1300, %v1223
      %v1302 = vmax.f32 %v1301, %v1231
      %v1303 = vmax.f32 %v1302, %v1239
      %v1304 = vmax.f32 %v1303, %v1247
      %v1305 = vmax.f32 %v1304, %v1255
      %v1306 = vrot.slane %v1305, 4
      %v1307 = vmax.f32 %v1305, %v1306
      %v1308 = vrot.slane %v1307, 2
      %v1309 = vmax.f32 %v1307, %v1308
      %v1310 = vrot.slane %v1309, 1
      %v1311 = vmax.f32 %v1309, %v1310
      %v1312 = vmax.f32 %v1200, %v1208
      %v1313 = vmax.f32 %v1312, %v1216
      %v1314 = vmax.f32 %v1313, %v1224
      %v1315 = vmax.f32 %v1314, %v1232
      %v1316 = vmax.f32 %v1315, %v1240
      %v1317 = vmax.f32 %v1316, %v1248
      %v1318 = vmax.f32 %v1317, %v1256
      %v1319 = vrot.slane %v1318, 4
      %v1320 = vmax.f32 %v1318, %v1319
      %v1321 = vrot.slane %v1320, 2
      %v1322 = vmax.f32 %v1320, %v1321
      %v1323 = vrot.slane %v1322, 1
      %v1324 = vmax.f32 %v1322, %v1323
      %v1325 = vmax.f32 %v1201, %v1209
      %v1326 = vmax.f32 %v1325, %v1217
      %v1327 = vmax.f32 %v1326, %v1225
      %v1328 = vmax.f32 %v1327, %v1233
      %v1329 = vmax.f32 %v1328, %v1241
      %v1330 = vmax.f32 %v1329, %v1249
      %v1331 = vmax.f32 %v1330, %v1257
      %v1332 = vrot.slane %v1331, 4
      %v1333 = vmax.f32 %v1331, %v1332
      %v1334 = vrot.slane %v1333, 2
      %v1335 = vmax.f32 %v1333, %v1334
      %v1336 = vrot.slane %v1335, 1
      %v1337 = vmax.f32 %v1335, %v1336
      %v1338 = vmax.f32 %v1202, %v1210
      %v1339 = vmax.f32 %v1338, %v1218
      %v1340 = vmax.f32 %v1339, %v1226
      %v1341 = vmax.f32 %v1340, %v1234
      %v1342 = vmax.f32 %v1341, %v1242
      %v1343 = vmax.f32 %v1342, %v1250
      %v1344 = vmax.f32 %v1343, %v1258
      %v1345 = vrot.slane %v1344, 4
      %v1346 = vmax.f32 %v1344, %v1345
      %v1347 = vrot.slane %v1346, 2
      %v1348 = vmax.f32 %v1346, %v1347
      %v1349 = vrot.slane %v1348, 1
      %v1350 = vmax.f32 %v1348, %v1349
      %v1351 = vmax.f32 %v1203, %v1211
      %v1352 = vmax.f32 %v1351, %v1219
      %v1353 = vmax.f32 %v1352, %v1227
      %v1354 = vmax.f32 %v1353, %v1235
      %v1355 = vmax.f32 %v1354, %v1243
      %v1356 = vmax.f32 %v1355, %v1251
      %v1357 = vmax.f32 %v1356, %v1259
      %v1358 = vrot.slane %v1357, 4
      %v1359 = vmax.f32 %v1357, %v1358
      %v1360 = vrot.slane %v1359, 2
      %v1361 = vmax.f32 %v1359, %v1360
      %v1362 = vrot.slane %v1361, 1
      %v1363 = vmax.f32 %v1361, %v1362
      %p1364 = scmp.eq.s32.totalorder %s24, 0
      // Predicated region
      $region45: #{pointnet_segmentation_forward.6} parent=43 // pred_check
        %p1365 = pneg %p1364
      $region46: #{pointnet_segmentation_forward.6} parent=43 // pred_check_branch
        %1367 = sbr.rel (%p1365) target = $region48
      $region47: #{pointnet_segmentation_forward.6} parent=43 // pred_region
        %v1376 = vrot.slane %v1285, 7
        %v1377 = vrot.slane %v1298, 6
        %v1378 = vrot.slane %v1311, 5
        %v1379 = vrot.slane %v1324, 4
        %v1380 = vrot.slane %v1337, 3
        %v1381 = vrot.slane %v1350, 2
        %v1382 = vrot.slane %v1363, 1
        %vm1383 = vcmask 1040384
        %v1384 = vsel %vm1383, %v1272, %v1376
        %vm1385 = vcmask 1042434
        %v1386 = vsel %vm1385, %v1377, %v1378
        %vm1387 = vcmask 1041408
        %v1388 = vsel %vm1387, %v1384, %v1386
        %vm1389 = vcmask 1044484
        %v1390 = vsel %vm1389, %v1379, %v1380
        %vm1391 = vcmask 1046534
        %v1392 = vsel %vm1391, %v1381, %v1382
        %vm1393 = vcmask 1045508
        %v1394 = vsel %vm1393, %v1390, %v1392
        %vm1395 = vcmask 1043456
        %v1396 = vsel %vm1395, %v1388, %v1394
        %1398 = vst [vmem:[%s321] sm:$0xff] %v1396
      $region48: #{pointnet_segmentation_forward.6} parent=43 // pred_fallthru
        _
      %p1399 = scmp.gt.s32.totalorder %s24, 0
      // Predicated region
      $region49: #{pointnet_segmentation_forward.6} parent=43 // pred_check
        %p1400 = pneg %p1399
      $region50: #{pointnet_segmentation_forward.6} parent=43 // pred_check_branch
        %1402 = sbr.rel (%p1400) target = $region52
      $region51: #{pointnet_segmentation_forward.6} parent=43 // pred_region
        %v1403 = vld [vmem:[%s321] sm:$0xff]
        %v1412 = vrot.slane %v1285, 7
        %v1413 = vrot.slane %v1298, 6
        %v1414 = vrot.slane %v1311, 5
        %v1415 = vrot.slane %v1324, 4
        %v1416 = vrot.slane %v1337, 3
        %v1417 = vrot.slane %v1350, 2
        %v1418 = vrot.slane %v1363, 1
        %vm1419 = vcmask 1040384
        %v1420 = vsel %vm1419, %v1272, %v1412
        %vm1421 = vcmask 1042434
        %v1422 = vsel %vm1421, %v1413, %v1414
        %vm1423 = vcmask 1041408
        %v1424 = vsel %vm1423, %v1420, %v1422
        %vm1425 = vcmask 1044484
        %v1426 = vsel %vm1425, %v1415, %v1416
        %vm1427 = vcmask 1046534
        %v1428 = vsel %vm1427, %v1417, %v1418
        %vm1429 = vcmask 1045508
        %v1430 = vsel %vm1429, %v1426, %v1428
        %vm1431 = vcmask 1043456
        %v1432 = vsel %vm1431, %v1424, %v1430
        %v1434 = vmax.f32 %v1403, %v1432
        %1435 = vst [vmem:[%s321] sm:$0xff] %v1434
      $region52: #{pointnet_segmentation_forward.6} parent=43 // pred_fallthru
        _
      %p1436 = scmp.lt.s32.totalorder %s22, 1
      %s1437 = scalar_select %p1436, %s22, 1
      %p1438 = scmp.lt.s32.totalorder %s23, 0
      %s1439 = scalar_select %p1438, %s23, 0
      %s1440 = smul.addr %s1439, 8
      %s1441 = smul.addr %s1437, 8
      %s1442 = sadd.s32 %s1440, %s1441
      %s1443 = scalar_lea.vmem %s6, %s1442
      // Predicated region
      $region53: #{pointnet_segmentation_forward.6} parent=43 // pred_check
        %p1444 = pneg %p196
      $region54: #{pointnet_segmentation_forward.6} parent=43 // pred_check_branch
        %1446 = sbr.rel (%p1444) target = $region56
      $region55: #{pointnet_segmentation_forward.6} parent=43 // pred_region
        _
      $region56: #{pointnet_segmentation_forward.6} parent=43 // pred_fallthru
        _
    $region44: #{pointnet_segmentation_forward.6} parent=5 // pred_fallthru
      _
    %p1447 = scmp.le.s32.totalorder 2, %s12
    // Predicated region
    $region57: #{pointnet_segmentation_forward.6} parent=5 // pred_check
      %p1448 = pneg %p1447
    $region58: #{pointnet_segmentation_forward.6} parent=5 // pred_check_branch
      %1450 = sbr.rel (%p1448) target = $region60
    $region59: #{pointnet_segmentation_forward.6} parent=5 // pred_region
      %s1451 = ssub.s32 %s12, 2
      // Predicated region
      $region61: #{pointnet_segmentation_forward.6} parent=59 // pred_check
        %p1452 = pneg %p202
      $region62: #{pointnet_segmentation_forward.6} parent=59 // pred_check_branch
        %1454 = sbr.rel (%p1452) target = $region64
      $region63: #{pointnet_segmentation_forward.6} parent=59 // pred_region
        %p1455 = scmp.lt.s32.totalorder %s25, 1
        %s1456 = scalar_select %p1455, %s25, 1
        %p1457 = scmp.lt.s32.totalorder %s26, 0
        %s1458 = scalar_select %p1457, %s26, 0
        %s1459 = smul.addr %s1458, 8
        %s1460 = smul.addr %s1456, 8
        %s1461 = sadd.s32 %s1459, %s1460
        %s1462 = scalar_lea.vmem %s6, %s1461
      $region64: #{pointnet_segmentation_forward.6} parent=59 // pred_fallthru
        _
    $region60: #{pointnet_segmentation_forward.6} parent=5 // pred_fallthru
      _
  $region6: #{pointnet_segmentation_forward.6} parent=0 // loop_footer
    %s16 = sadd.s32 1, %s12
  $region7: #{pointnet_segmentation_forward.6} parent=0 // loop_footer_branch
    %11 = sbr.rel target = $region3
  $region8: #{pointnet_segmentation_forward.6} parent=0 // loop_exit
    _

// kernel: pointnet_segmentation_forward.7
$region0: #{pointnet_segmentation_forward.7}
  #allocation0 [shape = 'u32[]', space=smem, size = 0x4, offset = 0x4, fixed_abs, tag = 'smem constant byte address 0x4 - core index']
  #allocation1 [shape = 'u32[72,128]{1,0:T(1,128)}', space=vmem, size = 0x9000, scoped, tag = 'internal scratch']
  %s0 = inlined_call_operand.vmem [shape: bf16[2,64,64], index: 0, kind: input, shape index: {}]
  %s1 = inlined_call_operand.vmem [shape: bf16[2,64,512], index: 1, kind: input, shape index: {}]
  %s2 = inlined_call_operand.vmem [shape: f32[2,1,512], index: 2, kind: input, shape index: {}]
  %s3 = inlined_call_operand.vmem [shape: bf16[512,256], index: 3, kind: input, shape index: {}]
  %s4 = inlined_call_operand.vmem [shape: f32[1,256], index: 4, kind: input, shape index: {}]
  %s5 = inlined_call_operand.vmem [shape: bf16[256,128], index: 5, kind: input, shape index: {}]
  %s6 = inlined_call_operand.vmem [shape: f32[1,128], index: 6, kind: input, shape index: {}]
  %s7 = inlined_call_operand.vmem [shape: bf16[128,128], index: 7, kind: input, shape index: {}]
  %s8 = inlined_call_operand.vmem [shape: f32[1,128], index: 8, kind: input, shape index: {}]
  %s9 = inlined_call_operand.vmem [shape: bf16[2,64,128], index: 9, kind: output, shape index: {}]
  %s10 = sld [smem:[#allocation0]]
  $region69: #{pointnet_segmentation_forward.7} parent=0
    _
  %s12 = ssub.s32 1, %s10
  %s13 = scalar_select 0, %s12, %s10
  loop: start=0, step=1, limit=4
  $region2: #{pointnet_segmentation_forward.7} parent=0 // loop_pre_header
    _
  $region3: #{pointnet_segmentation_forward.7} parent=0 // loop_header
    %s15 = sphi 0, %s19
    %p16 = scmp.ge.s32.totalorder %s15, 4
    %s22 = sphi 0, %s34
    %s23 = sphi 0, %s30
    %s24 = sphi 0, %s22
    %s25 = sphi 0, %s23
    %s26 = sphi 0, %s24
    %s27 = sphi 0, %s25
    %s39 = sphi 0, %s41
    %s42 = sphi 0, %s39
    %s43 = sphi 0, %s42
    %s59 = sphi 0, %s43
    %s65 = sphi 0, %s67
    %s68 = sphi 0, %s65
    %s69 = sphi 0, %s68
    %s85 = sphi 0, %s69
    %s91 = sphi 0, %s93
    %s94 = sphi 0, %s91
    %s95 = sphi 0, %s94
    %s111 = sphi 0, %s95
    %s115 = sphi 0, %s115
    %s117 = sphi 0, %s115
    %s118 = sphi 0, %s117
    %s132 = sphi 0, %s118
    %s136 = sphi 0, %s136
    %s138 = sphi 0, %s136
    %s139 = sphi 0, %s138
    %s153 = sphi 0, %s139
    %s157 = sphi 0, %s157
    %s159 = sphi 0, %s157
    %s160 = sphi 0, %s159
    %s174 = sphi 0, %s160
    %s178 = sphi 0, %s178
    %s180 = sphi 0, %s178
    %s181 = sphi 0, %s180
    %s195 = sphi 0, %s181
    %s199 = sphi 0, %s199
    %s201 = sphi 0, %s199
    %s202 = sphi 0, %s201
    %s216 = sphi 0, %s202
    %s220 = sphi 0, %s220
    %s222 = sphi 0, %s220
    %s223 = sphi 0, %s222
    %s237 = sphi 0, %s223
    %s245 = sphi 0, %s247
    %s248 = sphi 0, %s245
    %s249 = sphi 0, %s248
    %s265 = sphi 0, %s249
  $region4: #{pointnet_segmentation_forward.7} parent=0 // loop_header_branch
    %18 = sbr.rel (%p16) target = $region8
  $region5: #{pointnet_segmentation_forward.7} parent=0 // loop_body
    %s20 = ssub.s32 %s15, 1
    %s21 = ssub.s32 %s15, 2
    %s28 = sadd.s32 1, %s23
    %p29 = scmp.ge.s32.totalorder %s28, 1
    %s30 = scalar_select %p29, 0, %s28
    %s31 = sadd.s32 1, %s22
    %s32 = scalar_select %p29, %s31, %s22
    %p33 = scmp.ge.s32.totalorder %s32, 2
    %s34 = scalar_select %p33, 0, %s32
    %s35 = ssub.s32 %s22, %s34
    %s36 = ssub.s32 %s23, %s30
    %s37 = sor.u32 %s35, %s36
    %p38 = scmp.eq.s32.totalorder %s37, 0
    %s40 = sadd.s32 %s39, 1
    %s41 = scalar_select %p38, %s39, %s40
    %p44 = pneg %p38
    %p45 = scmp.eq.s32.totalorder %s15, 1
    %p46 = por %p44, %p45
    %p47 = scmp.ne.s32.totalorder %s39, %s42
    %p48 = scmp.eq.s32.totalorder %s15, 0
    %p49 = por %p47, %p48
    %p50 = scmp.ne.s32.totalorder %s39, %s42
    %p51 = scmp.eq.s32.totalorder %s20, 1
    %p52 = por %p50, %p51
    %p53 = scmp.ne.s32.totalorder %s42, %s43
    %p54 = scmp.eq.s32.totalorder %s20, 0
    %p55 = por %p53, %p54
    %p56 = scmp.ne.s32.totalorder %s42, %s43
    %p57 = scmp.eq.s32.totalorder %s21, 1
    %p58 = por %p56, %p57
    %p60 = scmp.ne.s32.totalorder %s43, %s59
    %p61 = scmp.eq.s32.totalorder %s21, 0
    %p62 = por %p60, %p61
    %s63 = ssub.s32 %s22, %s34
    %p64 = scmp.eq.s32.totalorder %s63, 0
    %s66 = sadd.s32 %s65, 1
    %s67 = scalar_select %p64, %s65, %s66
    %p70 = pneg %p64
    %p71 = scmp.eq.s32.totalorder %s15, 1
    %p72 = por %p70, %p71
    %p73 = scmp.ne.s32.totalorder %s65, %s68
    %p74 = scmp.eq.s32.totalorder %s15, 0
    %p75 = por %p73, %p74
    %p76 = scmp.ne.s32.totalorder %s65, %s68
    %p77 = scmp.eq.s32.totalorder %s20, 1
    %p78 = por %p76, %p77
    %p79 = scmp.ne.s32.totalorder %s68, %s69
    %p80 = scmp.eq.s32.totalorder %s20, 0
    %p81 = por %p79, %p80
    %p82 = scmp.ne.s32.totalorder %s68, %s69
    %p83 = scmp.eq.s32.totalorder %s21, 1
    %p84 = por %p82, %p83
    %p86 = scmp.ne.s32.totalorder %s69, %s85
    %p87 = scmp.eq.s32.totalorder %s21, 0
    %p88 = por %p86, %p87
    %s89 = ssub.s32 %s22, %s34
    %p90 = scmp.eq.s32.totalorder %s89, 0
    %s92 = sadd.s32 %s91, 1
    %s93 = scalar_select %p90, %s91, %s92
    %p96 = pneg %p90
    %p97 = scmp.eq.s32.totalorder %s15, 1
    %p98 = por %p96, %p97
    %p99 = scmp.ne.s32.totalorder %s91, %s94
    %p100 = scmp.eq.s32.totalorder %s15, 0
    %p101 = por %p99, %p100
    %p102 = scmp.ne.s32.totalorder %s91, %s94
    %p103 = scmp.eq.s32.totalorder %s20, 1
    %p104 = por %p102, %p103
    %p105 = scmp.ne.s32.totalorder %s94, %s95
    %p106 = scmp.eq.s32.totalorder %s20, 0
    %p107 = por %p105, %p106
    %p108 = scmp.ne.s32.totalorder %s94, %s95
    %p109 = scmp.eq.s32.totalorder %s21, 1
    %p110 = por %p108, %p109
    %p112 = scmp.ne.s32.totalorder %s95, %s111
    %p113 = scmp.eq.s32.totalorder %s21, 0
    %p114 = por %p112, %p113
    %s116 = sadd.s32 %s115, 1
    %p119 = scmp.eq.s32.totalorder %s15, 1
    %p120 = scmp.ne.s32.totalorder %s115, %s117
    %p121 = scmp.eq.s32.totalorder %s15, 0
    %p122 = por %p120, %p121
    %p123 = scmp.ne.s32.totalorder %s115, %s117
    %p124 = scmp.eq.s32.totalorder %s20, 1
    %p125 = por %p123, %p124
    %p126 = scmp.ne.s32.totalorder %s117, %s118
    %p127 = scmp.eq.s32.totalorder %s20, 0
    %p128 = por %p126, %p127
    %p129 = scmp.ne.s32.totalorder %s117, %s118
    %p130 = scmp.eq.s32.totalorder %s21, 1
    %p131 = por %p129, %p130
    %p133 = scmp.ne.s32.totalorder %s118, %s132
    %p134 = scmp.eq.s32.totalorder %s21, 0
    %p135 = por %p133, %p134
    %s137 = sadd.s32 %s136, 1
    %p140 = scmp.eq.s32.totalorder %s15, 1
    %p141 = scmp.ne.s32.totalorder %s136, %s138
    %p142 = scmp.eq.s32.totalorder %s15, 0
    %p143 = por %p141, %p142
    %p144 = scmp.ne.s32.totalorder %s136, %s138
    %p145 = scmp.eq.s32.totalorder %s20, 1
    %p146 = por %p144, %p145
    %p147 = scmp.ne.s32.totalorder %s138, %s139
    %p148 = scmp.eq.s32.totalorder %s20, 0
    %p149 = por %p147, %p148
    %p150 = scmp.ne.s32.totalorder %s138, %s139
    %p151 = scmp.eq.s32.totalorder %s21, 1
    %p152 = por %p150, %p151
    %p154 = scmp.ne.s32.totalorder %s139, %s153
    %p155 = scmp.eq.s32.totalorder %s21, 0
    %p156 = por %p154, %p155
    %s158 = sadd.s32 %s157, 1
    %p161 = scmp.eq.s32.totalorder %s15, 1
    %p162 = scmp.ne.s32.totalorder %s157, %s159
    %p163 = scmp.eq.s32.totalorder %s15, 0
    %p164 = por %p162, %p163
    %p165 = scmp.ne.s32.totalorder %s157, %s159
    %p166 = scmp.eq.s32.totalorder %s20, 1
    %p167 = por %p165, %p166
    %p168 = scmp.ne.s32.totalorder %s159, %s160
    %p169 = scmp.eq.s32.totalorder %s20, 0
    %p170 = por %p168, %p169
    %p171 = scmp.ne.s32.totalorder %s159, %s160
    %p172 = scmp.eq.s32.totalorder %s21, 1
    %p173 = por %p171, %p172
    %p175 = scmp.ne.s32.totalorder %s160, %s174
    %p176 = scmp.eq.s32.totalorder %s21, 0
    %p177 = por %p175, %p176
    %s179 = sadd.s32 %s178, 1
    %p182 = scmp.eq.s32.totalorder %s15, 1
    %p183 = scmp.ne.s32.totalorder %s178, %s180
    %p184 = scmp.eq.s32.totalorder %s15, 0
    %p185 = por %p183, %p184
    %p186 = scmp.ne.s32.totalorder %s178, %s180
    %p187 = scmp.eq.s32.totalorder %s20, 1
    %p188 = por %p186, %p187
    %p189 = scmp.ne.s32.totalorder %s180, %s181
    %p190 = scmp.eq.s32.totalorder %s20, 0
    %p191 = por %p189, %p190
    %p192 = scmp.ne.s32.totalorder %s180, %s181
    %p193 = scmp.eq.s32.totalorder %s21, 1
    %p194 = por %p192, %p193
    %p196 = scmp.ne.s32.totalorder %s181, %s195
    %p197 = scmp.eq.s32.totalorder %s21, 0
    %p198 = por %p196, %p197
    %s200 = sadd.s32 %s199, 1
    %p203 = scmp.eq.s32.totalorder %s15, 1
    %p204 = scmp.ne.s32.totalorder %s199, %s201
    %p205 = scmp.eq.s32.totalorder %s15, 0
    %p206 = por %p204, %p205
    %p207 = scmp.ne.s32.totalorder %s199, %s201
    %p208 = scmp.eq.s32.totalorder %s20, 1
    %p209 = por %p207, %p208
    %p210 = scmp.ne.s32.totalorder %s201, %s202
    %p211 = scmp.eq.s32.totalorder %s20, 0
    %p212 = por %p210, %p211
    %p213 = scmp.ne.s32.totalorder %s201, %s202
    %p214 = scmp.eq.s32.totalorder %s21, 1
    %p215 = por %p213, %p214
    %p217 = scmp.ne.s32.totalorder %s202, %s216
    %p218 = scmp.eq.s32.totalorder %s21, 0
    %p219 = por %p217, %p218
    %s221 = sadd.s32 %s220, 1
    %p224 = scmp.eq.s32.totalorder %s15, 1
    %p225 = scmp.ne.s32.totalorder %s220, %s222
    %p226 = scmp.eq.s32.totalorder %s15, 0
    %p227 = por %p225, %p226
    %p228 = scmp.ne.s32.totalorder %s220, %s222
    %p229 = scmp.eq.s32.totalorder %s20, 1
    %p230 = por %p228, %p229
    %p231 = scmp.ne.s32.totalorder %s222, %s223
    %p232 = scmp.eq.s32.totalorder %s20, 0
    %p233 = por %p231, %p232
    %p234 = scmp.ne.s32.totalorder %s222, %s223
    %p235 = scmp.eq.s32.totalorder %s21, 1
    %p236 = por %p234, %p235
    %p238 = scmp.ne.s32.totalorder %s223, %s237
    %p239 = scmp.eq.s32.totalorder %s21, 0
    %p240 = por %p238, %p239
    %s241 = ssub.s32 %s22, %s34
    %s242 = ssub.s32 %s23, %s30
    %s243 = sor.u32 %s241, %s242
    %p244 = scmp.eq.s32.totalorder %s243, 0
    %s246 = sadd.s32 %s245, 1
    %s247 = scalar_select %p244, %s245, %s246
    %p250 = pneg %p244
    %p251 = scmp.eq.s32.totalorder %s15, 1
    %p252 = por %p250, %p251
    %p253 = scmp.ne.s32.totalorder %s245, %s248
    %p254 = scmp.eq.s32.totalorder %s15, 0
    %p255 = por %p253, %p254
    %p256 = scmp.ne.s32.totalorder %s245, %s248
    %p257 = scmp.eq.s32.totalorder %s20, 1
    %p258 = por %p256, %p257
    %p259 = scmp.ne.s32.totalorder %s248, %s249
    %p260 = scmp.eq.s32.totalorder %s20, 0
    %p261 = por %p259, %p260
    %p262 = scmp.ne.s32.totalorder %s248, %s249
    %p263 = scmp.eq.s32.totalorder %s21, 1
    %p264 = por %p262, %p263
    %p266 = scmp.ne.s32.totalorder %s249, %s265
    %p267 = scmp.eq.s32.totalorder %s21, 0
    %p268 = por %p266, %p267
    %p269 = scmp.le.s32.totalorder 1, %s15
    %p270 = scmp.lt.s32.totalorder %s15, 3
    %p271 = pnand %p269, %p270
    %p272 = pneg %p271
    // Predicated region
    $region9: #{pointnet_segmentation_forward.7} parent=5 // pred_check
      _
    $region10: #{pointnet_segmentation_forward.7} parent=5 // pred_check_branch
      %274 = sbr.rel (%p271) target = $region12
    $region11: #{pointnet_segmentation_forward.7} parent=5 // pred_region
      %s275 = ssub.s32 %s15, 1
      // Predicated region
      $region13: #{pointnet_segmentation_forward.7} parent=11 // pred_check
        %p276 = pneg %p128
      $region14: #{pointnet_segmentation_forward.7} parent=11 // pred_check_branch
        %278 = sbr.rel (%p276) target = $region16
      $region15: #{pointnet_segmentation_forward.7} parent=11 // pred_region
        _
      $region16: #{pointnet_segmentation_forward.7} parent=11 // pred_fallthru
        _
      // Predicated region
      $region17: #{pointnet_segmentation_forward.7} parent=11 // pred_check
        %p279 = pneg %p149
      $region18: #{pointnet_segmentation_forward.7} parent=11 // pred_check_branch
        %281 = sbr.rel (%p279) target = $region20
      $region19: #{pointnet_segmentation_forward.7} parent=11 // pred_region
        _
      $region20: #{pointnet_segmentation_forward.7} parent=11 // pred_fallthru
        _
      // Predicated region
      $region21: #{pointnet_segmentation_forward.7} parent=11 // pred_check
        %p282 = pneg %p170
      $region22: #{pointnet_segmentation_forward.7} parent=11 // pred_check_branch
        %284 = sbr.rel (%p282) target = $region24
      $region23: #{pointnet_segmentation_forward.7} parent=11 // pred_region
        _
      $region24: #{pointnet_segmentation_forward.7} parent=11 // pred_fallthru
        _
      // Predicated region
      $region25: #{pointnet_segmentation_forward.7} parent=11 // pred_check
        %p285 = pneg %p191
      $region26: #{pointnet_segmentation_forward.7} parent=11 // pred_check_branch
        %287 = sbr.rel (%p285) target = $region28
      $region27: #{pointnet_segmentation_forward.7} parent=11 // pred_region
        _
      $region28: #{pointnet_segmentation_forward.7} parent=11 // pred_fallthru
        _
      // Predicated region
      $region29: #{pointnet_segmentation_forward.7} parent=11 // pred_check
        %p288 = pneg %p212
      $region30: #{pointnet_segmentation_forward.7} parent=11 // pred_check_branch
        %290 = sbr.rel (%p288) target = $region32
      $region31: #{pointnet_segmentation_forward.7} parent=11 // pred_region
        _
      $region32: #{pointnet_segmentation_forward.7} parent=11 // pred_fallthru
        _
      // Predicated region
      $region33: #{pointnet_segmentation_forward.7} parent=11 // pred_check
        %p291 = pneg %p233
      $region34: #{pointnet_segmentation_forward.7} parent=11 // pred_check_branch
        %293 = sbr.rel (%p291) target = $region36
      $region35: #{pointnet_segmentation_forward.7} parent=11 // pred_region
        _
      $region36: #{pointnet_segmentation_forward.7} parent=11 // pred_fallthru
        _
    $region12: #{pointnet_segmentation_forward.7} parent=5 // pred_fallthru
      _
    %p294 = scmp.lt.s32.totalorder %s15, 2
    // Predicated region
    $region37: #{pointnet_segmentation_forward.7} parent=5 // pred_check
      %p295 = pneg %p294
    $region38: #{pointnet_segmentation_forward.7} parent=5 // pred_check_branch
      %297 = sbr.rel (%p295) target = $region40
    $region39: #{pointnet_segmentation_forward.7} parent=5 // pred_region
      // Predicated region
      $region41: #{pointnet_segmentation_forward.7} parent=39 // pred_check
        %p298 = pneg %p49
      $region42: #{pointnet_segmentation_forward.7} parent=39 // pred_check_branch
        %300 = sbr.rel (%p298) target = $region44
      $region43: #{pointnet_segmentation_forward.7} parent=39 // pred_region
        %s301 = smul.u32 8, %s23
        %p302 = scmp.lt.s32.totalorder %s22, 1
        %s303 = scalar_select %p302, %s22, 1
        %p304 = scmp.lt.s32.totalorder %s301, 7
        %s305 = scalar_select %p304, %s301, 7
        %s306 = smul.addr %s303, 8
        %s307 = sadd.s32 %s305, %s306
        %s308 = smul.addr %s307, 4
        %s309 = scalar_lea.vmem %s0, %s308
        %s310 = smul.u32 8, %s23
      $region44: #{pointnet_segmentation_forward.7} parent=39 // pred_fallthru
        _
      // Predicated region
      $region45: #{pointnet_segmentation_forward.7} parent=39 // pred_check
        %p311 = pneg %p75
      $region46: #{pointnet_segmentation_forward.7} parent=39 // pred_check_branch
        %313 = sbr.rel (%p311) target = $region48
      $region47: #{pointnet_segmentation_forward.7} parent=39 // pred_region
        %p314 = scmp.lt.s32.totalorder %s22, 1
        %s315 = scalar_select %p314, %s22, 1
        %s316 = smul.addr %s315, 32
        %s317 = smul.addr %s316, 4
        %s318 = scalar_lea.vmem %s1, %s317
      $region48: #{pointnet_segmentation_forward.7} parent=39 // pred_fallthru
        _
      // Predicated region
      $region49: #{pointnet_segmentation_forward.7} parent=39 // pred_check
        %p319 = pneg %p101
      $region50: #{pointnet_segmentation_forward.7} parent=39 // pred_check_branch
        %321 = sbr.rel (%p319) target = $region52
      $region51: #{pointnet_segmentation_forward.7} parent=39 // pred_region
        %p322 = scmp.lt.s32.totalorder %s22, 1
        %s323 = scalar_select %p322, %s22, 1
        %s324 = smul.addr %s323, 4
        %s325 = scalar_lea.vmem %s2, %s324
      $region52: #{pointnet_segmentation_forward.7} parent=39 // pred_fallthru
        _
    $region40: #{pointnet_segmentation_forward.7} parent=5 // pred_fallthru
      _
    %p326 = scmp.le.s32.totalorder 1, %s15
    %p327 = scmp.lt.s32.totalorder %s15, 3
    %p328 = pnand %p326, %p327
    %p329 = pneg %p328
    // Predicated region
    $region53: #{pointnet_segmentation_forward.7} parent=5 // pred_check
      _
    $region54: #{pointnet_segmentation_forward.7} parent=5 // pred_check_branch
      %331 = sbr.rel (%p328) target = $region56
    $region55: #{pointnet_segmentation_forward.7} parent=5 // pred_region
      %s332 = ssub.s32 %s15, 1
      %s333 = smul.u32 8, %s25
      %p334 = scmp.lt.s32.totalorder %s24, 1
      %s335 = scalar_select %p334, %s24, 1
      %p336 = scmp.lt.s32.totalorder %s333, 7
      %s337 = scalar_select %p336, %s333, 7
      %s338 = smul.addr %s335, 8
      %s339 = sadd.s32 %s337, %s338
      %s340 = smul.addr %s339, 4
      %s341 = scalar_lea.vmem %s0, %s340
      %p342 = pneg %p55
      %p343 = pneg %p52
      %p344 = scmp.lt.s32.totalorder %s24, 1
      %s345 = scalar_select %p344, %s24, 1
      %s346 = smul.addr %s345, 32
      %s347 = smul.addr %s346, 4
      %s348 = scalar_lea.vmem %s1, %s347
      %p349 = pneg %p81
      %p350 = pneg %p78
      %p351 = scmp.lt.s32.totalorder %s24, 1
      %s352 = scalar_select %p351, %s24, 1
      %s353 = smul.addr %s352, 4
      %s354 = scalar_lea.vmem %s2, %s353
      %p355 = pneg %p107
      %p356 = pneg %p104
      %p357 = pneg %p128
      %p358 = pneg %p125
      %p359 = pneg %p149
      %p360 = pneg %p146
      %p361 = pneg %p170
      %p362 = pneg %p167
      %p363 = pneg %p191
      %p364 = pneg %p188
      %p365 = pneg %p212
      %p366 = pneg %p209
      %p367 = pneg %p233
      %p368 = pneg %p230
      %p369 = pneg %p261
      %p370 = pneg %p258
      %s371 = smul.u32 8, %s25
      %p372 = scmp.lt.s32.totalorder %s24, 1
      %s373 = scalar_select %p372, %s24, 1
      %p374 = scmp.lt.s32.totalorder %s371, 7
      %s375 = scalar_select %p374, %s371, 7
      %s376 = smul.addr %s373, 8
      %s377 = sadd.s32 %s375, %s376
      %s378 = smul.addr %s377, 4
      %s379 = scalar_lea.vmem %s9, %s378
      %s380 = smul.u32 8, %s25
      %p381 = scmp.lt.s32.totalorder %s24, 1
      %s382 = scalar_select %p381, %s24, 1
      %p383 = scmp.lt.s32.totalorder %s380, 7
      %s384 = scalar_select %p383, %s380, 7
      %s385 = smul.addr %s382, 8
      %s386 = sadd.s32 %s384, %s385
      %s387 = smul.addr %s386, 4
      %s388 = scalar_lea.vmem %s0, %s387
      %s389 = smul.u32 8, %s25
      %p390 = scmp.lt.s32.totalorder %s24, 1
      %s391 = scalar_select %p390, %s24, 1
      %s392 = smul.addr %s391, 32
      %s393 = smul.addr %s392, 4
      %s394 = scalar_lea.vmem %s1, %s393
      %p395 = scmp.lt.s32.totalorder %s24, 1
      %s396 = scalar_select %p395, %s24, 1
      %s397 = smul.addr %s396, 4
      %s398 = scalar_lea.vmem %s2, %s397
      %s399 = smul.u32 8, %s25
      %p400 = scmp.lt.s32.totalorder %s24, 1
      %s401 = scalar_select %p400, %s24, 1
      %p402 = scmp.lt.s32.totalorder %s399, 7
      %s403 = scalar_select %p402, %s399, 7
      %s404 = smul.addr %s401, 8
      %s405 = sadd.s32 %s403, %s404
      %s406 = smul.addr %s405, 4
      %s407 = scalar_lea.vmem %s9, %s406
      %s408 = smul.u32 8, %s25
      %v410 = vld [vmem:[%s388] sm:$0xf]
      %v411 = vld [vmem:[%s388 + $0x4] sm:$0xf]
      %v412 = vld [vmem:[%s388 + $0x8] sm:$0xf]
      %v413 = vld [vmem:[%s388 + $0xc] sm:$0xf]
      %v414 = vld [vmem:[%s388 + $0x10] sm:$0xf]
      %v415 = vld [vmem:[%s388 + $0x14] sm:$0xf]
      %v416 = vld [vmem:[%s388 + $0x18] sm:$0xf]
      %v417 = vld [vmem:[%s388 + $0x1c] sm:$0xf]
      %v418 = vld [vmem:[%s394] sm:$0xff]
      %v419 = vld [vmem:[%s394 + $0x8] sm:$0xff]
      %v420 = vld [vmem:[%s394 + $0x10] sm:$0xff]
      %v421 = vld [vmem:[%s394 + $0x18] sm:$0xff]
      %v422 = vld [vmem:[%s394 + $0x20] sm:$0xff]
      %v423 = vld [vmem:[%s394 + $0x28] sm:$0xff]
      %v424 = vld [vmem:[%s394 + $0x30] sm:$0xff]
      %v425 = vld [vmem:[%s394 + $0x38] sm:$0xff]
      %v426 = vld [vmem:[%s394 + $0x40] sm:$0xff]
      %v427 = vld [vmem:[%s394 + $0x48] sm:$0xff]
      %v428 = vld [vmem:[%s394 + $0x50] sm:$0xff]
      %v429 = vld [vmem:[%s394 + $0x58] sm:$0xff]
      %v430 = vld [vmem:[%s394 + $0x60] sm:$0xff]
      %v431 = vld [vmem:[%s394 + $0x68] sm:$0xff]
      %v432 = vld [vmem:[%s394 + $0x70] sm:$0xff]
      %v433 = vld [vmem:[%s394 + $0x78] sm:$0xff]
      %v434 = vld [vmem:[%s398] sm:$0xf]
      %v436 = vperm.slane %v434, 0
      %v437 = vperm.slane %v434, 1
      %v438 = vperm.slane %v434, 2
      %v439 = vperm.slane %v434, 3
      %v452 = vunpack.c.l.b16 %v410
      %v453 = vunpack.c.l.b16 %v411
      %v454 = vunpack.c.l.b16 %v412
      %v455 = vunpack.c.l.b16 %v413
      %v456 = vunpack.c.l.b16 %v414
      %v457 = vunpack.c.l.b16 %v415
      %v458 = vunpack.c.l.b16 %v416
      %v459 = vunpack.c.l.b16 %v417
      %v460 = vpack.c.b16 %v453, %v452
      %v461 = vpack.c.b16 %v455, %v454
      %v462 = vpack.c.b16 %v457, %v456
      %v463 = vpack.c.b16 %v459, %v458
      %v480 = vunpack.c.l.b16 %v418
      %v481 = vunpack.c.h.b16 %v418
      %v482 = vunpack.c.l.b16 %v419
      %v483 = vunpack.c.h.b16 %v419
      %v484 = vunpack.c.l.b16 %v420
      %v485 = vunpack.c.h.b16 %v420
      %v486 = vunpack.c.l.b16 %v421
      %v487 = vunpack.c.h.b16 %v421
      %v488 = vunpack.c.l.b16 %v422
      %v489 = vunpack.c.h.b16 %v422
      %v490 = vunpack.c.l.b16 %v423
      %v491 = vunpack.c.h.b16 %v423
      %v492 = vunpack.c.l.b16 %v424
      %v493 = vunpack.c.h.b16 %v424
      %v494 = vunpack.c.l.b16 %v425
      %v495 = vunpack.c.h.b16 %v425
      %v496 = vunpack.c.l.b16 %v426
      %v497 = vunpack.c.h.b16 %v426
      %v498 = vunpack.c.l.b16 %v427
      %v499 = vunpack.c.h.b16 %v427
      %v500 = vunpack.c.l.b16 %v428
      %v501 = vunpack.c.h.b16 %v428
      %v502 = vunpack.c.l.b16 %v429
      %v503 = vunpack.c.h.b16 %v429
      %v504 = vunpack.c.l.b16 %v430
      %v505 = vunpack.c.h.b16 %v430
      %v506 = vunpack.c.l.b16 %v431
      %v507 = vunpack.c.h.b16 %v431
      %v508 = vunpack.c.l.b16 %v432
      %v509 = vunpack.c.h.b16 %v432
      %v510 = vunpack.c.l.b16 %v433
      %v511 = vunpack.c.h.b16 %v433
      %v512 = vpack.c.b16 %v484, %v480
      %v513 = vpack.c.b16 %v485, %v481
      %v514 = vpack.c.b16 %v486, %v482
      %v515 = vpack.c.b16 %v487, %v483
      %v516 = vpack.c.b16 %v492, %v488
      %v517 = vpack.c.b16 %v493, %v489
      %v518 = vpack.c.b16 %v494, %v490
      %v519 = vpack.c.b16 %v495, %v491
      %v520 = vpack.c.b16 %v500, %v496
      %v521 = vpack.c.b16 %v501, %v497
      %v522 = vpack.c.b16 %v502, %v498
      %v523 = vpack.c.b16 %v503, %v499
      %v524 = vpack.c.b16 %v508, %v504
      %v525 = vpack.c.b16 %v509, %v505
      %v526 = vpack.c.b16 %v510, %v506
      %v527 = vpack.c.b16 %v511, %v507
      %vm544 = vcmask 523264
      %v546 = vsel %vm544, %v460, 0
      %v549 = vsel %vm544, %v461, 0
      %v552 = vsel %vm544, %v462, 0
      %v555 = vsel %vm544, %v463, 0
      %557 = vmatpush.bf16.msra.mxu0 0
      %558 = vmatpush.bf16.msra.mxu0 0
      %559 = vmatpush.bf16.msra.mxu0 0
      %560 = vmatpush.bf16.msra.mxu0 0
      %561 = vmatpush.bf16.msra.mxu0 %v524
      %562 = vmatpush.bf16.msra.mxu0 %v520
      %563 = vmatpush.bf16.msra.mxu0 %v516
      %564 = vmatpush.bf16.msra.mxu0 %v512
      %565 = vmatmul.bf16.gmra.mxu0 %v546
      %v566 = vpop.f32.mrf.mxu0
      %v567 = vadd.f32 %v436, %v566
      %v568 = vpop.f32.mrf.mxu0
      %v569 = vadd.f32 %v436, %v568
      %570 = vmatmul.bf16.gmra.mxu0 %v549
      %v571 = vpop.f32.mrf.mxu0
      %v572 = vadd.f32 %v436, %v571
      %v573 = vpop.f32.mrf.mxu0
      %v574 = vadd.f32 %v436, %v573
      %575 = vmatmul.bf16.gmra.mxu0 %v552
      %v576 = vpop.f32.mrf.mxu0
      %v577 = vadd.f32 %v436, %v576
      %v578 = vpop.f32.mrf.mxu0
      %v579 = vadd.f32 %v436, %v578
      %580 = vmatmul.bf16.gmra.mxu0 %v555
      %v581 = vpop.f32.mrf.mxu0
      %v582 = vadd.f32 %v436, %v581
      %v583 = vpop.f32.mrf.mxu0
      %v584 = vadd.f32 %v436, %v583
      %585 = vdwg.mxu0
      %586 = vmatpush.bf16.msra.mxu0 0
      %587 = vmatpush.bf16.msra.mxu0 0
      %588 = vmatpush.bf16.msra.mxu0 0
      %589 = vmatpush.bf16.msra.mxu0 0
      %590 = vmatpush.bf16.msra.mxu0 %v525
      %591 = vmatpush.bf16.msra.mxu0 %v521
      %592 = vmatpush.bf16.msra.mxu0 %v517
      %593 = vmatpush.bf16.msra.mxu0 %v513
      %594 = vmatmul.bf16.gmra.mxu0 %v546
      %v595 = vpop.f32.mrf.mxu0
      %v596 = vadd.f32 %v437, %v595
      %v597 = vpop.f32.mrf.mxu0
      %v598 = vadd.f32 %v437, %v597
      %599 = vmatmul.bf16.gmra.mxu0 %v549
      %v600 = vpop.f32.mrf.mxu0
      %v601 = vadd.f32 %v437, %v600
      %v602 = vpop.f32.mrf.mxu0
      %v603 = vadd.f32 %v437, %v602
      %604 = vmatmul.bf16.gmra.mxu0 %v552
      %v605 = vpop.f32.mrf.mxu0
      %v606 = vadd.f32 %v437, %v605
      %v607 = vpop.f32.mrf.mxu0
      %v608 = vadd.f32 %v437, %v607
      %609 = vmatmul.bf16.gmra.mxu0 %v555
      %v610 = vpop.f32.mrf.mxu0
      %v611 = vadd.f32 %v437, %v610
      %v612 = vpop.f32.mrf.mxu0
      %v613 = vadd.f32 %v437, %v612
      %614 = vdwg.mxu0
      %615 = vmatpush.bf16.msra.mxu0 0
      %616 = vmatpush.bf16.msra.mxu0 0
      %617 = vmatpush.bf16.msra.mxu0 0
      %618 = vmatpush.bf16.msra.mxu0 0
      %619 = vmatpush.bf16.msra.mxu0 %v526
      %620 = vmatpush.bf16.msra.mxu0 %v522
      %621 = vmatpush.bf16.msra.mxu0 %v518
      %622 = vmatpush.bf16.msra.mxu0 %v514
      %623 = vmatmul.bf16.gmra.mxu0 %v546
      %v624 = vpop.f32.mrf.mxu0
      %v625 = vadd.f32 %v438, %v624
      %v626 = vpop.f32.mrf.mxu0
      %v627 = vadd.f32 %v438, %v626
      %628 = vmatmul.bf16.gmra.mxu0 %v549
      %v629 = vpop.f32.mrf.mxu0
      %v630 = vadd.f32 %v438, %v629
      %v631 = vpop.f32.mrf.mxu0
      %v632 = vadd.f32 %v438, %v631
      %633 = vmatmul.bf16.gmra.mxu0 %v552
      %v634 = vpop.f32.mrf.mxu0
      %v635 = vadd.f32 %v438, %v634
      %v636 = vpop.f32.mrf.mxu0
      %v637 = vadd.f32 %v438, %v636
      %638 = vmatmul.bf16.gmra.mxu0 %v555
      %v639 = vpop.f32.mrf.mxu0
      %v640 = vadd.f32 %v438, %v639
      %v641 = vpop.f32.mrf.mxu0
      %v642 = vadd.f32 %v438, %v641
      %643 = vdwg.mxu0
      %644 = vmatpush.bf16.msra.mxu0 0
      %645 = vmatpush.bf16.msra.mxu0 0
      %646 = vmatpush.bf16.msra.mxu0 0
      %647 = vmatpush.bf16.msra.mxu0 0
      %648 = vmatpush.bf16.msra.mxu0 %v527
      %649 = vmatpush.bf16.msra.mxu0 %v523
      %650 = vmatpush.bf16.msra.mxu0 %v519
      %651 = vmatpush.bf16.msra.mxu0 %v515
      %652 = vmatmul.bf16.gmra.mxu0 %v546
      %v653 = vpop.f32.mrf.mxu0
      %v654 = vadd.f32 %v439, %v653
      %v655 = vpop.f32.mrf.mxu0
      %v656 = vadd.f32 %v439, %v655
      %657 = vmatmul.bf16.gmra.mxu0 %v549
      %v658 = vpop.f32.mrf.mxu0
      %v659 = vadd.f32 %v439, %v658
      %v660 = vpop.f32.mrf.mxu0
      %v661 = vadd.f32 %v439, %v660
      %662 = vmatmul.bf16.gmra.mxu0 %v552
      %v663 = vpop.f32.mrf.mxu0
      %v664 = vadd.f32 %v439, %v663
      %v665 = vpop.f32.mrf.mxu0
      %v666 = vadd.f32 %v439, %v665
      %667 = vmatmul.bf16.gmra.mxu0 %v555
      %v668 = vpop.f32.mrf.mxu0
      %v669 = vadd.f32 %v439, %v668
      %v670 = vpop.f32.mrf.mxu0
      %v671 = vadd.f32 %v439, %v670
      %672 = vdwg.mxu0
      %v673 = vmax.f32 %v567, 0.0
      %v674 = vmax.f32 %v596, 0.0
      %v675 = vmax.f32 %v625, 0.0
      %v676 = vmax.f32 %v654, 0.0
      %v677 = vmax.f32 %v569, 0.0
      %v678 = vmax.f32 %v598, 0.0
      %v679 = vmax.f32 %v627, 0.0
      %v680 = vmax.f32 %v656, 0.0
      %v681 = vmax.f32 %v572, 0.0
      %v682 = vmax.f32 %v601, 0.0
      %v683 = vmax.f32 %v630, 0.0
      %v684 = vmax.f32 %v659, 0.0
      %v685 = vmax.f32 %v574, 0.0
      %v686 = vmax.f32 %v603, 0.0
      %v687 = vmax.f32 %v632, 0.0
      %v688 = vmax.f32 %v661, 0.0
      %v689 = vmax.f32 %v577, 0.0
      %v690 = vmax.f32 %v606, 0.0
      %v691 = vmax.f32 %v635, 0.0
      %v692 = vmax.f32 %v664, 0.0
      %v693 = vmax.f32 %v579, 0.0
      %v694 = vmax.f32 %v608, 0.0
      %v695 = vmax.f32 %v637, 0.0
      %v696 = vmax.f32 %v666, 0.0
      %v697 = vmax.f32 %v582, 0.0
      %v698 = vmax.f32 %v611, 0.0
      %v699 = vmax.f32 %v640, 0.0
      %v700 = vmax.f32 %v669, 0.0
      %v701 = vmax.f32 %v584, 0.0
      %v702 = vmax.f32 %v613, 0.0
      %v703 = vmax.f32 %v642, 0.0
      %v704 = vmax.f32 %v671, 0.0
      %v705 = vpack.c.bf16 %v677, %v673
      %v706 = vpack.c.bf16 %v678, %v674
      %v707 = vpack.c.bf16 %v679, %v675
      %v708 = vpack.c.bf16 %v680, %v676
      %v709 = vpack.c.bf16 %v685, %v681
      %v710 = vpack.c.bf16 %v686, %v682
      %v711 = vpack.c.bf16 %v687, %v683
      %v712 = vpack.c.bf16 %v688, %v684
      %v713 = vpack.c.bf16 %v693, %v689
      %v714 = vpack.c.bf16 %v694, %v690
      %v715 = vpack.c.bf16 %v695, %v691
      %v716 = vpack.c.bf16 %v696, %v692
      %v717 = vpack.c.bf16 %v701, %v697
      %v718 = vpack.c.bf16 %v702, %v698
      %v719 = vpack.c.bf16 %v703, %v699
      %v720 = vpack.c.bf16 %v704, %v700
      %v721 = vld [vmem:[%s3] sm:$0xff]
      %v722 = vld [vmem:[%s3 + $0x8] sm:$0xff]
      %v723 = vld [vmem:[%s3 + $0x10] sm:$0xff]
      %v724 = vld [vmem:[%s3 + $0x18] sm:$0xff]
      %v725 = vld [vmem:[%s3 + $0x20] sm:$0xff]
      %v726 = vld [vmem:[%s3 + $0x28] sm:$0xff]
      %v727 = vld [vmem:[%s3 + $0x30] sm:$0xff]
      %v728 = vld [vmem:[%s3 + $0x38] sm:$0xff]
      %v729 = vld [vmem:[%s3 + $0x40] sm:$0xff]
      %v730 = vld [vmem:[%s3 + $0x48] sm:$0xff]
      %v731 = vld [vmem:[%s3 + $0x50] sm:$0xff]
      %v732 = vld [vmem:[%s3 + $0x58] sm:$0xff]
      %v733 = vld [vmem:[%s3 + $0x60] sm:$0xff]
      %v734 = vld [vmem:[%s3 + $0x68] sm:$0xff]
      %v735 = vld [vmem:[%s3 + $0x70] sm:$0xff]
      %v736 = vld [vmem:[%s3 + $0x78] sm:$0xff]
      %v737 = vld [vmem:[%s3 + $0x80] sm:$0xff]
      %v738 = vld [vmem:[%s3 + $0x88] sm:$0xff]
      %v739 = vld [vmem:[%s3 + $0x90] sm:$0xff]
      %v740 = vld [vmem:[%s3 + $0x98] sm:$0xff]
      %v741 = vld [vmem:[%s3 + $0xa0] sm:$0xff]
      %v742 = vld [vmem:[%s3 + $0xa8] sm:$0xff]
      %v743 = vld [vmem:[%s3 + $0xb0] sm:$0xff]
      %v744 = vld [vmem:[%s3 + $0xb8] sm:$0xff]
      %v745 = vld [vmem:[%s3 + $0xc0] sm:$0xff]
      %v746 = vld [vmem:[%s3 + $0xc8] sm:$0xff]
      %v747 = vld [vmem:[%s3 + $0xd0] sm:$0xff]
      %v748 = vld [vmem:[%s3 + $0xd8] sm:$0xff]
      %v749 = vld [vmem:[%s3 + $0xe0] sm:$0xff]
      %v750 = vld [vmem:[%s3 + $0xe8] sm:$0xff]
      %v751 = vld [vmem:[%s3 + $0xf0] sm:$0xff]
      %v752 = vld [vmem:[%s3 + $0xf8] sm:$0xff]
      %v753 = vld [vmem:[%s3 + $0x100] sm:$0xff]
      %v754 = vld [vmem:[%s3 + $0x108] sm:$0xff]
      %v755 = vld [vmem:[%s3 + $0x110] sm:$0xff]
      %v756 = vld [vmem:[%s3 + $0x118] sm:$0xff]
      %v757 = vld [vmem:[%s3 + $0x120] sm:$0xff]
      %v758 = vld [vmem:[%s3 + $0x128] sm:$0xff]
      %v759 = vld [vmem:[%s3 + $0x130] sm:$0xff]
      %v760 = vld [vmem:[%s3 + $0x138] sm:$0xff]
      %v761 = vld [vmem:[%s3 + $0x140] sm:$0xff]
      %v762 = vld [vmem:[%s3 + $0x148] sm:$0xff]
      %v763 = vld [vmem:[%s3 + $0x150] sm:$0xff]
      %v764 = vld [vmem:[%s3 + $0x158] sm:$0xff]
      %v765 = vld [vmem:[%s3 + $0x160] sm:$0xff]
      %v766 = vld [vmem:[%s3 + $0x168] sm:$0xff]
      %v767 = vld [vmem:[%s3 + $0x170] sm:$0xff]
      %v768 = vld [vmem:[%s3 + $0x178] sm:$0xff]
      %v769 = vld [vmem:[%s3 + $0x180] sm:$0xff]
      %v770 = vld [vmem:[%s3 + $0x188] sm:$0xff]
      %v771 = vld [vmem:[%s3 + $0x190] sm:$0xff]
      %v772 = vld [vmem:[%s3 + $0x198] sm:$0xff]
      %v773 = vld [vmem:[%s3 + $0x1a0] sm:$0xff]
      %v774 = vld [vmem:[%s3 + $0x1a8] sm:$0xff]
      %v775 = vld [vmem:[%s3 + $0x1b0] sm:$0xff]
      %v776 = vld [vmem:[%s3 + $0x1b8] sm:$0xff]
      %v777 = vld [vmem:[%s3 + $0x1c0] sm:$0xff]
      %v778 = vld [vmem:[%s3 + $0x1c8] sm:$0xff]
      %v779 = vld [vmem:[%s3 + $0x1d0] sm:$0xff]
      %v780 = vld [vmem:[%s3 + $0x1d8] sm:$0xff]
      %v781 = vld [vmem:[%s3 + $0x1e0] sm:$0xff]
      %v782 = vld [vmem:[%s3 + $0x1e8] sm:$0xff]
      %v783 = vld [vmem:[%s3 + $0x1f0] sm:$0xff]
      %v784 = vld [vmem:[%s3 + $0x1f8] sm:$0xff]
      %v785 = vld [vmem:[%s4] sm:$0x3]
      %v787 = vperm.slane %v785, 0
      %v788 = vperm.slane %v785, 1
      %v855 = vunpack.c.l.b16 %v721
      %v856 = vunpack.c.h.b16 %v721
      %v857 = vunpack.c.l.b16 %v722
      %v858 = vunpack.c.h.b16 %v722
      %v859 = vunpack.c.l.b16 %v723
      %v860 = vunpack.c.h.b16 %v723
      %v861 = vunpack.c.l.b16 %v724
      %v862 = vunpack.c.h.b16 %v724
      %v863 = vunpack.c.l.b16 %v725
      %v864 = vunpack.c.h.b16 %v725
      %v865 = vunpack.c.l.b16 %v726
      %v866 = vunpack.c.h.b16 %v726
      %v867 = vunpack.c.l.b16 %v727
      %v868 = vunpack.c.h.b16 %v727
      %v869 = vunpack.c.l.b16 %v728
      %v870 = vunpack.c.h.b16 %v728
      %v871 = vunpack.c.l.b16 %v729
      %v872 = vunpack.c.h.b16 %v729
      %v873 = vunpack.c.l.b16 %v730
      %v874 = vunpack.c.h.b16 %v730
      %v875 = vunpack.c.l.b16 %v731
      %v876 = vunpack.c.h.b16 %v731
      %v877 = vunpack.c.l.b16 %v732
      %v878 = vunpack.c.h.b16 %v732
      %v879 = vunpack.c.l.b16 %v733
      %v880 = vunpack.c.h.b16 %v733
      %v881 = vunpack.c.l.b16 %v734
      %v882 = vunpack.c.h.b16 %v734
      %v883 = vunpack.c.l.b16 %v735
      %v884 = vunpack.c.h.b16 %v735
      %v885 = vunpack.c.l.b16 %v736
      %v886 = vunpack.c.h.b16 %v736
      %v887 = vunpack.c.l.b16 %v737
      %v888 = vunpack.c.h.b16 %v737
      %v889 = vunpack.c.l.b16 %v738
      %v890 = vunpack.c.h.b16 %v738
      %v891 = vunpack.c.l.b16 %v739
      %v892 = vunpack.c.h.b16 %v739
      %v893 = vunpack.c.l.b16 %v740
      %v894 = vunpack.c.h.b16 %v740
      %v895 = vunpack.c.l.b16 %v741
      %v896 = vunpack.c.h.b16 %v741
      %v897 = vunpack.c.l.b16 %v742
      %v898 = vunpack.c.h.b16 %v742
      %v899 = vunpack.c.l.b16 %v743
      %v900 = vunpack.c.h.b16 %v743
      %v901 = vunpack.c.l.b16 %v744
      %v902 = vunpack.c.h.b16 %v744
      %v903 = vunpack.c.l.b16 %v745
      %v904 = vunpack.c.h.b16 %v745
      %v905 = vunpack.c.l.b16 %v746
      %v906 = vunpack.c.h.b16 %v746
      %v907 = vunpack.c.l.b16 %v747
      %v908 = vunpack.c.h.b16 %v747
      %v909 = vunpack.c.l.b16 %v748
      %v910 = vunpack.c.h.b16 %v748
      %v911 = vunpack.c.l.b16 %v749
      %v912 = vunpack.c.h.b16 %v749
      %v913 = vunpack.c.l.b16 %v750
      %v914 = vunpack.c.h.b16 %v750
      %v915 = vunpack.c.l.b16 %v751
      %v916 = vunpack.c.h.b16 %v751
      %v917 = vunpack.c.l.b16 %v752
      %v918 = vunpack.c.h.b16 %v752
      %v919 = vunpack.c.l.b16 %v753
      %v920 = vunpack.c.h.b16 %v753
      %v921 = vunpack.c.l.b16 %v754
      %v922 = vunpack.c.h.b16 %v754
      %v923 = vunpack.c.l.b16 %v755
      %v924 = vunpack.c.h.b16 %v755
      %v925 = vunpack.c.l.b16 %v756
      %v926 = vunpack.c.h.b16 %v756
      %v927 = vunpack.c.l.b16 %v757
      %v928 = vunpack.c.h.b16 %v757
      %v929 = vunpack.c.l.b16 %v758
      %v930 = vunpack.c.h.b16 %v758
      %v931 = vunpack.c.l.b16 %v759
      %v932 = vunpack.c.h.b16 %v759
      %v933 = vunpack.c.l.b16 %v760
      %v934 = vunpack.c.h.b16 %v760
      %v935 = vunpack.c.l.b16 %v761
      %v936 = vunpack.c.h.b16 %v761
      %v937 = vunpack.c.l.b16 %v762
      %v938 = vunpack.c.h.b16 %v762
      %v939 = vunpack.c.l.b16 %v763
      %v940 = vunpack.c.h.b16 %v763
      %v941 = vunpack.c.l.b16 %v764
      %v942 = vunpack.c.h.b16 %v764
      %v943 = vunpack.c.l.b16 %v765
      %v944 = vunpack.c.h.b16 %v765
      %v945 = vunpack.c.l.b16 %v766
      %v946 = vunpack.c.h.b16 %v766
      %v947 = vunpack.c.l.b16 %v767
      %v948 = vunpack.c.h.b16 %v767
      %v949 = vunpack.c.l.b16 %v768
      %v950 = vunpack.c.h.b16 %v768
      %v951 = vunpack.c.l.b16 %v769
      %v952 = vunpack.c.h.b16 %v769
      %v953 = vunpack.c.l.b16 %v770
      %v954 = vunpack.c.h.b16 %v770
      %v955 = vunpack.c.l.b16 %v771
      %v956 = vunpack.c.h.b16 %v771
      %v957 = vunpack.c.l.b16 %v772
      %v958 = vunpack.c.h.b16 %v772
      %v959 = vunpack.c.l.b16 %v773
      %v960 = vunpack.c.h.b16 %v773
      %v961 = vunpack.c.l.b16 %v774
      %v962 = vunpack.c.h.b16 %v774
      %v963 = vunpack.c.l.b16 %v775
      %v964 = vunpack.c.h.b16 %v775
      %v965 = vunpack.c.l.b16 %v776
      %v966 = vunpack.c.h.b16 %v776
      %v967 = vunpack.c.l.b16 %v777
      %v968 = vunpack.c.h.b16 %v777
      %v969 = vunpack.c.l.b16 %v778
      %v970 = vunpack.c.h.b16 %v778
      %v971 = vunpack.c.l.b16 %v779
      %v972 = vunpack.c.h.b16 %v779
      %v973 = vunpack.c.l.b16 %v780
      %v974 = vunpack.c.h.b16 %v780
      %v975 = vunpack.c.l.b16 %v781
      %v976 = vunpack.c.h.b16 %v781
      %v977 = vunpack.c.l.b16 %v782
      %v978 = vunpack.c.h.b16 %v782
      %v979 = vunpack.c.l.b16 %v783
      %v980 = vunpack.c.h.b16 %v783
      %v981 = vunpack.c.l.b16 %v784
      %v982 = vunpack.c.h.b16 %v784
      %v983 = vpack.c.b16 %v857, %v855
      %v984 = vpack.c.b16 %v858, %v856
      %v985 = vpack.c.b16 %v861, %v859
      %v986 = vpack.c.b16 %v862, %v860
      %v987 = vpack.c.b16 %v865, %v863
      %v988 = vpack.c.b16 %v866, %v864
      %v989 = vpack.c.b16 %v869, %v867
      %v990 = vpack.c.b16 %v870, %v868
      %v991 = vpack.c.b16 %v873, %v871
      %v992 = vpack.c.b16 %v874, %v872
      %v993 = vpack.c.b16 %v877, %v875
      %v994 = vpack.c.b16 %v878, %v876
      %v995 = vpack.c.b16 %v881, %v879
      %v996 = vpack.c.b16 %v882, %v880
      %v997 = vpack.c.b16 %v885, %v883
      %v998 = vpack.c.b16 %v886, %v884
      %v999 = vpack.c.b16 %v889, %v887
      %v1000 = vpack.c.b16 %v890, %v888
      %v1001 = vpack.c.b16 %v893, %v891
      %v1002 = vpack.c.b16 %v894, %v892
      %v1003 = vpack.c.b16 %v897, %v895
      %v1004 = vpack.c.b16 %v898, %v896
      %v1005 = vpack.c.b16 %v901, %v899
      %v1006 = vpack.c.b16 %v902, %v900
      %v1007 = vpack.c.b16 %v905, %v903
      %v1008 = vpack.c.b16 %v906, %v904
      %v1009 = vpack.c.b16 %v909, %v907
      %v1010 = vpack.c.b16 %v910, %v908
      %v1011 = vpack.c.b16 %v913, %v911
      %v1012 = vpack.c.b16 %v914, %v912
      %v1013 = vpack.c.b16 %v917, %v915
      %v1014 = vpack.c.b16 %v918, %v916
      %v1015 = vpack.c.b16 %v921, %v919
      %v1016 = vpack.c.b16 %v922, %v920
      %v1017 = vpack.c.b16 %v925, %v923
      %v1018 = vpack.c.b16 %v926, %v924
      %v1019 = vpack.c.b16 %v929, %v927
      %v1020 = vpack.c.b16 %v930, %v928
      %v1021 = vpack.c.b16 %v933, %v931
      %v1022 = vpack.c.b16 %v934, %v932
      %v1023 = vpack.c.b16 %v937, %v935
      %v1024 = vpack.c.b16 %v938, %v936
      %v1025 = vpack.c.b16 %v941, %v939
      %v1026 = vpack.c.b16 %v942, %v940
      %v1027 = vpack.c.b16 %v945, %v943
      %v1028 = vpack.c.b16 %v946, %v944
      %v1029 = vpack.c.b16 %v949, %v947
      %v1030 = vpack.c.b16 %v950, %v948
      %v1031 = vpack.c.b16 %v953, %v951
      %v1032 = vpack.c.b16 %v954, %v952
      %v1033 = vpack.c.b16 %v957, %v955
      %v1034 = vpack.c.b16 %v958, %v956
      %v1035 = vpack.c.b16 %v961, %v959
      %v1036 = vpack.c.b16 %v962, %v960
      %v1037 = vpack.c.b16 %v965, %v963
      %v1038 = vpack.c.b16 %v966, %v964
      %v1039 = vpack.c.b16 %v969, %v967
      %v1040 = vpack.c.b16 %v970, %v968
      %v1041 = vpack.c.b16 %v973, %v971
      %v1042 = vpack.c.b16 %v974, %v972
      %v1043 = vpack.c.b16 %v977, %v975
      %v1044 = vpack.c.b16 %v978, %v976
      %v1045 = vpack.c.b16 %v981, %v979
      %v1046 = vpack.c.b16 %v982, %v980
      %1111 = vmatpush.bf16.msra.mxu0 %v997
      %1112 = vmatpush.bf16.msra.mxu0 %v995
      %1113 = vmatpush.bf16.msra.mxu0 %v993
      %1114 = vmatpush.bf16.msra.mxu0 %v991
      %1115 = vmatpush.bf16.msra.mxu0 %v989
      %1116 = vmatpush.bf16.msra.mxu0 %v987
      %1117 = vmatpush.bf16.msra.mxu0 %v985
      %1118 = vmatpush.bf16.msra.mxu0 %v983
      %1119 = vmatmul.bf16.gmra.mxu0 %v705
      %v1120 = vpop.f32.mrf.mxu0
      %v1121 = vadd.f32 %v787, %v1120
      %v1122 = vpop.f32.mrf.mxu0
      %v1123 = vadd.f32 %v787, %v1122
      %1124 = vmatmul.bf16.gmra.mxu0 %v709
      %v1125 = vpop.f32.mrf.mxu0
      %v1126 = vadd.f32 %v787, %v1125
      %v1127 = vpop.f32.mrf.mxu0
      %v1128 = vadd.f32 %v787, %v1127
      %1129 = vmatmul.bf16.gmra.mxu0 %v713
      %v1130 = vpop.f32.mrf.mxu0
      %v1131 = vadd.f32 %v787, %v1130
      %v1132 = vpop.f32.mrf.mxu0
      %v1133 = vadd.f32 %v787, %v1132
      %1134 = vmatmul.bf16.gmra.mxu0 %v717
      %v1135 = vpop.f32.mrf.mxu0
      %v1136 = vadd.f32 %v787, %v1135
      %v1137 = vpop.f32.mrf.mxu0
      %v1138 = vadd.f32 %v787, %v1137
      %1139 = vdwg.mxu0
      %1140 = vmatpush.bf16.msra.mxu0 %v1013
      %1141 = vmatpush.bf16.msra.mxu0 %v1011
      %1142 = vmatpush.bf16.msra.mxu0 %v1009
      %1143 = vmatpush.bf16.msra.mxu0 %v1007
      %1144 = vmatpush.bf16.msra.mxu0 %v1005
      %1145 = vmatpush.bf16.msra.mxu0 %v1003
      %1146 = vmatpush.bf16.msra.mxu0 %v1001
      %1147 = vmatpush.bf16.msra.mxu0 %v999
      %1148 = vmatmul.bf16.gmra.mxu0 %v706
      %v1149 = vpop.f32.mrf.mxu0
      %v1150 = vadd.f32 %v1121, %v1149
      %v1151 = vpop.f32.mrf.mxu0
      %v1152 = vadd.f32 %v1123, %v1151
      %1153 = vmatmul.bf16.gmra.mxu0 %v710
      %v1154 = vpop.f32.mrf.mxu0
      %v1155 = vadd.f32 %v1126, %v1154
      %v1156 = vpop.f32.mrf.mxu0
      %v1157 = vadd.f32 %v1128, %v1156
      %1158 = vmatmul.bf16.gmra.mxu0 %v714
      %v1159 = vpop.f32.mrf.mxu0
      %v1160 = vadd.f32 %v1131, %v1159
      %v1161 = vpop.f32.mrf.mxu0
      %v1162 = vadd.f32 %v1133, %v1161
      %1163 = vmatmul.bf16.gmra.mxu0 %v718
      %v1164 = vpop.f32.mrf.mxu0
      %v1165 = vadd.f32 %v1136, %v1164
      %v1166 = vpop.f32.mrf.mxu0
      %v1167 = vadd.f32 %v1138, %v1166
      %1168 = vdwg.mxu0
      %1169 = vmatpush.bf16.msra.mxu0 %v1029
      %1170 = vmatpush.bf16.msra.mxu0 %v1027
      %1171 = vmatpush.bf16.msra.mxu0 %v1025
      %1172 = vmatpush.bf16.msra.mxu0 %v1023
      %1173 = vmatpush.bf16.msra.mxu0 %v1021
      %1174 = vmatpush.bf16.msra.mxu0 %v1019
      %1175 = vmatpush.bf16.msra.mxu0 %v1017
      %1176 = vmatpush.bf16.msra.mxu0 %v1015
      %1177 = vmatmul.bf16.gmra.mxu0 %v707
      %v1178 = vpop.f32.mrf.mxu0
      %v1179 = vadd.f32 %v1150, %v1178
      %v1180 = vpop.f32.mrf.mxu0
      %v1181 = vadd.f32 %v1152, %v1180
      %1182 = vmatmul.bf16.gmra.mxu0 %v711
      %v1183 = vpop.f32.mrf.mxu0
      %v1184 = vadd.f32 %v1155, %v1183
      %v1185 = vpop.f32.mrf.mxu0
      %v1186 = vadd.f32 %v1157, %v1185
      %1187 = vmatmul.bf16.gmra.mxu0 %v715
      %v1188 = vpop.f32.mrf.mxu0
      %v1189 = vadd.f32 %v1160, %v1188
      %v1190 = vpop.f32.mrf.mxu0
      %v1191 = vadd.f32 %v1162, %v1190
      %1192 = vmatmul.bf16.gmra.mxu0 %v719
      %v1193 = vpop.f32.mrf.mxu0
      %v1194 = vadd.f32 %v1165, %v1193
      %v1195 = vpop.f32.mrf.mxu0
      %v1196 = vadd.f32 %v1167, %v1195
      %1197 = vdwg.mxu0
      %1198 = vmatpush.bf16.msra.mxu0 %v1045
      %1199 = vmatpush.bf16.msra.mxu0 %v1043
      %1200 = vmatpush.bf16.msra.mxu0 %v1041
      %1201 = vmatpush.bf16.msra.mxu0 %v1039
      %1202 = vmatpush.bf16.msra.mxu0 %v1037
      %1203 = vmatpush.bf16.msra.mxu0 %v1035
      %1204 = vmatpush.bf16.msra.mxu0 %v1033
      %1205 = vmatpush.bf16.msra.mxu0 %v1031
      %1206 = vmatmul.bf16.gmra.mxu0 %v708
      %v1207 = vpop.f32.mrf.mxu0
      %v1208 = vadd.f32 %v1179, %v1207
      %v1209 = vpop.f32.mrf.mxu0
      %v1210 = vadd.f32 %v1181, %v1209
      %1211 = vmatmul.bf16.gmra.mxu0 %v712
      %v1212 = vpop.f32.mrf.mxu0
      %v1213 = vadd.f32 %v1184, %v1212
      %v1214 = vpop.f32.mrf.mxu0
      %v1215 = vadd.f32 %v1186, %v1214
      %1216 = vmatmul.bf16.gmra.mxu0 %v716
      %v1217 = vpop.f32.mrf.mxu0
      %v1218 = vadd.f32 %v1189, %v1217
      %v1219 = vpop.f32.mrf.mxu0
      %v1220 = vadd.f32 %v1191, %v1219
      %1221 = vmatmul.bf16.gmra.mxu0 %v720
      %v1222 = vpop.f32.mrf.mxu0
      %v1223 = vadd.f32 %v1194, %v1222
      %v1224 = vpop.f32.mrf.mxu0
      %v1225 = vadd.f32 %v1196, %v1224
      %1226 = vdwg.mxu0
      %1227 = vmatpush.bf16.msra.mxu0 %v998
      %1228 = vmatpush.bf16.msra.mxu0 %v996
      %1229 = vmatpush.bf16.msra.mxu0 %v994
      %1230 = vmatpush.bf16.msra.mxu0 %v992
      %1231 = vmatpush.bf16.msra.mxu0 %v990
      %1232 = vmatpush.bf16.msra.mxu0 %v988
      %1233 = vmatpush.bf16.msra.mxu0 %v986
      %1234 = vmatpush.bf16.msra.mxu0 %v984
      %1235 = vmatmul.bf16.gmra.mxu0 %v705
      %v1236 = vpop.f32.mrf.mxu0
      %v1237 = vadd.f32 %v788, %v1236
      %v1238 = vpop.f32.mrf.mxu0
      %v1239 = vadd.f32 %v788, %v1238
      %1240 = vmatmul.bf16.gmra.mxu0 %v709
      %v1241 = vpop.f32.mrf.mxu0
      %v1242 = vadd.f32 %v788, %v1241
      %v1243 = vpop.f32.mrf.mxu0
      %v1244 = vadd.f32 %v788, %v1243
      %1245 = vmatmul.bf16.gmra.mxu0 %v713
      %v1246 = vpop.f32.mrf.mxu0
      %v1247 = vadd.f32 %v788, %v1246
      %v1248 = vpop.f32.mrf.mxu0
      %v1249 = vadd.f32 %v788, %v1248
      %1250 = vmatmul.bf16.gmra.mxu0 %v717
      %v1251 = vpop.f32.mrf.mxu0
      %v1252 = vadd.f32 %v788, %v1251
      %v1253 = vpop.f32.mrf.mxu0
      %v1254 = vadd.f32 %v788, %v1253
      %1255 = vdwg.mxu0
      %1256 = vmatpush.bf16.msra.mxu0 %v1014
      %1257 = vmatpush.bf16.msra.mxu0 %v1012
      %1258 = vmatpush.bf16.msra.mxu0 %v1010
      %1259 = vmatpush.bf16.msra.mxu0 %v1008
      %1260 = vmatpush.bf16.msra.mxu0 %v1006
      %1261 = vmatpush.bf16.msra.mxu0 %v1004
      %1262 = vmatpush.bf16.msra.mxu0 %v1002
      %1263 = vmatpush.bf16.msra.mxu0 %v1000
      %1264 = vmatmul.bf16.gmra.mxu0 %v706
      %v1265 = vpop.f32.mrf.mxu0
      %v1266 = vadd.f32 %v1237, %v1265
      %v1267 = vpop.f32.mrf.mxu0
      %v1268 = vadd.f32 %v1239, %v1267
      %1269 = vmatmul.bf16.gmra.mxu0 %v710
      %v1270 = vpop.f32.mrf.mxu0
      %v1271 = vadd.f32 %v1242, %v1270
      %v1272 = vpop.f32.mrf.mxu0
      %v1273 = vadd.f32 %v1244, %v1272
      %1274 = vmatmul.bf16.gmra.mxu0 %v714
      %v1275 = vpop.f32.mrf.mxu0
      %v1276 = vadd.f32 %v1247, %v1275
      %v1277 = vpop.f32.mrf.mxu0
      %v1278 = vadd.f32 %v1249, %v1277
      %1279 = vmatmul.bf16.gmra.mxu0 %v718
      %v1280 = vpop.f32.mrf.mxu0
      %v1281 = vadd.f32 %v1252, %v1280
      %v1282 = vpop.f32.mrf.mxu0
      %v1283 = vadd.f32 %v1254, %v1282
      %1284 = vdwg.mxu0
      %1285 = vmatpush.bf16.msra.mxu0 %v1030
      %1286 = vmatpush.bf16.msra.mxu0 %v1028
      %1287 = vmatpush.bf16.msra.mxu0 %v1026
      %1288 = vmatpush.bf16.msra.mxu0 %v1024
      %1289 = vmatpush.bf16.msra.mxu0 %v1022
      %1290 = vmatpush.bf16.msra.mxu0 %v1020
      %1291 = vmatpush.bf16.msra.mxu0 %v1018
      %1292 = vmatpush.bf16.msra.mxu0 %v1016
      %1293 = vmatmul.bf16.gmra.mxu0 %v707
      %v1294 = vpop.f32.mrf.mxu0
      %v1295 = vadd.f32 %v1266, %v1294
      %v1296 = vpop.f32.mrf.mxu0
      %v1297 = vadd.f32 %v1268, %v1296
      %1298 = vmatmul.bf16.gmra.mxu0 %v711
      %v1299 = vpop.f32.mrf.mxu0
      %v1300 = vadd.f32 %v1271, %v1299
      %v1301 = vpop.f32.mrf.mxu0
      %v1302 = vadd.f32 %v1273, %v1301
      %1303 = vmatmul.bf16.gmra.mxu0 %v715
      %v1304 = vpop.f32.mrf.mxu0
      %v1305 = vadd.f32 %v1276, %v1304
      %v1306 = vpop.f32.mrf.mxu0
      %v1307 = vadd.f32 %v1278, %v1306
      %1308 = vmatmul.bf16.gmra.mxu0 %v719
      %v1309 = vpop.f32.mrf.mxu0
      %v1310 = vadd.f32 %v1281, %v1309
      %v1311 = vpop.f32.mrf.mxu0
      %v1312 = vadd.f32 %v1283, %v1311
      %1313 = vdwg.mxu0
      %1314 = vmatpush.bf16.msra.mxu0 %v1046
      %1315 = vmatpush.bf16.msra.mxu0 %v1044
      %1316 = vmatpush.bf16.msra.mxu0 %v1042
      %1317 = vmatpush.bf16.msra.mxu0 %v1040
      %1318 = vmatpush.bf16.msra.mxu0 %v1038
      %1319 = vmatpush.bf16.msra.mxu0 %v1036
      %1320 = vmatpush.bf16.msra.mxu0 %v1034
      %1321 = vmatpush.bf16.msra.mxu0 %v1032
      %1322 = vmatmul.bf16.gmra.mxu0 %v708
      %v1323 = vpop.f32.mrf.mxu0
      %v1324 = vadd.f32 %v1295, %v1323
      %v1325 = vpop.f32.mrf.mxu0
      %v1326 = vadd.f32 %v1297, %v1325
      %1327 = vmatmul.bf16.gmra.mxu0 %v712
      %v1328 = vpop.f32.mrf.mxu0
      %v1329 = vadd.f32 %v1300, %v1328
      %v1330 = vpop.f32.mrf.mxu0
      %v1331 = vadd.f32 %v1302, %v1330
      %1332 = vmatmul.bf16.gmra.mxu0 %v716
      %v1333 = vpop.f32.mrf.mxu0
      %v1334 = vadd.f32 %v1305, %v1333
      %v1335 = vpop.f32.mrf.mxu0
      %v1336 = vadd.f32 %v1307, %v1335
      %1337 = vmatmul.bf16.gmra.mxu0 %v720
      %v1338 = vpop.f32.mrf.mxu0
      %v1339 = vadd.f32 %v1310, %v1338
      %v1340 = vpop.f32.mrf.mxu0
      %v1341 = vadd.f32 %v1312, %v1340
      %1342 = vdwg.mxu0
      %v1343 = vmax.f32 %v1208, 0.0
      %v1344 = vmax.f32 %v1324, 0.0
      %v1345 = vmax.f32 %v1210, 0.0
      %v1346 = vmax.f32 %v1326, 0.0
      %v1347 = vmax.f32 %v1213, 0.0
      %v1348 = vmax.f32 %v1329, 0.0
      %v1349 = vmax.f32 %v1215, 0.0
      %v1350 = vmax.f32 %v1331, 0.0
      %v1351 = vmax.f32 %v1218, 0.0
      %v1352 = vmax.f32 %v1334, 0.0
      %v1353 = vmax.f32 %v1220, 0.0
      %v1354 = vmax.f32 %v1336, 0.0
      %v1355 = vmax.f32 %v1223, 0.0
      %v1356 = vmax.f32 %v1339, 0.0
      %v1357 = vmax.f32 %v1225, 0.0
      %v1358 = vmax.f32 %v1341, 0.0
      %v1359 = vpack.c.bf16 %v1345, %v1343
      %v1360 = vpack.c.bf16 %v1346, %v1344
      %v1361 = vpack.c.bf16 %v1349, %v1347
      %v1362 = vpack.c.bf16 %v1350, %v1348
      %v1363 = vpack.c.bf16 %v1353, %v1351
      %v1364 = vpack.c.bf16 %v1354, %v1352
      %v1365 = vpack.c.bf16 %v1357, %v1355
      %v1366 = vpack.c.bf16 %v1358, %v1356
      %v1367 = vld [vmem:[%s5] sm:$0xf]
      %v1368 = vld [vmem:[%s5 + $0x4] sm:$0xf]
      %v1369 = vld [vmem:[%s5 + $0x8] sm:$0xf]
      %v1370 = vld [vmem:[%s5 + $0xc] sm:$0xf]
      %v1371 = vld [vmem:[%s5 + $0x10] sm:$0xf]
      %v1372 = vld [vmem:[%s5 + $0x14] sm:$0xf]
      %v1373 = vld [vmem:[%s5 + $0x18] sm:$0xf]
      %v1374 = vld [vmem:[%s5 + $0x1c] sm:$0xf]
      %v1375 = vld [vmem:[%s5 + $0x20] sm:$0xf]
      %v1376 = vld [vmem:[%s5 + $0x24] sm:$0xf]
      %v1377 = vld [vmem:[%s5 + $0x28] sm:$0xf]
      %v1378 = vld [vmem:[%s5 + $0x2c] sm:$0xf]
      %v1379 = vld [vmem:[%s5 + $0x30] sm:$0xf]
      %v1380 = vld [vmem:[%s5 + $0x34] sm:$0xf]
      %v1381 = vld [vmem:[%s5 + $0x38] sm:$0xf]
      %v1382 = vld [vmem:[%s5 + $0x3c] sm:$0xf]
      %v1383 = vld [vmem:[%s5 + $0x40] sm:$0xf]
      %v1384 = vld [vmem:[%s5 + $0x44] sm:$0xf]
      %v1385 = vld [vmem:[%s5 + $0x48] sm:$0xf]
      %v1386 = vld [vmem:[%s5 + $0x4c] sm:$0xf]
      %v1387 = vld [vmem:[%s5 + $0x50] sm:$0xf]
      %v1388 = vld [vmem:[%s5 + $0x54] sm:$0xf]
      %v1389 = vld [vmem:[%s5 + $0x58] sm:$0xf]
      %v1390 = vld [vmem:[%s5 + $0x5c] sm:$0xf]
      %v1391 = vld [vmem:[%s5 + $0x60] sm:$0xf]
      %v1392 = vld [vmem:[%s5 + $0x64] sm:$0xf]
      %v1393 = vld [vmem:[%s5 + $0x68] sm:$0xf]
      %v1394 = vld [vmem:[%s5 + $0x6c] sm:$0xf]
      %v1395 = vld [vmem:[%s5 + $0x70] sm:$0xf]
      %v1396 = vld [vmem:[%s5 + $0x74] sm:$0xf]
      %v1397 = vld [vmem:[%s5 + $0x78] sm:$0xf]
      %v1398 = vld [vmem:[%s5 + $0x7c] sm:$0xf]
      %v1399 = vld [vmem:[%s6] sm:$0x1]
      %v1401 = vperm.slane %v1399, 0
      %v1435 = vunpack.c.l.b16 %v1367
      %v1436 = vunpack.c.l.b16 %v1368
      %v1437 = vunpack.c.l.b16 %v1369
      %v1438 = vunpack.c.l.b16 %v1370
      %v1439 = vunpack.c.l.b16 %v1371
      %v1440 = vunpack.c.l.b16 %v1372
      %v1441 = vunpack.c.l.b16 %v1373
      %v1442 = vunpack.c.l.b16 %v1374
      %v1443 = vunpack.c.l.b16 %v1375
      %v1444 = vunpack.c.l.b16 %v1376
      %v1445 = vunpack.c.l.b16 %v1377
      %v1446 = vunpack.c.l.b16 %v1378
      %v1447 = vunpack.c.l.b16 %v1379
      %v1448 = vunpack.c.l.b16 %v1380
      %v1449 = vunpack.c.l.b16 %v1381
      %v1450 = vunpack.c.l.b16 %v1382
      %v1451 = vunpack.c.l.b16 %v1383
      %v1452 = vunpack.c.l.b16 %v1384
      %v1453 = vunpack.c.l.b16 %v1385
      %v1454 = vunpack.c.l.b16 %v1386
      %v1455 = vunpack.c.l.b16 %v1387
      %v1456 = vunpack.c.l.b16 %v1388
      %v1457 = vunpack.c.l.b16 %v1389
      %v1458 = vunpack.c.l.b16 %v1390
      %v1459 = vunpack.c.l.b16 %v1391
      %v1460 = vunpack.c.l.b16 %v1392
      %v1461 = vunpack.c.l.b16 %v1393
      %v1462 = vunpack.c.l.b16 %v1394
      %v1463 = vunpack.c.l.b16 %v1395
      %v1464 = vunpack.c.l.b16 %v1396
      %v1465 = vunpack.c.l.b16 %v1397
      %v1466 = vunpack.c.l.b16 %v1398
      %v1467 = vpack.c.b16 %v1436, %v1435
      %v1468 = vpack.c.b16 %v1438, %v1437
      %v1469 = vpack.c.b16 %v1440, %v1439
      %v1470 = vpack.c.b16 %v1442, %v1441
      %v1471 = vpack.c.b16 %v1444, %v1443
      %v1472 = vpack.c.b16 %v1446, %v1445
      %v1473 = vpack.c.b16 %v1448, %v1447
      %v1474 = vpack.c.b16 %v1450, %v1449
      %v1475 = vpack.c.b16 %v1452, %v1451
      %v1476 = vpack.c.b16 %v1454, %v1453
      %v1477 = vpack.c.b16 %v1456, %v1455
      %v1478 = vpack.c.b16 %v1458, %v1457
      %v1479 = vpack.c.b16 %v1460, %v1459
      %v1480 = vpack.c.b16 %v1462, %v1461
      %v1481 = vpack.c.b16 %v1464, %v1463
      %v1482 = vpack.c.b16 %v1466, %v1465
      %1499 = vmatpush.bf16.msra.mxu0 %v1474
      %1500 = vmatpush.bf16.msra.mxu0 %v1473
      %1501 = vmatpush.bf16.msra.mxu0 %v1472
      %1502 = vmatpush.bf16.msra.mxu0 %v1471
      %1503 = vmatpush.bf16.msra.mxu0 %v1470
      %1504 = vmatpush.bf16.msra.mxu0 %v1469
      %1505 = vmatpush.bf16.msra.mxu0 %v1468
      %1506 = vmatpush.bf16.msra.mxu0 %v1467
      %1507 = vmatmul.bf16.gmra.mxu0 %v1359
      %v1508 = vpop.f32.mrf.mxu0
      %v1509 = vadd.f32 %v1401, %v1508
      %v1510 = vpop.f32.mrf.mxu0
      %v1511 = vadd.f32 %v1401, %v1510
      %1512 = vmatmul.bf16.gmra.mxu0 %v1361
      %v1513 = vpop.f32.mrf.mxu0
      %v1514 = vadd.f32 %v1401, %v1513
      %v1515 = vpop.f32.mrf.mxu0
      %v1516 = vadd.f32 %v1401, %v1515
      %1517 = vmatmul.bf16.gmra.mxu0 %v1363
      %v1518 = vpop.f32.mrf.mxu0
      %v1519 = vadd.f32 %v1401, %v1518
      %v1520 = vpop.f32.mrf.mxu0
      %v1521 = vadd.f32 %v1401, %v1520
      %1522 = vmatmul.bf16.gmra.mxu0 %v1365
      %v1523 = vpop.f32.mrf.mxu0
      %v1524 = vadd.f32 %v1401, %v1523
      %v1525 = vpop.f32.mrf.mxu0
      %v1526 = vadd.f32 %v1401, %v1525
      %1527 = vdwg.mxu0
      %1528 = vmatpush.bf16.msra.mxu0 %v1482
      %1529 = vmatpush.bf16.msra.mxu0 %v1481
      %1530 = vmatpush.bf16.msra.mxu0 %v1480
      %1531 = vmatpush.bf16.msra.mxu0 %v1479
      %1532 = vmatpush.bf16.msra.mxu0 %v1478
      %1533 = vmatpush.bf16.msra.mxu0 %v1477
      %1534 = vmatpush.bf16.msra.mxu0 %v1476
      %1535 = vmatpush.bf16.msra.mxu0 %v1475
      %1536 = vmatmul.bf16.gmra.mxu0 %v1360
      %v1537 = vpop.f32.mrf.mxu0
      %v1538 = vadd.f32 %v1509, %v1537
      %v1539 = vpop.f32.mrf.mxu0
      %v1540 = vadd.f32 %v1511, %v1539
      %1541 = vmatmul.bf16.gmra.mxu0 %v1362
      %v1542 = vpop.f32.mrf.mxu0
      %v1543 = vadd.f32 %v1514, %v1542
      %v1544 = vpop.f32.mrf.mxu0
      %v1545 = vadd.f32 %v1516, %v1544
      %1546 = vmatmul.bf16.gmra.mxu0 %v1364
      %v1547 = vpop.f32.mrf.mxu0
      %v1548 = vadd.f32 %v1519, %v1547
      %v1549 = vpop.f32.mrf.mxu0
      %v1550 = vadd.f32 %v1521, %v1549
      %1551 = vmatmul.bf16.gmra.mxu0 %v1366
      %v1552 = vpop.f32.mrf.mxu0
      %v1553 = vadd.f32 %v1524, %v1552
      %v1554 = vpop.f32.mrf.mxu0
      %v1555 = vadd.f32 %v1526, %v1554
      %1556 = vdwg.mxu0
      %v1557 = vmax.f32 %v1538, 0.0
      %v1558 = vmax.f32 %v1540, 0.0
      %v1559 = vmax.f32 %v1543, 0.0
      %v1560 = vmax.f32 %v1545, 0.0
      %v1561 = vmax.f32 %v1548, 0.0
      %v1562 = vmax.f32 %v1550, 0.0
      %v1563 = vmax.f32 %v1553, 0.0
      %v1564 = vmax.f32 %v1555, 0.0
      %v1565 = vpack.c.bf16 %v1558, %v1557
      %v1566 = vpack.c.bf16 %v1560, %v1559
      %v1567 = vpack.c.bf16 %v1562, %v1561
      %v1568 = vpack.c.bf16 %v1564, %v1563
      %v1569 = vld [vmem:[%s7] sm:$0xf]
      %v1570 = vld [vmem:[%s7 + $0x4] sm:$0xf]
      %v1571 = vld [vmem:[%s7 + $0x8] sm:$0xf]
      %v1572 = vld [vmem:[%s7 + $0xc] sm:$0xf]
      %v1573 = vld [vmem:[%s7 + $0x10] sm:$0xf]
      %v1574 = vld [vmem:[%s7 + $0x14] sm:$0xf]
      %v1575 = vld [vmem:[%s7 + $0x18] sm:$0xf]
      %v1576 = vld [vmem:[%s7 + $0x1c] sm:$0xf]
      %v1577 = vld [vmem:[%s7 + $0x20] sm:$0xf]
      %v1578 = vld [vmem:[%s7 + $0x24] sm:$0xf]
      %v1579 = vld [vmem:[%s7 + $0x28] sm:$0xf]
      %v1580 = vld [vmem:[%s7 + $0x2c] sm:$0xf]
      %v1581 = vld [vmem:[%s7 + $0x30] sm:$0xf]
      %v1582 = vld [vmem:[%s7 + $0x34] sm:$0xf]
      %v1583 = vld [vmem:[%s7 + $0x38] sm:$0xf]
      %v1584 = vld [vmem:[%s7 + $0x3c] sm:$0xf]
      %v1585 = vld [vmem:[%s8] sm:$0x1]
      %v1587 = vperm.slane %v1585, 0
      %v1605 = vunpack.c.l.b16 %v1569
      %v1606 = vunpack.c.l.b16 %v1570
      %v1607 = vunpack.c.l.b16 %v1571
      %v1608 = vunpack.c.l.b16 %v1572
      %v1609 = vunpack.c.l.b16 %v1573
      %v1610 = vunpack.c.l.b16 %v1574
      %v1611 = vunpack.c.l.b16 %v1575
      %v1612 = vunpack.c.l.b16 %v1576
      %v1613 = vunpack.c.l.b16 %v1577
      %v1614 = vunpack.c.l.b16 %v1578
      %v1615 = vunpack.c.l.b16 %v1579
      %v1616 = vunpack.c.l.b16 %v1580
      %v1617 = vunpack.c.l.b16 %v1581
      %v1618 = vunpack.c.l.b16 %v1582
      %v1619 = vunpack.c.l.b16 %v1583
      %v1620 = vunpack.c.l.b16 %v1584
      %v1621 = vpack.c.b16 %v1606, %v1605
      %v1622 = vpack.c.b16 %v1608, %v1607
      %v1623 = vpack.c.b16 %v1610, %v1609
      %v1624 = vpack.c.b16 %v1612, %v1611
      %v1625 = vpack.c.b16 %v1614, %v1613
      %v1626 = vpack.c.b16 %v1616, %v1615
      %v1627 = vpack.c.b16 %v1618, %v1617
      %v1628 = vpack.c.b16 %v1620, %v1619
      %1637 = vmatpush.bf16.msra.mxu0 %v1628
      %1638 = vmatpush.bf16.msra.mxu0 %v1627
      %1639 = vmatpush.bf16.msra.mxu0 %v1626
      %1640 = vmatpush.bf16.msra.mxu0 %v1625
      %1641 = vmatpush.bf16.msra.mxu0 %v1624
      %1642 = vmatpush.bf16.msra.mxu0 %v1623
      %1643 = vmatpush.bf16.msra.mxu0 %v1622
      %1644 = vmatpush.bf16.msra.mxu0 %v1621
      %1645 = vmatmul.bf16.gmra.mxu0 %v1565
      %v1646 = vpop.f32.mrf.mxu0
      %v1647 = vadd.f32 %v1587, %v1646
      %v1648 = vpop.f32.mrf.mxu0
      %v1649 = vadd.f32 %v1587, %v1648
      %1650 = vmatmul.bf16.gmra.mxu0 %v1566
      %v1651 = vpop.f32.mrf.mxu0
      %v1652 = vadd.f32 %v1587, %v1651
      %v1653 = vpop.f32.mrf.mxu0
      %v1654 = vadd.f32 %v1587, %v1653
      %1655 = vmatmul.bf16.gmra.mxu0 %v1567
      %v1656 = vpop.f32.mrf.mxu0
      %v1657 = vadd.f32 %v1587, %v1656
      %v1658 = vpop.f32.mrf.mxu0
      %v1659 = vadd.f32 %v1587, %v1658
      %1660 = vmatmul.bf16.gmra.mxu0 %v1568
      %v1661 = vpop.f32.mrf.mxu0
      %v1662 = vadd.f32 %v1587, %v1661
      %v1663 = vpop.f32.mrf.mxu0
      %v1664 = vadd.f32 %v1587, %v1663
      %1665 = vdwg.mxu0
      %v1666 = vpack.c.bf16 %v1647, %v1647
      %v1667 = vpack.c.bf16 %v1649, %v1649
      %v1668 = vpack.c.bf16 %v1652, %v1652
      %v1669 = vpack.c.bf16 %v1654, %v1654
      %v1670 = vpack.c.bf16 %v1657, %v1657
      %v1671 = vpack.c.bf16 %v1659, %v1659
      %v1672 = vpack.c.bf16 %v1662, %v1662
      %v1673 = vpack.c.bf16 %v1664, %v1664
      %1674 = vst [vmem:[%s407] sm:$0xf] %v1666
      %1675 = vst [vmem:[%s407 + $0x4] sm:$0xf] %v1667
      %1676 = vst [vmem:[%s407 + $0x8] sm:$0xf] %v1668
      %1677 = vst [vmem:[%s407 + $0xc] sm:$0xf] %v1669
      %1678 = vst [vmem:[%s407 + $0x10] sm:$0xf] %v1670
      %1679 = vst [vmem:[%s407 + $0x14] sm:$0xf] %v1671
      %1680 = vst [vmem:[%s407 + $0x18] sm:$0xf] %v1672
      %1681 = vst [vmem:[%s407 + $0x1c] sm:$0xf] %v1673
      %s1682 = smul.u32 8, %s25
      %p1683 = scmp.lt.s32.totalorder %s24, 1
      %s1684 = scalar_select %p1683, %s24, 1
      %p1685 = scmp.lt.s32.totalorder %s1682, 7
      %s1686 = scalar_select %p1685, %s1682, 7
      %s1687 = smul.addr %s1684, 8
      %s1688 = sadd.s32 %s1686, %s1687
      %s1689 = smul.addr %s1688, 4
      %s1690 = scalar_lea.vmem %s9, %s1689
      // Predicated region
      $region57: #{pointnet_segmentation_forward.7} parent=55 // pred_check
        %p1691 = pneg %p258
      $region58: #{pointnet_segmentation_forward.7} parent=55 // pred_check_branch
        %1693 = sbr.rel (%p1691) target = $region60
      $region59: #{pointnet_segmentation_forward.7} parent=55 // pred_region
        %s1694 = smul.u32 8, %s25
      $region60: #{pointnet_segmentation_forward.7} parent=55 // pred_fallthru
        _
    $region56: #{pointnet_segmentation_forward.7} parent=5 // pred_fallthru
      _
    %p1695 = scmp.le.s32.totalorder 2, %s15
    // Predicated region
    $region61: #{pointnet_segmentation_forward.7} parent=5 // pred_check
      %p1696 = pneg %p1695
    $region62: #{pointnet_segmentation_forward.7} parent=5 // pred_check_branch
      %1698 = sbr.rel (%p1696) target = $region64
    $region63: #{pointnet_segmentation_forward.7} parent=5 // pred_region
      %s1699 = ssub.s32 %s15, 2
      // Predicated region
      $region65: #{pointnet_segmentation_forward.7} parent=63 // pred_check
        %p1700 = pneg %p264
      $region66: #{pointnet_segmentation_forward.7} parent=63 // pred_check_branch
        %1702 = sbr.rel (%p1700) target = $region68
      $region67: #{pointnet_segmentation_forward.7} parent=63 // pred_region
        %s1703 = smul.u32 8, %s27
        %p1704 = scmp.lt.s32.totalorder %s26, 1
        %s1705 = scalar_select %p1704, %s26, 1
        %p1706 = scmp.lt.s32.totalorder %s1703, 7
        %s1707 = scalar_select %p1706, %s1703, 7
        %s1708 = smul.addr %s1705, 8
        %s1709 = sadd.s32 %s1707, %s1708
        %s1710 = smul.addr %s1709, 4
        %s1711 = scalar_lea.vmem %s9, %s1710
      $region68: #{pointnet_segmentation_forward.7} parent=63 // pred_fallthru
        _
    $region64: #{pointnet_segmentation_forward.7} parent=5 // pred_fallthru
      _
  $region6: #{pointnet_segmentation_forward.7} parent=0 // loop_footer
    %s19 = sadd.s32 1, %s15
  $region7: #{pointnet_segmentation_forward.7} parent=0 // loop_footer_branch
    %14 = sbr.rel target = $region3
  $region8: #{pointnet_segmentation_forward.7} parent=0 // loop_exit
    _

</llo_original>
